<compile_context>
chip_gen: v6e
topology: v6e:2x2x1
jax: 0.10.0
libtpu: 0.0.40
codegen_flags: <defaults>
</compile_context>

<pallas_src>
import functools

import jax
import jax.numpy as jnp
from jax import lax
from jax.experimental import pallas as pl
from jax.experimental.pallas import tpu as pltpu


# =============================================================================
# Kernel 1: fused (multi-phase) conv matmul + bias + dual VBN + LeakyReLU(0.2)
# =============================================================================
def _conv_vbn_lrelu_kernel(w_ref, x_ref, pv_ref, out_ref, *,
                           n_phases, m_ref, m_main, old_coeff, eps, slope):
    """One fused layer for BOTH the reference batch and the main batch.

    w_ref  : (P, Cout, K) bf16  per-phase packed conv weights
    x_ref  : (P, K, M)    bf16  per-phase transposed im2col, lane-dense M
    pv_ref : (Cout, 8)    f32   packed [bias, gamma, beta, 0, ...]
    out_ref: (P, Cout, M) bf16  normalized + LeakyReLU activations

    Columns [0, m_ref) of every phase belong to the reference batch, the rest
    to the main batch.  Ref columns are normalized with the ref-batch stats;
    main columns with stats blended new=1/(B+1), old=B/(B+1) against the ref
    stats (Improved-GAN VBN convention).
    """
    bias = pv_ref[:, 0:1]
    gamma = pv_ref[:, 1:2]
    beta = pv_ref[:, 2:3]

    M = x_ref.shape[-1]
    col = lax.broadcasted_iota(jnp.int32, (1, M), 1)
    is_ref = col < m_ref                                   # (1, M) bool

    ys = []
    tot_s = 0.0
    tot_sq = 0.0
    ref_s = 0.0
    ref_sq = 0.0
    for p in range(n_phases):
        # bf16 x bf16 -> f32 accumulation on the MXU.
        y = jnp.dot(w_ref[p], x_ref[p], preferred_element_type=jnp.float32)
        y = y + bias
        ys.append(y)
        yr = jnp.where(is_ref, y, 0.0)
        tot_s = tot_s + jnp.sum(y, axis=1, keepdims=True)
        tot_sq = tot_sq + jnp.sum(y * y, axis=1, keepdims=True)
        ref_s = ref_s + jnp.sum(yr, axis=1, keepdims=True)
        ref_sq = ref_sq + jnp.sum(yr * yr, axis=1, keepdims=True)

    inv_ref = 1.0 / (n_phases * m_ref)
    inv_main = 1.0 / (n_phases * m_main)
    ref_mean = ref_s * inv_ref
    ref_msq = ref_sq * inv_ref
    main_mean = (tot_s - ref_s) * inv_main
    main_msq = (tot_sq - ref_sq) * inv_main

    new_coeff = 1.0 - old_coeff
    bl_mean = new_coeff * main_mean + old_coeff * ref_mean
    bl_msq = new_coeff * main_msq + old_coeff * ref_msq

    # E[y^2]-E[y]^2 in f32 (matches the reference VBN formula; see TODO above).
    ref_scale = lax.rsqrt(ref_msq - ref_mean * ref_mean + eps) * gamma
    main_scale = lax.rsqrt(bl_msq - bl_mean * bl_mean + eps) * gamma
    ref_shift = beta - ref_mean * ref_scale
    main_shift = beta - bl_mean * main_scale

    scale = jnp.where(is_ref, ref_scale, main_scale)       # (Cout, M)
    shift = jnp.where(is_ref, ref_shift, main_shift)

    for p in range(n_phases):
        o = ys[p] * scale + shift
        o = jnp.where(o >= 0.0, o, slope * o)              # LeakyReLU(0.2)
        out_ref[p] = o.astype(out_ref.dtype)


def conv_vbn_lrelu(x_phases, w_phases, pvec, *, m_ref, old_coeff):
    P, cout, K = w_phases.shape
    Px, Kx, M = x_phases.shape
    assert P == Px and K == Kx
    m_main = M - m_ref
    kernel = functools.partial(
        _conv_vbn_lrelu_kernel, n_phases=P, m_ref=int(m_ref),
        m_main=int(m_main), old_coeff=float(old_coeff), eps=1e-5, slope=0.2)
    # Single full-extent block: stats need all of M; everything fits easily in
    # VMEM at these sizes (largest resident X is ~0.5 MiB).
    # TODO(synk): M-tiled two-pass fallback + 2-TC split for huge configs (v7x).
    return pl.pallas_call(
        kernel,
        out_shape=jax.ShapeDtypeStruct((P, cout, M), jnp.bfloat16),
        grid_spec=pltpu.PrefetchScalarGridSpec(
            num_scalar_prefetch=0,
            grid=(1,),
            in_specs=[
                pl.BlockSpec((P, cout, K), lambda i: (0, 0, 0)),   # weights
                pl.BlockSpec((P, K, M), lambda i: (0, 0, 0)),      # im2col (lane-dense M)
                pl.BlockSpec((cout, 8), lambda i: (0, 0)),         # packed bias/gamma/beta
            ],
            out_specs=pl.BlockSpec((P, cout, M), lambda i: (0, 0, 0)),
        ),
        compiler_params=pltpu.CompilerParams(
            dimension_semantics=("arbitrary",),
            vmem_limit_bytes=32 * 1024 * 1024),
    )(w_phases, x_phases, pvec)


# =============================================================================
# Kernel 2: head — (multi-phase) conv matmul + bias + tanh, tiled over (P, M)
# =============================================================================
def _conv_bias_tanh_kernel(w_ref, x_ref, b_ref, o_ref):
    y = jnp.dot(w_ref[0], x_ref[0], preferred_element_type=jnp.float32)
    o_ref[0] = jnp.tanh(y + b_ref[...]).astype(o_ref.dtype)


def _pick_tm(m, cap=4096):
    """Largest lane tile <= cap that divides M and is a multiple of 128."""
    if m <= cap:
        return m
    for tm in range(cap - cap % 128, 127, -128):
        if m % tm == 0:
            return tm
    return m                                                # full extent is legal


def conv_bias_tanh(x_phases, w_phases, bias_col):
    P, cout, K = w_phases.shape
    _, _, M = x_phases.shape
    tm = _pick_tm(M)
    # Grid = (phase, M tile); both "parallel" -> >= 4 steps, so both v7x TCs
    # get work even when M fits in a single tile.
    return pl.pallas_call(
        _conv_bias_tanh_kernel,
        out_shape=jax.ShapeDtypeStruct((P, cout, M), jnp.float32),
        grid_spec=pltpu.PrefetchScalarGridSpec(
            num_scalar_prefetch=0,
            grid=(P, M // tm),
            in_specs=[
                pl.BlockSpec((1, cout, K), lambda p, i: (p, 0, 0)),
                pl.BlockSpec((1, K, tm), lambda p, i: (p, 0, i)),
                pl.BlockSpec((cout, 1), lambda p, i: (0, 0)),
            ],
            out_specs=pl.BlockSpec((1, cout, tm), lambda p, i: (p, 0, i)),
        ),
        compiler_params=pltpu.CompilerParams(
            dimension_semantics=("parallel", "parallel"),
            vmem_limit_bytes=32 * 1024 * 1024),
    )(w_phases, x_phases, bias_col)


# =============================================================================
# Wrapper glue: padding / phase im2col (pure slicing, no FLOPs, stays bf16)
# =============================================================================
def _pad_hw(x, p):
    if p == 0:
        return x
    return jnp.pad(x, ((0, 0), (0, 0), (p, p), (p, p)))


def _im2col_T(xp, k):
    """(C, N, Hp, Wp) (already padded) -> (k*k*C, N*Ho*Wo), K order (kh, kw, ci)."""
    C, N, Hp, Wp = xp.shape
    Ho, Wo = Hp - k + 1, Wp - k + 1
    slabs = [xp[:, :, i:i + Ho, j:j + Wo] for i in range(k) for j in range(k)]
    return jnp.stack(slabs, 0).reshape(k * k * C, N * Ho * Wo)


def _single_phase_input(x, k, pad):
    return _im2col_T(_pad_hw(x, pad), k)[None]              # (1, K, M)


def _phase_inputs_convT2(x):
    """Sub-pixel phase im2col for ConvTranspose2d(k=4, s=2, p=1).

    Each output phase (py, px) is a dense 2x2, stride-1 conv over the input
    padded by 1; phase (py, px) reads 2x2 windows starting at (ry+py, rx+px).
    """
    C, N, H, W = x.shape
    xp = _pad_hw(x, 1)
    cols = []
    for py in range(2):
        for px in range(2):
            cols.append(_im2col_T(xp[:, :, py:py + H + 1, px:px + W + 1], 2))
    return jnp.stack(cols, 0)                               # (4, 4*C, N*H*W)


def _interleave_phases(y, cout, N, H, W):
    """(4, Cout, N*H*W) phase outputs -> (Cout, N, 2H, 2W) pixel-shuffled."""
    y = y.reshape(2, 2, cout, N, H, W)                      # (py, px, c, n, ry, rx)
    y = jnp.transpose(y, (2, 3, 4, 0, 5, 1))                # (c, n, ry, py, rx, px)
    return y.reshape(cout, N, 2 * H, 2 * W)


# =============================================================================
# Model definition / deterministic parameter init + kernel-layout weight packing
# =============================================================================
def layer_configs(nc, ngf, nz):
    # (kind, cin, cout, kernel, stride, pad, has_vbn)
    return [
        ("convT1", nz,      ngf * 8, 4, 1, 0, True),
        ("conv",   ngf * 8, ngf * 8, 3, 1, 1, True),
        ("convT2", ngf * 8, ngf * 4, 4, 2, 1, True),
        ("convT2", ngf * 4, ngf * 2, 4, 2, 1, True),
        ("convT2", ngf * 2, ngf,     4, 2, 1, True),
        ("convT2", ngf,     nc,      4, 2, 1, False),        # -> Tanh (head)
    ]


def _pack_conv_weight(w, kind, k):
    """Pack PyTorch-layout weights into (P, Cout, K) for the kernel matmuls."""
    if kind == "conv":                                       # (Cout, Cin, KH, KW)
        cout, cin = w.shape[0], w.shape[1]
        return jnp.transpose(w, (0, 2, 3, 1)).reshape(1, cout, k * k * cin)
    if kind == "convT1":                                     # (Cin, Cout, KH, KW)
        cin, cout = w.shape[0], w.shape[1]
        wf = jnp.transpose(w[:, :, ::-1, ::-1], (1, 2, 3, 0))
        return wf.reshape(1, cout, k * k * cin)
    # convT2: phase decomposition of ConvTranspose2d(4, 2, 1).
    # Phase (py, px), tap (ty, tx) uses W[ci, co, ky=3-py-2ty, kx=3-px-2tx].
    cin, cout = w.shape[0], w.shape[1]
    phases = []
    for py in range(2):
        for px in range(2):
            sub = w[:, :, (3 - py)::-2, (3 - px)::-2]        # (cin, cout, 2, 2)
            phases.append(jnp.transpose(sub, (1, 2, 3, 0)).reshape(cout, 4 * cin))
    return jnp.stack(phases, 0)                              # (4, cout, 4*cin)


def init_params(key, nc, ngf, nz):
    params = []
    for (kind, cin, cout, k, s, pad, has_vbn) in layer_configs(nc, ngf, nz):
        key, kw_, kb_, kg_, kbe_ = jax.random.split(key, 5)
        if kind == "conv":
            w_raw = 0.05 * jax.random.normal(kw_, (cout, cin, k, k), jnp.float32)
        else:
            w_raw = 0.05 * jax.random.normal(kw_, (cin, cout, k, k), jnp.float32)
        b_raw = 0.01 * jax.random.normal(kb_, (cout,), jnp.float32)
        p = {
            "w_raw": w_raw,
            "b_raw": b_raw,
            "w": _pack_conv_weight(w_raw, kind, k).astype(jnp.bfloat16),
        }
        if has_vbn:
            gamma = 1.0 + 0.02 * jax.random.normal(kg_, (cout,), jnp.float32)
            beta = 0.02 * jax.random.normal(kbe_, (cout,), jnp.float32)
            p["gamma_raw"] = gamma
            p["beta_raw"] = beta
            pv = jnp.zeros((cout, 8), jnp.float32)
            pv = pv.at[:, 0].set(b_raw).at[:, 1].set(gamma).at[:, 2].set(beta)
            p["pvec"] = pv                                   # packed epilogue scalars
        else:
            p["bias_col"] = b_raw.reshape(cout, 1)
        params.append(p)
    return params


# =============================================================================
# Forward pass (ref + main batches fused along the lane axis, ref first)
# =============================================================================
def generator_forward(x_nchw, ref_nchw, params, *, nc, ngf, nz):
    cfgs = layer_configs(nc, ngf, nz)
    n_ref = ref_nchw.shape[0]
    n_main = x_nchw.shape[0]
    old_coeff = n_main / (n_main + 1.0)                      # new = 1/(B+1)

    a = jnp.concatenate([ref_nchw, x_nchw], axis=0)          # ref first
    a = jnp.transpose(a, (1, 0, 2, 3)).astype(jnp.bfloat16)  # (C, Ntot, H, W)

    for p, cfg in zip(params, cfgs):
        kind, cin, cout, k, s, pad, has_vbn = cfg
        if not has_vbn:
            a = a[:, n_ref:]                                 # ref pass ends at last VBN
        C, N, H, W = a.shape
        if kind == "convT2":
            xph = _phase_inputs_convT2(a)
            Ho, Wo = H, W                                    # per-phase output size
        else:
            epad = pad if kind == "conv" else (k - 1 - pad)  # ConvT(s=1) == flipped conv
            xph = _single_phase_input(a, k, epad)
            Ho, Wo = H + 2 * epad - k + 1, W + 2 * epad - k + 1
        if has_vbn:
            y = conv_vbn_lrelu(xph, p["w"], p["pvec"],
                               m_ref=n_ref * Ho * Wo, old_coeff=old_coeff)
            if kind == "convT2":
                a = _interleave_phases(y, cout, N, Ho, Wo)
            else:
                a = y[0].reshape(cout, N, Ho, Wo)
        else:
            y = conv_bias_tanh(xph, p["w"], p["bias_col"])
            a = _interleave_phases(y, cout, N, Ho, Wo)
    return jnp.transpose(a, (1, 0, 2, 3)).astype(jnp.float32)  # (N, nc, 64, 64)


# =============================================================================
# Pure-JAX reference (same math, same bf16 cast points) for self-checking
# =============================================================================
def reference_forward(x, ref, params, cfgs, eps=1e-5):
    bf = jnp.bfloat16
    f32 = jnp.float32

    def convT(a, w, b, s, p, k):
        rhs = jnp.transpose(w[:, :, ::-1, ::-1], (1, 0, 2, 3))       # (O, I, kh, kw)
        y = lax.conv_general_dilated(
            a.astype(bf), rhs.astype(bf), window_strides=(1, 1),
            padding=[(k - 1 - p, k - 1 - p)] * 2, lhs_dilation=(s, s),
            dimension_numbers=("NCHW", "OIHW", "NCHW"),
            preferred_element_type=f32)
        return y + b.reshape(1, -1, 1, 1)

    def conv(a, w, b, s, p):
        y = lax.conv_general_dilated(
            a.astype(bf), w.astype(bf), window_strides=(s, s),
            padding=[(p, p)] * 2,
            dimension_numbers=("NCHW", "OIHW", "NCHW"),
            preferred_element_type=f32)
        return y + b.reshape(1, -1, 1, 1)

    def stats(y):
        return (jnp.mean(y, axis=(0, 2, 3), keepdims=True),
                jnp.mean(y * y, axis=(0, 2, 3), keepdims=True))

    def vbn(y, gamma, beta, mean, meansq):
        scale = lax.rsqrt(meansq - mean * mean + eps) * gamma.reshape(1, -1, 1, 1)
        return (y - mean) * scale + beta.reshape(1, -1, 1, 1)

    lrelu = lambda v: jnp.where(v >= 0.0, v, 0.2 * v)

    B = x.shape[0]
    new_c = 1.0 / (B + 1.0)
    old_c = 1.0 - new_c

    def layer_conv(a, cfg, pr):
        kind, cin, cout, k, s, pad, has_vbn = cfg
        if kind == "conv":
            return conv(a, pr["w_raw"], pr["b_raw"], s, pad)
        return convT(a, pr["w_raw"], pr["b_raw"], s, pad, k)

    # reference pass (its own stats)
    rx = ref.astype(bf).astype(f32)
    ref_stats = []
    for cfg, pr in zip(cfgs[:-1], params[:-1]):
        ry = layer_conv(rx, cfg, pr)
        rm, rs = stats(ry)
        ref_stats.append((rm, rs))
        rx = lrelu(vbn(ry, pr["gamma_raw"], pr["beta_raw"], rm, rs))
        rx = rx.astype(bf).astype(f32)

    # main pass (blended stats)
    mx = x.astype(bf).astype(f32)
    for i, (cfg, pr) in enumerate(zip(cfgs, params)):
        y = layer_conv(mx, cfg, pr)
        if cfg[-1]:
            bm, bs = stats(y)
            rm, rs = ref_stats[i]
            m = new_c * bm + old_c * rm
            sq = new_c * bs + old_c * rs
            mx = lrelu(vbn(y, pr["gamma_raw"], pr["beta_raw"], m, sq))
            mx = mx.astype(bf).astype(f32)
        else:
            mx = jnp.tanh(y)
    return mx


# =============================================================================
if __name__ == "__main__":
    nc, ngf, nz = 3, 8, 100
    N, N_ref = 2, 2

    key = jax.random.PRNGKey(0)
    kp, kx, kr = jax.random.split(key, 3)
    params = init_params(kp, nc, ngf, nz)
    x = jax.random.normal(kx, (N, nz, 1, 1), jnp.float32)            # latent z
    ref_batch = jax.random.normal(kr, (N_ref, nz, 1, 1), jnp.float32)

    fwd = jax.jit(functools.partial(generator_forward, nc=nc, ngf=ngf, nz=nz))
    out = jax.block_until_ready(fwd(x, ref_batch, params))

    assert out.shape == (N, nc, 64, 64), out.shape
    assert bool(jnp.all(jnp.isfinite(out)))
    assert bool(jnp.all((out >= -1.0) & (out <= 1.0)))               # tanh range

    # Self-check against a pure-JAX/XLA implementation of the same semantics
    # (identical bf16 cast points, f32 accumulation) — catches any bug in the
    # phase decomposition, im2col/weight packing, masking or VBN blending.
    ref_out = jax.jit(functools.partial(
        reference_forward, cfgs=layer_configs(nc, ngf, nz)))(x, ref_batch, params)
    err = float(jnp.max(jnp.abs(out - ref_out)))
    assert err < 2e-2, f"max |kernel - reference| = {err}"

    print("KERNEL_OK")
</pallas_src>

<mosaic_0001>
module attributes {stable_mosaic.version = 11 : i64} {
  func.func @_conv_vbn_lrelu_kernel(%arg0: i32, %arg1: memref<1x64x1600xbf16, #tpu.memory_space<vmem>>, %arg2: memref<1x1600x64xbf16, #tpu.memory_space<vmem>>, %arg3: memref<64x8xf32, #tpu.memory_space<vmem>>, %arg4: memref<1x64x64xbf16, #tpu.memory_space<vmem>>) attributes {dimension_semantics = [#tpu.dimension_semantics<arbitrary>], iteration_bounds = array<i64: 1>, scalar_prefetch = 0 : i64, scratch_operands = 0 : i64, tpu.core_type = #tpu.core_type<tc>, window_params = [{pipeline_mode = #tpu.pipeline_mode<synchronous>, transform_indices = @transform_0, window_bounds = array<i64: 1, 64, 1600>}, {pipeline_mode = #tpu.pipeline_mode<synchronous>, transform_indices = @transform_1, window_bounds = array<i64: 1, 1600, 64>}, {pipeline_mode = #tpu.pipeline_mode<synchronous>, transform_indices = @transform_2, window_bounds = array<i64: 64, 8>}, {pipeline_mode = #tpu.pipeline_mode<synchronous>, transform_indices = @transform_3, window_bounds = array<i64: 1, 64, 64>}]} {
    %c0 = arith.constant 0 : index
    %c0_0 = arith.constant 0 : index
    %0 = vector.load %arg3[%c0, %c0_0] : memref<64x8xf32, #tpu.memory_space<vmem>>, vector<64x1xf32>
    %c0_1 = arith.constant 0 : index
    %c1 = arith.constant 1 : index
    %1 = vector.load %arg3[%c0_1, %c1] : memref<64x8xf32, #tpu.memory_space<vmem>>, vector<64x1xf32>
    %c0_2 = arith.constant 0 : index
    %c2 = arith.constant 2 : index
    %2 = vector.load %arg3[%c0_2, %c2] : memref<64x8xf32, #tpu.memory_space<vmem>>, vector<64x1xf32>
    %3 = tpu.iota {dimensions = array<i32: 1>} : vector<1x64xi32>
    %c32_i32 = arith.constant 32 : i32
    %4 = vector.broadcast %c32_i32 : i32 to vector<1x64xi32>
    %5 = arith.cmpi slt, %3, %4 : vector<1x64xi32>
    %c0_3 = arith.constant 0 : index
    %c0_4 = arith.constant 0 : index
    %c0_5 = arith.constant 0 : index
    %6 = vector.load %arg1[%c0_3, %c0_4, %c0_5] : memref<1x64x1600xbf16, #tpu.memory_space<vmem>>, vector<1x64x1600xbf16>
    %7 = vector.shape_cast %6 : vector<1x64x1600xbf16> to vector<64x1600xbf16>
    %c0_6 = arith.constant 0 : index
    %c0_7 = arith.constant 0 : index
    %c0_8 = arith.constant 0 : index
    %8 = vector.load %arg2[%c0_6, %c0_7, %c0_8] : memref<1x1600x64xbf16, #tpu.memory_space<vmem>>, vector<1x1600x64xbf16>
    %9 = vector.shape_cast %8 : vector<1x1600x64xbf16> to vector<1600x64xbf16>
    %cst = arith.constant dense<0.000000e+00> : vector<64x64xf32>
    %10 = tpu.matmul %7, %9, %cst {dimension_numbers = #tpu.dot_dimension_numbers<[1], [0], [0], [1], [0, 0, 1, 1], [], []>} : vector<64x1600xbf16>, vector<1600x64xbf16>, vector<64x64xf32> -> vector<64x64xf32>
    %11 = vector.broadcast %0 : vector<64x1xf32> to vector<64x64xf32>
    %12 = arith.addf %10, %11 : vector<64x64xf32>
    %cst_9 = arith.constant 0.000000e+00 : f32
    %13 = vector.shape_cast %5 : vector<1x64xi1> to vector<1x64xi1>
    %14 = vector.broadcast %13 : vector<1x64xi1> to vector<64x64xi1>
    %15 = vector.broadcast %cst_9 : f32 to vector<64x64xf32>
    %16 = arith.select %14, %12, %15 : vector<64x64xi1>, vector<64x64xf32>
    %cst_10 = arith.constant dense<0.000000e+00> : vector<64xf32>
    %17 = vector.multi_reduction <add>, %12, %cst_10 [1] : vector<64x64xf32> to vector<64xf32>
    %18 = vector.shape_cast %17 : vector<64xf32> to vector<64x1xf32>
    %cst_11 = arith.constant 0.000000e+00 : f32
    %19 = vector.broadcast %cst_11 : f32 to vector<64x1xf32>
    %20 = arith.addf %19, %18 : vector<64x1xf32>
    %21 = arith.mulf %12, %12 : vector<64x64xf32>
    %cst_12 = arith.constant dense<0.000000e+00> : vector<64xf32>
    %22 = vector.multi_reduction <add>, %21, %cst_12 [1] : vector<64x64xf32> to vector<64xf32>
    %23 = vector.shape_cast %22 : vector<64xf32> to vector<64x1xf32>
    %cst_13 = arith.constant 0.000000e+00 : f32
    %24 = vector.broadcast %cst_13 : f32 to vector<64x1xf32>
    %25 = arith.addf %24, %23 : vector<64x1xf32>
    %cst_14 = arith.constant dense<0.000000e+00> : vector<64xf32>
    %26 = vector.multi_reduction <add>, %16, %cst_14 [1] : vector<64x64xf32> to vector<64xf32>
    %27 = vector.shape_cast %26 : vector<64xf32> to vector<64x1xf32>
    %cst_15 = arith.constant 0.000000e+00 : f32
    %28 = vector.broadcast %cst_15 : f32 to vector<64x1xf32>
    %29 = arith.addf %28, %27 : vector<64x1xf32>
    %30 = arith.mulf %16, %16 : vector<64x64xf32>
    %cst_16 = arith.constant dense<0.000000e+00> : vector<64xf32>
    %31 = vector.multi_reduction <add>, %30, %cst_16 [1] : vector<64x64xf32> to vector<64xf32>
    %32 = vector.shape_cast %31 : vector<64xf32> to vector<64x1xf32>
    %cst_17 = arith.constant 0.000000e+00 : f32
    %33 = vector.broadcast %cst_17 : f32 to vector<64x1xf32>
    %34 = arith.addf %33, %32 : vector<64x1xf32>
    %cst_18 = arith.constant 3.125000e-02 : f32
    %35 = vector.broadcast %cst_18 : f32 to vector<64x1xf32>
    %36 = arith.mulf %29, %35 : vector<64x1xf32>
    %cst_19 = arith.constant 3.125000e-02 : f32
    %37 = vector.broadcast %cst_19 : f32 to vector<64x1xf32>
    %38 = arith.mulf %34, %37 : vector<64x1xf32>
    %39 = arith.subf %20, %29 : vector<64x1xf32>
    %cst_20 = arith.constant 3.125000e-02 : f32
    %40 = vector.broadcast %cst_20 : f32 to vector<64x1xf32>
    %41 = arith.mulf %39, %40 : vector<64x1xf32>
    %42 = arith.subf %25, %34 : vector<64x1xf32>
    %cst_21 = arith.constant 3.125000e-02 : f32
    %43 = vector.broadcast %cst_21 : f32 to vector<64x1xf32>
    %44 = arith.mulf %42, %43 : vector<64x1xf32>
    %cst_22 = arith.constant 0.333333343 : f32
    %45 = vector.broadcast %cst_22 : f32 to vector<64x1xf32>
    %46 = arith.mulf %45, %41 : vector<64x1xf32>
    %cst_23 = arith.constant 0.666666686 : f32
    %47 = vector.broadcast %cst_23 : f32 to vector<64x1xf32>
    %48 = arith.mulf %47, %36 : vector<64x1xf32>
    %49 = arith.addf %46, %48 : vector<64x1xf32>
    %cst_24 = arith.constant 0.333333343 : f32
    %50 = vector.broadcast %cst_24 : f32 to vector<64x1xf32>
    %51 = arith.mulf %50, %44 : vector<64x1xf32>
    %cst_25 = arith.constant 0.666666686 : f32
    %52 = vector.broadcast %cst_25 : f32 to vector<64x1xf32>
    %53 = arith.mulf %52, %38 : vector<64x1xf32>
    %54 = arith.addf %51, %53 : vector<64x1xf32>
    %55 = arith.mulf %36, %36 : vector<64x1xf32>
    %56 = arith.subf %38, %55 : vector<64x1xf32>
    %cst_26 = arith.constant 9.99999974E-6 : f32
    %57 = vector.broadcast %cst_26 : f32 to vector<64x1xf32>
    %58 = arith.addf %56, %57 : vector<64x1xf32>
    %59 = math.rsqrt %58 : vector<64x1xf32>
    %60 = arith.mulf %59, %1 : vector<64x1xf32>
    %61 = arith.mulf %49, %49 : vector<64x1xf32>
    %62 = arith.subf %54, %61 : vector<64x1xf32>
    %cst_27 = arith.constant 9.99999974E-6 : f32
    %63 = vector.broadcast %cst_27 : f32 to vector<64x1xf32>
    %64 = arith.addf %62, %63 : vector<64x1xf32>
    %65 = math.rsqrt %64 : vector<64x1xf32>
    %66 = arith.mulf %65, %1 : vector<64x1xf32>
    %67 = arith.mulf %36, %60 : vector<64x1xf32>
    %68 = arith.subf %2, %67 : vector<64x1xf32>
    %69 = arith.mulf %49, %66 : vector<64x1xf32>
    %70 = arith.subf %2, %69 : vector<64x1xf32>
    %71 = vector.shape_cast %5 : vector<1x64xi1> to vector<1x64xi1>
    %72 = vector.broadcast %71 : vector<1x64xi1> to vector<64x64xi1>
    %73 = vector.shape_cast %60 : vector<64x1xf32> to vector<64x1xf32>
    %74 = vector.broadcast %73 : vector<64x1xf32> to vector<64x64xf32>
    %75 = vector.shape_cast %66 : vector<64x1xf32> to vector<64x1xf32>
    %76 = vector.broadcast %75 : vector<64x1xf32> to vector<64x64xf32>
    %77 = arith.select %72, %74, %76 : vector<64x64xi1>, vector<64x64xf32>
    %78 = vector.shape_cast %5 : vector<1x64xi1> to vector<1x64xi1>
    %79 = vector.broadcast %78 : vector<1x64xi1> to vector<64x64xi1>
    %80 = vector.shape_cast %68 : vector<64x1xf32> to vector<64x1xf32>
    %81 = vector.broadcast %80 : vector<64x1xf32> to vector<64x64xf32>
    %82 = vector.shape_cast %70 : vector<64x1xf32> to vector<64x1xf32>
    %83 = vector.broadcast %82 : vector<64x1xf32> to vector<64x64xf32>
    %84 = arith.select %79, %81, %83 : vector<64x64xi1>, vector<64x64xf32>
    %85 = arith.mulf %12, %77 : vector<64x64xf32>
    %86 = arith.addf %85, %84 : vector<64x64xf32>
    %cst_28 = arith.constant 0.000000e+00 : f32
    %87 = vector.broadcast %cst_28 : f32 to vector<64x64xf32>
    %88 = arith.cmpf oge, %86, %87 : vector<64x64xf32>
    %cst_29 = arith.constant 2.000000e-01 : f32
    %89 = vector.broadcast %cst_29 : f32 to vector<64x64xf32>
    %90 = arith.mulf %89, %86 : vector<64x64xf32>
    %91 = arith.select %88, %86, %90 : vector<64x64xi1>, vector<64x64xf32>
    %92 = arith.truncf %91 : vector<64x64xf32> to vector<64x64xbf16>
    %c0_30 = arith.constant 0 : index
    %c0_31 = arith.constant 0 : index
    %c0_32 = arith.constant 0 : index
    %93 = vector.load %arg4[%c0_30, %c0_31, %c0_32] : memref<1x64x64xbf16, #tpu.memory_space<vmem>>, vector<1x64x64xbf16>
    %94 = vector.shape_cast %93 : vector<1x64x64xbf16> to vector<64x64xbf16>
    %95 = vector.shape_cast %92 : vector<64x64xbf16> to vector<1x64x64xbf16>
    tpu.vector_store %arg4[%c0_30, %c0_31, %c0_32], %95 {strides = array<i32>} : memref<1x64x64xbf16, #tpu.memory_space<vmem>>, vector<1x64x64xbf16>,
    return
  }
  func.func @transform_0(%arg0: i32) -> (i32, i32, i32) {
    %c0_i32 = arith.constant 0 : i32
    %c0_i32_0 = arith.constant 0 : i32
    %c0_i32_1 = arith.constant 0 : i32
    %c0_i32_2 = arith.constant 0 : i32
    return %c0_i32, %c0_i32_0, %c0_i32_1 : i32, i32, i32
  }
  func.func @transform_1(%arg0: i32) -> (i32, i32, i32) {
    %c0_i32 = arith.constant 0 : i32
    %c0_i32_0 = arith.constant 0 : i32
    %c0_i32_1 = arith.constant 0 : i32
    %c0_i32_2 = arith.constant 0 : i32
    return %c0_i32, %c0_i32_0, %c0_i32_1 : i32, i32, i32
  }
  func.func @transform_2(%arg0: i32) -> (i32, i32) {
    %c0_i32 = arith.constant 0 : i32
    %c0_i32_0 = arith.constant 0 : i32
    %c0_i32_1 = arith.constant 0 : i32
    return %c0_i32, %c0_i32_0 : i32, i32
  }
  func.func @transform_3(%arg0: i32) -> (i32, i32, i32) {
    %c0_i32 = arith.constant 0 : i32
    %c0_i32_0 = arith.constant 0 : i32
    %c0_i32_1 = arith.constant 0 : i32
    %c0_i32_2 = arith.constant 0 : i32
    return %c0_i32, %c0_i32_0, %c0_i32_1 : i32, i32, i32
  }
}

module attributes {stable_mosaic.version = 11 : i64} {
  func.func @_conv_vbn_lrelu_kernel(%arg0: i32, %arg1: memref<1x64x576xbf16, #tpu.memory_space<vmem>>, %arg2: memref<1x576x64xbf16, #tpu.memory_space<vmem>>, %arg3: memref<64x8xf32, #tpu.memory_space<vmem>>, %arg4: memref<1x64x64xbf16, #tpu.memory_space<vmem>>) attributes {dimension_semantics = [#tpu.dimension_semantics<arbitrary>], iteration_bounds = array<i64: 1>, scalar_prefetch = 0 : i64, scratch_operands = 0 : i64, tpu.core_type = #tpu.core_type<tc>, window_params = [{pipeline_mode = #tpu.pipeline_mode<synchronous>, transform_indices = @transform_0, window_bounds = array<i64: 1, 64, 576>}, {pipeline_mode = #tpu.pipeline_mode<synchronous>, transform_indices = @transform_1, window_bounds = array<i64: 1, 576, 64>}, {pipeline_mode = #tpu.pipeline_mode<synchronous>, transform_indices = @transform_2, window_bounds = array<i64: 64, 8>}, {pipeline_mode = #tpu.pipeline_mode<synchronous>, transform_indices = @transform_3, window_bounds = array<i64: 1, 64, 64>}]} {
    %c0 = arith.constant 0 : index
    %c0_0 = arith.constant 0 : index
    %0 = vector.load %arg3[%c0, %c0_0] : memref<64x8xf32, #tpu.memory_space<vmem>>, vector<64x1xf32>
    %c0_1 = arith.constant 0 : index
    %c1 = arith.constant 1 : index
    %1 = vector.load %arg3[%c0_1, %c1] : memref<64x8xf32, #tpu.memory_space<vmem>>, vector<64x1xf32>
    %c0_2 = arith.constant 0 : index
    %c2 = arith.constant 2 : index
    %2 = vector.load %arg3[%c0_2, %c2] : memref<64x8xf32, #tpu.memory_space<vmem>>, vector<64x1xf32>
    %3 = tpu.iota {dimensions = array<i32: 1>} : vector<1x64xi32>
    %c32_i32 = arith.constant 32 : i32
    %4 = vector.broadcast %c32_i32 : i32 to vector<1x64xi32>
    %5 = arith.cmpi slt, %3, %4 : vector<1x64xi32>
    %c0_3 = arith.constant 0 : index
    %c0_4 = arith.constant 0 : index
    %c0_5 = arith.constant 0 : index
    %6 = vector.load %arg1[%c0_3, %c0_4, %c0_5] : memref<1x64x576xbf16, #tpu.memory_space<vmem>>, vector<1x64x576xbf16>
    %7 = vector.shape_cast %6 : vector<1x64x576xbf16> to vector<64x576xbf16>
    %c0_6 = arith.constant 0 : index
    %c0_7 = arith.constant 0 : index
    %c0_8 = arith.constant 0 : index
    %8 = vector.load %arg2[%c0_6, %c0_7, %c0_8] : memref<1x576x64xbf16, #tpu.memory_space<vmem>>, vector<1x576x64xbf16>
    %9 = vector.shape_cast %8 : vector<1x576x64xbf16> to vector<576x64xbf16>
    %cst = arith.constant dense<0.000000e+00> : vector<64x64xf32>
    %10 = tpu.matmul %7, %9, %cst {dimension_numbers = #tpu.dot_dimension_numbers<[1], [0], [0], [1], [0, 0, 1, 1], [], []>} : vector<64x576xbf16>, vector<576x64xbf16>, vector<64x64xf32> -> vector<64x64xf32>
    %11 = vector.broadcast %0 : vector<64x1xf32> to vector<64x64xf32>
    %12 = arith.addf %10, %11 : vector<64x64xf32>
    %cst_9 = arith.constant 0.000000e+00 : f32
    %13 = vector.shape_cast %5 : vector<1x64xi1> to vector<1x64xi1>
    %14 = vector.broadcast %13 : vector<1x64xi1> to vector<64x64xi1>
    %15 = vector.broadcast %cst_9 : f32 to vector<64x64xf32>
    %16 = arith.select %14, %12, %15 : vector<64x64xi1>, vector<64x64xf32>
    %cst_10 = arith.constant dense<0.000000e+00> : vector<64xf32>
    %17 = vector.multi_reduction <add>, %12, %cst_10 [1] : vector<64x64xf32> to vector<64xf32>
    %18 = vector.shape_cast %17 : vector<64xf32> to vector<64x1xf32>
    %cst_11 = arith.constant 0.000000e+00 : f32
    %19 = vector.broadcast %cst_11 : f32 to vector<64x1xf32>
    %20 = arith.addf %19, %18 : vector<64x1xf32>
    %21 = arith.mulf %12, %12 : vector<64x64xf32>
    %cst_12 = arith.constant dense<0.000000e+00> : vector<64xf32>
    %22 = vector.multi_reduction <add>, %21, %cst_12 [1] : vector<64x64xf32> to vector<64xf32>
    %23 = vector.shape_cast %22 : vector<64xf32> to vector<64x1xf32>
    %cst_13 = arith.constant 0.000000e+00 : f32
    %24 = vector.broadcast %cst_13 : f32 to vector<64x1xf32>
    %25 = arith.addf %24, %23 : vector<64x1xf32>
    %cst_14 = arith.constant dense<0.000000e+00> : vector<64xf32>
    %26 = vector.multi_reduction <add>, %16, %cst_14 [1] : vector<64x64xf32> to vector<64xf32>
    %27 = vector.shape_cast %26 : vector<64xf32> to vector<64x1xf32>
    %cst_15 = arith.constant 0.000000e+00 : f32
    %28 = vector.broadcast %cst_15 : f32 to vector<64x1xf32>
    %29 = arith.addf %28, %27 : vector<64x1xf32>
    %30 = arith.mulf %16, %16 : vector<64x64xf32>
    %cst_16 = arith.constant dense<0.000000e+00> : vector<64xf32>
    %31 = vector.multi_reduction <add>, %30, %cst_16 [1] : vector<64x64xf32> to vector<64xf32>
    %32 = vector.shape_cast %31 : vector<64xf32> to vector<64x1xf32>
    %cst_17 = arith.constant 0.000000e+00 : f32
    %33 = vector.broadcast %cst_17 : f32 to vector<64x1xf32>
    %34 = arith.addf %33, %32 : vector<64x1xf32>
    %cst_18 = arith.constant 3.125000e-02 : f32
    %35 = vector.broadcast %cst_18 : f32 to vector<64x1xf32>
    %36 = arith.mulf %29, %35 : vector<64x1xf32>
    %cst_19 = arith.constant 3.125000e-02 : f32
    %37 = vector.broadcast %cst_19 : f32 to vector<64x1xf32>
    %38 = arith.mulf %34, %37 : vector<64x1xf32>
    %39 = arith.subf %20, %29 : vector<64x1xf32>
    %cst_20 = arith.constant 3.125000e-02 : f32
    %40 = vector.broadcast %cst_20 : f32 to vector<64x1xf32>
    %41 = arith.mulf %39, %40 : vector<64x1xf32>
    %42 = arith.subf %25, %34 : vector<64x1xf32>
    %cst_21 = arith.constant 3.125000e-02 : f32
    %43 = vector.broadcast %cst_21 : f32 to vector<64x1xf32>
    %44 = arith.mulf %42, %43 : vector<64x1xf32>
    %cst_22 = arith.constant 0.333333343 : f32
    %45 = vector.broadcast %cst_22 : f32 to vector<64x1xf32>
    %46 = arith.mulf %45, %41 : vector<64x1xf32>
    %cst_23 = arith.constant 0.666666686 : f32
    %47 = vector.broadcast %cst_23 : f32 to vector<64x1xf32>
    %48 = arith.mulf %47, %36 : vector<64x1xf32>
    %49 = arith.addf %46, %48 : vector<64x1xf32>
    %cst_24 = arith.constant 0.333333343 : f32
    %50 = vector.broadcast %cst_24 : f32 to vector<64x1xf32>
    %51 = arith.mulf %50, %44 : vector<64x1xf32>
    %cst_25 = arith.constant 0.666666686 : f32
    %52 = vector.broadcast %cst_25 : f32 to vector<64x1xf32>
    %53 = arith.mulf %52, %38 : vector<64x1xf32>
    %54 = arith.addf %51, %53 : vector<64x1xf32>
    %55 = arith.mulf %36, %36 : vector<64x1xf32>
    %56 = arith.subf %38, %55 : vector<64x1xf32>
    %cst_26 = arith.constant 9.99999974E-6 : f32
    %57 = vector.broadcast %cst_26 : f32 to vector<64x1xf32>
    %58 = arith.addf %56, %57 : vector<64x1xf32>
    %59 = math.rsqrt %58 : vector<64x1xf32>
    %60 = arith.mulf %59, %1 : vector<64x1xf32>
    %61 = arith.mulf %49, %49 : vector<64x1xf32>
    %62 = arith.subf %54, %61 : vector<64x1xf32>
    %cst_27 = arith.constant 9.99999974E-6 : f32
    %63 = vector.broadcast %cst_27 : f32 to vector<64x1xf32>
    %64 = arith.addf %62, %63 : vector<64x1xf32>
    %65 = math.rsqrt %64 : vector<64x1xf32>
    %66 = arith.mulf %65, %1 : vector<64x1xf32>
    %67 = arith.mulf %36, %60 : vector<64x1xf32>
    %68 = arith.subf %2, %67 : vector<64x1xf32>
    %69 = arith.mulf %49, %66 : vector<64x1xf32>
    %70 = arith.subf %2, %69 : vector<64x1xf32>
    %71 = vector.shape_cast %5 : vector<1x64xi1> to vector<1x64xi1>
    %72 = vector.broadcast %71 : vector<1x64xi1> to vector<64x64xi1>
    %73 = vector.shape_cast %60 : vector<64x1xf32> to vector<64x1xf32>
    %74 = vector.broadcast %73 : vector<64x1xf32> to vector<64x64xf32>
    %75 = vector.shape_cast %66 : vector<64x1xf32> to vector<64x1xf32>
    %76 = vector.broadcast %75 : vector<64x1xf32> to vector<64x64xf32>
    %77 = arith.select %72, %74, %76 : vector<64x64xi1>, vector<64x64xf32>
    %78 = vector.shape_cast %5 : vector<1x64xi1> to vector<1x64xi1>
    %79 = vector.broadcast %78 : vector<1x64xi1> to vector<64x64xi1>
    %80 = vector.shape_cast %68 : vector<64x1xf32> to vector<64x1xf32>
    %81 = vector.broadcast %80 : vector<64x1xf32> to vector<64x64xf32>
    %82 = vector.shape_cast %70 : vector<64x1xf32> to vector<64x1xf32>
    %83 = vector.broadcast %82 : vector<64x1xf32> to vector<64x64xf32>
    %84 = arith.select %79, %81, %83 : vector<64x64xi1>, vector<64x64xf32>
    %85 = arith.mulf %12, %77 : vector<64x64xf32>
    %86 = arith.addf %85, %84 : vector<64x64xf32>
    %cst_28 = arith.constant 0.000000e+00 : f32
    %87 = vector.broadcast %cst_28 : f32 to vector<64x64xf32>
    %88 = arith.cmpf oge, %86, %87 : vector<64x64xf32>
    %cst_29 = arith.constant 2.000000e-01 : f32
    %89 = vector.broadcast %cst_29 : f32 to vector<64x64xf32>
    %90 = arith.mulf %89, %86 : vector<64x64xf32>
    %91 = arith.select %88, %86, %90 : vector<64x64xi1>, vector<64x64xf32>
    %92 = arith.truncf %91 : vector<64x64xf32> to vector<64x64xbf16>
    %c0_30 = arith.constant 0 : index
    %c0_31 = arith.constant 0 : index
    %c0_32 = arith.constant 0 : index
    %93 = vector.load %arg4[%c0_30, %c0_31, %c0_32] : memref<1x64x64xbf16, #tpu.memory_space<vmem>>, vector<1x64x64xbf16>
    %94 = vector.shape_cast %93 : vector<1x64x64xbf16> to vector<64x64xbf16>
    %95 = vector.shape_cast %92 : vector<64x64xbf16> to vector<1x64x64xbf16>
    tpu.vector_store %arg4[%c0_30, %c0_31, %c0_32], %95 {strides = array<i32>} : memref<1x64x64xbf16, #tpu.memory_space<vmem>>, vector<1x64x64xbf16>,
    return
  }
  func.func @transform_0(%arg0: i32) -> (i32, i32, i32) {
    %c0_i32 = arith.constant 0 : i32
    %c0_i32_0 = arith.constant 0 : i32
    %c0_i32_1 = arith.constant 0 : i32
    %c0_i32_2 = arith.constant 0 : i32
    return %c0_i32, %c0_i32_0, %c0_i32_1 : i32, i32, i32
  }
  func.func @transform_1(%arg0: i32) -> (i32, i32, i32) {
    %c0_i32 = arith.constant 0 : i32
    %c0_i32_0 = arith.constant 0 : i32
    %c0_i32_1 = arith.constant 0 : i32
    %c0_i32_2 = arith.constant 0 : i32
    return %c0_i32, %c0_i32_0, %c0_i32_1 : i32, i32, i32
  }
  func.func @transform_2(%arg0: i32) -> (i32, i32) {
    %c0_i32 = arith.constant 0 : i32
    %c0_i32_0 = arith.constant 0 : i32
    %c0_i32_1 = arith.constant 0 : i32
    return %c0_i32, %c0_i32_0 : i32, i32
  }
  func.func @transform_3(%arg0: i32) -> (i32, i32, i32) {
    %c0_i32 = arith.constant 0 : i32
    %c0_i32_0 = arith.constant 0 : i32
    %c0_i32_1 = arith.constant 0 : i32
    %c0_i32_2 = arith.constant 0 : i32
    return %c0_i32, %c0_i32_0, %c0_i32_1 : i32, i32, i32
  }
}

module attributes {stable_mosaic.version = 11 : i64} {
  func.func @_conv_vbn_lrelu_kernel(%arg0: i32, %arg1: memref<4x32x256xbf16, #tpu.memory_space<vmem>>, %arg2: memref<4x256x64xbf16, #tpu.memory_space<vmem>>, %arg3: memref<32x8xf32, #tpu.memory_space<vmem>>, %arg4: memref<4x32x64xbf16, #tpu.memory_space<vmem>>) attributes {dimension_semantics = [#tpu.dimension_semantics<arbitrary>], iteration_bounds = array<i64: 1>, scalar_prefetch = 0 : i64, scratch_operands = 0 : i64, tpu.core_type = #tpu.core_type<tc>, window_params = [{pipeline_mode = #tpu.pipeline_mode<synchronous>, transform_indices = @transform_0, window_bounds = array<i64: 4, 32, 256>}, {pipeline_mode = #tpu.pipeline_mode<synchronous>, transform_indices = @transform_1, window_bounds = array<i64: 4, 256, 64>}, {pipeline_mode = #tpu.pipeline_mode<synchronous>, transform_indices = @transform_2, window_bounds = array<i64: 32, 8>}, {pipeline_mode = #tpu.pipeline_mode<synchronous>, transform_indices = @transform_3, window_bounds = array<i64: 4, 32, 64>}]} {
    %c0 = arith.constant 0 : index
    %c0_0 = arith.constant 0 : index
    %0 = vector.load %arg3[%c0, %c0_0] : memref<32x8xf32, #tpu.memory_space<vmem>>, vector<32x1xf32>
    %c0_1 = arith.constant 0 : index
    %c1 = arith.constant 1 : index
    %1 = vector.load %arg3[%c0_1, %c1] : memref<32x8xf32, #tpu.memory_space<vmem>>, vector<32x1xf32>
    %c0_2 = arith.constant 0 : index
    %c2 = arith.constant 2 : index
    %2 = vector.load %arg3[%c0_2, %c2] : memref<32x8xf32, #tpu.memory_space<vmem>>, vector<32x1xf32>
    %3 = tpu.iota {dimensions = array<i32: 1>} : vector<1x64xi32>
    %c32_i32 = arith.constant 32 : i32
    %4 = vector.broadcast %c32_i32 : i32 to vector<1x64xi32>
    %5 = arith.cmpi slt, %3, %4 : vector<1x64xi32>
    %c0_3 = arith.constant 0 : index
    %c0_4 = arith.constant 0 : index
    %c0_5 = arith.constant 0 : index
    %6 = vector.load %arg1[%c0_3, %c0_4, %c0_5] : memref<4x32x256xbf16, #tpu.memory_space<vmem>>, vector<1x32x256xbf16>
    %7 = vector.shape_cast %6 : vector<1x32x256xbf16> to vector<32x256xbf16>
    %c0_6 = arith.constant 0 : index
    %c0_7 = arith.constant 0 : index
    %c0_8 = arith.constant 0 : index
    %8 = vector.load %arg2[%c0_6, %c0_7, %c0_8] : memref<4x256x64xbf16, #tpu.memory_space<vmem>>, vector<1x256x64xbf16>
    %9 = vector.shape_cast %8 : vector<1x256x64xbf16> to vector<256x64xbf16>
    %cst = arith.constant dense<0.000000e+00> : vector<32x64xf32>
    %10 = tpu.matmul %7, %9, %cst {dimension_numbers = #tpu.dot_dimension_numbers<[1], [0], [0], [1], [0, 0, 1, 1], [], []>} : vector<32x256xbf16>, vector<256x64xbf16>, vector<32x64xf32> -> vector<32x64xf32>
    %11 = vector.broadcast %0 : vector<32x1xf32> to vector<32x64xf32>
    %12 = arith.addf %10, %11 : vector<32x64xf32>
    %cst_9 = arith.constant 0.000000e+00 : f32
    %13 = vector.shape_cast %5 : vector<1x64xi1> to vector<1x64xi1>
    %14 = vector.broadcast %13 : vector<1x64xi1> to vector<32x64xi1>
    %15 = vector.broadcast %cst_9 : f32 to vector<32x64xf32>
    %16 = arith.select %14, %12, %15 : vector<32x64xi1>, vector<32x64xf32>
    %cst_10 = arith.constant dense<0.000000e+00> : vector<32xf32>
    %17 = vector.multi_reduction <add>, %12, %cst_10 [1] : vector<32x64xf32> to vector<32xf32>
    %18 = vector.shape_cast %17 : vector<32xf32> to vector<32x1xf32>
    %cst_11 = arith.constant 0.000000e+00 : f32
    %19 = vector.broadcast %cst_11 : f32 to vector<32x1xf32>
    %20 = arith.addf %19, %18 : vector<32x1xf32>
    %21 = arith.mulf %12, %12 : vector<32x64xf32>
    %cst_12 = arith.constant dense<0.000000e+00> : vector<32xf32>
    %22 = vector.multi_reduction <add>, %21, %cst_12 [1] : vector<32x64xf32> to vector<32xf32>
    %23 = vector.shape_cast %22 : vector<32xf32> to vector<32x1xf32>
    %cst_13 = arith.constant 0.000000e+00 : f32
    %24 = vector.broadcast %cst_13 : f32 to vector<32x1xf32>
    %25 = arith.addf %24, %23 : vector<32x1xf32>
    %cst_14 = arith.constant dense<0.000000e+00> : vector<32xf32>
    %26 = vector.multi_reduction <add>, %16, %cst_14 [1] : vector<32x64xf32> to vector<32xf32>
    %27 = vector.shape_cast %26 : vector<32xf32> to vector<32x1xf32>
    %cst_15 = arith.constant 0.000000e+00 : f32
    %28 = vector.broadcast %cst_15 : f32 to vector<32x1xf32>
    %29 = arith.addf %28, %27 : vector<32x1xf32>
    %30 = arith.mulf %16, %16 : vector<32x64xf32>
    %cst_16 = arith.constant dense<0.000000e+00> : vector<32xf32>
    %31 = vector.multi_reduction <add>, %30, %cst_16 [1] : vector<32x64xf32> to vector<32xf32>
    %32 = vector.shape_cast %31 : vector<32xf32> to vector<32x1xf32>
    %cst_17 = arith.constant 0.000000e+00 : f32
    %33 = vector.broadcast %cst_17 : f32 to vector<32x1xf32>
    %34 = arith.addf %33, %32 : vector<32x1xf32>
    %c1_18 = arith.constant 1 : index
    %c0_19 = arith.constant 0 : index
    %c0_20 = arith.constant 0 : index
    %35 = vector.load %arg1[%c1_18, %c0_19, %c0_20] : memref<4x32x256xbf16, #tpu.memory_space<vmem>>, vector<1x32x256xbf16>
    %36 = vector.shape_cast %35 : vector<1x32x256xbf16> to vector<32x256xbf16>
    %c1_21 = arith.constant 1 : index
    %c0_22 = arith.constant 0 : index
    %c0_23 = arith.constant 0 : index
    %37 = vector.load %arg2[%c1_21, %c0_22, %c0_23] : memref<4x256x64xbf16, #tpu.memory_space<vmem>>, vector<1x256x64xbf16>
    %38 = vector.shape_cast %37 : vector<1x256x64xbf16> to vector<256x64xbf16>
    %cst_24 = arith.constant dense<0.000000e+00> : vector<32x64xf32>
    %39 = tpu.matmul %36, %38, %cst_24 {dimension_numbers = #tpu.dot_dimension_numbers<[1], [0], [0], [1], [0, 0, 1, 1], [], []>} : vector<32x256xbf16>, vector<256x64xbf16>, vector<32x64xf32> -> vector<32x64xf32>
    %40 = vector.broadcast %0 : vector<32x1xf32> to vector<32x64xf32>
    %41 = arith.addf %39, %40 : vector<32x64xf32>
    %cst_25 = arith.constant 0.000000e+00 : f32
    %42 = vector.shape_cast %5 : vector<1x64xi1> to vector<1x64xi1>
    %43 = vector.broadcast %42 : vector<1x64xi1> to vector<32x64xi1>
    %44 = vector.broadcast %cst_25 : f32 to vector<32x64xf32>
    %45 = arith.select %43, %41, %44 : vector<32x64xi1>, vector<32x64xf32>
    %cst_26 = arith.constant dense<0.000000e+00> : vector<32xf32>
    %46 = vector.multi_reduction <add>, %41, %cst_26 [1] : vector<32x64xf32> to vector<32xf32>
    %47 = vector.shape_cast %46 : vector<32xf32> to vector<32x1xf32>
    %48 = arith.addf %20, %47 : vector<32x1xf32>
    %49 = arith.mulf %41, %41 : vector<32x64xf32>
    %cst_27 = arith.constant dense<0.000000e+00> : vector<32xf32>
    %50 = vector.multi_reduction <add>, %49, %cst_27 [1] : vector<32x64xf32> to vector<32xf32>
    %51 = vector.shape_cast %50 : vector<32xf32> to vector<32x1xf32>
    %52 = arith.addf %25, %51 : vector<32x1xf32>
    %cst_28 = arith.constant dense<0.000000e+00> : vector<32xf32>
    %53 = vector.multi_reduction <add>, %45, %cst_28 [1] : vector<32x64xf32> to vector<32xf32>
    %54 = vector.shape_cast %53 : vector<32xf32> to vector<32x1xf32>
    %55 = arith.addf %29, %54 : vector<32x1xf32>
    %56 = arith.mulf %45, %45 : vector<32x64xf32>
    %cst_29 = arith.constant dense<0.000000e+00> : vector<32xf32>
    %57 = vector.multi_reduction <add>, %56, %cst_29 [1] : vector<32x64xf32> to vector<32xf32>
    %58 = vector.shape_cast %57 : vector<32xf32> to vector<32x1xf32>
    %59 = arith.addf %34, %58 : vector<32x1xf32>
    %c2_30 = arith.constant 2 : index
    %c0_31 = arith.constant 0 : index
    %c0_32 = arith.constant 0 : index
    %60 = vector.load %arg1[%c2_30, %c0_31, %c0_32] : memref<4x32x256xbf16, #tpu.memory_space<vmem>>, vector<1x32x256xbf16>
    %61 = vector.shape_cast %60 : vector<1x32x256xbf16> to vector<32x256xbf16>
    %c2_33 = arith.constant 2 : index
    %c0_34 = arith.constant 0 : index
    %c0_35 = arith.constant 0 : index
    %62 = vector.load %arg2[%c2_33, %c0_34, %c0_35] : memref<4x256x64xbf16, #tpu.memory_space<vmem>>, vector<1x256x64xbf16>
    %63 = vector.shape_cast %62 : vector<1x256x64xbf16> to vector<256x64xbf16>
    %cst_36 = arith.constant dense<0.000000e+00> : vector<32x64xf32>
    %64 = tpu.matmul %61, %63, %cst_36 {dimension_numbers = #tpu.dot_dimension_numbers<[1], [0], [0], [1], [0, 0, 1, 1], [], []>} : vector<32x256xbf16>, vector<256x64xbf16>, vector<32x64xf32> -> vector<32x64xf32>
    %65 = vector.broadcast %0 : vector<32x1xf32> to vector<32x64xf32>
    %66 = arith.addf %64, %65 : vector<32x64xf32>
    %cst_37 = arith.constant 0.000000e+00 : f32
    %67 = vector.shape_cast %5 : vector<1x64xi1> to vector<1x64xi1>
    %68 = vector.broadcast %67 : vector<1x64xi1> to vector<32x64xi1>
    %69 = vector.broadcast %cst_37 : f32 to vector<32x64xf32>
    %70 = arith.select %68, %66, %69 : vector<32x64xi1>, vector<32x64xf32>
    %cst_38 = arith.constant dense<0.000000e+00> : vector<32xf32>
    %71 = vector.multi_reduction <add>, %66, %cst_38 [1] : vector<32x64xf32> to vector<32xf32>
    %72 = vector.shape_cast %71 : vector<32xf32> to vector<32x1xf32>
    %73 = arith.addf %48, %72 : vector<32x1xf32>
    %74 = arith.mulf %66, %66 : vector<32x64xf32>
    %cst_39 = arith.constant dense<0.000000e+00> : vector<32xf32>
    %75 = vector.multi_reduction <add>, %74, %cst_39 [1] : vector<32x64xf32> to vector<32xf32>
    %76 = vector.shape_cast %75 : vector<32xf32> to vector<32x1xf32>
    %77 = arith.addf %52, %76 : vector<32x1xf32>
    %cst_40 = arith.constant dense<0.000000e+00> : vector<32xf32>
    %78 = vector.multi_reduction <add>, %70, %cst_40 [1] : vector<32x64xf32> to vector<32xf32>
    %79 = vector.shape_cast %78 : vector<32xf32> to vector<32x1xf32>
    %80 = arith.addf %55, %79 : vector<32x1xf32>
    %81 = arith.mulf %70, %70 : vector<32x64xf32>
    %cst_41 = arith.constant dense<0.000000e+00> : vector<32xf32>
    %82 = vector.multi_reduction <add>, %81, %cst_41 [1] : vector<32x64xf32> to vector<32xf32>
    %83 = vector.shape_cast %82 : vector<32xf32> to vector<32x1xf32>
    %84 = arith.addf %59, %83 : vector<32x1xf32>
    %c3 = arith.constant 3 : index
    %c0_42 = arith.constant 0 : index
    %c0_43 = arith.constant 0 : index
    %85 = vector.load %arg1[%c3, %c0_42, %c0_43] : memref<4x32x256xbf16, #tpu.memory_space<vmem>>, vector<1x32x256xbf16>
    %86 = vector.shape_cast %85 : vector<1x32x256xbf16> to vector<32x256xbf16>
    %c3_44 = arith.constant 3 : index
    %c0_45 = arith.constant 0 : index
    %c0_46 = arith.constant 0 : index
    %87 = vector.load %arg2[%c3_44, %c0_45, %c0_46] : memref<4x256x64xbf16, #tpu.memory_space<vmem>>, vector<1x256x64xbf16>
    %88 = vector.shape_cast %87 : vector<1x256x64xbf16> to vector<256x64xbf16>
    %cst_47 = arith.constant dense<0.000000e+00> : vector<32x64xf32>
    %89 = tpu.matmul %86, %88, %cst_47 {dimension_numbers = #tpu.dot_dimension_numbers<[1], [0], [0], [1], [0, 0, 1, 1], [], []>} : vector<32x256xbf16>, vector<256x64xbf16>, vector<32x64xf32> -> vector<32x64xf32>
    %90 = vector.broadcast %0 : vector<32x1xf32> to vector<32x64xf32>
    %91 = arith.addf %89, %90 : vector<32x64xf32>
    %cst_48 = arith.constant 0.000000e+00 : f32
    %92 = vector.shape_cast %5 : vector<1x64xi1> to vector<1x64xi1>
    %93 = vector.broadcast %92 : vector<1x64xi1> to vector<32x64xi1>
    %94 = vector.broadcast %cst_48 : f32 to vector<32x64xf32>
    %95 = arith.select %93, %91, %94 : vector<32x64xi1>, vector<32x64xf32>
    %cst_49 = arith.constant dense<0.000000e+00> : vector<32xf32>
    %96 = vector.multi_reduction <add>, %91, %cst_49 [1] : vector<32x64xf32> to vector<32xf32>
    %97 = vector.shape_cast %96 : vector<32xf32> to vector<32x1xf32>
    %98 = arith.addf %73, %97 : vector<32x1xf32>
    %99 = arith.mulf %91, %91 : vector<32x64xf32>
    %cst_50 = arith.constant dense<0.000000e+00> : vector<32xf32>
    %100 = vector.multi_reduction <add>, %99, %cst_50 [1] : vector<32x64xf32> to vector<32xf32>
    %101 = vector.shape_cast %100 : vector<32xf32> to vector<32x1xf32>
    %102 = arith.addf %77, %101 : vector<32x1xf32>
    %cst_51 = arith.constant dense<0.000000e+00> : vector<32xf32>
    %103 = vector.multi_reduction <add>, %95, %cst_51 [1] : vector<32x64xf32> to vector<32xf32>
    %104 = vector.shape_cast %103 : vector<32xf32> to vector<32x1xf32>
    %105 = arith.addf %80, %104 : vector<32x1xf32>
    %106 = arith.mulf %95, %95 : vector<32x64xf32>
    %cst_52 = arith.constant dense<0.000000e+00> : vector<32xf32>
    %107 = vector.multi_reduction <add>, %106, %cst_52 [1] : vector<32x64xf32> to vector<32xf32>
    %108 = vector.shape_cast %107 : vector<32xf32> to vector<32x1xf32>
    %109 = arith.addf %84, %108 : vector<32x1xf32>
    %cst_53 = arith.constant 7.812500e-03 : f32
    %110 = vector.broadcast %cst_53 : f32 to vector<32x1xf32>
    %111 = arith.mulf %105, %110 : vector<32x1xf32>
    %cst_54 = arith.constant 7.812500e-03 : f32
    %112 = vector.broadcast %cst_54 : f32 to vector<32x1xf32>
    %113 = arith.mulf %109, %112 : vector<32x1xf32>
    %114 = arith.subf %98, %105 : vector<32x1xf32>
    %cst_55 = arith.constant 7.812500e-03 : f32
    %115 = vector.broadcast %cst_55 : f32 to vector<32x1xf32>
    %116 = arith.mulf %114, %115 : vector<32x1xf32>
    %117 = arith.subf %102, %109 : vector<32x1xf32>
    %cst_56 = arith.constant 7.812500e-03 : f32
    %118 = vector.broadcast %cst_56 : f32 to vector<32x1xf32>
    %119 = arith.mulf %117, %118 : vector<32x1xf32>
    %cst_57 = arith.constant 0.333333343 : f32
    %120 = vector.broadcast %cst_57 : f32 to vector<32x1xf32>
    %121 = arith.mulf %120, %116 : vector<32x1xf32>
    %cst_58 = arith.constant 0.666666686 : f32
    %122 = vector.broadcast %cst_58 : f32 to vector<32x1xf32>
    %123 = arith.mulf %122, %111 : vector<32x1xf32>
    %124 = arith.addf %121, %123 : vector<32x1xf32>
    %cst_59 = arith.constant 0.333333343 : f32
    %125 = vector.broadcast %cst_59 : f32 to vector<32x1xf32>
    %126 = arith.mulf %125, %119 : vector<32x1xf32>
    %cst_60 = arith.constant 0.666666686 : f32
    %127 = vector.broadcast %cst_60 : f32 to vector<32x1xf32>
    %128 = arith.mulf %127, %113 : vector<32x1xf32>
    %129 = arith.addf %126, %128 : vector<32x1xf32>
    %130 = arith.mulf %111, %111 : vector<32x1xf32>
    %131 = arith.subf %113, %130 : vector<32x1xf32>
    %cst_61 = arith.constant 9.99999974E-6 : f32
    %132 = vector.broadcast %cst_61 : f32 to vector<32x1xf32>
    %133 = arith.addf %131, %132 : vector<32x1xf32>
    %134 = math.rsqrt %133 : vector<32x1xf32>
    %135 = arith.mulf %134, %1 : vector<32x1xf32>
    %136 = arith.mulf %124, %124 : vector<32x1xf32>
    %137 = arith.subf %129, %136 : vector<32x1xf32>
    %cst_62 = arith.constant 9.99999974E-6 : f32
    %138 = vector.broadcast %cst_62 : f32 to vector<32x1xf32>
    %139 = arith.addf %137, %138 : vector<32x1xf32>
    %140 = math.rsqrt %139 : vector<32x1xf32>
    %141 = arith.mulf %140, %1 : vector<32x1xf32>
    %142 = arith.mulf %111, %135 : vector<32x1xf32>
    %143 = arith.subf %2, %142 : vector<32x1xf32>
    %144 = arith.mulf %124, %141 : vector<32x1xf32>
    %145 = arith.subf %2, %144 : vector<32x1xf32>
    %146 = vector.shape_cast %5 : vector<1x64xi1> to vector<1x64xi1>
    %147 = vector.broadcast %146 : vector<1x64xi1> to vector<32x64xi1>
    %148 = vector.shape_cast %135 : vector<32x1xf32> to vector<32x1xf32>
    %149 = vector.broadcast %148 : vector<32x1xf32> to vector<32x64xf32>
    %150 = vector.shape_cast %141 : vector<32x1xf32> to vector<32x1xf32>
    %151 = vector.broadcast %150 : vector<32x1xf32> to vector<32x64xf32>
    %152 = arith.select %147, %149, %151 : vector<32x64xi1>, vector<32x64xf32>
    %153 = vector.shape_cast %5 : vector<1x64xi1> to vector<1x64xi1>
    %154 = vector.broadcast %153 : vector<1x64xi1> to vector<32x64xi1>
    %155 = vector.shape_cast %143 : vector<32x1xf32> to vector<32x1xf32>
    %156 = vector.broadcast %155 : vector<32x1xf32> to vector<32x64xf32>
    %157 = vector.shape_cast %145 : vector<32x1xf32> to vector<32x1xf32>
    %158 = vector.broadcast %157 : vector<32x1xf32> to vector<32x64xf32>
    %159 = arith.select %154, %156, %158 : vector<32x64xi1>, vector<32x64xf32>
    %160 = arith.mulf %12, %152 : vector<32x64xf32>
    %161 = arith.addf %160, %159 : vector<32x64xf32>
    %cst_63 = arith.constant 0.000000e+00 : f32
    %162 = vector.broadcast %cst_63 : f32 to vector<32x64xf32>
    %163 = arith.cmpf oge, %161, %162 : vector<32x64xf32>
    %cst_64 = arith.constant 2.000000e-01 : f32
    %164 = vector.broadcast %cst_64 : f32 to vector<32x64xf32>
    %165 = arith.mulf %164, %161 : vector<32x64xf32>
    %166 = arith.select %163, %161, %165 : vector<32x64xi1>, vector<32x64xf32>
    %167 = arith.truncf %166 : vector<32x64xf32> to vector<32x64xbf16>
    %c0_65 = arith.constant 0 : index
    %c0_66 = arith.constant 0 : index
    %c0_67 = arith.constant 0 : index
    %168 = vector.load %arg4[%c0_65, %c0_66, %c0_67] : memref<4x32x64xbf16, #tpu.memory_space<vmem>>, vector<1x32x64xbf16>
    %169 = vector.shape_cast %168 : vector<1x32x64xbf16> to vector<32x64xbf16>
    %170 = vector.shape_cast %167 : vector<32x64xbf16> to vector<1x32x64xbf16>
    tpu.vector_store %arg4[%c0_65, %c0_66, %c0_67], %170 {strides = array<i32>} : memref<4x32x64xbf16, #tpu.memory_space<vmem>>, vector<1x32x64xbf16>,
    %171 = arith.mulf %41, %152 : vector<32x64xf32>
    %172 = arith.addf %171, %159 : vector<32x64xf32>
    %cst_68 = arith.constant 0.000000e+00 : f32
    %173 = vector.broadcast %cst_68 : f32 to vector<32x64xf32>
    %174 = arith.cmpf oge, %172, %173 : vector<32x64xf32>
    %cst_69 = arith.constant 2.000000e-01 : f32
    %175 = vector.broadcast %cst_69 : f32 to vector<32x64xf32>
    %176 = arith.mulf %175, %172 : vector<32x64xf32>
    %177 = arith.select %174, %172, %176 : vector<32x64xi1>, vector<32x64xf32>
    %178 = arith.truncf %177 : vector<32x64xf32> to vector<32x64xbf16>
    %c1_70 = arith.constant 1 : index
    %c0_71 = arith.constant 0 : index
    %c0_72 = arith.constant 0 : index
    %179 = vector.load %arg4[%c1_70, %c0_71, %c0_72] : memref<4x32x64xbf16, #tpu.memory_space<vmem>>, vector<1x32x64xbf16>
    %180 = vector.shape_cast %179 : vector<1x32x64xbf16> to vector<32x64xbf16>
    %181 = vector.shape_cast %178 : vector<32x64xbf16> to vector<1x32x64xbf16>
    tpu.vector_store %arg4[%c1_70, %c0_71, %c0_72], %181 {strides = array<i32>} : memref<4x32x64xbf16, #tpu.memory_space<vmem>>, vector<1x32x64xbf16>,
    %182 = arith.mulf %66, %152 : vector<32x64xf32>
    %183 = arith.addf %182, %159 : vector<32x64xf32>
    %cst_73 = arith.constant 0.000000e+00 : f32
    %184 = vector.broadcast %cst_73 : f32 to vector<32x64xf32>
    %185 = arith.cmpf oge, %183, %184 : vector<32x64xf32>
    %cst_74 = arith.constant 2.000000e-01 : f32
    %186 = vector.broadcast %cst_74 : f32 to vector<32x64xf32>
    %187 = arith.mulf %186, %183 : vector<32x64xf32>
    %188 = arith.select %185, %183, %187 : vector<32x64xi1>, vector<32x64xf32>
    %189 = arith.truncf %188 : vector<32x64xf32> to vector<32x64xbf16>
    %c2_75 = arith.constant 2 : index
    %c0_76 = arith.constant 0 : index
    %c0_77 = arith.constant 0 : index
    %190 = vector.load %arg4[%c2_75, %c0_76, %c0_77] : memref<4x32x64xbf16, #tpu.memory_space<vmem>>, vector<1x32x64xbf16>
    %191 = vector.shape_cast %190 : vector<1x32x64xbf16> to vector<32x64xbf16>
    %192 = vector.shape_cast %189 : vector<32x64xbf16> to vector<1x32x64xbf16>
    tpu.vector_store %arg4[%c2_75, %c0_76, %c0_77], %192 {strides = array<i32>} : memref<4x32x64xbf16, #tpu.memory_space<vmem>>, vector<1x32x64xbf16>,
    %193 = arith.mulf %91, %152 : vector<32x64xf32>
    %194 = arith.addf %193, %159 : vector<32x64xf32>
    %cst_78 = arith.constant 0.000000e+00 : f32
    %195 = vector.broadcast %cst_78 : f32 to vector<32x64xf32>
    %196 = arith.cmpf oge, %194, %195 : vector<32x64xf32>
    %cst_79 = arith.constant 2.000000e-01 : f32
    %197 = vector.broadcast %cst_79 : f32 to vector<32x64xf32>
    %198 = arith.mulf %197, %194 : vector<32x64xf32>
    %199 = arith.select %196, %194, %198 : vector<32x64xi1>, vector<32x64xf32>
    %200 = arith.truncf %199 : vector<32x64xf32> to vector<32x64xbf16>
    %c3_80 = arith.constant 3 : index
    %c0_81 = arith.constant 0 : index
    %c0_82 = arith.constant 0 : index
    %201 = vector.load %arg4[%c3_80, %c0_81, %c0_82] : memref<4x32x64xbf16, #tpu.memory_space<vmem>>, vector<1x32x64xbf16>
    %202 = vector.shape_cast %201 : vector<1x32x64xbf16> to vector<32x64xbf16>
    %203 = vector.shape_cast %200 : vector<32x64xbf16> to vector<1x32x64xbf16>
    tpu.vector_store %arg4[%c3_80, %c0_81, %c0_82], %203 {strides = array<i32>} : memref<4x32x64xbf16, #tpu.memory_space<vmem>>, vector<1x32x64xbf16>,
    return
  }
  func.func @transform_0(%arg0: i32) -> (i32, i32, i32) {
    %c0_i32 = arith.constant 0 : i32
    %c0_i32_0 = arith.constant 0 : i32
    %c0_i32_1 = arith.constant 0 : i32
    %c0_i32_2 = arith.constant 0 : i32
    return %c0_i32, %c0_i32_0, %c0_i32_1 : i32, i32, i32
  }
  func.func @transform_1(%arg0: i32) -> (i32, i32, i32) {
    %c0_i32 = arith.constant 0 : i32
    %c0_i32_0 = arith.constant 0 : i32
    %c0_i32_1 = arith.constant 0 : i32
    %c0_i32_2 = arith.constant 0 : i32
    return %c0_i32, %c0_i32_0, %c0_i32_1 : i32, i32, i32
  }
  func.func @transform_2(%arg0: i32) -> (i32, i32) {
    %c0_i32 = arith.constant 0 : i32
    %c0_i32_0 = arith.constant 0 : i32
    %c0_i32_1 = arith.constant 0 : i32
    return %c0_i32, %c0_i32_0 : i32, i32
  }
  func.func @transform_3(%arg0: i32) -> (i32, i32, i32) {
    %c0_i32 = arith.constant 0 : i32
    %c0_i32_0 = arith.constant 0 : i32
    %c0_i32_1 = arith.constant 0 : i32
    %c0_i32_2 = arith.constant 0 : i32
    return %c0_i32, %c0_i32_0, %c0_i32_1 : i32, i32, i32
  }
}

module attributes {stable_mosaic.version = 11 : i64} {
  func.func @_conv_vbn_lrelu_kernel(%arg0: i32, %arg1: memref<4x16x128xbf16, #tpu.memory_space<vmem>>, %arg2: memref<4x128x256xbf16, #tpu.memory_space<vmem>>, %arg3: memref<16x8xf32, #tpu.memory_space<vmem>>, %arg4: memref<4x16x256xbf16, #tpu.memory_space<vmem>>) attributes {dimension_semantics = [#tpu.dimension_semantics<arbitrary>], iteration_bounds = array<i64: 1>, scalar_prefetch = 0 : i64, scratch_operands = 0 : i64, tpu.core_type = #tpu.core_type<tc>, window_params = [{pipeline_mode = #tpu.pipeline_mode<synchronous>, transform_indices = @transform_0, window_bounds = array<i64: 4, 16, 128>}, {pipeline_mode = #tpu.pipeline_mode<synchronous>, transform_indices = @transform_1, window_bounds = array<i64: 4, 128, 256>}, {pipeline_mode = #tpu.pipeline_mode<synchronous>, transform_indices = @transform_2, window_bounds = array<i64: 16, 8>}, {pipeline_mode = #tpu.pipeline_mode<synchronous>, transform_indices = @transform_3, window_bounds = array<i64: 4, 16, 256>}]} {
    %c0 = arith.constant 0 : index
    %c0_0 = arith.constant 0 : index
    %0 = vector.load %arg3[%c0, %c0_0] : memref<16x8xf32, #tpu.memory_space<vmem>>, vector<16x1xf32>
    %c0_1 = arith.constant 0 : index
    %c1 = arith.constant 1 : index
    %1 = vector.load %arg3[%c0_1, %c1] : memref<16x8xf32, #tpu.memory_space<vmem>>, vector<16x1xf32>
    %c0_2 = arith.constant 0 : index
    %c2 = arith.constant 2 : index
    %2 = vector.load %arg3[%c0_2, %c2] : memref<16x8xf32, #tpu.memory_space<vmem>>, vector<16x1xf32>
    %3 = tpu.iota {dimensions = array<i32: 1>} : vector<1x256xi32>
    %c128_i32 = arith.constant 128 : i32
    %4 = vector.broadcast %c128_i32 : i32 to vector<1x256xi32>
    %5 = arith.cmpi slt, %3, %4 : vector<1x256xi32>
    %c0_3 = arith.constant 0 : index
    %c0_4 = arith.constant 0 : index
    %c0_5 = arith.constant 0 : index
    %6 = vector.load %arg1[%c0_3, %c0_4, %c0_5] : memref<4x16x128xbf16, #tpu.memory_space<vmem>>, vector<1x16x128xbf16>
    %7 = vector.shape_cast %6 : vector<1x16x128xbf16> to vector<16x128xbf16>
    %c0_6 = arith.constant 0 : index
    %c0_7 = arith.constant 0 : index
    %c0_8 = arith.constant 0 : index
    %8 = vector.load %arg2[%c0_6, %c0_7, %c0_8] : memref<4x128x256xbf16, #tpu.memory_space<vmem>>, vector<1x128x256xbf16>
    %9 = vector.shape_cast %8 : vector<1x128x256xbf16> to vector<128x256xbf16>
    %cst = arith.constant dense<0.000000e+00> : vector<16x256xf32>
    %10 = tpu.matmul %7, %9, %cst {dimension_numbers = #tpu.dot_dimension_numbers<[1], [0], [0], [1], [0, 0, 1, 1], [], []>} : vector<16x128xbf16>, vector<128x256xbf16>, vector<16x256xf32> -> vector<16x256xf32>
    %11 = vector.broadcast %0 : vector<16x1xf32> to vector<16x256xf32>
    %12 = arith.addf %10, %11 : vector<16x256xf32>
    %cst_9 = arith.constant 0.000000e+00 : f32
    %13 = vector.shape_cast %5 : vector<1x256xi1> to vector<1x256xi1>
    %14 = vector.broadcast %13 : vector<1x256xi1> to vector<16x256xi1>
    %15 = vector.broadcast %cst_9 : f32 to vector<16x256xf32>
    %16 = arith.select %14, %12, %15 : vector<16x256xi1>, vector<16x256xf32>
    %cst_10 = arith.constant dense<0.000000e+00> : vector<16xf32>
    %17 = vector.multi_reduction <add>, %12, %cst_10 [1] : vector<16x256xf32> to vector<16xf32>
    %18 = vector.shape_cast %17 : vector<16xf32> to vector<16x1xf32>
    %cst_11 = arith.constant 0.000000e+00 : f32
    %19 = vector.broadcast %cst_11 : f32 to vector<16x1xf32>
    %20 = arith.addf %19, %18 : vector<16x1xf32>
    %21 = arith.mulf %12, %12 : vector<16x256xf32>
    %cst_12 = arith.constant dense<0.000000e+00> : vector<16xf32>
    %22 = vector.multi_reduction <add>, %21, %cst_12 [1] : vector<16x256xf32> to vector<16xf32>
    %23 = vector.shape_cast %22 : vector<16xf32> to vector<16x1xf32>
    %cst_13 = arith.constant 0.000000e+00 : f32
    %24 = vector.broadcast %cst_13 : f32 to vector<16x1xf32>
    %25 = arith.addf %24, %23 : vector<16x1xf32>
    %cst_14 = arith.constant dense<0.000000e+00> : vector<16xf32>
    %26 = vector.multi_reduction <add>, %16, %cst_14 [1] : vector<16x256xf32> to vector<16xf32>
    %27 = vector.shape_cast %26 : vector<16xf32> to vector<16x1xf32>
    %cst_15 = arith.constant 0.000000e+00 : f32
    %28 = vector.broadcast %cst_15 : f32 to vector<16x1xf32>
    %29 = arith.addf %28, %27 : vector<16x1xf32>
    %30 = arith.mulf %16, %16 : vector<16x256xf32>
    %cst_16 = arith.constant dense<0.000000e+00> : vector<16xf32>
    %31 = vector.multi_reduction <add>, %30, %cst_16 [1] : vector<16x256xf32> to vector<16xf32>
    %32 = vector.shape_cast %31 : vector<16xf32> to vector<16x1xf32>
    %cst_17 = arith.constant 0.000000e+00 : f32
    %33 = vector.broadcast %cst_17 : f32 to vector<16x1xf32>
    %34 = arith.addf %33, %32 : vector<16x1xf32>
    %c1_18 = arith.constant 1 : index
    %c0_19 = arith.constant 0 : index
    %c0_20 = arith.constant 0 : index
    %35 = vector.load %arg1[%c1_18, %c0_19, %c0_20] : memref<4x16x128xbf16, #tpu.memory_space<vmem>>, vector<1x16x128xbf16>
    %36 = vector.shape_cast %35 : vector<1x16x128xbf16> to vector<16x128xbf16>
    %c1_21 = arith.constant 1 : index
    %c0_22 = arith.constant 0 : index
    %c0_23 = arith.constant 0 : index
    %37 = vector.load %arg2[%c1_21, %c0_22, %c0_23] : memref<4x128x256xbf16, #tpu.memory_space<vmem>>, vector<1x128x256xbf16>
    %38 = vector.shape_cast %37 : vector<1x128x256xbf16> to vector<128x256xbf16>
    %cst_24 = arith.constant dense<0.000000e+00> : vector<16x256xf32>
    %39 = tpu.matmul %36, %38, %cst_24 {dimension_numbers = #tpu.dot_dimension_numbers<[1], [0], [0], [1], [0, 0, 1, 1], [], []>} : vector<16x128xbf16>, vector<128x256xbf16>, vector<16x256xf32> -> vector<16x256xf32>
    %40 = vector.broadcast %0 : vector<16x1xf32> to vector<16x256xf32>
    %41 = arith.addf %39, %40 : vector<16x256xf32>
    %cst_25 = arith.constant 0.000000e+00 : f32
    %42 = vector.shape_cast %5 : vector<1x256xi1> to vector<1x256xi1>
    %43 = vector.broadcast %42 : vector<1x256xi1> to vector<16x256xi1>
    %44 = vector.broadcast %cst_25 : f32 to vector<16x256xf32>
    %45 = arith.select %43, %41, %44 : vector<16x256xi1>, vector<16x256xf32>
    %cst_26 = arith.constant dense<0.000000e+00> : vector<16xf32>
    %46 = vector.multi_reduction <add>, %41, %cst_26 [1] : vector<16x256xf32> to vector<16xf32>
    %47 = vector.shape_cast %46 : vector<16xf32> to vector<16x1xf32>
    %48 = arith.addf %20, %47 : vector<16x1xf32>
    %49 = arith.mulf %41, %41 : vector<16x256xf32>
    %cst_27 = arith.constant dense<0.000000e+00> : vector<16xf32>
    %50 = vector.multi_reduction <add>, %49, %cst_27 [1] : vector<16x256xf32> to vector<16xf32>
    %51 = vector.shape_cast %50 : vector<16xf32> to vector<16x1xf32>
    %52 = arith.addf %25, %51 : vector<16x1xf32>
    %cst_28 = arith.constant dense<0.000000e+00> : vector<16xf32>
    %53 = vector.multi_reduction <add>, %45, %cst_28 [1] : vector<16x256xf32> to vector<16xf32>
    %54 = vector.shape_cast %53 : vector<16xf32> to vector<16x1xf32>
    %55 = arith.addf %29, %54 : vector<16x1xf32>
    %56 = arith.mulf %45, %45 : vector<16x256xf32>
    %cst_29 = arith.constant dense<0.000000e+00> : vector<16xf32>
    %57 = vector.multi_reduction <add>, %56, %cst_29 [1] : vector<16x256xf32> to vector<16xf32>
    %58 = vector.shape_cast %57 : vector<16xf32> to vector<16x1xf32>
    %59 = arith.addf %34, %58 : vector<16x1xf32>
    %c2_30 = arith.constant 2 : index
    %c0_31 = arith.constant 0 : index
    %c0_32 = arith.constant 0 : index
    %60 = vector.load %arg1[%c2_30, %c0_31, %c0_32] : memref<4x16x128xbf16, #tpu.memory_space<vmem>>, vector<1x16x128xbf16>
    %61 = vector.shape_cast %60 : vector<1x16x128xbf16> to vector<16x128xbf16>
    %c2_33 = arith.constant 2 : index
    %c0_34 = arith.constant 0 : index
    %c0_35 = arith.constant 0 : index
    %62 = vector.load %arg2[%c2_33, %c0_34, %c0_35] : memref<4x128x256xbf16, #tpu.memory_space<vmem>>, vector<1x128x256xbf16>
    %63 = vector.shape_cast %62 : vector<1x128x256xbf16> to vector<128x256xbf16>
    %cst_36 = arith.constant dense<0.000000e+00> : vector<16x256xf32>
    %64 = tpu.matmul %61, %63, %cst_36 {dimension_numbers = #tpu.dot_dimension_numbers<[1], [0], [0], [1], [0, 0, 1, 1], [], []>} : vector<16x128xbf16>, vector<128x256xbf16>, vector<16x256xf32> -> vector<16x256xf32>
    %65 = vector.broadcast %0 : vector<16x1xf32> to vector<16x256xf32>
    %66 = arith.addf %64, %65 : vector<16x256xf32>
    %cst_37 = arith.constant 0.000000e+00 : f32
    %67 = vector.shape_cast %5 : vector<1x256xi1> to vector<1x256xi1>
    %68 = vector.broadcast %67 : vector<1x256xi1> to vector<16x256xi1>
    %69 = vector.broadcast %cst_37 : f32 to vector<16x256xf32>
    %70 = arith.select %68, %66, %69 : vector<16x256xi1>, vector<16x256xf32>
    %cst_38 = arith.constant dense<0.000000e+00> : vector<16xf32>
    %71 = vector.multi_reduction <add>, %66, %cst_38 [1] : vector<16x256xf32> to vector<16xf32>
    %72 = vector.shape_cast %71 : vector<16xf32> to vector<16x1xf32>
    %73 = arith.addf %48, %72 : vector<16x1xf32>
    %74 = arith.mulf %66, %66 : vector<16x256xf32>
    %cst_39 = arith.constant dense<0.000000e+00> : vector<16xf32>
    %75 = vector.multi_reduction <add>, %74, %cst_39 [1] : vector<16x256xf32> to vector<16xf32>
    %76 = vector.shape_cast %75 : vector<16xf32> to vector<16x1xf32>
    %77 = arith.addf %52, %76 : vector<16x1xf32>
    %cst_40 = arith.constant dense<0.000000e+00> : vector<16xf32>
    %78 = vector.multi_reduction <add>, %70, %cst_40 [1] : vector<16x256xf32> to vector<16xf32>
    %79 = vector.shape_cast %78 : vector<16xf32> to vector<16x1xf32>
    %80 = arith.addf %55, %79 : vector<16x1xf32>
    %81 = arith.mulf %70, %70 : vector<16x256xf32>
    %cst_41 = arith.constant dense<0.000000e+00> : vector<16xf32>
    %82 = vector.multi_reduction <add>, %81, %cst_41 [1] : vector<16x256xf32> to vector<16xf32>
    %83 = vector.shape_cast %82 : vector<16xf32> to vector<16x1xf32>
    %84 = arith.addf %59, %83 : vector<16x1xf32>
    %c3 = arith.constant 3 : index
    %c0_42 = arith.constant 0 : index
    %c0_43 = arith.constant 0 : index
    %85 = vector.load %arg1[%c3, %c0_42, %c0_43] : memref<4x16x128xbf16, #tpu.memory_space<vmem>>, vector<1x16x128xbf16>
    %86 = vector.shape_cast %85 : vector<1x16x128xbf16> to vector<16x128xbf16>
    %c3_44 = arith.constant 3 : index
    %c0_45 = arith.constant 0 : index
    %c0_46 = arith.constant 0 : index
    %87 = vector.load %arg2[%c3_44, %c0_45, %c0_46] : memref<4x128x256xbf16, #tpu.memory_space<vmem>>, vector<1x128x256xbf16>
    %88 = vector.shape_cast %87 : vector<1x128x256xbf16> to vector<128x256xbf16>
    %cst_47 = arith.constant dense<0.000000e+00> : vector<16x256xf32>
    %89 = tpu.matmul %86, %88, %cst_47 {dimension_numbers = #tpu.dot_dimension_numbers<[1], [0], [0], [1], [0, 0, 1, 1], [], []>} : vector<16x128xbf16>, vector<128x256xbf16>, vector<16x256xf32> -> vector<16x256xf32>
    %90 = vector.broadcast %0 : vector<16x1xf32> to vector<16x256xf32>
    %91 = arith.addf %89, %90 : vector<16x256xf32>
    %cst_48 = arith.constant 0.000000e+00 : f32
    %92 = vector.shape_cast %5 : vector<1x256xi1> to vector<1x256xi1>
    %93 = vector.broadcast %92 : vector<1x256xi1> to vector<16x256xi1>
    %94 = vector.broadcast %cst_48 : f32 to vector<16x256xf32>
    %95 = arith.select %93, %91, %94 : vector<16x256xi1>, vector<16x256xf32>
    %cst_49 = arith.constant dense<0.000000e+00> : vector<16xf32>
    %96 = vector.multi_reduction <add>, %91, %cst_49 [1] : vector<16x256xf32> to vector<16xf32>
    %97 = vector.shape_cast %96 : vector<16xf32> to vector<16x1xf32>
    %98 = arith.addf %73, %97 : vector<16x1xf32>
    %99 = arith.mulf %91, %91 : vector<16x256xf32>
    %cst_50 = arith.constant dense<0.000000e+00> : vector<16xf32>
    %100 = vector.multi_reduction <add>, %99, %cst_50 [1] : vector<16x256xf32> to vector<16xf32>
    %101 = vector.shape_cast %100 : vector<16xf32> to vector<16x1xf32>
    %102 = arith.addf %77, %101 : vector<16x1xf32>
    %cst_51 = arith.constant dense<0.000000e+00> : vector<16xf32>
    %103 = vector.multi_reduction <add>, %95, %cst_51 [1] : vector<16x256xf32> to vector<16xf32>
    %104 = vector.shape_cast %103 : vector<16xf32> to vector<16x1xf32>
    %105 = arith.addf %80, %104 : vector<16x1xf32>
    %106 = arith.mulf %95, %95 : vector<16x256xf32>
    %cst_52 = arith.constant dense<0.000000e+00> : vector<16xf32>
    %107 = vector.multi_reduction <add>, %106, %cst_52 [1] : vector<16x256xf32> to vector<16xf32>
    %108 = vector.shape_cast %107 : vector<16xf32> to vector<16x1xf32>
    %109 = arith.addf %84, %108 : vector<16x1xf32>
    %cst_53 = arith.constant 0.001953125 : f32
    %110 = vector.broadcast %cst_53 : f32 to vector<16x1xf32>
    %111 = arith.mulf %105, %110 : vector<16x1xf32>
    %cst_54 = arith.constant 0.001953125 : f32
    %112 = vector.broadcast %cst_54 : f32 to vector<16x1xf32>
    %113 = arith.mulf %109, %112 : vector<16x1xf32>
    %114 = arith.subf %98, %105 : vector<16x1xf32>
    %cst_55 = arith.constant 0.001953125 : f32
    %115 = vector.broadcast %cst_55 : f32 to vector<16x1xf32>
    %116 = arith.mulf %114, %115 : vector<16x1xf32>
    %117 = arith.subf %102, %109 : vector<16x1xf32>
    %cst_56 = arith.constant 0.001953125 : f32
    %118 = vector.broadcast %cst_56 : f32 to vector<16x1xf32>
    %119 = arith.mulf %117, %118 : vector<16x1xf32>
    %cst_57 = arith.constant 0.333333343 : f32
    %120 = vector.broadcast %cst_57 : f32 to vector<16x1xf32>
    %121 = arith.mulf %120, %116 : vector<16x1xf32>
    %cst_58 = arith.constant 0.666666686 : f32
    %122 = vector.broadcast %cst_58 : f32 to vector<16x1xf32>
    %123 = arith.mulf %122, %111 : vector<16x1xf32>
    %124 = arith.addf %121, %123 : vector<16x1xf32>
    %cst_59 = arith.constant 0.333333343 : f32
    %125 = vector.broadcast %cst_59 : f32 to vector<16x1xf32>
    %126 = arith.mulf %125, %119 : vector<16x1xf32>
    %cst_60 = arith.constant 0.666666686 : f32
    %127 = vector.broadcast %cst_60 : f32 to vector<16x1xf32>
    %128 = arith.mulf %127, %113 : vector<16x1xf32>
    %129 = arith.addf %126, %128 : vector<16x1xf32>
    %130 = arith.mulf %111, %111 : vector<16x1xf32>
    %131 = arith.subf %113, %130 : vector<16x1xf32>
    %cst_61 = arith.constant 9.99999974E-6 : f32
    %132 = vector.broadcast %cst_61 : f32 to vector<16x1xf32>
    %133 = arith.addf %131, %132 : vector<16x1xf32>
    %134 = math.rsqrt %133 : vector<16x1xf32>
    %135 = arith.mulf %134, %1 : vector<16x1xf32>
    %136 = arith.mulf %124, %124 : vector<16x1xf32>
    %137 = arith.subf %129, %136 : vector<16x1xf32>
    %cst_62 = arith.constant 9.99999974E-6 : f32
    %138 = vector.broadcast %cst_62 : f32 to vector<16x1xf32>
    %139 = arith.addf %137, %138 : vector<16x1xf32>
    %140 = math.rsqrt %139 : vector<16x1xf32>
    %141 = arith.mulf %140, %1 : vector<16x1xf32>
    %142 = arith.mulf %111, %135 : vector<16x1xf32>
    %143 = arith.subf %2, %142 : vector<16x1xf32>
    %144 = arith.mulf %124, %141 : vector<16x1xf32>
    %145 = arith.subf %2, %144 : vector<16x1xf32>
    %146 = vector.shape_cast %5 : vector<1x256xi1> to vector<1x256xi1>
    %147 = vector.broadcast %146 : vector<1x256xi1> to vector<16x256xi1>
    %148 = vector.shape_cast %135 : vector<16x1xf32> to vector<16x1xf32>
    %149 = vector.broadcast %148 : vector<16x1xf32> to vector<16x256xf32>
    %150 = vector.shape_cast %141 : vector<16x1xf32> to vector<16x1xf32>
    %151 = vector.broadcast %150 : vector<16x1xf32> to vector<16x256xf32>
    %152 = arith.select %147, %149, %151 : vector<16x256xi1>, vector<16x256xf32>
    %153 = vector.shape_cast %5 : vector<1x256xi1> to vector<1x256xi1>
    %154 = vector.broadcast %153 : vector<1x256xi1> to vector<16x256xi1>
    %155 = vector.shape_cast %143 : vector<16x1xf32> to vector<16x1xf32>
    %156 = vector.broadcast %155 : vector<16x1xf32> to vector<16x256xf32>
    %157 = vector.shape_cast %145 : vector<16x1xf32> to vector<16x1xf32>
    %158 = vector.broadcast %157 : vector<16x1xf32> to vector<16x256xf32>
    %159 = arith.select %154, %156, %158 : vector<16x256xi1>, vector<16x256xf32>
    %160 = arith.mulf %12, %152 : vector<16x256xf32>
    %161 = arith.addf %160, %159 : vector<16x256xf32>
    %cst_63 = arith.constant 0.000000e+00 : f32
    %162 = vector.broadcast %cst_63 : f32 to vector<16x256xf32>
    %163 = arith.cmpf oge, %161, %162 : vector<16x256xf32>
    %cst_64 = arith.constant 2.000000e-01 : f32
    %164 = vector.broadcast %cst_64 : f32 to vector<16x256xf32>
    %165 = arith.mulf %164, %161 : vector<16x256xf32>
    %166 = arith.select %163, %161, %165 : vector<16x256xi1>, vector<16x256xf32>
    %167 = arith.truncf %166 : vector<16x256xf32> to vector<16x256xbf16>
    %c0_65 = arith.constant 0 : index
    %c0_66 = arith.constant 0 : index
    %c0_67 = arith.constant 0 : index
    %168 = vector.load %arg4[%c0_65, %c0_66, %c0_67] : memref<4x16x256xbf16, #tpu.memory_space<vmem>>, vector<1x16x256xbf16>
    %169 = vector.shape_cast %168 : vector<1x16x256xbf16> to vector<16x256xbf16>
    %170 = vector.shape_cast %167 : vector<16x256xbf16> to vector<1x16x256xbf16>
    tpu.vector_store %arg4[%c0_65, %c0_66, %c0_67], %170 {strides = array<i32>} : memref<4x16x256xbf16, #tpu.memory_space<vmem>>, vector<1x16x256xbf16>,
    %171 = arith.mulf %41, %152 : vector<16x256xf32>
    %172 = arith.addf %171, %159 : vector<16x256xf32>
    %cst_68 = arith.constant 0.000000e+00 : f32
    %173 = vector.broadcast %cst_68 : f32 to vector<16x256xf32>
    %174 = arith.cmpf oge, %172, %173 : vector<16x256xf32>
    %cst_69 = arith.constant 2.000000e-01 : f32
    %175 = vector.broadcast %cst_69 : f32 to vector<16x256xf32>
    %176 = arith.mulf %175, %172 : vector<16x256xf32>
    %177 = arith.select %174, %172, %176 : vector<16x256xi1>, vector<16x256xf32>
    %178 = arith.truncf %177 : vector<16x256xf32> to vector<16x256xbf16>
    %c1_70 = arith.constant 1 : index
    %c0_71 = arith.constant 0 : index
    %c0_72 = arith.constant 0 : index
    %179 = vector.load %arg4[%c1_70, %c0_71, %c0_72] : memref<4x16x256xbf16, #tpu.memory_space<vmem>>, vector<1x16x256xbf16>
    %180 = vector.shape_cast %179 : vector<1x16x256xbf16> to vector<16x256xbf16>
    %181 = vector.shape_cast %178 : vector<16x256xbf16> to vector<1x16x256xbf16>
    tpu.vector_store %arg4[%c1_70, %c0_71, %c0_72], %181 {strides = array<i32>} : memref<4x16x256xbf16, #tpu.memory_space<vmem>>, vector<1x16x256xbf16>,
    %182 = arith.mulf %66, %152 : vector<16x256xf32>
    %183 = arith.addf %182, %159 : vector<16x256xf32>
    %cst_73 = arith.constant 0.000000e+00 : f32
    %184 = vector.broadcast %cst_73 : f32 to vector<16x256xf32>
    %185 = arith.cmpf oge, %183, %184 : vector<16x256xf32>
    %cst_74 = arith.constant 2.000000e-01 : f32
    %186 = vector.broadcast %cst_74 : f32 to vector<16x256xf32>
    %187 = arith.mulf %186, %183 : vector<16x256xf32>
    %188 = arith.select %185, %183, %187 : vector<16x256xi1>, vector<16x256xf32>
    %189 = arith.truncf %188 : vector<16x256xf32> to vector<16x256xbf16>
    %c2_75 = arith.constant 2 : index
    %c0_76 = arith.constant 0 : index
    %c0_77 = arith.constant 0 : index
    %190 = vector.load %arg4[%c2_75, %c0_76, %c0_77] : memref<4x16x256xbf16, #tpu.memory_space<vmem>>, vector<1x16x256xbf16>
    %191 = vector.shape_cast %190 : vector<1x16x256xbf16> to vector<16x256xbf16>
    %192 = vector.shape_cast %189 : vector<16x256xbf16> to vector<1x16x256xbf16>
    tpu.vector_store %arg4[%c2_75, %c0_76, %c0_77], %192 {strides = array<i32>} : memref<4x16x256xbf16, #tpu.memory_space<vmem>>, vector<1x16x256xbf16>,
    %193 = arith.mulf %91, %152 : vector<16x256xf32>
    %194 = arith.addf %193, %159 : vector<16x256xf32>
    %cst_78 = arith.constant 0.000000e+00 : f32
    %195 = vector.broadcast %cst_78 : f32 to vector<16x256xf32>
    %196 = arith.cmpf oge, %194, %195 : vector<16x256xf32>
    %cst_79 = arith.constant 2.000000e-01 : f32
    %197 = vector.broadcast %cst_79 : f32 to vector<16x256xf32>
    %198 = arith.mulf %197, %194 : vector<16x256xf32>
    %199 = arith.select %196, %194, %198 : vector<16x256xi1>, vector<16x256xf32>
    %200 = arith.truncf %199 : vector<16x256xf32> to vector<16x256xbf16>
    %c3_80 = arith.constant 3 : index
    %c0_81 = arith.constant 0 : index
    %c0_82 = arith.constant 0 : index
    %201 = vector.load %arg4[%c3_80, %c0_81, %c0_82] : memref<4x16x256xbf16, #tpu.memory_space<vmem>>, vector<1x16x256xbf16>
    %202 = vector.shape_cast %201 : vector<1x16x256xbf16> to vector<16x256xbf16>
    %203 = vector.shape_cast %200 : vector<16x256xbf16> to vector<1x16x256xbf16>
    tpu.vector_store %arg4[%c3_80, %c0_81, %c0_82], %203 {strides = array<i32>} : memref<4x16x256xbf16, #tpu.memory_space<vmem>>, vector<1x16x256xbf16>,
    return
  }
  func.func @transform_0(%arg0: i32) -> (i32, i32, i32) {
    %c0_i32 = arith.constant 0 : i32
    %c0_i32_0 = arith.constant 0 : i32
    %c0_i32_1 = arith.constant 0 : i32
    %c0_i32_2 = arith.constant 0 : i32
    return %c0_i32, %c0_i32_0, %c0_i32_1 : i32, i32, i32
  }
  func.func @transform_1(%arg0: i32) -> (i32, i32, i32) {
    %c0_i32 = arith.constant 0 : i32
    %c0_i32_0 = arith.constant 0 : i32
    %c0_i32_1 = arith.constant 0 : i32
    %c0_i32_2 = arith.constant 0 : i32
    return %c0_i32, %c0_i32_0, %c0_i32_1 : i32, i32, i32
  }
  func.func @transform_2(%arg0: i32) -> (i32, i32) {
    %c0_i32 = arith.constant 0 : i32
    %c0_i32_0 = arith.constant 0 : i32
    %c0_i32_1 = arith.constant 0 : i32
    return %c0_i32, %c0_i32_0 : i32, i32
  }
  func.func @transform_3(%arg0: i32) -> (i32, i32, i32) {
    %c0_i32 = arith.constant 0 : i32
    %c0_i32_0 = arith.constant 0 : i32
    %c0_i32_1 = arith.constant 0 : i32
    %c0_i32_2 = arith.constant 0 : i32
    return %c0_i32, %c0_i32_0, %c0_i32_1 : i32, i32, i32
  }
}

module attributes {stable_mosaic.version = 11 : i64} {
  func.func @_conv_vbn_lrelu_kernel(%arg0: i32, %arg1: memref<4x8x64xbf16, #tpu.memory_space<vmem>>, %arg2: memref<4x64x1024xbf16, #tpu.memory_space<vmem>>, %arg3: memref<8x8xf32, #tpu.memory_space<vmem>>, %arg4: memref<4x8x1024xbf16, #tpu.memory_space<vmem>>) attributes {dimension_semantics = [#tpu.dimension_semantics<arbitrary>], iteration_bounds = array<i64: 1>, scalar_prefetch = 0 : i64, scratch_operands = 0 : i64, tpu.core_type = #tpu.core_type<tc>, window_params = [{pipeline_mode = #tpu.pipeline_mode<synchronous>, transform_indices = @transform_0, window_bounds = array<i64: 4, 8, 64>}, {pipeline_mode = #tpu.pipeline_mode<synchronous>, transform_indices = @transform_1, window_bounds = array<i64: 4, 64, 1024>}, {pipeline_mode = #tpu.pipeline_mode<synchronous>, transform_indices = @transform_2, window_bounds = array<i64: 8, 8>}, {pipeline_mode = #tpu.pipeline_mode<synchronous>, transform_indices = @transform_3, window_bounds = array<i64: 4, 8, 1024>}]} {
    %c0 = arith.constant 0 : index
    %c0_0 = arith.constant 0 : index
    %0 = vector.load %arg3[%c0, %c0_0] : memref<8x8xf32, #tpu.memory_space<vmem>>, vector<8x1xf32>
    %c0_1 = arith.constant 0 : index
    %c1 = arith.constant 1 : index
    %1 = vector.load %arg3[%c0_1, %c1] : memref<8x8xf32, #tpu.memory_space<vmem>>, vector<8x1xf32>
    %c0_2 = arith.constant 0 : index
    %c2 = arith.constant 2 : index
    %2 = vector.load %arg3[%c0_2, %c2] : memref<8x8xf32, #tpu.memory_space<vmem>>, vector<8x1xf32>
    %3 = tpu.iota {dimensions = array<i32: 1>} : vector<1x1024xi32>
    %c512_i32 = arith.constant 512 : i32
    %4 = vector.broadcast %c512_i32 : i32 to vector<1x1024xi32>
    %5 = arith.cmpi slt, %3, %4 : vector<1x1024xi32>
    %c0_3 = arith.constant 0 : index
    %c0_4 = arith.constant 0 : index
    %c0_5 = arith.constant 0 : index
    %6 = vector.load %arg1[%c0_3, %c0_4, %c0_5] : memref<4x8x64xbf16, #tpu.memory_space<vmem>>, vector<1x8x64xbf16>
    %7 = vector.shape_cast %6 : vector<1x8x64xbf16> to vector<8x64xbf16>
    %c0_6 = arith.constant 0 : index
    %c0_7 = arith.constant 0 : index
    %c0_8 = arith.constant 0 : index
    %8 = vector.load %arg2[%c0_6, %c0_7, %c0_8] : memref<4x64x1024xbf16, #tpu.memory_space<vmem>>, vector<1x64x1024xbf16>
    %9 = vector.shape_cast %8 : vector<1x64x1024xbf16> to vector<64x1024xbf16>
    %cst = arith.constant dense<0.000000e+00> : vector<8x1024xf32>
    %10 = tpu.matmul %7, %9, %cst {dimension_numbers = #tpu.dot_dimension_numbers<[1], [0], [0], [1], [0, 0, 1, 1], [], []>} : vector<8x64xbf16>, vector<64x1024xbf16>, vector<8x1024xf32> -> vector<8x1024xf32>
    %11 = vector.broadcast %0 : vector<8x1xf32> to vector<8x1024xf32>
    %12 = arith.addf %10, %11 : vector<8x1024xf32>
    %cst_9 = arith.constant 0.000000e+00 : f32
    %13 = vector.shape_cast %5 : vector<1x1024xi1> to vector<1x1024xi1>
    %14 = vector.broadcast %13 : vector<1x1024xi1> to vector<8x1024xi1>
    %15 = vector.broadcast %cst_9 : f32 to vector<8x1024xf32>
    %16 = arith.select %14, %12, %15 : vector<8x1024xi1>, vector<8x1024xf32>
    %cst_10 = arith.constant dense<0.000000e+00> : vector<8xf32>
    %17 = vector.multi_reduction <add>, %12, %cst_10 [1] : vector<8x1024xf32> to vector<8xf32>
    %18 = vector.shape_cast %17 : vector<8xf32> to vector<8x1xf32>
    %cst_11 = arith.constant 0.000000e+00 : f32
    %19 = vector.broadcast %cst_11 : f32 to vector<8x1xf32>
    %20 = arith.addf %19, %18 : vector<8x1xf32>
    %21 = arith.mulf %12, %12 : vector<8x1024xf32>
    %cst_12 = arith.constant dense<0.000000e+00> : vector<8xf32>
    %22 = vector.multi_reduction <add>, %21, %cst_12 [1] : vector<8x1024xf32> to vector<8xf32>
    %23 = vector.shape_cast %22 : vector<8xf32> to vector<8x1xf32>
    %cst_13 = arith.constant 0.000000e+00 : f32
    %24 = vector.broadcast %cst_13 : f32 to vector<8x1xf32>
    %25 = arith.addf %24, %23 : vector<8x1xf32>
    %cst_14 = arith.constant dense<0.000000e+00> : vector<8xf32>
    %26 = vector.multi_reduction <add>, %16, %cst_14 [1] : vector<8x1024xf32> to vector<8xf32>
    %27 = vector.shape_cast %26 : vector<8xf32> to vector<8x1xf32>
    %cst_15 = arith.constant 0.000000e+00 : f32
    %28 = vector.broadcast %cst_15 : f32 to vector<8x1xf32>
    %29 = arith.addf %28, %27 : vector<8x1xf32>
    %30 = arith.mulf %16, %16 : vector<8x1024xf32>
    %cst_16 = arith.constant dense<0.000000e+00> : vector<8xf32>
    %31 = vector.multi_reduction <add>, %30, %cst_16 [1] : vector<8x1024xf32> to vector<8xf32>
    %32 = vector.shape_cast %31 : vector<8xf32> to vector<8x1xf32>
    %cst_17 = arith.constant 0.000000e+00 : f32
    %33 = vector.broadcast %cst_17 : f32 to vector<8x1xf32>
    %34 = arith.addf %33, %32 : vector<8x1xf32>
    %c1_18 = arith.constant 1 : index
    %c0_19 = arith.constant 0 : index
    %c0_20 = arith.constant 0 : index
    %35 = vector.load %arg1[%c1_18, %c0_19, %c0_20] : memref<4x8x64xbf16, #tpu.memory_space<vmem>>, vector<1x8x64xbf16>
    %36 = vector.shape_cast %35 : vector<1x8x64xbf16> to vector<8x64xbf16>
    %c1_21 = arith.constant 1 : index
    %c0_22 = arith.constant 0 : index
    %c0_23 = arith.constant 0 : index
    %37 = vector.load %arg2[%c1_21, %c0_22, %c0_23] : memref<4x64x1024xbf16, #tpu.memory_space<vmem>>, vector<1x64x1024xbf16>
    %38 = vector.shape_cast %37 : vector<1x64x1024xbf16> to vector<64x1024xbf16>
    %cst_24 = arith.constant dense<0.000000e+00> : vector<8x1024xf32>
    %39 = tpu.matmul %36, %38, %cst_24 {dimension_numbers = #tpu.dot_dimension_numbers<[1], [0], [0], [1], [0, 0, 1, 1], [], []>} : vector<8x64xbf16>, vector<64x1024xbf16>, vector<8x1024xf32> -> vector<8x1024xf32>
    %40 = vector.broadcast %0 : vector<8x1xf32> to vector<8x1024xf32>
    %41 = arith.addf %39, %40 : vector<8x1024xf32>
    %cst_25 = arith.constant 0.000000e+00 : f32
    %42 = vector.shape_cast %5 : vector<1x1024xi1> to vector<1x1024xi1>
    %43 = vector.broadcast %42 : vector<1x1024xi1> to vector<8x1024xi1>
    %44 = vector.broadcast %cst_25 : f32 to vector<8x1024xf32>
    %45 = arith.select %43, %41, %44 : vector<8x1024xi1>, vector<8x1024xf32>
    %cst_26 = arith.constant dense<0.000000e+00> : vector<8xf32>
    %46 = vector.multi_reduction <add>, %41, %cst_26 [1] : vector<8x1024xf32> to vector<8xf32>
    %47 = vector.shape_cast %46 : vector<8xf32> to vector<8x1xf32>
    %48 = arith.addf %20, %47 : vector<8x1xf32>
    %49 = arith.mulf %41, %41 : vector<8x1024xf32>
    %cst_27 = arith.constant dense<0.000000e+00> : vector<8xf32>
    %50 = vector.multi_reduction <add>, %49, %cst_27 [1] : vector<8x1024xf32> to vector<8xf32>
    %51 = vector.shape_cast %50 : vector<8xf32> to vector<8x1xf32>
    %52 = arith.addf %25, %51 : vector<8x1xf32>
    %cst_28 = arith.constant dense<0.000000e+00> : vector<8xf32>
    %53 = vector.multi_reduction <add>, %45, %cst_28 [1] : vector<8x1024xf32> to vector<8xf32>
    %54 = vector.shape_cast %53 : vector<8xf32> to vector<8x1xf32>
    %55 = arith.addf %29, %54 : vector<8x1xf32>
    %56 = arith.mulf %45, %45 : vector<8x1024xf32>
    %cst_29 = arith.constant dense<0.000000e+00> : vector<8xf32>
    %57 = vector.multi_reduction <add>, %56, %cst_29 [1] : vector<8x1024xf32> to vector<8xf32>
    %58 = vector.shape_cast %57 : vector<8xf32> to vector<8x1xf32>
    %59 = arith.addf %34, %58 : vector<8x1xf32>
    %c2_30 = arith.constant 2 : index
    %c0_31 = arith.constant 0 : index
    %c0_32 = arith.constant 0 : index
    %60 = vector.load %arg1[%c2_30, %c0_31, %c0_32] : memref<4x8x64xbf16, #tpu.memory_space<vmem>>, vector<1x8x64xbf16>
    %61 = vector.shape_cast %60 : vector<1x8x64xbf16> to vector<8x64xbf16>
    %c2_33 = arith.constant 2 : index
    %c0_34 = arith.constant 0 : index
    %c0_35 = arith.constant 0 : index
    %62 = vector.load %arg2[%c2_33, %c0_34, %c0_35] : memref<4x64x1024xbf16, #tpu.memory_space<vmem>>, vector<1x64x1024xbf16>
    %63 = vector.shape_cast %62 : vector<1x64x1024xbf16> to vector<64x1024xbf16>
    %cst_36 = arith.constant dense<0.000000e+00> : vector<8x1024xf32>
    %64 = tpu.matmul %61, %63, %cst_36 {dimension_numbers = #tpu.dot_dimension_numbers<[1], [0], [0], [1], [0, 0, 1, 1], [], []>} : vector<8x64xbf16>, vector<64x1024xbf16>, vector<8x1024xf32> -> vector<8x1024xf32>
    %65 = vector.broadcast %0 : vector<8x1xf32> to vector<8x1024xf32>
    %66 = arith.addf %64, %65 : vector<8x1024xf32>
    %cst_37 = arith.constant 0.000000e+00 : f32
    %67 = vector.shape_cast %5 : vector<1x1024xi1> to vector<1x1024xi1>
    %68 = vector.broadcast %67 : vector<1x1024xi1> to vector<8x1024xi1>
    %69 = vector.broadcast %cst_37 : f32 to vector<8x1024xf32>
    %70 = arith.select %68, %66, %69 : vector<8x1024xi1>, vector<8x1024xf32>
    %cst_38 = arith.constant dense<0.000000e+00> : vector<8xf32>
    %71 = vector.multi_reduction <add>, %66, %cst_38 [1] : vector<8x1024xf32> to vector<8xf32>
    %72 = vector.shape_cast %71 : vector<8xf32> to vector<8x1xf32>
    %73 = arith.addf %48, %72 : vector<8x1xf32>
    %74 = arith.mulf %66, %66 : vector<8x1024xf32>
    %cst_39 = arith.constant dense<0.000000e+00> : vector<8xf32>
    %75 = vector.multi_reduction <add>, %74, %cst_39 [1] : vector<8x1024xf32> to vector<8xf32>
    %76 = vector.shape_cast %75 : vector<8xf32> to vector<8x1xf32>
    %77 = arith.addf %52, %76 : vector<8x1xf32>
    %cst_40 = arith.constant dense<0.000000e+00> : vector<8xf32>
    %78 = vector.multi_reduction <add>, %70, %cst_40 [1] : vector<8x1024xf32> to vector<8xf32>
    %79 = vector.shape_cast %78 : vector<8xf32> to vector<8x1xf32>
    %80 = arith.addf %55, %79 : vector<8x1xf32>
    %81 = arith.mulf %70, %70 : vector<8x1024xf32>
    %cst_41 = arith.constant dense<0.000000e+00> : vector<8xf32>
    %82 = vector.multi_reduction <add>, %81, %cst_41 [1] : vector<8x1024xf32> to vector<8xf32>
    %83 = vector.shape_cast %82 : vector<8xf32> to vector<8x1xf32>
    %84 = arith.addf %59, %83 : vector<8x1xf32>
    %c3 = arith.constant 3 : index
    %c0_42 = arith.constant 0 : index
    %c0_43 = arith.constant 0 : index
    %85 = vector.load %arg1[%c3, %c0_42, %c0_43] : memref<4x8x64xbf16, #tpu.memory_space<vmem>>, vector<1x8x64xbf16>
    %86 = vector.shape_cast %85 : vector<1x8x64xbf16> to vector<8x64xbf16>
    %c3_44 = arith.constant 3 : index
    %c0_45 = arith.constant 0 : index
    %c0_46 = arith.constant 0 : index
    %87 = vector.load %arg2[%c3_44, %c0_45, %c0_46] : memref<4x64x1024xbf16, #tpu.memory_space<vmem>>, vector<1x64x1024xbf16>
    %88 = vector.shape_cast %87 : vector<1x64x1024xbf16> to vector<64x1024xbf16>
    %cst_47 = arith.constant dense<0.000000e+00> : vector<8x1024xf32>
    %89 = tpu.matmul %86, %88, %cst_47 {dimension_numbers = #tpu.dot_dimension_numbers<[1], [0], [0], [1], [0, 0, 1, 1], [], []>} : vector<8x64xbf16>, vector<64x1024xbf16>, vector<8x1024xf32> -> vector<8x1024xf32>
    %90 = vector.broadcast %0 : vector<8x1xf32> to vector<8x1024xf32>
    %91 = arith.addf %89, %90 : vector<8x1024xf32>
    %cst_48 = arith.constant 0.000000e+00 : f32
    %92 = vector.shape_cast %5 : vector<1x1024xi1> to vector<1x1024xi1>
    %93 = vector.broadcast %92 : vector<1x1024xi1> to vector<8x1024xi1>
    %94 = vector.broadcast %cst_48 : f32 to vector<8x1024xf32>
    %95 = arith.select %93, %91, %94 : vector<8x1024xi1>, vector<8x1024xf32>
    %cst_49 = arith.constant dense<0.000000e+00> : vector<8xf32>
    %96 = vector.multi_reduction <add>, %91, %cst_49 [1] : vector<8x1024xf32> to vector<8xf32>
    %97 = vector.shape_cast %96 : vector<8xf32> to vector<8x1xf32>
    %98 = arith.addf %73, %97 : vector<8x1xf32>
    %99 = arith.mulf %91, %91 : vector<8x1024xf32>
    %cst_50 = arith.constant dense<0.000000e+00> : vector<8xf32>
    %100 = vector.multi_reduction <add>, %99, %cst_50 [1] : vector<8x1024xf32> to vector<8xf32>
    %101 = vector.shape_cast %100 : vector<8xf32> to vector<8x1xf32>
    %102 = arith.addf %77, %101 : vector<8x1xf32>
    %cst_51 = arith.constant dense<0.000000e+00> : vector<8xf32>
    %103 = vector.multi_reduction <add>, %95, %cst_51 [1] : vector<8x1024xf32> to vector<8xf32>
    %104 = vector.shape_cast %103 : vector<8xf32> to vector<8x1xf32>
    %105 = arith.addf %80, %104 : vector<8x1xf32>
    %106 = arith.mulf %95, %95 : vector<8x1024xf32>
    %cst_52 = arith.constant dense<0.000000e+00> : vector<8xf32>
    %107 = vector.multi_reduction <add>, %106, %cst_52 [1] : vector<8x1024xf32> to vector<8xf32>
    %108 = vector.shape_cast %107 : vector<8xf32> to vector<8x1xf32>
    %109 = arith.addf %84, %108 : vector<8x1xf32>
    %cst_53 = arith.constant 4.8828125E-4 : f32
    %110 = vector.broadcast %cst_53 : f32 to vector<8x1xf32>
    %111 = arith.mulf %105, %110 : vector<8x1xf32>
    %cst_54 = arith.constant 4.8828125E-4 : f32
    %112 = vector.broadcast %cst_54 : f32 to vector<8x1xf32>
    %113 = arith.mulf %109, %112 : vector<8x1xf32>
    %114 = arith.subf %98, %105 : vector<8x1xf32>
    %cst_55 = arith.constant 4.8828125E-4 : f32
    %115 = vector.broadcast %cst_55 : f32 to vector<8x1xf32>
    %116 = arith.mulf %114, %115 : vector<8x1xf32>
    %117 = arith.subf %102, %109 : vector<8x1xf32>
    %cst_56 = arith.constant 4.8828125E-4 : f32
    %118 = vector.broadcast %cst_56 : f32 to vector<8x1xf32>
    %119 = arith.mulf %117, %118 : vector<8x1xf32>
    %cst_57 = arith.constant 0.333333343 : f32
    %120 = vector.broadcast %cst_57 : f32 to vector<8x1xf32>
    %121 = arith.mulf %120, %116 : vector<8x1xf32>
    %cst_58 = arith.constant 0.666666686 : f32
    %122 = vector.broadcast %cst_58 : f32 to vector<8x1xf32>
    %123 = arith.mulf %122, %111 : vector<8x1xf32>
    %124 = arith.addf %121, %123 : vector<8x1xf32>
    %cst_59 = arith.constant 0.333333343 : f32
    %125 = vector.broadcast %cst_59 : f32 to vector<8x1xf32>
    %126 = arith.mulf %125, %119 : vector<8x1xf32>
    %cst_60 = arith.constant 0.666666686 : f32
    %127 = vector.broadcast %cst_60 : f32 to vector<8x1xf32>
    %128 = arith.mulf %127, %113 : vector<8x1xf32>
    %129 = arith.addf %126, %128 : vector<8x1xf32>
    %130 = arith.mulf %111, %111 : vector<8x1xf32>
    %131 = arith.subf %113, %130 : vector<8x1xf32>
    %cst_61 = arith.constant 9.99999974E-6 : f32
    %132 = vector.broadcast %cst_61 : f32 to vector<8x1xf32>
    %133 = arith.addf %131, %132 : vector<8x1xf32>
    %134 = math.rsqrt %133 : vector<8x1xf32>
    %135 = arith.mulf %134, %1 : vector<8x1xf32>
    %136 = arith.mulf %124, %124 : vector<8x1xf32>
    %137 = arith.subf %129, %136 : vector<8x1xf32>
    %cst_62 = arith.constant 9.99999974E-6 : f32
    %138 = vector.broadcast %cst_62 : f32 to vector<8x1xf32>
    %139 = arith.addf %137, %138 : vector<8x1xf32>
    %140 = math.rsqrt %139 : vector<8x1xf32>
    %141 = arith.mulf %140, %1 : vector<8x1xf32>
    %142 = arith.mulf %111, %135 : vector<8x1xf32>
    %143 = arith.subf %2, %142 : vector<8x1xf32>
    %144 = arith.mulf %124, %141 : vector<8x1xf32>
    %145 = arith.subf %2, %144 : vector<8x1xf32>
    %146 = vector.shape_cast %5 : vector<1x1024xi1> to vector<1x1024xi1>
    %147 = vector.broadcast %146 : vector<1x1024xi1> to vector<8x1024xi1>
    %148 = vector.shape_cast %135 : vector<8x1xf32> to vector<8x1xf32>
    %149 = vector.broadcast %148 : vector<8x1xf32> to vector<8x1024xf32>
    %150 = vector.shape_cast %141 : vector<8x1xf32> to vector<8x1xf32>
    %151 = vector.broadcast %150 : vector<8x1xf32> to vector<8x1024xf32>
    %152 = arith.select %147, %149, %151 : vector<8x1024xi1>, vector<8x1024xf32>
    %153 = vector.shape_cast %5 : vector<1x1024xi1> to vector<1x1024xi1>
    %154 = vector.broadcast %153 : vector<1x1024xi1> to vector<8x1024xi1>
    %155 = vector.shape_cast %143 : vector<8x1xf32> to vector<8x1xf32>
    %156 = vector.broadcast %155 : vector<8x1xf32> to vector<8x1024xf32>
    %157 = vector.shape_cast %145 : vector<8x1xf32> to vector<8x1xf32>
    %158 = vector.broadcast %157 : vector<8x1xf32> to vector<8x1024xf32>
    %159 = arith.select %154, %156, %158 : vector<8x1024xi1>, vector<8x1024xf32>
    %160 = arith.mulf %12, %152 : vector<8x1024xf32>
    %161 = arith.addf %160, %159 : vector<8x1024xf32>
    %cst_63 = arith.constant 0.000000e+00 : f32
    %162 = vector.broadcast %cst_63 : f32 to vector<8x1024xf32>
    %163 = arith.cmpf oge, %161, %162 : vector<8x1024xf32>
    %cst_64 = arith.constant 2.000000e-01 : f32
    %164 = vector.broadcast %cst_64 : f32 to vector<8x1024xf32>
    %165 = arith.mulf %164, %161 : vector<8x1024xf32>
    %166 = arith.select %163, %161, %165 : vector<8x1024xi1>, vector<8x1024xf32>
    %167 = arith.truncf %166 : vector<8x1024xf32> to vector<8x1024xbf16>
    %c0_65 = arith.constant 0 : index
    %c0_66 = arith.constant 0 : index
    %c0_67 = arith.constant 0 : index
    %168 = vector.load %arg4[%c0_65, %c0_66, %c0_67] : memref<4x8x1024xbf16, #tpu.memory_space<vmem>>, vector<1x8x1024xbf16>
    %169 = vector.shape_cast %168 : vector<1x8x1024xbf16> to vector<8x1024xbf16>
    %170 = vector.shape_cast %167 : vector<8x1024xbf16> to vector<1x8x1024xbf16>
    tpu.vector_store %arg4[%c0_65, %c0_66, %c0_67], %170 {strides = array<i32>} : memref<4x8x1024xbf16, #tpu.memory_space<vmem>>, vector<1x8x1024xbf16>,
    %171 = arith.mulf %41, %152 : vector<8x1024xf32>
    %172 = arith.addf %171, %159 : vector<8x1024xf32>
    %cst_68 = arith.constant 0.000000e+00 : f32
    %173 = vector.broadcast %cst_68 : f32 to vector<8x1024xf32>
    %174 = arith.cmpf oge, %172, %173 : vector<8x1024xf32>
    %cst_69 = arith.constant 2.000000e-01 : f32
    %175 = vector.broadcast %cst_69 : f32 to vector<8x1024xf32>
    %176 = arith.mulf %175, %172 : vector<8x1024xf32>
    %177 = arith.select %174, %172, %176 : vector<8x1024xi1>, vector<8x1024xf32>
    %178 = arith.truncf %177 : vector<8x1024xf32> to vector<8x1024xbf16>
    %c1_70 = arith.constant 1 : index
    %c0_71 = arith.constant 0 : index
    %c0_72 = arith.constant 0 : index
    %179 = vector.load %arg4[%c1_70, %c0_71, %c0_72] : memref<4x8x1024xbf16, #tpu.memory_space<vmem>>, vector<1x8x1024xbf16>
    %180 = vector.shape_cast %179 : vector<1x8x1024xbf16> to vector<8x1024xbf16>
    %181 = vector.shape_cast %178 : vector<8x1024xbf16> to vector<1x8x1024xbf16>
    tpu.vector_store %arg4[%c1_70, %c0_71, %c0_72], %181 {strides = array<i32>} : memref<4x8x1024xbf16, #tpu.memory_space<vmem>>, vector<1x8x1024xbf16>,
    %182 = arith.mulf %66, %152 : vector<8x1024xf32>
    %183 = arith.addf %182, %159 : vector<8x1024xf32>
    %cst_73 = arith.constant 0.000000e+00 : f32
    %184 = vector.broadcast %cst_73 : f32 to vector<8x1024xf32>
    %185 = arith.cmpf oge, %183, %184 : vector<8x1024xf32>
    %cst_74 = arith.constant 2.000000e-01 : f32
    %186 = vector.broadcast %cst_74 : f32 to vector<8x1024xf32>
    %187 = arith.mulf %186, %183 : vector<8x1024xf32>
    %188 = arith.select %185, %183, %187 : vector<8x1024xi1>, vector<8x1024xf32>
    %189 = arith.truncf %188 : vector<8x1024xf32> to vector<8x1024xbf16>
    %c2_75 = arith.constant 2 : index
    %c0_76 = arith.constant 0 : index
    %c0_77 = arith.constant 0 : index
    %190 = vector.load %arg4[%c2_75, %c0_76, %c0_77] : memref<4x8x1024xbf16, #tpu.memory_space<vmem>>, vector<1x8x1024xbf16>
    %191 = vector.shape_cast %190 : vector<1x8x1024xbf16> to vector<8x1024xbf16>
    %192 = vector.shape_cast %189 : vector<8x1024xbf16> to vector<1x8x1024xbf16>
    tpu.vector_store %arg4[%c2_75, %c0_76, %c0_77], %192 {strides = array<i32>} : memref<4x8x1024xbf16, #tpu.memory_space<vmem>>, vector<1x8x1024xbf16>,
    %193 = arith.mulf %91, %152 : vector<8x1024xf32>
    %194 = arith.addf %193, %159 : vector<8x1024xf32>
    %cst_78 = arith.constant 0.000000e+00 : f32
    %195 = vector.broadcast %cst_78 : f32 to vector<8x1024xf32>
    %196 = arith.cmpf oge, %194, %195 : vector<8x1024xf32>
    %cst_79 = arith.constant 2.000000e-01 : f32
    %197 = vector.broadcast %cst_79 : f32 to vector<8x1024xf32>
    %198 = arith.mulf %197, %194 : vector<8x1024xf32>
    %199 = arith.select %196, %194, %198 : vector<8x1024xi1>, vector<8x1024xf32>
    %200 = arith.truncf %199 : vector<8x1024xf32> to vector<8x1024xbf16>
    %c3_80 = arith.constant 3 : index
    %c0_81 = arith.constant 0 : index
    %c0_82 = arith.constant 0 : index
    %201 = vector.load %arg4[%c3_80, %c0_81, %c0_82] : memref<4x8x1024xbf16, #tpu.memory_space<vmem>>, vector<1x8x1024xbf16>
    %202 = vector.shape_cast %201 : vector<1x8x1024xbf16> to vector<8x1024xbf16>
    %203 = vector.shape_cast %200 : vector<8x1024xbf16> to vector<1x8x1024xbf16>
    tpu.vector_store %arg4[%c3_80, %c0_81, %c0_82], %203 {strides = array<i32>} : memref<4x8x1024xbf16, #tpu.memory_space<vmem>>, vector<1x8x1024xbf16>,
    return
  }
  func.func @transform_0(%arg0: i32) -> (i32, i32, i32) {
    %c0_i32 = arith.constant 0 : i32
    %c0_i32_0 = arith.constant 0 : i32
    %c0_i32_1 = arith.constant 0 : i32
    %c0_i32_2 = arith.constant 0 : i32
    return %c0_i32, %c0_i32_0, %c0_i32_1 : i32, i32, i32
  }
  func.func @transform_1(%arg0: i32) -> (i32, i32, i32) {
    %c0_i32 = arith.constant 0 : i32
    %c0_i32_0 = arith.constant 0 : i32
    %c0_i32_1 = arith.constant 0 : i32
    %c0_i32_2 = arith.constant 0 : i32
    return %c0_i32, %c0_i32_0, %c0_i32_1 : i32, i32, i32
  }
  func.func @transform_2(%arg0: i32) -> (i32, i32) {
    %c0_i32 = arith.constant 0 : i32
    %c0_i32_0 = arith.constant 0 : i32
    %c0_i32_1 = arith.constant 0 : i32
    return %c0_i32, %c0_i32_0 : i32, i32
  }
  func.func @transform_3(%arg0: i32) -> (i32, i32, i32) {
    %c0_i32 = arith.constant 0 : i32
    %c0_i32_0 = arith.constant 0 : i32
    %c0_i32_1 = arith.constant 0 : i32
    %c0_i32_2 = arith.constant 0 : i32
    return %c0_i32, %c0_i32_0, %c0_i32_1 : i32, i32, i32
  }
}

module attributes {stable_mosaic.version = 11 : i64} {
  func.func @_conv_bias_tanh_kernel(%arg0: i32, %arg1: i32, %arg2: memref<1x3x32xbf16, #tpu.memory_space<vmem>>, %arg3: memref<1x32x2048xbf16, #tpu.memory_space<vmem>>, %arg4: memref<3x1xf32, #tpu.memory_space<vmem>>, %arg5: memref<1x3x2048xf32, #tpu.memory_space<vmem>>) attributes {dimension_semantics = [#tpu.dimension_semantics<parallel>, #tpu.dimension_semantics<parallel>], iteration_bounds = array<i64: 4, 1>, scalar_prefetch = 0 : i64, scratch_operands = 0 : i64, tpu.core_type = #tpu.core_type<tc>, window_params = [{transform_indices = @transform_0, window_bounds = array<i64: 1, 3, 32>}, {transform_indices = @transform_1, window_bounds = array<i64: 1, 32, 2048>}, {pipeline_mode = #tpu.pipeline_mode<synchronous>, transform_indices = @transform_2, window_bounds = array<i64: 3, 1>}, {transform_indices = @transform_3, window_bounds = array<i64: 1, 3, 2048>}]} {
    %c0 = arith.constant 0 : index
    %c0_0 = arith.constant 0 : index
    %c0_1 = arith.constant 0 : index
    %0 = vector.load %arg2[%c0, %c0_0, %c0_1] : memref<1x3x32xbf16, #tpu.memory_space<vmem>>, vector<1x3x32xbf16>
    %1 = vector.shape_cast %0 : vector<1x3x32xbf16> to vector<3x32xbf16>
    %c0_2 = arith.constant 0 : index
    %c0_3 = arith.constant 0 : index
    %c0_4 = arith.constant 0 : index
    %2 = vector.load %arg3[%c0_2, %c0_3, %c0_4] : memref<1x32x2048xbf16, #tpu.memory_space<vmem>>, vector<1x32x2048xbf16>
    %3 = vector.shape_cast %2 : vector<1x32x2048xbf16> to vector<32x2048xbf16>
    %cst = arith.constant dense<0.000000e+00> : vector<3x2048xf32>
    %4 = tpu.matmul %1, %3, %cst {dimension_numbers = #tpu.dot_dimension_numbers<[1], [0], [0], [1], [0, 0, 1, 1], [], []>} : vector<3x32xbf16>, vector<32x2048xbf16>, vector<3x2048xf32> -> vector<3x2048xf32>
    %c0_5 = arith.constant 0 : index
    %c0_6 = arith.constant 0 : index
    %5 = vector.load %arg4[%c0_5, %c0_6] : memref<3x1xf32, #tpu.memory_space<vmem>>, vector<3x1xf32>
    %6 = vector.broadcast %5 : vector<3x1xf32> to vector<3x2048xf32>
    %7 = arith.addf %4, %6 : vector<3x2048xf32>
    %8 = math.tanh %7 : vector<3x2048xf32>
    %c0_7 = arith.constant 0 : index
    %c0_8 = arith.constant 0 : index
    %c0_9 = arith.constant 0 : index
    %9 = vector.load %arg5[%c0_7, %c0_8, %c0_9] : memref<1x3x2048xf32, #tpu.memory_space<vmem>>, vector<1x3x2048xf32>
    %10 = vector.shape_cast %9 : vector<1x3x2048xf32> to vector<3x2048xf32>
    %11 = vector.shape_cast %8 : vector<3x2048xf32> to vector<1x3x2048xf32>
    tpu.vector_store %arg5[%c0_7, %c0_8, %c0_9], %11 {strides = array<i32>} : memref<1x3x2048xf32, #tpu.memory_space<vmem>>, vector<1x3x2048xf32>,
    return
  }
  func.func @transform_0(%arg0: i32, %arg1: i32) -> (i32, i32, i32) {
    %c0_i32 = arith.constant 0 : i32
    %c0_i32_0 = arith.constant 0 : i32
    %c0_i32_1 = arith.constant 0 : i32
    return %arg0, %c0_i32, %c0_i32_0 : i32, i32, i32
  }
  func.func @transform_1(%arg0: i32, %arg1: i32) -> (i32, i32, i32) {
    %c0_i32 = arith.constant 0 : i32
    %c0_i32_0 = arith.constant 0 : i32
    return %arg0, %c0_i32, %arg1 : i32, i32, i32
  }
  func.func @transform_2(%arg0: i32, %arg1: i32) -> (i32, i32) {
    %c0_i32 = arith.constant 0 : i32
    %c0_i32_0 = arith.constant 0 : i32
    %c0_i32_1 = arith.constant 0 : i32
    return %c0_i32, %c0_i32_0 : i32, i32
  }
  func.func @transform_3(%arg0: i32, %arg1: i32) -> (i32, i32, i32) {
    %c0_i32 = arith.constant 0 : i32
    %c0_i32_0 = arith.constant 0 : i32
    return %arg0, %c0_i32, %arg1 : i32, i32, i32
  }
}

</mosaic_0001>

<llo_original>
// kernel: generator_forward.6
$region0: #{generator_forward.6}
  #allocation0 [shape = 'u32[]', space=smem, size = 0x4, offset = 0x4, fixed_abs, tag = 'smem constant byte address 0x4 - core index']
  #allocation1 [shape = 'u32[144,128]{1,0:T(1,128)}', space=vmem, size = 0x12000, scoped, tag = 'internal scratch']
  %s0 = inlined_call_operand.hbm [shape: bf16[1,64,1600], index: 0, kind: input, shape index: {}]
  %s1 = inlined_call_operand.vmem [shape: bf16[1,1600,64], index: 1, kind: input, shape index: {}]
  %s2 = inlined_call_operand.vmem [shape: f32[64,8], index: 2, kind: input, shape index: {}]
  %s3 = inlined_call_operand.vmem [shape: bf16[1,64,64], index: 3, kind: output, shape index: {}]
  %s4 = sld [smem:[#allocation0]]
  $region26: #{generator_forward.6} parent=0
    _
  %s6 = ssub.s32 1, %s4
  %s7 = scalar_select 0, %s6, %s4
  $region1: #{generator_forward.6} parent=0
    #allocation2 [shape = 'u8[212992]{0}', space=vmem, size = 0x34000, scoped, tag = 'input window, operand 0, single buffered']
    #allocation3 [shape = 's32[1]{0}', space=sflag, size = 0x4, scoped, tag = 'scoped memory for generator_forward.6']
    %8 = vsyncpa [#allocation3], 0
    // Predicated region
    $region2: #{generator_forward.6} parent=1 // pred_check
      _
    $region3: #{generator_forward.6} parent=1 // pred_check_branch
      %10 = sbr.rel (0) target = $region5
    $region4: #{generator_forward.6} parent=1 // pred_region
      %s12 = ssub.s32 6656, 6656
      %13 = vsyncadd [#allocation3], %s12
      %s14 = sshll.u32 [#allocation2], 4
      %s15 = int_to_ptr.vmem [resolvable:$true] %s14
      %20 = dma.hbm_to_vmem [thread:$0]  %s0, 6656, %s15, [#allocation3], 832, 832, 52
    $region5: #{generator_forward.6} parent=1 // pred_fallthru
      _
    // Predicated region
    $region6: #{generator_forward.6} parent=1 // pred_check
      _
    $region7: #{generator_forward.6} parent=1 // pred_check_branch
      %22 = sbr.rel (0) target = $region9
    $region8: #{generator_forward.6} parent=1 // pred_region
      _
    $region9: #{generator_forward.6} parent=1 // pred_fallthru
      _
    // Predicated region
    $region10: #{generator_forward.6} parent=1 // pred_check
      _
    $region11: #{generator_forward.6} parent=1 // pred_check_branch
      %24 = sbr.rel (0) target = $region13
    $region12: #{generator_forward.6} parent=1 // pred_region
      _
    $region13: #{generator_forward.6} parent=1 // pred_fallthru
      _
    // Predicated region
    $region14: #{generator_forward.6} parent=1 // pred_check
      _
    $region15: #{generator_forward.6} parent=1 // pred_check_branch
      %26 = sbr.rel (0) target = $region17
    $region16: #{generator_forward.6} parent=1 // pred_region
      %27 = dma.done [#allocation3], 6656
    $region17: #{generator_forward.6} parent=1 // pred_fallthru
      _
    %v29 = vld [vmem:[%s2] sm:$0xff]
    %v30 = vld [vmem:[%s2 + $0x8] sm:$0xff]
    %v31 = vld [vmem:[%s2 + $0x10] sm:$0xff]
    %v32 = vld [vmem:[%s2 + $0x18] sm:$0xff]
    %v33 = vld [vmem:[%s2 + $0x20] sm:$0xff]
    %v34 = vld [vmem:[%s2 + $0x28] sm:$0xff]
    %v35 = vld [vmem:[%s2 + $0x30] sm:$0xff]
    %v36 = vld [vmem:[%s2 + $0x38] sm:$0xff]
    %v37 = vlaneseq
    %v38 = vand.u32 %v37, 127
    %vm39 = vcmp.lt.s32.totalorder %v38, 32
    %v40 = vld [vmem:[#allocation2] sm:$0xff]
    %v41 = vld [vmem:[#allocation2 + $0x8] sm:$0xff]
    %v42 = vld [vmem:[#allocation2 + $0x10] sm:$0xff]
    %v43 = vld [vmem:[#allocation2 + $0x18] sm:$0xff]
    %v44 = vld [vmem:[#allocation2 + $0x20] sm:$0xff]
    %v45 = vld [vmem:[#allocation2 + $0x28] sm:$0xff]
    %v46 = vld [vmem:[#allocation2 + $0x30] sm:$0xf]
    %v47 = vld [vmem:[#allocation2 + $0x34] sm:$0xff]
    %v48 = vld [vmem:[#allocation2 + $0x3c] sm:$0xff]
    %v49 = vld [vmem:[#allocation2 + $0x44] sm:$0xff]
    %v50 = vld [vmem:[#allocation2 + $0x4c] sm:$0xff]
    %v51 = vld [vmem:[#allocation2 + $0x54] sm:$0xff]
    %v52 = vld [vmem:[#allocation2 + $0x5c] sm:$0xff]
    %v53 = vld [vmem:[#allocation2 + $0x64] sm:$0xf]
    %v54 = vld [vmem:[#allocation2 + $0x68] sm:$0xff]
    %v55 = vld [vmem:[#allocation2 + $0x70] sm:$0xff]
    %v56 = vld [vmem:[#allocation2 + $0x78] sm:$0xff]
    %v57 = vld [vmem:[#allocation2 + $0x80] sm:$0xff]
    %v58 = vld [vmem:[#allocation2 + $0x88] sm:$0xff]
    %v59 = vld [vmem:[#allocation2 + $0x90] sm:$0xff]
    %v60 = vld [vmem:[#allocation2 + $0x98] sm:$0xf]
    %v61 = vld [vmem:[#allocation2 + $0x9c] sm:$0xff]
    %v62 = vld [vmem:[#allocation2 + $0xa4] sm:$0xff]
    %v63 = vld [vmem:[#allocation2 + $0xac] sm:$0xff]
    %v64 = vld [vmem:[#allocation2 + $0xb4] sm:$0xff]
    %v65 = vld [vmem:[#allocation2 + $0xbc] sm:$0xff]
    %v66 = vld [vmem:[#allocation2 + $0xc4] sm:$0xff]
    %v67 = vld [vmem:[#allocation2 + $0xcc] sm:$0xf]
    %v68 = vld [vmem:[#allocation2 + $0xd0] sm:$0xff]
    %v69 = vld [vmem:[#allocation2 + $0xd8] sm:$0xff]
    %v70 = vld [vmem:[#allocation2 + $0xe0] sm:$0xff]
    %v71 = vld [vmem:[#allocation2 + $0xe8] sm:$0xff]
    %v72 = vld [vmem:[#allocation2 + $0xf0] sm:$0xff]
    %v73 = vld [vmem:[#allocation2 + $0xf8] sm:$0xff]
    %v74 = vld [vmem:[#allocation2 + $0x100] sm:$0xf]
    %v75 = vld [vmem:[#allocation2 + $0x104] sm:$0xff]
    %v76 = vld [vmem:[#allocation2 + $0x10c] sm:$0xff]
    %v77 = vld [vmem:[#allocation2 + $0x114] sm:$0xff]
    %v78 = vld [vmem:[#allocation2 + $0x11c] sm:$0xff]
    %v79 = vld [vmem:[#allocation2 + $0x124] sm:$0xff]
    %v80 = vld [vmem:[#allocation2 + $0x12c] sm:$0xff]
    %v81 = vld [vmem:[#allocation2 + $0x134] sm:$0xf]
    %v82 = vld [vmem:[#allocation2 + $0x138] sm:$0xff]
    %v83 = vld [vmem:[#allocation2 + $0x140] sm:$0xff]
    %v84 = vld [vmem:[#allocation2 + $0x148] sm:$0xff]
    %v85 = vld [vmem:[#allocation2 + $0x150] sm:$0xff]
    %v86 = vld [vmem:[#allocation2 + $0x158] sm:$0xff]
    %v87 = vld [vmem:[#allocation2 + $0x160] sm:$0xff]
    %v88 = vld [vmem:[#allocation2 + $0x168] sm:$0xf]
    %v89 = vld [vmem:[#allocation2 + $0x16c] sm:$0xff]
    %v90 = vld [vmem:[#allocation2 + $0x174] sm:$0xff]
    %v91 = vld [vmem:[#allocation2 + $0x17c] sm:$0xff]
    %v92 = vld [vmem:[#allocation2 + $0x184] sm:$0xff]
    %v93 = vld [vmem:[#allocation2 + $0x18c] sm:$0xff]
    %v94 = vld [vmem:[#allocation2 + $0x194] sm:$0xff]
    %v95 = vld [vmem:[#allocation2 + $0x19c] sm:$0xf]
    %v96 = vld [vmem:[%s1] sm:$0xf]
    %v97 = vld [vmem:[%s1 + $0x4] sm:$0xf]
    %v98 = vld [vmem:[%s1 + $0x8] sm:$0xf]
    %v99 = vld [vmem:[%s1 + $0xc] sm:$0xf]
    %v100 = vld [vmem:[%s1 + $0x10] sm:$0xf]
    %v101 = vld [vmem:[%s1 + $0x14] sm:$0xf]
    %v102 = vld [vmem:[%s1 + $0x18] sm:$0xf]
    %v103 = vld [vmem:[%s1 + $0x1c] sm:$0xf]
    %v104 = vld [vmem:[%s1 + $0x20] sm:$0xf]
    %v105 = vld [vmem:[%s1 + $0x24] sm:$0xf]
    %v106 = vld [vmem:[%s1 + $0x28] sm:$0xf]
    %v107 = vld [vmem:[%s1 + $0x2c] sm:$0xf]
    %v108 = vld [vmem:[%s1 + $0x30] sm:$0xf]
    %v109 = vld [vmem:[%s1 + $0x34] sm:$0xf]
    %v110 = vld [vmem:[%s1 + $0x38] sm:$0xf]
    %v111 = vld [vmem:[%s1 + $0x3c] sm:$0xf]
    %v112 = vld [vmem:[%s1 + $0x40] sm:$0xf]
    %v113 = vld [vmem:[%s1 + $0x44] sm:$0xf]
    %v114 = vld [vmem:[%s1 + $0x48] sm:$0xf]
    %v115 = vld [vmem:[%s1 + $0x4c] sm:$0xf]
    %v116 = vld [vmem:[%s1 + $0x50] sm:$0xf]
    %v117 = vld [vmem:[%s1 + $0x54] sm:$0xf]
    %v118 = vld [vmem:[%s1 + $0x58] sm:$0xf]
    %v119 = vld [vmem:[%s1 + $0x5c] sm:$0xf]
    %v120 = vld [vmem:[%s1 + $0x60] sm:$0xf]
    %v121 = vld [vmem:[%s1 + $0x64] sm:$0xf]
    %v122 = vld [vmem:[%s1 + $0x68] sm:$0xf]
    %v123 = vld [vmem:[%s1 + $0x6c] sm:$0xf]
    %v124 = vld [vmem:[%s1 + $0x70] sm:$0xf]
    %v125 = vld [vmem:[%s1 + $0x74] sm:$0xf]
    %v126 = vld [vmem:[%s1 + $0x78] sm:$0xf]
    %v127 = vld [vmem:[%s1 + $0x7c] sm:$0xf]
    %v128 = vld [vmem:[%s1 + $0x80] sm:$0xf]
    %v129 = vld [vmem:[%s1 + $0x84] sm:$0xf]
    %v130 = vld [vmem:[%s1 + $0x88] sm:$0xf]
    %v131 = vld [vmem:[%s1 + $0x8c] sm:$0xf]
    %v132 = vld [vmem:[%s1 + $0x90] sm:$0xf]
    %v133 = vld [vmem:[%s1 + $0x94] sm:$0xf]
    %v134 = vld [vmem:[%s1 + $0x98] sm:$0xf]
    %v135 = vld [vmem:[%s1 + $0x9c] sm:$0xf]
    %v136 = vld [vmem:[%s1 + $0xa0] sm:$0xf]
    %v137 = vld [vmem:[%s1 + $0xa4] sm:$0xf]
    %v138 = vld [vmem:[%s1 + $0xa8] sm:$0xf]
    %v139 = vld [vmem:[%s1 + $0xac] sm:$0xf]
    %v140 = vld [vmem:[%s1 + $0xb0] sm:$0xf]
    %v141 = vld [vmem:[%s1 + $0xb4] sm:$0xf]
    %v142 = vld [vmem:[%s1 + $0xb8] sm:$0xf]
    %v143 = vld [vmem:[%s1 + $0xbc] sm:$0xf]
    %v144 = vld [vmem:[%s1 + $0xc0] sm:$0xf]
    %v145 = vld [vmem:[%s1 + $0xc4] sm:$0xf]
    %v146 = vld [vmem:[%s1 + $0xc8] sm:$0xf]
    %v147 = vld [vmem:[%s1 + $0xcc] sm:$0xf]
    %v148 = vld [vmem:[%s1 + $0xd0] sm:$0xf]
    %v149 = vld [vmem:[%s1 + $0xd4] sm:$0xf]
    %v150 = vld [vmem:[%s1 + $0xd8] sm:$0xf]
    %v151 = vld [vmem:[%s1 + $0xdc] sm:$0xf]
    %v152 = vld [vmem:[%s1 + $0xe0] sm:$0xf]
    %v153 = vld [vmem:[%s1 + $0xe4] sm:$0xf]
    %v154 = vld [vmem:[%s1 + $0xe8] sm:$0xf]
    %v155 = vld [vmem:[%s1 + $0xec] sm:$0xf]
    %v156 = vld [vmem:[%s1 + $0xf0] sm:$0xf]
    %v157 = vld [vmem:[%s1 + $0xf4] sm:$0xf]
    %v158 = vld [vmem:[%s1 + $0xf8] sm:$0xf]
    %v159 = vld [vmem:[%s1 + $0xfc] sm:$0xf]
    %v160 = vld [vmem:[%s1 + $0x100] sm:$0xf]
    %v161 = vld [vmem:[%s1 + $0x104] sm:$0xf]
    %v162 = vld [vmem:[%s1 + $0x108] sm:$0xf]
    %v163 = vld [vmem:[%s1 + $0x10c] sm:$0xf]
    %v164 = vld [vmem:[%s1 + $0x110] sm:$0xf]
    %v165 = vld [vmem:[%s1 + $0x114] sm:$0xf]
    %v166 = vld [vmem:[%s1 + $0x118] sm:$0xf]
    %v167 = vld [vmem:[%s1 + $0x11c] sm:$0xf]
    %v168 = vld [vmem:[%s1 + $0x120] sm:$0xf]
    %v169 = vld [vmem:[%s1 + $0x124] sm:$0xf]
    %v170 = vld [vmem:[%s1 + $0x128] sm:$0xf]
    %v171 = vld [vmem:[%s1 + $0x12c] sm:$0xf]
    %v172 = vld [vmem:[%s1 + $0x130] sm:$0xf]
    %v173 = vld [vmem:[%s1 + $0x134] sm:$0xf]
    %v174 = vld [vmem:[%s1 + $0x138] sm:$0xf]
    %v175 = vld [vmem:[%s1 + $0x13c] sm:$0xf]
    %v176 = vld [vmem:[%s1 + $0x140] sm:$0xf]
    %v177 = vld [vmem:[%s1 + $0x144] sm:$0xf]
    %v178 = vld [vmem:[%s1 + $0x148] sm:$0xf]
    %v179 = vld [vmem:[%s1 + $0x14c] sm:$0xf]
    %v180 = vld [vmem:[%s1 + $0x150] sm:$0xf]
    %v181 = vld [vmem:[%s1 + $0x154] sm:$0xf]
    %v182 = vld [vmem:[%s1 + $0x158] sm:$0xf]
    %v183 = vld [vmem:[%s1 + $0x15c] sm:$0xf]
    %v184 = vld [vmem:[%s1 + $0x160] sm:$0xf]
    %v185 = vld [vmem:[%s1 + $0x164] sm:$0xf]
    %v186 = vld [vmem:[%s1 + $0x168] sm:$0xf]
    %v187 = vld [vmem:[%s1 + $0x16c] sm:$0xf]
    %v188 = vld [vmem:[%s1 + $0x170] sm:$0xf]
    %v189 = vld [vmem:[%s1 + $0x174] sm:$0xf]
    %v190 = vld [vmem:[%s1 + $0x178] sm:$0xf]
    %v191 = vld [vmem:[%s1 + $0x17c] sm:$0xf]
    %v192 = vld [vmem:[%s1 + $0x180] sm:$0xf]
    %v193 = vld [vmem:[%s1 + $0x184] sm:$0xf]
    %v194 = vld [vmem:[%s1 + $0x188] sm:$0xf]
    %v195 = vld [vmem:[%s1 + $0x18c] sm:$0xf]
    %v196 = vld [vmem:[%s1 + $0x190] sm:$0xf]
    %v197 = vld [vmem:[%s1 + $0x194] sm:$0xf]
    %v198 = vld [vmem:[%s1 + $0x198] sm:$0xf]
    %v199 = vld [vmem:[%s1 + $0x19c] sm:$0xf]
    %v200 = vld [vmem:[%s1 + $0x1a0] sm:$0xf]
    %v201 = vld [vmem:[%s1 + $0x1a4] sm:$0xf]
    %v202 = vld [vmem:[%s1 + $0x1a8] sm:$0xf]
    %v203 = vld [vmem:[%s1 + $0x1ac] sm:$0xf]
    %v204 = vld [vmem:[%s1 + $0x1b0] sm:$0xf]
    %v205 = vld [vmem:[%s1 + $0x1b4] sm:$0xf]
    %v206 = vld [vmem:[%s1 + $0x1b8] sm:$0xf]
    %v207 = vld [vmem:[%s1 + $0x1bc] sm:$0xf]
    %v208 = vld [vmem:[%s1 + $0x1c0] sm:$0xf]
    %v209 = vld [vmem:[%s1 + $0x1c4] sm:$0xf]
    %v210 = vld [vmem:[%s1 + $0x1c8] sm:$0xf]
    %v211 = vld [vmem:[%s1 + $0x1cc] sm:$0xf]
    %v212 = vld [vmem:[%s1 + $0x1d0] sm:$0xf]
    %v213 = vld [vmem:[%s1 + $0x1d4] sm:$0xf]
    %v214 = vld [vmem:[%s1 + $0x1d8] sm:$0xf]
    %v215 = vld [vmem:[%s1 + $0x1dc] sm:$0xf]
    %v216 = vld [vmem:[%s1 + $0x1e0] sm:$0xf]
    %v217 = vld [vmem:[%s1 + $0x1e4] sm:$0xf]
    %v218 = vld [vmem:[%s1 + $0x1e8] sm:$0xf]
    %v219 = vld [vmem:[%s1 + $0x1ec] sm:$0xf]
    %v220 = vld [vmem:[%s1 + $0x1f0] sm:$0xf]
    %v221 = vld [vmem:[%s1 + $0x1f4] sm:$0xf]
    %v222 = vld [vmem:[%s1 + $0x1f8] sm:$0xf]
    %v223 = vld [vmem:[%s1 + $0x1fc] sm:$0xf]
    %v224 = vld [vmem:[%s1 + $0x200] sm:$0xf]
    %v225 = vld [vmem:[%s1 + $0x204] sm:$0xf]
    %v226 = vld [vmem:[%s1 + $0x208] sm:$0xf]
    %v227 = vld [vmem:[%s1 + $0x20c] sm:$0xf]
    %v228 = vld [vmem:[%s1 + $0x210] sm:$0xf]
    %v229 = vld [vmem:[%s1 + $0x214] sm:$0xf]
    %v230 = vld [vmem:[%s1 + $0x218] sm:$0xf]
    %v231 = vld [vmem:[%s1 + $0x21c] sm:$0xf]
    %v232 = vld [vmem:[%s1 + $0x220] sm:$0xf]
    %v233 = vld [vmem:[%s1 + $0x224] sm:$0xf]
    %v234 = vld [vmem:[%s1 + $0x228] sm:$0xf]
    %v235 = vld [vmem:[%s1 + $0x22c] sm:$0xf]
    %v236 = vld [vmem:[%s1 + $0x230] sm:$0xf]
    %v237 = vld [vmem:[%s1 + $0x234] sm:$0xf]
    %v238 = vld [vmem:[%s1 + $0x238] sm:$0xf]
    %v239 = vld [vmem:[%s1 + $0x23c] sm:$0xf]
    %v240 = vld [vmem:[%s1 + $0x240] sm:$0xf]
    %v241 = vld [vmem:[%s1 + $0x244] sm:$0xf]
    %v242 = vld [vmem:[%s1 + $0x248] sm:$0xf]
    %v243 = vld [vmem:[%s1 + $0x24c] sm:$0xf]
    %v244 = vld [vmem:[%s1 + $0x250] sm:$0xf]
    %v245 = vld [vmem:[%s1 + $0x254] sm:$0xf]
    %v246 = vld [vmem:[%s1 + $0x258] sm:$0xf]
    %v247 = vld [vmem:[%s1 + $0x25c] sm:$0xf]
    %v248 = vld [vmem:[%s1 + $0x260] sm:$0xf]
    %v249 = vld [vmem:[%s1 + $0x264] sm:$0xf]
    %v250 = vld [vmem:[%s1 + $0x268] sm:$0xf]
    %v251 = vld [vmem:[%s1 + $0x26c] sm:$0xf]
    %v252 = vld [vmem:[%s1 + $0x270] sm:$0xf]
    %v253 = vld [vmem:[%s1 + $0x274] sm:$0xf]
    %v254 = vld [vmem:[%s1 + $0x278] sm:$0xf]
    %v255 = vld [vmem:[%s1 + $0x27c] sm:$0xf]
    %v256 = vld [vmem:[%s1 + $0x280] sm:$0xf]
    %v257 = vld [vmem:[%s1 + $0x284] sm:$0xf]
    %v258 = vld [vmem:[%s1 + $0x288] sm:$0xf]
    %v259 = vld [vmem:[%s1 + $0x28c] sm:$0xf]
    %v260 = vld [vmem:[%s1 + $0x290] sm:$0xf]
    %v261 = vld [vmem:[%s1 + $0x294] sm:$0xf]
    %v262 = vld [vmem:[%s1 + $0x298] sm:$0xf]
    %v263 = vld [vmem:[%s1 + $0x29c] sm:$0xf]
    %v264 = vld [vmem:[%s1 + $0x2a0] sm:$0xf]
    %v265 = vld [vmem:[%s1 + $0x2a4] sm:$0xf]
    %v266 = vld [vmem:[%s1 + $0x2a8] sm:$0xf]
    %v267 = vld [vmem:[%s1 + $0x2ac] sm:$0xf]
    %v268 = vld [vmem:[%s1 + $0x2b0] sm:$0xf]
    %v269 = vld [vmem:[%s1 + $0x2b4] sm:$0xf]
    %v270 = vld [vmem:[%s1 + $0x2b8] sm:$0xf]
    %v271 = vld [vmem:[%s1 + $0x2bc] sm:$0xf]
    %v272 = vld [vmem:[%s1 + $0x2c0] sm:$0xf]
    %v273 = vld [vmem:[%s1 + $0x2c4] sm:$0xf]
    %v274 = vld [vmem:[%s1 + $0x2c8] sm:$0xf]
    %v275 = vld [vmem:[%s1 + $0x2cc] sm:$0xf]
    %v276 = vld [vmem:[%s1 + $0x2d0] sm:$0xf]
    %v277 = vld [vmem:[%s1 + $0x2d4] sm:$0xf]
    %v278 = vld [vmem:[%s1 + $0x2d8] sm:$0xf]
    %v279 = vld [vmem:[%s1 + $0x2dc] sm:$0xf]
    %v280 = vld [vmem:[%s1 + $0x2e0] sm:$0xf]
    %v281 = vld [vmem:[%s1 + $0x2e4] sm:$0xf]
    %v282 = vld [vmem:[%s1 + $0x2e8] sm:$0xf]
    %v283 = vld [vmem:[%s1 + $0x2ec] sm:$0xf]
    %v284 = vld [vmem:[%s1 + $0x2f0] sm:$0xf]
    %v285 = vld [vmem:[%s1 + $0x2f4] sm:$0xf]
    %v286 = vld [vmem:[%s1 + $0x2f8] sm:$0xf]
    %v287 = vld [vmem:[%s1 + $0x2fc] sm:$0xf]
    %v288 = vld [vmem:[%s1 + $0x300] sm:$0xf]
    %v289 = vld [vmem:[%s1 + $0x304] sm:$0xf]
    %v290 = vld [vmem:[%s1 + $0x308] sm:$0xf]
    %v291 = vld [vmem:[%s1 + $0x30c] sm:$0xf]
    %v292 = vld [vmem:[%s1 + $0x310] sm:$0xf]
    %v293 = vld [vmem:[%s1 + $0x314] sm:$0xf]
    %v294 = vld [vmem:[%s1 + $0x318] sm:$0xf]
    %v295 = vld [vmem:[%s1 + $0x31c] sm:$0xf]
    %297 = vset.pattern.permute.xlu0 0
    %298 = vperm.xlu0 %297, %v29
    %v299 = vpop.permute.xlu0 %298
    %302 = vset.pattern.permute.xlu0 0
    %303 = vperm.xlu0 %302, %v30
    %v304 = vpop.permute.xlu0 %303
    %307 = vset.pattern.permute.xlu0 0
    %308 = vperm.xlu0 %307, %v31
    %v309 = vpop.permute.xlu0 %308
    %312 = vset.pattern.permute.xlu0 0
    %313 = vperm.xlu0 %312, %v32
    %v314 = vpop.permute.xlu0 %313
    %317 = vset.pattern.permute.xlu0 0
    %318 = vperm.xlu0 %317, %v33
    %v319 = vpop.permute.xlu0 %318
    %322 = vset.pattern.permute.xlu0 0
    %323 = vperm.xlu0 %322, %v34
    %v324 = vpop.permute.xlu0 %323
    %327 = vset.pattern.permute.xlu0 0
    %328 = vperm.xlu0 %327, %v35
    %v329 = vpop.permute.xlu0 %328
    %332 = vset.pattern.permute.xlu0 0
    %333 = vperm.xlu0 %332, %v36
    %v334 = vpop.permute.xlu0 %333
    %v392 = vunpack.c.l.b16 %v40
    %v393 = vunpack.c.h.b16 %v40
    %v394 = vunpack.c.l.b16 %v41
    %v395 = vunpack.c.h.b16 %v41
    %v396 = vunpack.c.l.b16 %v42
    %v397 = vunpack.c.h.b16 %v42
    %v398 = vunpack.c.l.b16 %v43
    %v399 = vunpack.c.h.b16 %v43
    %v400 = vunpack.c.l.b16 %v44
    %v401 = vunpack.c.h.b16 %v44
    %v402 = vunpack.c.l.b16 %v45
    %v403 = vunpack.c.h.b16 %v45
    %v404 = vunpack.c.l.b16 %v46
    %v405 = vunpack.c.l.b16 %v47
    %v406 = vunpack.c.h.b16 %v47
    %v407 = vunpack.c.l.b16 %v48
    %v408 = vunpack.c.h.b16 %v48
    %v409 = vunpack.c.l.b16 %v49
    %v410 = vunpack.c.h.b16 %v49
    %v411 = vunpack.c.l.b16 %v50
    %v412 = vunpack.c.h.b16 %v50
    %v413 = vunpack.c.l.b16 %v51
    %v414 = vunpack.c.h.b16 %v51
    %v415 = vunpack.c.l.b16 %v52
    %v416 = vunpack.c.h.b16 %v52
    %v417 = vunpack.c.l.b16 %v53
    %v418 = vunpack.c.l.b16 %v54
    %v419 = vunpack.c.h.b16 %v54
    %v420 = vunpack.c.l.b16 %v55
    %v421 = vunpack.c.h.b16 %v55
    %v422 = vunpack.c.l.b16 %v56
    %v423 = vunpack.c.h.b16 %v56
    %v424 = vunpack.c.l.b16 %v57
    %v425 = vunpack.c.h.b16 %v57
    %v426 = vunpack.c.l.b16 %v58
    %v427 = vunpack.c.h.b16 %v58
    %v428 = vunpack.c.l.b16 %v59
    %v429 = vunpack.c.h.b16 %v59
    %v430 = vunpack.c.l.b16 %v60
    %v431 = vunpack.c.l.b16 %v61
    %v432 = vunpack.c.h.b16 %v61
    %v433 = vunpack.c.l.b16 %v62
    %v434 = vunpack.c.h.b16 %v62
    %v435 = vunpack.c.l.b16 %v63
    %v436 = vunpack.c.h.b16 %v63
    %v437 = vunpack.c.l.b16 %v64
    %v438 = vunpack.c.h.b16 %v64
    %v439 = vunpack.c.l.b16 %v65
    %v440 = vunpack.c.h.b16 %v65
    %v441 = vunpack.c.l.b16 %v66
    %v442 = vunpack.c.h.b16 %v66
    %v443 = vunpack.c.l.b16 %v67
    %v444 = vunpack.c.l.b16 %v68
    %v445 = vunpack.c.h.b16 %v68
    %v446 = vunpack.c.l.b16 %v69
    %v447 = vunpack.c.h.b16 %v69
    %v448 = vunpack.c.l.b16 %v70
    %v449 = vunpack.c.h.b16 %v70
    %v450 = vunpack.c.l.b16 %v71
    %v451 = vunpack.c.h.b16 %v71
    %v452 = vunpack.c.l.b16 %v72
    %v453 = vunpack.c.h.b16 %v72
    %v454 = vunpack.c.l.b16 %v73
    %v455 = vunpack.c.h.b16 %v73
    %v456 = vunpack.c.l.b16 %v74
    %v457 = vunpack.c.l.b16 %v75
    %v458 = vunpack.c.h.b16 %v75
    %v459 = vunpack.c.l.b16 %v76
    %v460 = vunpack.c.h.b16 %v76
    %v461 = vunpack.c.l.b16 %v77
    %v462 = vunpack.c.h.b16 %v77
    %v463 = vunpack.c.l.b16 %v78
    %v464 = vunpack.c.h.b16 %v78
    %v465 = vunpack.c.l.b16 %v79
    %v466 = vunpack.c.h.b16 %v79
    %v467 = vunpack.c.l.b16 %v80
    %v468 = vunpack.c.h.b16 %v80
    %v469 = vunpack.c.l.b16 %v81
    %v470 = vunpack.c.l.b16 %v82
    %v471 = vunpack.c.h.b16 %v82
    %v472 = vunpack.c.l.b16 %v83
    %v473 = vunpack.c.h.b16 %v83
    %v474 = vunpack.c.l.b16 %v84
    %v475 = vunpack.c.h.b16 %v84
    %v476 = vunpack.c.l.b16 %v85
    %v477 = vunpack.c.h.b16 %v85
    %v478 = vunpack.c.l.b16 %v86
    %v479 = vunpack.c.h.b16 %v86
    %v480 = vunpack.c.l.b16 %v87
    %v481 = vunpack.c.h.b16 %v87
    %v482 = vunpack.c.l.b16 %v88
    %v483 = vunpack.c.l.b16 %v89
    %v484 = vunpack.c.h.b16 %v89
    %v485 = vunpack.c.l.b16 %v90
    %v486 = vunpack.c.h.b16 %v90
    %v487 = vunpack.c.l.b16 %v91
    %v488 = vunpack.c.h.b16 %v91
    %v489 = vunpack.c.l.b16 %v92
    %v490 = vunpack.c.h.b16 %v92
    %v491 = vunpack.c.l.b16 %v93
    %v492 = vunpack.c.h.b16 %v93
    %v493 = vunpack.c.l.b16 %v94
    %v494 = vunpack.c.h.b16 %v94
    %v495 = vunpack.c.l.b16 %v95
    %v496 = vpack.c.b16 %v405, %v392
    %v497 = vpack.c.b16 %v406, %v393
    %v498 = vpack.c.b16 %v407, %v394
    %v499 = vpack.c.b16 %v408, %v395
    %v500 = vpack.c.b16 %v409, %v396
    %v501 = vpack.c.b16 %v410, %v397
    %v502 = vpack.c.b16 %v411, %v398
    %v503 = vpack.c.b16 %v412, %v399
    %v504 = vpack.c.b16 %v413, %v400
    %v505 = vpack.c.b16 %v414, %v401
    %v506 = vpack.c.b16 %v415, %v402
    %v507 = vpack.c.b16 %v416, %v403
    %v508 = vpack.c.b16 %v417, %v404
    %v509 = vpack.c.b16 %v431, %v418
    %v510 = vpack.c.b16 %v432, %v419
    %v511 = vpack.c.b16 %v433, %v420
    %v512 = vpack.c.b16 %v434, %v421
    %v513 = vpack.c.b16 %v435, %v422
    %v514 = vpack.c.b16 %v436, %v423
    %v515 = vpack.c.b16 %v437, %v424
    %v516 = vpack.c.b16 %v438, %v425
    %v517 = vpack.c.b16 %v439, %v426
    %v518 = vpack.c.b16 %v440, %v427
    %v519 = vpack.c.b16 %v441, %v428
    %v520 = vpack.c.b16 %v442, %v429
    %v521 = vpack.c.b16 %v443, %v430
    %v522 = vpack.c.b16 %v457, %v444
    %v523 = vpack.c.b16 %v458, %v445
    %v524 = vpack.c.b16 %v459, %v446
    %v525 = vpack.c.b16 %v460, %v447
    %v526 = vpack.c.b16 %v461, %v448
    %v527 = vpack.c.b16 %v462, %v449
    %v528 = vpack.c.b16 %v463, %v450
    %v529 = vpack.c.b16 %v464, %v451
    %v530 = vpack.c.b16 %v465, %v452
    %v531 = vpack.c.b16 %v466, %v453
    %v532 = vpack.c.b16 %v467, %v454
    %v533 = vpack.c.b16 %v468, %v455
    %v534 = vpack.c.b16 %v469, %v456
    %v535 = vpack.c.b16 %v483, %v470
    %v536 = vpack.c.b16 %v484, %v471
    %v537 = vpack.c.b16 %v485, %v472
    %v538 = vpack.c.b16 %v486, %v473
    %v539 = vpack.c.b16 %v487, %v474
    %v540 = vpack.c.b16 %v488, %v475
    %v541 = vpack.c.b16 %v489, %v476
    %v542 = vpack.c.b16 %v490, %v477
    %v543 = vpack.c.b16 %v491, %v478
    %v544 = vpack.c.b16 %v492, %v479
    %v545 = vpack.c.b16 %v493, %v480
    %v546 = vpack.c.b16 %v494, %v481
    %v547 = vpack.c.b16 %v495, %v482
    %v796 = vunpack.c.l.b16 %v96
    %v797 = vunpack.c.l.b16 %v97
    %v798 = vunpack.c.l.b16 %v98
    %v799 = vunpack.c.l.b16 %v99
    %v800 = vunpack.c.l.b16 %v100
    %v801 = vunpack.c.l.b16 %v101
    %v802 = vunpack.c.l.b16 %v102
    %v803 = vunpack.c.l.b16 %v103
    %v804 = vunpack.c.l.b16 %v104
    %v805 = vunpack.c.l.b16 %v105
    %v806 = vunpack.c.l.b16 %v106
    %v807 = vunpack.c.l.b16 %v107
    %v808 = vunpack.c.l.b16 %v108
    %v809 = vunpack.c.l.b16 %v109
    %v810 = vunpack.c.l.b16 %v110
    %v811 = vunpack.c.l.b16 %v111
    %v812 = vunpack.c.l.b16 %v112
    %v813 = vunpack.c.l.b16 %v113
    %v814 = vunpack.c.l.b16 %v114
    %v815 = vunpack.c.l.b16 %v115
    %v816 = vunpack.c.l.b16 %v116
    %v817 = vunpack.c.l.b16 %v117
    %v818 = vunpack.c.l.b16 %v118
    %v819 = vunpack.c.l.b16 %v119
    %v820 = vunpack.c.l.b16 %v120
    %v821 = vunpack.c.l.b16 %v121
    %v822 = vunpack.c.l.b16 %v122
    %v823 = vunpack.c.l.b16 %v123
    %v824 = vunpack.c.l.b16 %v124
    %v825 = vunpack.c.l.b16 %v125
    %v826 = vunpack.c.l.b16 %v126
    %v827 = vunpack.c.l.b16 %v127
    %v828 = vunpack.c.l.b16 %v128
    %v829 = vunpack.c.l.b16 %v129
    %v830 = vunpack.c.l.b16 %v130
    %v831 = vunpack.c.l.b16 %v131
    %v832 = vunpack.c.l.b16 %v132
    %v833 = vunpack.c.l.b16 %v133
    %v834 = vunpack.c.l.b16 %v134
    %v835 = vunpack.c.l.b16 %v135
    %v836 = vunpack.c.l.b16 %v136
    %v837 = vunpack.c.l.b16 %v137
    %v838 = vunpack.c.l.b16 %v138
    %v839 = vunpack.c.l.b16 %v139
    %v840 = vunpack.c.l.b16 %v140
    %v841 = vunpack.c.l.b16 %v141
    %v842 = vunpack.c.l.b16 %v142
    %v843 = vunpack.c.l.b16 %v143
    %v844 = vunpack.c.l.b16 %v144
    %v845 = vunpack.c.l.b16 %v145
    %v846 = vunpack.c.l.b16 %v146
    %v847 = vunpack.c.l.b16 %v147
    %v848 = vunpack.c.l.b16 %v148
    %v849 = vunpack.c.l.b16 %v149
    %v850 = vunpack.c.l.b16 %v150
    %v851 = vunpack.c.l.b16 %v151
    %v852 = vunpack.c.l.b16 %v152
    %v853 = vunpack.c.l.b16 %v153
    %v854 = vunpack.c.l.b16 %v154
    %v855 = vunpack.c.l.b16 %v155
    %v856 = vunpack.c.l.b16 %v156
    %v857 = vunpack.c.l.b16 %v157
    %v858 = vunpack.c.l.b16 %v158
    %v859 = vunpack.c.l.b16 %v159
    %v860 = vunpack.c.l.b16 %v160
    %v861 = vunpack.c.l.b16 %v161
    %v862 = vunpack.c.l.b16 %v162
    %v863 = vunpack.c.l.b16 %v163
    %v864 = vunpack.c.l.b16 %v164
    %v865 = vunpack.c.l.b16 %v165
    %v866 = vunpack.c.l.b16 %v166
    %v867 = vunpack.c.l.b16 %v167
    %v868 = vunpack.c.l.b16 %v168
    %v869 = vunpack.c.l.b16 %v169
    %v870 = vunpack.c.l.b16 %v170
    %v871 = vunpack.c.l.b16 %v171
    %v872 = vunpack.c.l.b16 %v172
    %v873 = vunpack.c.l.b16 %v173
    %v874 = vunpack.c.l.b16 %v174
    %v875 = vunpack.c.l.b16 %v175
    %v876 = vunpack.c.l.b16 %v176
    %v877 = vunpack.c.l.b16 %v177
    %v878 = vunpack.c.l.b16 %v178
    %v879 = vunpack.c.l.b16 %v179
    %v880 = vunpack.c.l.b16 %v180
    %v881 = vunpack.c.l.b16 %v181
    %v882 = vunpack.c.l.b16 %v182
    %v883 = vunpack.c.l.b16 %v183
    %v884 = vunpack.c.l.b16 %v184
    %v885 = vunpack.c.l.b16 %v185
    %v886 = vunpack.c.l.b16 %v186
    %v887 = vunpack.c.l.b16 %v187
    %v888 = vunpack.c.l.b16 %v188
    %v889 = vunpack.c.l.b16 %v189
    %v890 = vunpack.c.l.b16 %v190
    %v891 = vunpack.c.l.b16 %v191
    %v892 = vunpack.c.l.b16 %v192
    %v893 = vunpack.c.l.b16 %v193
    %v894 = vunpack.c.l.b16 %v194
    %v895 = vunpack.c.l.b16 %v195
    %v896 = vunpack.c.l.b16 %v196
    %v897 = vunpack.c.l.b16 %v197
    %v898 = vunpack.c.l.b16 %v198
    %v899 = vunpack.c.l.b16 %v199
    %v900 = vunpack.c.l.b16 %v200
    %v901 = vunpack.c.l.b16 %v201
    %v902 = vunpack.c.l.b16 %v202
    %v903 = vunpack.c.l.b16 %v203
    %v904 = vunpack.c.l.b16 %v204
    %v905 = vunpack.c.l.b16 %v205
    %v906 = vunpack.c.l.b16 %v206
    %v907 = vunpack.c.l.b16 %v207
    %v908 = vunpack.c.l.b16 %v208
    %v909 = vunpack.c.l.b16 %v209
    %v910 = vunpack.c.l.b16 %v210
    %v911 = vunpack.c.l.b16 %v211
    %v912 = vunpack.c.l.b16 %v212
    %v913 = vunpack.c.l.b16 %v213
    %v914 = vunpack.c.l.b16 %v214
    %v915 = vunpack.c.l.b16 %v215
    %v916 = vunpack.c.l.b16 %v216
    %v917 = vunpack.c.l.b16 %v217
    %v918 = vunpack.c.l.b16 %v218
    %v919 = vunpack.c.l.b16 %v219
    %v920 = vunpack.c.l.b16 %v220
    %v921 = vunpack.c.l.b16 %v221
    %v922 = vunpack.c.l.b16 %v222
    %v923 = vunpack.c.l.b16 %v223
    %v924 = vunpack.c.l.b16 %v224
    %v925 = vunpack.c.l.b16 %v225
    %v926 = vunpack.c.l.b16 %v226
    %v927 = vunpack.c.l.b16 %v227
    %v928 = vunpack.c.l.b16 %v228
    %v929 = vunpack.c.l.b16 %v229
    %v930 = vunpack.c.l.b16 %v230
    %v931 = vunpack.c.l.b16 %v231
    %v932 = vunpack.c.l.b16 %v232
    %v933 = vunpack.c.l.b16 %v233
    %v934 = vunpack.c.l.b16 %v234
    %v935 = vunpack.c.l.b16 %v235
    %v936 = vunpack.c.l.b16 %v236
    %v937 = vunpack.c.l.b16 %v237
    %v938 = vunpack.c.l.b16 %v238
    %v939 = vunpack.c.l.b16 %v239
    %v940 = vunpack.c.l.b16 %v240
    %v941 = vunpack.c.l.b16 %v241
    %v942 = vunpack.c.l.b16 %v242
    %v943 = vunpack.c.l.b16 %v243
    %v944 = vunpack.c.l.b16 %v244
    %v945 = vunpack.c.l.b16 %v245
    %v946 = vunpack.c.l.b16 %v246
    %v947 = vunpack.c.l.b16 %v247
    %v948 = vunpack.c.l.b16 %v248
    %v949 = vunpack.c.l.b16 %v249
    %v950 = vunpack.c.l.b16 %v250
    %v951 = vunpack.c.l.b16 %v251
    %v952 = vunpack.c.l.b16 %v252
    %v953 = vunpack.c.l.b16 %v253
    %v954 = vunpack.c.l.b16 %v254
    %v955 = vunpack.c.l.b16 %v255
    %v956 = vunpack.c.l.b16 %v256
    %v957 = vunpack.c.l.b16 %v257
    %v958 = vunpack.c.l.b16 %v258
    %v959 = vunpack.c.l.b16 %v259
    %v960 = vunpack.c.l.b16 %v260
    %v961 = vunpack.c.l.b16 %v261
    %v962 = vunpack.c.l.b16 %v262
    %v963 = vunpack.c.l.b16 %v263
    %v964 = vunpack.c.l.b16 %v264
    %v965 = vunpack.c.l.b16 %v265
    %v966 = vunpack.c.l.b16 %v266
    %v967 = vunpack.c.l.b16 %v267
    %v968 = vunpack.c.l.b16 %v268
    %v969 = vunpack.c.l.b16 %v269
    %v970 = vunpack.c.l.b16 %v270
    %v971 = vunpack.c.l.b16 %v271
    %v972 = vunpack.c.l.b16 %v272
    %v973 = vunpack.c.l.b16 %v273
    %v974 = vunpack.c.l.b16 %v274
    %v975 = vunpack.c.l.b16 %v275
    %v976 = vunpack.c.l.b16 %v276
    %v977 = vunpack.c.l.b16 %v277
    %v978 = vunpack.c.l.b16 %v278
    %v979 = vunpack.c.l.b16 %v279
    %v980 = vunpack.c.l.b16 %v280
    %v981 = vunpack.c.l.b16 %v281
    %v982 = vunpack.c.l.b16 %v282
    %v983 = vunpack.c.l.b16 %v283
    %v984 = vunpack.c.l.b16 %v284
    %v985 = vunpack.c.l.b16 %v285
    %v986 = vunpack.c.l.b16 %v286
    %v987 = vunpack.c.l.b16 %v287
    %v988 = vunpack.c.l.b16 %v288
    %v989 = vunpack.c.l.b16 %v289
    %v990 = vunpack.c.l.b16 %v290
    %v991 = vunpack.c.l.b16 %v291
    %v992 = vunpack.c.l.b16 %v292
    %v993 = vunpack.c.l.b16 %v293
    %v994 = vunpack.c.l.b16 %v294
    %v995 = vunpack.c.l.b16 %v295
    %v996 = vpack.c.b16 %v797, %v796
    %v997 = vpack.c.b16 %v799, %v798
    %v998 = vpack.c.b16 %v801, %v800
    %v999 = vpack.c.b16 %v803, %v802
    %v1000 = vpack.c.b16 %v805, %v804
    %v1001 = vpack.c.b16 %v807, %v806
    %v1002 = vpack.c.b16 %v809, %v808
    %v1003 = vpack.c.b16 %v811, %v810
    %v1004 = vpack.c.b16 %v813, %v812
    %v1005 = vpack.c.b16 %v815, %v814
    %v1006 = vpack.c.b16 %v817, %v816
    %v1007 = vpack.c.b16 %v819, %v818
    %v1008 = vpack.c.b16 %v821, %v820
    %v1009 = vpack.c.b16 %v823, %v822
    %v1010 = vpack.c.b16 %v825, %v824
    %v1011 = vpack.c.b16 %v827, %v826
    %v1012 = vpack.c.b16 %v829, %v828
    %v1013 = vpack.c.b16 %v831, %v830
    %v1014 = vpack.c.b16 %v833, %v832
    %v1015 = vpack.c.b16 %v835, %v834
    %v1016 = vpack.c.b16 %v837, %v836
    %v1017 = vpack.c.b16 %v839, %v838
    %v1018 = vpack.c.b16 %v841, %v840
    %v1019 = vpack.c.b16 %v843, %v842
    %v1020 = vpack.c.b16 %v845, %v844
    %v1021 = vpack.c.b16 %v847, %v846
    %v1022 = vpack.c.b16 %v849, %v848
    %v1023 = vpack.c.b16 %v851, %v850
    %v1024 = vpack.c.b16 %v853, %v852
    %v1025 = vpack.c.b16 %v855, %v854
    %v1026 = vpack.c.b16 %v857, %v856
    %v1027 = vpack.c.b16 %v859, %v858
    %v1028 = vpack.c.b16 %v861, %v860
    %v1029 = vpack.c.b16 %v863, %v862
    %v1030 = vpack.c.b16 %v865, %v864
    %v1031 = vpack.c.b16 %v867, %v866
    %v1032 = vpack.c.b16 %v869, %v868
    %v1033 = vpack.c.b16 %v871, %v870
    %v1034 = vpack.c.b16 %v873, %v872
    %v1035 = vpack.c.b16 %v875, %v874
    %v1036 = vpack.c.b16 %v877, %v876
    %v1037 = vpack.c.b16 %v879, %v878
    %v1038 = vpack.c.b16 %v881, %v880
    %v1039 = vpack.c.b16 %v883, %v882
    %v1040 = vpack.c.b16 %v885, %v884
    %v1041 = vpack.c.b16 %v887, %v886
    %v1042 = vpack.c.b16 %v889, %v888
    %v1043 = vpack.c.b16 %v891, %v890
    %v1044 = vpack.c.b16 %v893, %v892
    %v1045 = vpack.c.b16 %v895, %v894
    %v1046 = vpack.c.b16 %v897, %v896
    %v1047 = vpack.c.b16 %v899, %v898
    %v1048 = vpack.c.b16 %v901, %v900
    %v1049 = vpack.c.b16 %v903, %v902
    %v1050 = vpack.c.b16 %v905, %v904
    %v1051 = vpack.c.b16 %v907, %v906
    %v1052 = vpack.c.b16 %v909, %v908
    %v1053 = vpack.c.b16 %v911, %v910
    %v1054 = vpack.c.b16 %v913, %v912
    %v1055 = vpack.c.b16 %v915, %v914
    %v1056 = vpack.c.b16 %v917, %v916
    %v1057 = vpack.c.b16 %v919, %v918
    %v1058 = vpack.c.b16 %v921, %v920
    %v1059 = vpack.c.b16 %v923, %v922
    %v1060 = vpack.c.b16 %v925, %v924
    %v1061 = vpack.c.b16 %v927, %v926
    %v1062 = vpack.c.b16 %v929, %v928
    %v1063 = vpack.c.b16 %v931, %v930
    %v1064 = vpack.c.b16 %v933, %v932
    %v1065 = vpack.c.b16 %v935, %v934
    %v1066 = vpack.c.b16 %v937, %v936
    %v1067 = vpack.c.b16 %v939, %v938
    %v1068 = vpack.c.b16 %v941, %v940
    %v1069 = vpack.c.b16 %v943, %v942
    %v1070 = vpack.c.b16 %v945, %v944
    %v1071 = vpack.c.b16 %v947, %v946
    %v1072 = vpack.c.b16 %v949, %v948
    %v1073 = vpack.c.b16 %v951, %v950
    %v1074 = vpack.c.b16 %v953, %v952
    %v1075 = vpack.c.b16 %v955, %v954
    %v1076 = vpack.c.b16 %v957, %v956
    %v1077 = vpack.c.b16 %v959, %v958
    %v1078 = vpack.c.b16 %v961, %v960
    %v1079 = vpack.c.b16 %v963, %v962
    %v1080 = vpack.c.b16 %v965, %v964
    %v1081 = vpack.c.b16 %v967, %v966
    %v1082 = vpack.c.b16 %v969, %v968
    %v1083 = vpack.c.b16 %v971, %v970
    %v1084 = vpack.c.b16 %v973, %v972
    %v1085 = vpack.c.b16 %v975, %v974
    %v1086 = vpack.c.b16 %v977, %v976
    %v1087 = vpack.c.b16 %v979, %v978
    %v1088 = vpack.c.b16 %v981, %v980
    %v1089 = vpack.c.b16 %v983, %v982
    %v1090 = vpack.c.b16 %v985, %v984
    %v1091 = vpack.c.b16 %v987, %v986
    %v1092 = vpack.c.b16 %v989, %v988
    %v1093 = vpack.c.b16 %v991, %v990
    %v1094 = vpack.c.b16 %v993, %v992
    %v1095 = vpack.c.b16 %v995, %v994
    %vm1196 = vcmask 523264
    %v1198 = vsel %vm1196, %v508, 0
    %v1201 = vsel %vm1196, %v521, 0
    %v1204 = vsel %vm1196, %v534, 0
    %v1207 = vsel %vm1196, %v547, 0
    %1209 = vmatprep.subr.bf16.mxu0 0
    %1210 = vmatpush1.bf16.msra.mxu0 %v1003
    %1211 = vmatprep.subr.bf16.mxu0 0
    %1212 = vmatpush1.bf16.msra.mxu0 %v1002
    %1213 = vmatprep.subr.bf16.mxu0 0
    %1214 = vmatpush1.bf16.msra.mxu0 %v1001
    %1215 = vmatprep.subr.bf16.mxu0 0
    %1216 = vmatpush1.bf16.msra.mxu0 %v1000
    %1217 = vmatprep.subr.bf16.mxu0 0
    %1218 = vmatpush1.bf16.msra.mxu0 %v999
    %1219 = vmatprep.subr.bf16.mxu0 0
    %1220 = vmatpush1.bf16.msra.mxu0 %v998
    %1221 = vmatprep.subr.bf16.mxu0 0
    %1222 = vmatpush1.bf16.msra.mxu0 %v997
    %1223 = vmatprep.subr.bf16.mxu0 0
    %1224 = vmatpush1.bf16.msra.mxu0 %v996
    %1225 = vmatprep.subr.bf16.mxu0 0
    %1226 = vmatpush2.bf16.msra.mxu0 %v1011
    %1227 = vmatprep.subr.bf16.mxu0 0
    %1228 = vmatpush2.bf16.msra.mxu0 %v1010
    %1229 = vmatprep.subr.bf16.mxu0 0
    %1230 = vmatpush2.bf16.msra.mxu0 %v1009
    %1231 = vmatprep.subr.bf16.mxu0 0
    %1232 = vmatpush2.bf16.msra.mxu0 %v1008
    %1233 = vmatprep.subr.bf16.mxu0 0
    %1234 = vmatpush2.bf16.msra.mxu0 %v1007
    %1235 = vmatprep.subr.bf16.mxu0 0
    %1236 = vmatpush2.bf16.msra.mxu0 %v1006
    %1237 = vmatprep.subr.bf16.mxu0 0
    %1238 = vmatpush2.bf16.msra.mxu0 %v1005
    %1239 = vmatprep.subr.bf16.mxu0 0
    %1240 = vmatpush2.bf16.msra.mxu0 %v1004
    %1241 = vmatprep.mubr.bf16.mxu0 %v497
    %1242 = vmatmul.mubr.bf16.gmra.mxu0 %v496
    %v1243 = vpop.f32.mrf.mxu0
    %v1244 = vadd.f32 %v299, %v1243
    %v1245 = vpop.f32.mrf.mxu0
    %v1246 = vpop.f32.mrf.mxu0
    %v1247 = vadd.f32 %v304, %v1246
    %v1248 = vpop.f32.mrf.mxu0
    %1249 = vmatprep.mubr.bf16.mxu0 %v510
    %1250 = vmatmul.mubr.bf16.gmra.mxu0 %v509
    %v1251 = vpop.f32.mrf.mxu0
    %v1252 = vadd.f32 %v309, %v1251
    %v1253 = vpop.f32.mrf.mxu0
    %v1254 = vpop.f32.mrf.mxu0
    %v1255 = vadd.f32 %v314, %v1254
    %v1256 = vpop.f32.mrf.mxu0
    %1257 = vmatprep.mubr.bf16.mxu0 %v523
    %1258 = vmatmul.mubr.bf16.gmra.mxu0 %v522
    %v1259 = vpop.f32.mrf.mxu0
    %v1260 = vadd.f32 %v319, %v1259
    %v1261 = vpop.f32.mrf.mxu0
    %v1262 = vpop.f32.mrf.mxu0
    %v1263 = vadd.f32 %v324, %v1262
    %v1264 = vpop.f32.mrf.mxu0
    %1265 = vmatprep.mubr.bf16.mxu0 %v536
    %1266 = vmatmul.mubr.bf16.gmra.mxu0 %v535
    %v1267 = vpop.f32.mrf.mxu0
    %v1268 = vadd.f32 %v329, %v1267
    %v1269 = vpop.f32.mrf.mxu0
    %v1270 = vpop.f32.mrf.mxu0
    %v1271 = vadd.f32 %v334, %v1270
    %v1272 = vpop.f32.mrf.mxu0
    %1273 = vdwg.mxu0
    %1274 = vmatprep.subr.bf16.mxu0 0
    %1275 = vmatpush1.bf16.msra.mxu0 %v1019
    %1276 = vmatprep.subr.bf16.mxu0 0
    %1277 = vmatpush1.bf16.msra.mxu0 %v1018
    %1278 = vmatprep.subr.bf16.mxu0 0
    %1279 = vmatpush1.bf16.msra.mxu0 %v1017
    %1280 = vmatprep.subr.bf16.mxu0 0
    %1281 = vmatpush1.bf16.msra.mxu0 %v1016
    %1282 = vmatprep.subr.bf16.mxu0 0
    %1283 = vmatpush1.bf16.msra.mxu0 %v1015
    %1284 = vmatprep.subr.bf16.mxu0 0
    %1285 = vmatpush1.bf16.msra.mxu0 %v1014
    %1286 = vmatprep.subr.bf16.mxu0 0
    %1287 = vmatpush1.bf16.msra.mxu0 %v1013
    %1288 = vmatprep.subr.bf16.mxu0 0
    %1289 = vmatpush1.bf16.msra.mxu0 %v1012
    %1290 = vmatprep.subr.bf16.mxu0 0
    %1291 = vmatpush2.bf16.msra.mxu0 %v1027
    %1292 = vmatprep.subr.bf16.mxu0 0
    %1293 = vmatpush2.bf16.msra.mxu0 %v1026
    %1294 = vmatprep.subr.bf16.mxu0 0
    %1295 = vmatpush2.bf16.msra.mxu0 %v1025
    %1296 = vmatprep.subr.bf16.mxu0 0
    %1297 = vmatpush2.bf16.msra.mxu0 %v1024
    %1298 = vmatprep.subr.bf16.mxu0 0
    %1299 = vmatpush2.bf16.msra.mxu0 %v1023
    %1300 = vmatprep.subr.bf16.mxu0 0
    %1301 = vmatpush2.bf16.msra.mxu0 %v1022
    %1302 = vmatprep.subr.bf16.mxu0 0
    %1303 = vmatpush2.bf16.msra.mxu0 %v1021
    %1304 = vmatprep.subr.bf16.mxu0 0
    %1305 = vmatpush2.bf16.msra.mxu0 %v1020
    %1306 = vmatprep.mubr.bf16.mxu0 %v499
    %1307 = vmatmul.mubr.bf16.gmra.mxu0 %v498
    %v1308 = vpop.f32.mrf.mxu0
    %v1309 = vadd.f32 %v1244, %v1308
    %v1310 = vpop.f32.mrf.mxu0
    %v1311 = vpop.f32.mrf.mxu0
    %v1312 = vadd.f32 %v1247, %v1311
    %v1313 = vpop.f32.mrf.mxu0
    %1314 = vmatprep.mubr.bf16.mxu0 %v512
    %1315 = vmatmul.mubr.bf16.gmra.mxu0 %v511
    %v1316 = vpop.f32.mrf.mxu0
    %v1317 = vadd.f32 %v1252, %v1316
    %v1318 = vpop.f32.mrf.mxu0
    %v1319 = vpop.f32.mrf.mxu0
    %v1320 = vadd.f32 %v1255, %v1319
    %v1321 = vpop.f32.mrf.mxu0
    %1322 = vmatprep.mubr.bf16.mxu0 %v525
    %1323 = vmatmul.mubr.bf16.gmra.mxu0 %v524
    %v1324 = vpop.f32.mrf.mxu0
    %v1325 = vadd.f32 %v1260, %v1324
    %v1326 = vpop.f32.mrf.mxu0
    %v1327 = vpop.f32.mrf.mxu0
    %v1328 = vadd.f32 %v1263, %v1327
    %v1329 = vpop.f32.mrf.mxu0
    %1330 = vmatprep.mubr.bf16.mxu0 %v538
    %1331 = vmatmul.mubr.bf16.gmra.mxu0 %v537
    %v1332 = vpop.f32.mrf.mxu0
    %v1333 = vadd.f32 %v1268, %v1332
    %v1334 = vpop.f32.mrf.mxu0
    %v1335 = vpop.f32.mrf.mxu0
    %v1336 = vadd.f32 %v1271, %v1335
    %v1337 = vpop.f32.mrf.mxu0
    %1338 = vdwg.mxu0
    %1339 = vmatprep.subr.bf16.mxu0 0
    %1340 = vmatpush1.bf16.msra.mxu0 %v1035
    %1341 = vmatprep.subr.bf16.mxu0 0
    %1342 = vmatpush1.bf16.msra.mxu0 %v1034
    %1343 = vmatprep.subr.bf16.mxu0 0
    %1344 = vmatpush1.bf16.msra.mxu0 %v1033
    %1345 = vmatprep.subr.bf16.mxu0 0
    %1346 = vmatpush1.bf16.msra.mxu0 %v1032
    %1347 = vmatprep.subr.bf16.mxu0 0
    %1348 = vmatpush1.bf16.msra.mxu0 %v1031
    %1349 = vmatprep.subr.bf16.mxu0 0
    %1350 = vmatpush1.bf16.msra.mxu0 %v1030
    %1351 = vmatprep.subr.bf16.mxu0 0
    %1352 = vmatpush1.bf16.msra.mxu0 %v1029
    %1353 = vmatprep.subr.bf16.mxu0 0
    %1354 = vmatpush1.bf16.msra.mxu0 %v1028
    %1355 = vmatprep.subr.bf16.mxu0 0
    %1356 = vmatpush2.bf16.msra.mxu0 %v1043
    %1357 = vmatprep.subr.bf16.mxu0 0
    %1358 = vmatpush2.bf16.msra.mxu0 %v1042
    %1359 = vmatprep.subr.bf16.mxu0 0
    %1360 = vmatpush2.bf16.msra.mxu0 %v1041
    %1361 = vmatprep.subr.bf16.mxu0 0
    %1362 = vmatpush2.bf16.msra.mxu0 %v1040
    %1363 = vmatprep.subr.bf16.mxu0 0
    %1364 = vmatpush2.bf16.msra.mxu0 %v1039
    %1365 = vmatprep.subr.bf16.mxu0 0
    %1366 = vmatpush2.bf16.msra.mxu0 %v1038
    %1367 = vmatprep.subr.bf16.mxu0 0
    %1368 = vmatpush2.bf16.msra.mxu0 %v1037
    %1369 = vmatprep.subr.bf16.mxu0 0
    %1370 = vmatpush2.bf16.msra.mxu0 %v1036
    %1371 = vmatprep.mubr.bf16.mxu0 %v501
    %1372 = vmatmul.mubr.bf16.gmra.mxu0 %v500
    %v1373 = vpop.f32.mrf.mxu0
    %v1374 = vadd.f32 %v1309, %v1373
    %v1375 = vpop.f32.mrf.mxu0
    %v1376 = vpop.f32.mrf.mxu0
    %v1377 = vadd.f32 %v1312, %v1376
    %v1378 = vpop.f32.mrf.mxu0
    %1379 = vmatprep.mubr.bf16.mxu0 %v514
    %1380 = vmatmul.mubr.bf16.gmra.mxu0 %v513
    %v1381 = vpop.f32.mrf.mxu0
    %v1382 = vadd.f32 %v1317, %v1381
    %v1383 = vpop.f32.mrf.mxu0
    %v1384 = vpop.f32.mrf.mxu0
    %v1385 = vadd.f32 %v1320, %v1384
    %v1386 = vpop.f32.mrf.mxu0
    %1387 = vmatprep.mubr.bf16.mxu0 %v527
    %1388 = vmatmul.mubr.bf16.gmra.mxu0 %v526
    %v1389 = vpop.f32.mrf.mxu0
    %v1390 = vadd.f32 %v1325, %v1389
    %v1391 = vpop.f32.mrf.mxu0
    %v1392 = vpop.f32.mrf.mxu0
    %v1393 = vadd.f32 %v1328, %v1392
    %v1394 = vpop.f32.mrf.mxu0
    %1395 = vmatprep.mubr.bf16.mxu0 %v540
    %1396 = vmatmul.mubr.bf16.gmra.mxu0 %v539
    %v1397 = vpop.f32.mrf.mxu0
    %v1398 = vadd.f32 %v1333, %v1397
    %v1399 = vpop.f32.mrf.mxu0
    %v1400 = vpop.f32.mrf.mxu0
    %v1401 = vadd.f32 %v1336, %v1400
    %v1402 = vpop.f32.mrf.mxu0
    %1403 = vdwg.mxu0
    %1404 = vmatprep.subr.bf16.mxu0 0
    %1405 = vmatpush1.bf16.msra.mxu0 %v1051
    %1406 = vmatprep.subr.bf16.mxu0 0
    %1407 = vmatpush1.bf16.msra.mxu0 %v1050
    %1408 = vmatprep.subr.bf16.mxu0 0
    %1409 = vmatpush1.bf16.msra.mxu0 %v1049
    %1410 = vmatprep.subr.bf16.mxu0 0
    %1411 = vmatpush1.bf16.msra.mxu0 %v1048
    %1412 = vmatprep.subr.bf16.mxu0 0
    %1413 = vmatpush1.bf16.msra.mxu0 %v1047
    %1414 = vmatprep.subr.bf16.mxu0 0
    %1415 = vmatpush1.bf16.msra.mxu0 %v1046
    %1416 = vmatprep.subr.bf16.mxu0 0
    %1417 = vmatpush1.bf16.msra.mxu0 %v1045
    %1418 = vmatprep.subr.bf16.mxu0 0
    %1419 = vmatpush1.bf16.msra.mxu0 %v1044
    %1420 = vmatprep.subr.bf16.mxu0 0
    %1421 = vmatpush2.bf16.msra.mxu0 %v1059
    %1422 = vmatprep.subr.bf16.mxu0 0
    %1423 = vmatpush2.bf16.msra.mxu0 %v1058
    %1424 = vmatprep.subr.bf16.mxu0 0
    %1425 = vmatpush2.bf16.msra.mxu0 %v1057
    %1426 = vmatprep.subr.bf16.mxu0 0
    %1427 = vmatpush2.bf16.msra.mxu0 %v1056
    %1428 = vmatprep.subr.bf16.mxu0 0
    %1429 = vmatpush2.bf16.msra.mxu0 %v1055
    %1430 = vmatprep.subr.bf16.mxu0 0
    %1431 = vmatpush2.bf16.msra.mxu0 %v1054
    %1432 = vmatprep.subr.bf16.mxu0 0
    %1433 = vmatpush2.bf16.msra.mxu0 %v1053
    %1434 = vmatprep.subr.bf16.mxu0 0
    %1435 = vmatpush2.bf16.msra.mxu0 %v1052
    %1436 = vmatprep.mubr.bf16.mxu0 %v503
    %1437 = vmatmul.mubr.bf16.gmra.mxu0 %v502
    %v1438 = vpop.f32.mrf.mxu0
    %v1439 = vadd.f32 %v1374, %v1438
    %v1440 = vpop.f32.mrf.mxu0
    %v1441 = vpop.f32.mrf.mxu0
    %v1442 = vadd.f32 %v1377, %v1441
    %v1443 = vpop.f32.mrf.mxu0
    %1444 = vmatprep.mubr.bf16.mxu0 %v516
    %1445 = vmatmul.mubr.bf16.gmra.mxu0 %v515
    %v1446 = vpop.f32.mrf.mxu0
    %v1447 = vadd.f32 %v1382, %v1446
    %v1448 = vpop.f32.mrf.mxu0
    %v1449 = vpop.f32.mrf.mxu0
    %v1450 = vadd.f32 %v1385, %v1449
    %v1451 = vpop.f32.mrf.mxu0
    %1452 = vmatprep.mubr.bf16.mxu0 %v529
    %1453 = vmatmul.mubr.bf16.gmra.mxu0 %v528
    %v1454 = vpop.f32.mrf.mxu0
    %v1455 = vadd.f32 %v1390, %v1454
    %v1456 = vpop.f32.mrf.mxu0
    %v1457 = vpop.f32.mrf.mxu0
    %v1458 = vadd.f32 %v1393, %v1457
    %v1459 = vpop.f32.mrf.mxu0
    %1460 = vmatprep.mubr.bf16.mxu0 %v542
    %1461 = vmatmul.mubr.bf16.gmra.mxu0 %v541
    %v1462 = vpop.f32.mrf.mxu0
    %v1463 = vadd.f32 %v1398, %v1462
    %v1464 = vpop.f32.mrf.mxu0
    %v1465 = vpop.f32.mrf.mxu0
    %v1466 = vadd.f32 %v1401, %v1465
    %v1467 = vpop.f32.mrf.mxu0
    %1468 = vdwg.mxu0
    %1469 = vmatprep.subr.bf16.mxu0 0
    %1470 = vmatpush1.bf16.msra.mxu0 %v1067
    %1471 = vmatprep.subr.bf16.mxu0 0
    %1472 = vmatpush1.bf16.msra.mxu0 %v1066
    %1473 = vmatprep.subr.bf16.mxu0 0
    %1474 = vmatpush1.bf16.msra.mxu0 %v1065
    %1475 = vmatprep.subr.bf16.mxu0 0
    %1476 = vmatpush1.bf16.msra.mxu0 %v1064
    %1477 = vmatprep.subr.bf16.mxu0 0
    %1478 = vmatpush1.bf16.msra.mxu0 %v1063
    %1479 = vmatprep.subr.bf16.mxu0 0
    %1480 = vmatpush1.bf16.msra.mxu0 %v1062
    %1481 = vmatprep.subr.bf16.mxu0 0
    %1482 = vmatpush1.bf16.msra.mxu0 %v1061
    %1483 = vmatprep.subr.bf16.mxu0 0
    %1484 = vmatpush1.bf16.msra.mxu0 %v1060
    %1485 = vmatprep.subr.bf16.mxu0 0
    %1486 = vmatpush2.bf16.msra.mxu0 %v1075
    %1487 = vmatprep.subr.bf16.mxu0 0
    %1488 = vmatpush2.bf16.msra.mxu0 %v1074
    %1489 = vmatprep.subr.bf16.mxu0 0
    %1490 = vmatpush2.bf16.msra.mxu0 %v1073
    %1491 = vmatprep.subr.bf16.mxu0 0
    %1492 = vmatpush2.bf16.msra.mxu0 %v1072
    %1493 = vmatprep.subr.bf16.mxu0 0
    %1494 = vmatpush2.bf16.msra.mxu0 %v1071
    %1495 = vmatprep.subr.bf16.mxu0 0
    %1496 = vmatpush2.bf16.msra.mxu0 %v1070
    %1497 = vmatprep.subr.bf16.mxu0 0
    %1498 = vmatpush2.bf16.msra.mxu0 %v1069
    %1499 = vmatprep.subr.bf16.mxu0 0
    %1500 = vmatpush2.bf16.msra.mxu0 %v1068
    %1501 = vmatprep.mubr.bf16.mxu0 %v505
    %1502 = vmatmul.mubr.bf16.gmra.mxu0 %v504
    %v1503 = vpop.f32.mrf.mxu0
    %v1504 = vadd.f32 %v1439, %v1503
    %v1505 = vpop.f32.mrf.mxu0
    %v1506 = vpop.f32.mrf.mxu0
    %v1507 = vadd.f32 %v1442, %v1506
    %v1508 = vpop.f32.mrf.mxu0
    %1509 = vmatprep.mubr.bf16.mxu0 %v518
    %1510 = vmatmul.mubr.bf16.gmra.mxu0 %v517
    %v1511 = vpop.f32.mrf.mxu0
    %v1512 = vadd.f32 %v1447, %v1511
    %v1513 = vpop.f32.mrf.mxu0
    %v1514 = vpop.f32.mrf.mxu0
    %v1515 = vadd.f32 %v1450, %v1514
    %v1516 = vpop.f32.mrf.mxu0
    %1517 = vmatprep.mubr.bf16.mxu0 %v531
    %1518 = vmatmul.mubr.bf16.gmra.mxu0 %v530
    %v1519 = vpop.f32.mrf.mxu0
    %v1520 = vadd.f32 %v1455, %v1519
    %v1521 = vpop.f32.mrf.mxu0
    %v1522 = vpop.f32.mrf.mxu0
    %v1523 = vadd.f32 %v1458, %v1522
    %v1524 = vpop.f32.mrf.mxu0
    %1525 = vmatprep.mubr.bf16.mxu0 %v544
    %1526 = vmatmul.mubr.bf16.gmra.mxu0 %v543
    %v1527 = vpop.f32.mrf.mxu0
    %v1528 = vadd.f32 %v1463, %v1527
    %v1529 = vpop.f32.mrf.mxu0
    %v1530 = vpop.f32.mrf.mxu0
    %v1531 = vadd.f32 %v1466, %v1530
    %v1532 = vpop.f32.mrf.mxu0
    %1533 = vdwg.mxu0
    %1534 = vmatprep.subr.bf16.mxu0 0
    %1535 = vmatpush1.bf16.msra.mxu0 %v1083
    %1536 = vmatprep.subr.bf16.mxu0 0
    %1537 = vmatpush1.bf16.msra.mxu0 %v1082
    %1538 = vmatprep.subr.bf16.mxu0 0
    %1539 = vmatpush1.bf16.msra.mxu0 %v1081
    %1540 = vmatprep.subr.bf16.mxu0 0
    %1541 = vmatpush1.bf16.msra.mxu0 %v1080
    %1542 = vmatprep.subr.bf16.mxu0 0
    %1543 = vmatpush1.bf16.msra.mxu0 %v1079
    %1544 = vmatprep.subr.bf16.mxu0 0
    %1545 = vmatpush1.bf16.msra.mxu0 %v1078
    %1546 = vmatprep.subr.bf16.mxu0 0
    %1547 = vmatpush1.bf16.msra.mxu0 %v1077
    %1548 = vmatprep.subr.bf16.mxu0 0
    %1549 = vmatpush1.bf16.msra.mxu0 %v1076
    %1550 = vmatprep.subr.bf16.mxu0 0
    %1551 = vmatpush2.bf16.msra.mxu0 %v1091
    %1552 = vmatprep.subr.bf16.mxu0 0
    %1553 = vmatpush2.bf16.msra.mxu0 %v1090
    %1554 = vmatprep.subr.bf16.mxu0 0
    %1555 = vmatpush2.bf16.msra.mxu0 %v1089
    %1556 = vmatprep.subr.bf16.mxu0 0
    %1557 = vmatpush2.bf16.msra.mxu0 %v1088
    %1558 = vmatprep.subr.bf16.mxu0 0
    %1559 = vmatpush2.bf16.msra.mxu0 %v1087
    %1560 = vmatprep.subr.bf16.mxu0 0
    %1561 = vmatpush2.bf16.msra.mxu0 %v1086
    %1562 = vmatprep.subr.bf16.mxu0 0
    %1563 = vmatpush2.bf16.msra.mxu0 %v1085
    %1564 = vmatprep.subr.bf16.mxu0 0
    %1565 = vmatpush2.bf16.msra.mxu0 %v1084
    %1566 = vmatprep.mubr.bf16.mxu0 %v507
    %1567 = vmatmul.mubr.bf16.gmra.mxu0 %v506
    %v1568 = vpop.f32.mrf.mxu0
    %v1569 = vadd.f32 %v1504, %v1568
    %v1570 = vpop.f32.mrf.mxu0
    %v1571 = vpop.f32.mrf.mxu0
    %v1572 = vadd.f32 %v1507, %v1571
    %v1573 = vpop.f32.mrf.mxu0
    %1574 = vmatprep.mubr.bf16.mxu0 %v520
    %1575 = vmatmul.mubr.bf16.gmra.mxu0 %v519
    %v1576 = vpop.f32.mrf.mxu0
    %v1577 = vadd.f32 %v1512, %v1576
    %v1578 = vpop.f32.mrf.mxu0
    %v1579 = vpop.f32.mrf.mxu0
    %v1580 = vadd.f32 %v1515, %v1579
    %v1581 = vpop.f32.mrf.mxu0
    %1582 = vmatprep.mubr.bf16.mxu0 %v533
    %1583 = vmatmul.mubr.bf16.gmra.mxu0 %v532
    %v1584 = vpop.f32.mrf.mxu0
    %v1585 = vadd.f32 %v1520, %v1584
    %v1586 = vpop.f32.mrf.mxu0
    %v1587 = vpop.f32.mrf.mxu0
    %v1588 = vadd.f32 %v1523, %v1587
    %v1589 = vpop.f32.mrf.mxu0
    %1590 = vmatprep.mubr.bf16.mxu0 %v546
    %1591 = vmatmul.mubr.bf16.gmra.mxu0 %v545
    %v1592 = vpop.f32.mrf.mxu0
    %v1593 = vadd.f32 %v1528, %v1592
    %v1594 = vpop.f32.mrf.mxu0
    %v1595 = vpop.f32.mrf.mxu0
    %v1596 = vadd.f32 %v1531, %v1595
    %v1597 = vpop.f32.mrf.mxu0
    %1598 = vdwg.mxu0
    %1599 = vmatprep.subr.bf16.mxu0 0
    %1600 = vmatpush1.bf16.msra.mxu0 0
    %1601 = vmatprep.subr.bf16.mxu0 0
    %1602 = vmatpush1.bf16.msra.mxu0 0
    %1603 = vmatprep.subr.bf16.mxu0 0
    %1604 = vmatpush1.bf16.msra.mxu0 0
    %1605 = vmatprep.subr.bf16.mxu0 0
    %1606 = vmatpush1.bf16.msra.mxu0 0
    %1607 = vmatprep.subr.bf16.mxu0 0
    %1608 = vmatpush1.bf16.msra.mxu0 %v1095
    %1609 = vmatprep.subr.bf16.mxu0 0
    %1610 = vmatpush1.bf16.msra.mxu0 %v1094
    %1611 = vmatprep.subr.bf16.mxu0 0
    %1612 = vmatpush1.bf16.msra.mxu0 %v1093
    %1613 = vmatprep.subr.bf16.mxu0 0
    %1614 = vmatpush1.bf16.msra.mxu0 %v1092
    %1615 = vmatprep.subr.bf16.mxu0 0
    %1616 = vmatpush2.bf16.msra.mxu0 0
    %1617 = vmatprep.subr.bf16.mxu0 0
    %1618 = vmatpush2.bf16.msra.mxu0 0
    %1619 = vmatprep.subr.bf16.mxu0 0
    %1620 = vmatpush2.bf16.msra.mxu0 0
    %1621 = vmatprep.subr.bf16.mxu0 0
    %1622 = vmatpush2.bf16.msra.mxu0 0
    %1623 = vmatprep.subr.bf16.mxu0 0
    %1624 = vmatpush2.bf16.msra.mxu0 0
    %1625 = vmatprep.subr.bf16.mxu0 0
    %1626 = vmatpush2.bf16.msra.mxu0 0
    %1627 = vmatprep.subr.bf16.mxu0 0
    %1628 = vmatpush2.bf16.msra.mxu0 0
    %1629 = vmatprep.subr.bf16.mxu0 0
    %1630 = vmatpush2.bf16.msra.mxu0 0
    %1631 = vmatprep.mubr.bf16.mxu0 0
    %1632 = vmatmul.mubr.bf16.gmra.mxu0 %v1198
    %v1633 = vpop.f32.mrf.mxu0
    %v1634 = vadd.f32 %v1569, %v1633
    %v1635 = vpop.f32.mrf.mxu0
    %v1636 = vpop.f32.mrf.mxu0
    %v1637 = vadd.f32 %v1572, %v1636
    %v1638 = vpop.f32.mrf.mxu0
    %1639 = vmatprep.mubr.bf16.mxu0 0
    %1640 = vmatmul.mubr.bf16.gmra.mxu0 %v1201
    %v1641 = vpop.f32.mrf.mxu0
    %v1642 = vadd.f32 %v1577, %v1641
    %v1643 = vpop.f32.mrf.mxu0
    %v1644 = vpop.f32.mrf.mxu0
    %v1645 = vadd.f32 %v1580, %v1644
    %v1646 = vpop.f32.mrf.mxu0
    %1647 = vmatprep.mubr.bf16.mxu0 0
    %1648 = vmatmul.mubr.bf16.gmra.mxu0 %v1204
    %v1649 = vpop.f32.mrf.mxu0
    %v1650 = vadd.f32 %v1585, %v1649
    %v1651 = vpop.f32.mrf.mxu0
    %v1652 = vpop.f32.mrf.mxu0
    %v1653 = vadd.f32 %v1588, %v1652
    %v1654 = vpop.f32.mrf.mxu0
    %1655 = vmatprep.mubr.bf16.mxu0 0
    %1656 = vmatmul.mubr.bf16.gmra.mxu0 %v1207
    %v1657 = vpop.f32.mrf.mxu0
    %v1658 = vadd.f32 %v1593, %v1657
    %v1659 = vpop.f32.mrf.mxu0
    %v1660 = vpop.f32.mrf.mxu0
    %v1661 = vadd.f32 %v1596, %v1660
    %v1662 = vpop.f32.mrf.mxu0
    %1663 = vdwg.mxu0
    %v1664 = vsel %vm39, 1, 0
    %vm1665 = vcmp.eq.s32.totalorder %v1664, 1
    %v1666 = vsel %vm1665, %v1634, 0.0
    %v1667 = vsel %vm1665, %v1637, 0.0
    %v1668 = vsel %vm1665, %v1642, 0.0
    %v1669 = vsel %vm1665, %v1645, 0.0
    %v1670 = vsel %vm1665, %v1650, 0.0
    %v1671 = vsel %vm1665, %v1653, 0.0
    %v1672 = vsel %vm1665, %v1658, 0.0
    %v1673 = vsel %vm1665, %v1661, 0.0
    %v1674 = vsel %vm1196, %v1634, 0.0
    %1675 = vadd.xlane.f32.xlu0 %v1674
    %v1676 = vpop.xlane.xlu0 %1675
    %v1677 = vsel %vm1196, %v1637, 0.0
    %1678 = vadd.xlane.f32.xlu0 %v1677
    %v1679 = vpop.xlane.xlu0 %1678
    %v1680 = vsel %vm1196, %v1642, 0.0
    %1681 = vadd.xlane.f32.xlu0 %v1680
    %v1682 = vpop.xlane.xlu0 %1681
    %v1683 = vsel %vm1196, %v1645, 0.0
    %1684 = vadd.xlane.f32.xlu0 %v1683
    %v1685 = vpop.xlane.xlu0 %1684
    %v1686 = vsel %vm1196, %v1650, 0.0
    %1687 = vadd.xlane.f32.xlu0 %v1686
    %v1688 = vpop.xlane.xlu0 %1687
    %v1689 = vsel %vm1196, %v1653, 0.0
    %1690 = vadd.xlane.f32.xlu0 %v1689
    %v1691 = vpop.xlane.xlu0 %1690
    %v1692 = vsel %vm1196, %v1658, 0.0
    %1693 = vadd.xlane.f32.xlu0 %v1692
    %v1694 = vpop.xlane.xlu0 %1693
    %v1695 = vsel %vm1196, %v1661, 0.0
    %1696 = vadd.xlane.f32.xlu0 %v1695
    %v1697 = vpop.xlane.xlu0 %1696
    %v1698 = vadd.f32 %v1676, 0.0
    %v1699 = vadd.f32 %v1679, 0.0
    %v1700 = vadd.f32 %v1682, 0.0
    %v1701 = vadd.f32 %v1685, 0.0
    %v1702 = vadd.f32 %v1688, 0.0
    %v1703 = vadd.f32 %v1691, 0.0
    %v1704 = vadd.f32 %v1694, 0.0
    %v1705 = vadd.f32 %v1697, 0.0
    %v1706 = vmul.f32 %v1634, %v1634
    %v1707 = vmul.f32 %v1637, %v1637
    %v1708 = vmul.f32 %v1642, %v1642
    %v1709 = vmul.f32 %v1645, %v1645
    %v1710 = vmul.f32 %v1650, %v1650
    %v1711 = vmul.f32 %v1653, %v1653
    %v1712 = vmul.f32 %v1658, %v1658
    %v1713 = vmul.f32 %v1661, %v1661
    %v1714 = vsel %vm1196, %v1706, 0.0
    %1715 = vadd.xlane.f32.xlu0 %v1714
    %v1716 = vpop.xlane.xlu0 %1715
    %v1717 = vsel %vm1196, %v1707, 0.0
    %1718 = vadd.xlane.f32.xlu0 %v1717
    %v1719 = vpop.xlane.xlu0 %1718
    %v1720 = vsel %vm1196, %v1708, 0.0
    %1721 = vadd.xlane.f32.xlu0 %v1720
    %v1722 = vpop.xlane.xlu0 %1721
    %v1723 = vsel %vm1196, %v1709, 0.0
    %1724 = vadd.xlane.f32.xlu0 %v1723
    %v1725 = vpop.xlane.xlu0 %1724
    %v1726 = vsel %vm1196, %v1710, 0.0
    %1727 = vadd.xlane.f32.xlu0 %v1726
    %v1728 = vpop.xlane.xlu0 %1727
    %v1729 = vsel %vm1196, %v1711, 0.0
    %1730 = vadd.xlane.f32.xlu0 %v1729
    %v1731 = vpop.xlane.xlu0 %1730
    %v1732 = vsel %vm1196, %v1712, 0.0
    %1733 = vadd.xlane.f32.xlu0 %v1732
    %v1734 = vpop.xlane.xlu0 %1733
    %v1735 = vsel %vm1196, %v1713, 0.0
    %1736 = vadd.xlane.f32.xlu0 %v1735
    %v1737 = vpop.xlane.xlu0 %1736
    %v1738 = vadd.f32 %v1716, 0.0
    %v1739 = vadd.f32 %v1719, 0.0
    %v1740 = vadd.f32 %v1722, 0.0
    %v1741 = vadd.f32 %v1725, 0.0
    %v1742 = vadd.f32 %v1728, 0.0
    %v1743 = vadd.f32 %v1731, 0.0
    %v1744 = vadd.f32 %v1734, 0.0
    %v1745 = vadd.f32 %v1737, 0.0
    %v1746 = vsel %vm1196, %v1666, 0.0
    %1747 = vadd.xlane.f32.xlu0 %v1746
    %v1748 = vpop.xlane.xlu0 %1747
    %v1749 = vsel %vm1196, %v1667, 0.0
    %1750 = vadd.xlane.f32.xlu0 %v1749
    %v1751 = vpop.xlane.xlu0 %1750
    %v1752 = vsel %vm1196, %v1668, 0.0
    %1753 = vadd.xlane.f32.xlu0 %v1752
    %v1754 = vpop.xlane.xlu0 %1753
    %v1755 = vsel %vm1196, %v1669, 0.0
    %1756 = vadd.xlane.f32.xlu0 %v1755
    %v1757 = vpop.xlane.xlu0 %1756
    %v1758 = vsel %vm1196, %v1670, 0.0
    %1759 = vadd.xlane.f32.xlu0 %v1758
    %v1760 = vpop.xlane.xlu0 %1759
    %v1761 = vsel %vm1196, %v1671, 0.0
    %1762 = vadd.xlane.f32.xlu0 %v1761
    %v1763 = vpop.xlane.xlu0 %1762
    %v1764 = vsel %vm1196, %v1672, 0.0
    %1765 = vadd.xlane.f32.xlu0 %v1764
    %v1766 = vpop.xlane.xlu0 %1765
    %v1767 = vsel %vm1196, %v1673, 0.0
    %1768 = vadd.xlane.f32.xlu0 %v1767
    %v1769 = vpop.xlane.xlu0 %1768
    %v1770 = vadd.f32 %v1748, 0.0
    %v1771 = vadd.f32 %v1751, 0.0
    %v1772 = vadd.f32 %v1754, 0.0
    %v1773 = vadd.f32 %v1757, 0.0
    %v1774 = vadd.f32 %v1760, 0.0
    %v1775 = vadd.f32 %v1763, 0.0
    %v1776 = vadd.f32 %v1766, 0.0
    %v1777 = vadd.f32 %v1769, 0.0
    %v1778 = vmul.f32 %v1666, %v1666
    %v1779 = vmul.f32 %v1667, %v1667
    %v1780 = vmul.f32 %v1668, %v1668
    %v1781 = vmul.f32 %v1669, %v1669
    %v1782 = vmul.f32 %v1670, %v1670
    %v1783 = vmul.f32 %v1671, %v1671
    %v1784 = vmul.f32 %v1672, %v1672
    %v1785 = vmul.f32 %v1673, %v1673
    %v1786 = vsel %vm1196, %v1778, 0.0
    %1787 = vadd.xlane.f32.xlu0 %v1786
    %v1788 = vpop.xlane.xlu0 %1787
    %v1789 = vsel %vm1196, %v1779, 0.0
    %1790 = vadd.xlane.f32.xlu0 %v1789
    %v1791 = vpop.xlane.xlu0 %1790
    %v1792 = vsel %vm1196, %v1780, 0.0
    %1793 = vadd.xlane.f32.xlu0 %v1792
    %v1794 = vpop.xlane.xlu0 %1793
    %v1795 = vsel %vm1196, %v1781, 0.0
    %1796 = vadd.xlane.f32.xlu0 %v1795
    %v1797 = vpop.xlane.xlu0 %1796
    %v1798 = vsel %vm1196, %v1782, 0.0
    %1799 = vadd.xlane.f32.xlu0 %v1798
    %v1800 = vpop.xlane.xlu0 %1799
    %v1801 = vsel %vm1196, %v1783, 0.0
    %1802 = vadd.xlane.f32.xlu0 %v1801
    %v1803 = vpop.xlane.xlu0 %1802
    %v1804 = vsel %vm1196, %v1784, 0.0
    %1805 = vadd.xlane.f32.xlu0 %v1804
    %v1806 = vpop.xlane.xlu0 %1805
    %v1807 = vsel %vm1196, %v1785, 0.0
    %1808 = vadd.xlane.f32.xlu0 %v1807
    %v1809 = vpop.xlane.xlu0 %1808
    %v1810 = vadd.f32 %v1788, 0.0
    %v1811 = vadd.f32 %v1791, 0.0
    %v1812 = vadd.f32 %v1794, 0.0
    %v1813 = vadd.f32 %v1797, 0.0
    %v1814 = vadd.f32 %v1800, 0.0
    %v1815 = vadd.f32 %v1803, 0.0
    %v1816 = vadd.f32 %v1806, 0.0
    %v1817 = vadd.f32 %v1809, 0.0
    %v1818 = vmul.f32 %v1770, 0.03125
    %v1819 = vmul.f32 %v1771, 0.03125
    %v1820 = vmul.f32 %v1772, 0.03125
    %v1821 = vmul.f32 %v1773, 0.03125
    %v1822 = vmul.f32 %v1774, 0.03125
    %v1823 = vmul.f32 %v1775, 0.03125
    %v1824 = vmul.f32 %v1776, 0.03125
    %v1825 = vmul.f32 %v1777, 0.03125
    %v1826 = vmul.f32 %v1810, 0.03125
    %v1827 = vmul.f32 %v1811, 0.03125
    %v1828 = vmul.f32 %v1812, 0.03125
    %v1829 = vmul.f32 %v1813, 0.03125
    %v1830 = vmul.f32 %v1814, 0.03125
    %v1831 = vmul.f32 %v1815, 0.03125
    %v1832 = vmul.f32 %v1816, 0.03125
    %v1833 = vmul.f32 %v1817, 0.03125
    %v1834 = vsub.f32 %v1698, %v1770
    %v1835 = vsub.f32 %v1699, %v1771
    %v1836 = vsub.f32 %v1700, %v1772
    %v1837 = vsub.f32 %v1701, %v1773
    %v1838 = vsub.f32 %v1702, %v1774
    %v1839 = vsub.f32 %v1703, %v1775
    %v1840 = vsub.f32 %v1704, %v1776
    %v1841 = vsub.f32 %v1705, %v1777
    %v1842 = vmul.f32 %v1834, 0.03125
    %v1843 = vmul.f32 %v1835, 0.03125
    %v1844 = vmul.f32 %v1836, 0.03125
    %v1845 = vmul.f32 %v1837, 0.03125
    %v1846 = vmul.f32 %v1838, 0.03125
    %v1847 = vmul.f32 %v1839, 0.03125
    %v1848 = vmul.f32 %v1840, 0.03125
    %v1849 = vmul.f32 %v1841, 0.03125
    %v1850 = vsub.f32 %v1738, %v1810
    %v1851 = vsub.f32 %v1739, %v1811
    %v1852 = vsub.f32 %v1740, %v1812
    %v1853 = vsub.f32 %v1741, %v1813
    %v1854 = vsub.f32 %v1742, %v1814
    %v1855 = vsub.f32 %v1743, %v1815
    %v1856 = vsub.f32 %v1744, %v1816
    %v1857 = vsub.f32 %v1745, %v1817
    %v1858 = vmul.f32 %v1850, 0.03125
    %v1859 = vmul.f32 %v1851, 0.03125
    %v1860 = vmul.f32 %v1852, 0.03125
    %v1861 = vmul.f32 %v1853, 0.03125
    %v1862 = vmul.f32 %v1854, 0.03125
    %v1863 = vmul.f32 %v1855, 0.03125
    %v1864 = vmul.f32 %v1856, 0.03125
    %v1865 = vmul.f32 %v1857, 0.03125
    %v1866 = vmul.f32 %v1842, 0.33333334
    %v1867 = vmul.f32 %v1843, 0.33333334
    %v1868 = vmul.f32 %v1844, 0.33333334
    %v1869 = vmul.f32 %v1845, 0.33333334
    %v1870 = vmul.f32 %v1846, 0.33333334
    %v1871 = vmul.f32 %v1847, 0.33333334
    %v1872 = vmul.f32 %v1848, 0.33333334
    %v1873 = vmul.f32 %v1849, 0.33333334
    %v1874 = vmul.f32 %v1818, 0.6666667
    %v1875 = vmul.f32 %v1819, 0.6666667
    %v1876 = vmul.f32 %v1820, 0.6666667
    %v1877 = vmul.f32 %v1821, 0.6666667
    %v1878 = vmul.f32 %v1822, 0.6666667
    %v1879 = vmul.f32 %v1823, 0.6666667
    %v1880 = vmul.f32 %v1824, 0.6666667
    %v1881 = vmul.f32 %v1825, 0.6666667
    %v1882 = vadd.f32 %v1866, %v1874
    %v1883 = vadd.f32 %v1867, %v1875
    %v1884 = vadd.f32 %v1868, %v1876
    %v1885 = vadd.f32 %v1869, %v1877
    %v1886 = vadd.f32 %v1870, %v1878
    %v1887 = vadd.f32 %v1871, %v1879
    %v1888 = vadd.f32 %v1872, %v1880
    %v1889 = vadd.f32 %v1873, %v1881
    %v1890 = vmul.f32 %v1858, 0.33333334
    %v1891 = vmul.f32 %v1859, 0.33333334
    %v1892 = vmul.f32 %v1860, 0.33333334
    %v1893 = vmul.f32 %v1861, 0.33333334
    %v1894 = vmul.f32 %v1862, 0.33333334
    %v1895 = vmul.f32 %v1863, 0.33333334
    %v1896 = vmul.f32 %v1864, 0.33333334
    %v1897 = vmul.f32 %v1865, 0.33333334
    %v1898 = vmul.f32 %v1826, 0.6666667
    %v1899 = vmul.f32 %v1827, 0.6666667
    %v1900 = vmul.f32 %v1828, 0.6666667
    %v1901 = vmul.f32 %v1829, 0.6666667
    %v1902 = vmul.f32 %v1830, 0.6666667
    %v1903 = vmul.f32 %v1831, 0.6666667
    %v1904 = vmul.f32 %v1832, 0.6666667
    %v1905 = vmul.f32 %v1833, 0.6666667
    %v1906 = vadd.f32 %v1890, %v1898
    %v1907 = vadd.f32 %v1891, %v1899
    %v1908 = vadd.f32 %v1892, %v1900
    %v1909 = vadd.f32 %v1893, %v1901
    %v1910 = vadd.f32 %v1894, %v1902
    %v1911 = vadd.f32 %v1895, %v1903
    %v1912 = vadd.f32 %v1896, %v1904
    %v1913 = vadd.f32 %v1897, %v1905
    %v1914 = vmul.f32 %v1818, %v1818
    %v1915 = vmul.f32 %v1819, %v1819
    %v1916 = vmul.f32 %v1820, %v1820
    %v1917 = vmul.f32 %v1821, %v1821
    %v1918 = vmul.f32 %v1822, %v1822
    %v1919 = vmul.f32 %v1823, %v1823
    %v1920 = vmul.f32 %v1824, %v1824
    %v1921 = vmul.f32 %v1825, %v1825
    %v1922 = vsub.f32 %v1826, %v1914
    %v1923 = vsub.f32 %v1827, %v1915
    %v1924 = vsub.f32 %v1828, %v1916
    %v1925 = vsub.f32 %v1829, %v1917
    %v1926 = vsub.f32 %v1830, %v1918
    %v1927 = vsub.f32 %v1831, %v1919
    %v1928 = vsub.f32 %v1832, %v1920
    %v1929 = vsub.f32 %v1833, %v1921
    %v1930 = vadd.f32 %v1922, 1e-05
    %v1931 = vadd.f32 %v1923, 1e-05
    %v1932 = vadd.f32 %v1924, 1e-05
    %v1933 = vadd.f32 %v1925, 1e-05
    %v1934 = vadd.f32 %v1926, 1e-05
    %v1935 = vadd.f32 %v1927, 1e-05
    %v1936 = vadd.f32 %v1928, 1e-05
    %v1937 = vadd.f32 %v1929, 1e-05
    %v1938 = vrsqrt.pop %v1930
    %v1939 = vrsqrt.pop %v1931
    %v1940 = vrsqrt.pop %v1932
    %v1941 = vrsqrt.pop %v1933
    %v1942 = vrsqrt.pop %v1934
    %v1943 = vrsqrt.pop %v1935
    %v1944 = vrsqrt.pop %v1936
    %v1945 = vrsqrt.pop %v1937
    %v1946 = vmul.f32 %v1938, %v29
    %v1947 = vmul.f32 %v1939, %v30
    %v1948 = vmul.f32 %v1940, %v31
    %v1949 = vmul.f32 %v1941, %v32
    %v1950 = vmul.f32 %v1942, %v33
    %v1951 = vmul.f32 %v1943, %v34
    %v1952 = vmul.f32 %v1944, %v35
    %v1953 = vmul.f32 %v1945, %v36
    %v1954 = vmul.f32 %v1882, %v1882
    %v1955 = vmul.f32 %v1883, %v1883
    %v1956 = vmul.f32 %v1884, %v1884
    %v1957 = vmul.f32 %v1885, %v1885
    %v1958 = vmul.f32 %v1886, %v1886
    %v1959 = vmul.f32 %v1887, %v1887
    %v1960 = vmul.f32 %v1888, %v1888
    %v1961 = vmul.f32 %v1889, %v1889
    %v1962 = vsub.f32 %v1906, %v1954
    %v1963 = vsub.f32 %v1907, %v1955
    %v1964 = vsub.f32 %v1908, %v1956
    %v1965 = vsub.f32 %v1909, %v1957
    %v1966 = vsub.f32 %v1910, %v1958
    %v1967 = vsub.f32 %v1911, %v1959
    %v1968 = vsub.f32 %v1912, %v1960
    %v1969 = vsub.f32 %v1913, %v1961
    %v1970 = vadd.f32 %v1962, 1e-05
    %v1971 = vadd.f32 %v1963, 1e-05
    %v1972 = vadd.f32 %v1964, 1e-05
    %v1973 = vadd.f32 %v1965, 1e-05
    %v1974 = vadd.f32 %v1966, 1e-05
    %v1975 = vadd.f32 %v1967, 1e-05
    %v1976 = vadd.f32 %v1968, 1e-05
    %v1977 = vadd.f32 %v1969, 1e-05
    %v1978 = vrsqrt.pop %v1970
    %v1979 = vrsqrt.pop %v1971
    %v1980 = vrsqrt.pop %v1972
    %v1981 = vrsqrt.pop %v1973
    %v1982 = vrsqrt.pop %v1974
    %v1983 = vrsqrt.pop %v1975
    %v1984 = vrsqrt.pop %v1976
    %v1985 = vrsqrt.pop %v1977
    %v1986 = vmul.f32 %v1978, %v29
    %v1987 = vmul.f32 %v1979, %v30
    %v1988 = vmul.f32 %v1980, %v31
    %v1989 = vmul.f32 %v1981, %v32
    %v1990 = vmul.f32 %v1982, %v33
    %v1991 = vmul.f32 %v1983, %v34
    %v1992 = vmul.f32 %v1984, %v35
    %v1993 = vmul.f32 %v1985, %v36
    %v1994 = vmul.f32 %v1818, %v1946
    %v1995 = vmul.f32 %v1819, %v1947
    %v1996 = vmul.f32 %v1820, %v1948
    %v1997 = vmul.f32 %v1821, %v1949
    %v1998 = vmul.f32 %v1822, %v1950
    %v1999 = vmul.f32 %v1823, %v1951
    %v2000 = vmul.f32 %v1824, %v1952
    %v2001 = vmul.f32 %v1825, %v1953
    %2010 = vrot.lane.b32.xlu0 %v1994, 1
    %v2011 = vpop.permute.xlu0 %2010
    %2012 = vrot.lane.b32.xlu0 %v1995, 1
    %v2013 = vpop.permute.xlu0 %2012
    %2014 = vrot.lane.b32.xlu0 %v1996, 1
    %v2015 = vpop.permute.xlu0 %2014
    %2016 = vrot.lane.b32.xlu0 %v1997, 1
    %v2017 = vpop.permute.xlu0 %2016
    %2018 = vrot.lane.b32.xlu0 %v1998, 1
    %v2019 = vpop.permute.xlu0 %2018
    %2020 = vrot.lane.b32.xlu0 %v1999, 1
    %v2021 = vpop.permute.xlu0 %2020
    %2022 = vrot.lane.b32.xlu0 %v2000, 1
    %v2023 = vpop.permute.xlu0 %2022
    %2024 = vrot.lane.b32.xlu0 %v2001, 1
    %v2025 = vpop.permute.xlu0 %2024
    %v2034 = vsub.f32 %v29, %v2011
    %v2035 = vsub.f32 %v30, %v2013
    %v2036 = vsub.f32 %v31, %v2015
    %v2037 = vsub.f32 %v32, %v2017
    %v2038 = vsub.f32 %v33, %v2019
    %v2039 = vsub.f32 %v34, %v2021
    %v2040 = vsub.f32 %v35, %v2023
    %v2041 = vsub.f32 %v36, %v2025
    %v2042 = vmul.f32 %v1882, %v1986
    %v2043 = vmul.f32 %v1883, %v1987
    %v2044 = vmul.f32 %v1884, %v1988
    %v2045 = vmul.f32 %v1885, %v1989
    %v2046 = vmul.f32 %v1886, %v1990
    %v2047 = vmul.f32 %v1887, %v1991
    %v2048 = vmul.f32 %v1888, %v1992
    %v2049 = vmul.f32 %v1889, %v1993
    %2058 = vrot.lane.b32.xlu0 %v2042, 1
    %v2059 = vpop.permute.xlu0 %2058
    %2060 = vrot.lane.b32.xlu0 %v2043, 1
    %v2061 = vpop.permute.xlu0 %2060
    %2062 = vrot.lane.b32.xlu0 %v2044, 1
    %v2063 = vpop.permute.xlu0 %2062
    %2064 = vrot.lane.b32.xlu0 %v2045, 1
    %v2065 = vpop.permute.xlu0 %2064
    %2066 = vrot.lane.b32.xlu0 %v2046, 1
    %v2067 = vpop.permute.xlu0 %2066
    %2068 = vrot.lane.b32.xlu0 %v2047, 1
    %v2069 = vpop.permute.xlu0 %2068
    %2070 = vrot.lane.b32.xlu0 %v2048, 1
    %v2071 = vpop.permute.xlu0 %2070
    %2072 = vrot.lane.b32.xlu0 %v2049, 1
    %v2073 = vpop.permute.xlu0 %2072
    %v2082 = vsub.f32 %v29, %v2059
    %v2083 = vsub.f32 %v30, %v2061
    %v2084 = vsub.f32 %v31, %v2063
    %v2085 = vsub.f32 %v32, %v2065
    %v2086 = vsub.f32 %v33, %v2067
    %v2087 = vsub.f32 %v34, %v2069
    %v2088 = vsub.f32 %v35, %v2071
    %v2089 = vsub.f32 %v36, %v2073
    %2091 = vset.pattern.permute.xlu0 1
    %2092 = vperm.xlu0 %2091, %v1946
    %v2093 = vpop.permute.xlu0 %2092
    %2096 = vset.pattern.permute.xlu0 1
    %2097 = vperm.xlu0 %2096, %v1947
    %v2098 = vpop.permute.xlu0 %2097
    %2101 = vset.pattern.permute.xlu0 1
    %2102 = vperm.xlu0 %2101, %v1948
    %v2103 = vpop.permute.xlu0 %2102
    %2106 = vset.pattern.permute.xlu0 1
    %2107 = vperm.xlu0 %2106, %v1949
    %v2108 = vpop.permute.xlu0 %2107
    %2111 = vset.pattern.permute.xlu0 1
    %2112 = vperm.xlu0 %2111, %v1950
    %v2113 = vpop.permute.xlu0 %2112
    %2116 = vset.pattern.permute.xlu0 1
    %2117 = vperm.xlu0 %2116, %v1951
    %v2118 = vpop.permute.xlu0 %2117
    %2121 = vset.pattern.permute.xlu0 1
    %2122 = vperm.xlu0 %2121, %v1952
    %v2123 = vpop.permute.xlu0 %2122
    %2126 = vset.pattern.permute.xlu0 1
    %2127 = vperm.xlu0 %2126, %v1953
    %v2128 = vpop.permute.xlu0 %2127
    %2131 = vset.pattern.permute.xlu0 1
    %2132 = vperm.xlu0 %2131, %v1986
    %v2133 = vpop.permute.xlu0 %2132
    %2136 = vset.pattern.permute.xlu0 1
    %2137 = vperm.xlu0 %2136, %v1987
    %v2138 = vpop.permute.xlu0 %2137
    %2141 = vset.pattern.permute.xlu0 1
    %2142 = vperm.xlu0 %2141, %v1988
    %v2143 = vpop.permute.xlu0 %2142
    %2146 = vset.pattern.permute.xlu0 1
    %2147 = vperm.xlu0 %2146, %v1989
    %v2148 = vpop.permute.xlu0 %2147
    %2151 = vset.pattern.permute.xlu0 1
    %2152 = vperm.xlu0 %2151, %v1990
    %v2153 = vpop.permute.xlu0 %2152
    %2156 = vset.pattern.permute.xlu0 1
    %2157 = vperm.xlu0 %2156, %v1991
    %v2158 = vpop.permute.xlu0 %2157
    %2161 = vset.pattern.permute.xlu0 1
    %2162 = vperm.xlu0 %2161, %v1992
    %v2163 = vpop.permute.xlu0 %2162
    %2166 = vset.pattern.permute.xlu0 1
    %2167 = vperm.xlu0 %2166, %v1993
    %v2168 = vpop.permute.xlu0 %2167
    %v2170 = vsel %vm1665, %v2093, %v2133
    %v2171 = vsel %vm1665, %v2098, %v2138
    %v2172 = vsel %vm1665, %v2103, %v2143
    %v2173 = vsel %vm1665, %v2108, %v2148
    %v2174 = vsel %vm1665, %v2113, %v2153
    %v2175 = vsel %vm1665, %v2118, %v2158
    %v2176 = vsel %vm1665, %v2123, %v2163
    %v2177 = vsel %vm1665, %v2128, %v2168
    %2179 = vset.pattern.permute.xlu0 2
    %2180 = vperm.xlu0 %2179, %v2034
    %v2181 = vpop.permute.xlu0 %2180
    %2184 = vset.pattern.permute.xlu0 2
    %2185 = vperm.xlu0 %2184, %v2035
    %v2186 = vpop.permute.xlu0 %2185
    %2189 = vset.pattern.permute.xlu0 2
    %2190 = vperm.xlu0 %2189, %v2036
    %v2191 = vpop.permute.xlu0 %2190
    %2194 = vset.pattern.permute.xlu0 2
    %2195 = vperm.xlu0 %2194, %v2037
    %v2196 = vpop.permute.xlu0 %2195
    %2199 = vset.pattern.permute.xlu0 2
    %2200 = vperm.xlu0 %2199, %v2038
    %v2201 = vpop.permute.xlu0 %2200
    %2204 = vset.pattern.permute.xlu0 2
    %2205 = vperm.xlu0 %2204, %v2039
    %v2206 = vpop.permute.xlu0 %2205
    %2209 = vset.pattern.permute.xlu0 2
    %2210 = vperm.xlu0 %2209, %v2040
    %v2211 = vpop.permute.xlu0 %2210
    %2214 = vset.pattern.permute.xlu0 2
    %2215 = vperm.xlu0 %2214, %v2041
    %v2216 = vpop.permute.xlu0 %2215
    %2219 = vset.pattern.permute.xlu0 2
    %2220 = vperm.xlu0 %2219, %v2082
    %v2221 = vpop.permute.xlu0 %2220
    %2224 = vset.pattern.permute.xlu0 2
    %2225 = vperm.xlu0 %2224, %v2083
    %v2226 = vpop.permute.xlu0 %2225
    %2229 = vset.pattern.permute.xlu0 2
    %2230 = vperm.xlu0 %2229, %v2084
    %v2231 = vpop.permute.xlu0 %2230
    %2234 = vset.pattern.permute.xlu0 2
    %2235 = vperm.xlu0 %2234, %v2085
    %v2236 = vpop.permute.xlu0 %2235
    %2239 = vset.pattern.permute.xlu0 2
    %2240 = vperm.xlu0 %2239, %v2086
    %v2241 = vpop.permute.xlu0 %2240
    %2244 = vset.pattern.permute.xlu0 2
    %2245 = vperm.xlu0 %2244, %v2087
    %v2246 = vpop.permute.xlu0 %2245
    %2249 = vset.pattern.permute.xlu0 2
    %2250 = vperm.xlu0 %2249, %v2088
    %v2251 = vpop.permute.xlu0 %2250
    %2254 = vset.pattern.permute.xlu0 2
    %2255 = vperm.xlu0 %2254, %v2089
    %v2256 = vpop.permute.xlu0 %2255
    %v2258 = vsel %vm1665, %v2181, %v2221
    %v2259 = vsel %vm1665, %v2186, %v2226
    %v2260 = vsel %vm1665, %v2191, %v2231
    %v2261 = vsel %vm1665, %v2196, %v2236
    %v2262 = vsel %vm1665, %v2201, %v2241
    %v2263 = vsel %vm1665, %v2206, %v2246
    %v2264 = vsel %vm1665, %v2211, %v2251
    %v2265 = vsel %vm1665, %v2216, %v2256
    %v2266 = vmul.f32 %v1634, %v2170
    %v2267 = vmul.f32 %v1637, %v2171
    %v2268 = vmul.f32 %v1642, %v2172
    %v2269 = vmul.f32 %v1645, %v2173
    %v2270 = vmul.f32 %v1650, %v2174
    %v2271 = vmul.f32 %v1653, %v2175
    %v2272 = vmul.f32 %v1658, %v2176
    %v2273 = vmul.f32 %v1661, %v2177
    %v2274 = vadd.f32 %v2266, %v2258
    %v2275 = vadd.f32 %v2267, %v2259
    %v2276 = vadd.f32 %v2268, %v2260
    %v2277 = vadd.f32 %v2269, %v2261
    %v2278 = vadd.f32 %v2270, %v2262
    %v2279 = vadd.f32 %v2271, %v2263
    %v2280 = vadd.f32 %v2272, %v2264
    %v2281 = vadd.f32 %v2273, %v2265
    %vm2282 = vcmp.ge.f32.partialorder %v2274, 0.0
    %vm2283 = vcmp.ge.f32.partialorder %v2275, 0.0
    %vm2284 = vcmp.ge.f32.partialorder %v2276, 0.0
    %vm2285 = vcmp.ge.f32.partialorder %v2277, 0.0
    %vm2286 = vcmp.ge.f32.partialorder %v2278, 0.0
    %vm2287 = vcmp.ge.f32.partialorder %v2279, 0.0
    %vm2288 = vcmp.ge.f32.partialorder %v2280, 0.0
    %vm2289 = vcmp.ge.f32.partialorder %v2281, 0.0
    %v2290 = vmul.f32 %v2274, 0.2
    %v2291 = vmul.f32 %v2275, 0.2
    %v2292 = vmul.f32 %v2276, 0.2
    %v2293 = vmul.f32 %v2277, 0.2
    %v2294 = vmul.f32 %v2278, 0.2
    %v2295 = vmul.f32 %v2279, 0.2
    %v2296 = vmul.f32 %v2280, 0.2
    %v2297 = vmul.f32 %v2281, 0.2
    %v2298 = vsel %vm2282, %v2274, %v2290
    %v2299 = vsel %vm2283, %v2275, %v2291
    %v2300 = vsel %vm2284, %v2276, %v2292
    %v2301 = vsel %vm2285, %v2277, %v2293
    %v2302 = vsel %vm2286, %v2278, %v2294
    %v2303 = vsel %vm2287, %v2279, %v2295
    %v2304 = vsel %vm2288, %v2280, %v2296
    %v2305 = vsel %vm2289, %v2281, %v2297
    %v2306 = vpack.c.bf16 %v2299, %v2298
    %v2307 = vpack.c.bf16 %v2301, %v2300
    %v2308 = vpack.c.bf16 %v2303, %v2302
    %v2309 = vpack.c.bf16 %v2305, %v2304
    %v2314 = vunpack.c.l.b16 %v2306
    %v2315 = vunpack.c.h.b16 %v2306
    %v2316 = vunpack.c.l.b16 %v2307
    %v2317 = vunpack.c.h.b16 %v2307
    %v2318 = vunpack.c.l.b16 %v2308
    %v2319 = vunpack.c.h.b16 %v2308
    %v2320 = vunpack.c.l.b16 %v2309
    %v2321 = vunpack.c.h.b16 %v2309
    %v2322 = vpack.c.b16 %v2314, %v2314
    %v2323 = vpack.c.b16 %v2315, %v2315
    %v2324 = vpack.c.b16 %v2316, %v2316
    %v2325 = vpack.c.b16 %v2317, %v2317
    %v2326 = vpack.c.b16 %v2318, %v2318
    %v2327 = vpack.c.b16 %v2319, %v2319
    %v2328 = vpack.c.b16 %v2320, %v2320
    %v2329 = vpack.c.b16 %v2321, %v2321
    %vm2338 = vcmask 519168
    %2339 = vst.msk [vmem:[%s3] sm:$0xf] %vm2338, %v2322
    %2340 = vst.msk [vmem:[%s3 + $0x4] sm:$0xf] %vm2338, %v2323
    %2341 = vst.msk [vmem:[%s3 + $0x8] sm:$0xf] %vm2338, %v2324
    %2342 = vst.msk [vmem:[%s3 + $0xc] sm:$0xf] %vm2338, %v2325
    %2343 = vst.msk [vmem:[%s3 + $0x10] sm:$0xf] %vm2338, %v2326
    %2344 = vst.msk [vmem:[%s3 + $0x14] sm:$0xf] %vm2338, %v2327
    %2345 = vst.msk [vmem:[%s3 + $0x18] sm:$0xf] %vm2338, %v2328
    %2346 = vst.msk [vmem:[%s3 + $0x1c] sm:$0xf] %vm2338, %v2329
    // Predicated region
    $region18: #{generator_forward.6} parent=1 // pred_check
      _
    $region19: #{generator_forward.6} parent=1 // pred_check_branch
      %2348 = sbr.rel (0) target = $region21
    $region20: #{generator_forward.6} parent=1 // pred_region
      _
    $region21: #{generator_forward.6} parent=1 // pred_fallthru
      _
    // Predicated region
    $region22: #{generator_forward.6} parent=1 // pred_check
      _
    $region23: #{generator_forward.6} parent=1 // pred_check_branch
      %2350 = sbr.rel (0) target = $region25
    $region24: #{generator_forward.6} parent=1 // pred_region
      _
    $region25: #{generator_forward.6} parent=1 // pred_fallthru
      _
    %2351 = vsyncpa [#allocation3], 1

// kernel: generator_forward.7
$region0: #{generator_forward.7}
  #allocation0 [shape = 'u32[]', space=smem, size = 0x4, offset = 0x4, fixed_abs, tag = 'smem constant byte address 0x4 - core index']
  #allocation1 [shape = 'u32[144,128]{1,0:T(1,128)}', space=vmem, size = 0x12000, scoped, tag = 'internal scratch']
  %s0 = inlined_call_operand.hbm [shape: bf16[1,64,576], index: 0, kind: input, shape index: {}]
  %s1 = inlined_call_operand.vmem [shape: bf16[1,576,64], index: 1, kind: input, shape index: {}]
  %s2 = inlined_call_operand.vmem [shape: f32[64,8], index: 2, kind: input, shape index: {}]
  %s3 = inlined_call_operand.vmem [shape: bf16[1,64,64], index: 3, kind: output, shape index: {}]
  %s4 = sld [smem:[#allocation0]]
  $region26: #{generator_forward.7} parent=0
    _
  %s6 = ssub.s32 1, %s4
  %s7 = scalar_select 0, %s6, %s4
  $region1: #{generator_forward.7} parent=0
    #allocation2 [shape = 'u8[81920]{0}', space=vmem, size = 0x14000, scoped, tag = 'input window, operand 0, single buffered']
    #allocation3 [shape = 's32[1]{0}', space=sflag, size = 0x4, scoped, tag = 'scoped memory for generator_forward.7']
    %8 = vsyncpa [#allocation3], 0
    // Predicated region
    $region2: #{generator_forward.7} parent=1 // pred_check
      _
    $region3: #{generator_forward.7} parent=1 // pred_check_branch
      %10 = sbr.rel (0) target = $region5
    $region4: #{generator_forward.7} parent=1 // pred_region
      %s12 = ssub.s32 2560, 2560
      %13 = vsyncadd [#allocation3], %s12
      %s14 = sshll.u32 [#allocation2], 4
      %s15 = int_to_ptr.vmem [resolvable:$true] %s14
      %20 = dma.hbm_to_vmem [thread:$0]  %s0, 2560, %s15, [#allocation3], 320, 320, 20
    $region5: #{generator_forward.7} parent=1 // pred_fallthru
      _
    // Predicated region
    $region6: #{generator_forward.7} parent=1 // pred_check
      _
    $region7: #{generator_forward.7} parent=1 // pred_check_branch
      %22 = sbr.rel (0) target = $region9
    $region8: #{generator_forward.7} parent=1 // pred_region
      _
    $region9: #{generator_forward.7} parent=1 // pred_fallthru
      _
    // Predicated region
    $region10: #{generator_forward.7} parent=1 // pred_check
      _
    $region11: #{generator_forward.7} parent=1 // pred_check_branch
      %24 = sbr.rel (0) target = $region13
    $region12: #{generator_forward.7} parent=1 // pred_region
      _
    $region13: #{generator_forward.7} parent=1 // pred_fallthru
      _
    // Predicated region
    $region14: #{generator_forward.7} parent=1 // pred_check
      _
    $region15: #{generator_forward.7} parent=1 // pred_check_branch
      %26 = sbr.rel (0) target = $region17
    $region16: #{generator_forward.7} parent=1 // pred_region
      %27 = dma.done [#allocation3], 2560
    $region17: #{generator_forward.7} parent=1 // pred_fallthru
      _
    %v29 = vld [vmem:[%s2] sm:$0xff]
    %v30 = vld [vmem:[%s2 + $0x8] sm:$0xff]
    %v31 = vld [vmem:[%s2 + $0x10] sm:$0xff]
    %v32 = vld [vmem:[%s2 + $0x18] sm:$0xff]
    %v33 = vld [vmem:[%s2 + $0x20] sm:$0xff]
    %v34 = vld [vmem:[%s2 + $0x28] sm:$0xff]
    %v35 = vld [vmem:[%s2 + $0x30] sm:$0xff]
    %v36 = vld [vmem:[%s2 + $0x38] sm:$0xff]
    %v37 = vlaneseq
    %v38 = vand.u32 %v37, 127
    %vm39 = vcmp.lt.s32.totalorder %v38, 32
    %v40 = vld [vmem:[#allocation2] sm:$0xff]
    %v41 = vld [vmem:[#allocation2 + $0x8] sm:$0xff]
    %v42 = vld [vmem:[#allocation2 + $0x10] sm:$0xf]
    %v43 = vld [vmem:[#allocation2 + $0x14] sm:$0xff]
    %v44 = vld [vmem:[#allocation2 + $0x1c] sm:$0xff]
    %v45 = vld [vmem:[#allocation2 + $0x24] sm:$0xf]
    %v46 = vld [vmem:[#allocation2 + $0x28] sm:$0xff]
    %v47 = vld [vmem:[#allocation2 + $0x30] sm:$0xff]
    %v48 = vld [vmem:[#allocation2 + $0x38] sm:$0xf]
    %v49 = vld [vmem:[#allocation2 + $0x3c] sm:$0xff]
    %v50 = vld [vmem:[#allocation2 + $0x44] sm:$0xff]
    %v51 = vld [vmem:[#allocation2 + $0x4c] sm:$0xf]
    %v52 = vld [vmem:[#allocation2 + $0x50] sm:$0xff]
    %v53 = vld [vmem:[#allocation2 + $0x58] sm:$0xff]
    %v54 = vld [vmem:[#allocation2 + $0x60] sm:$0xf]
    %v55 = vld [vmem:[#allocation2 + $0x64] sm:$0xff]
    %v56 = vld [vmem:[#allocation2 + $0x6c] sm:$0xff]
    %v57 = vld [vmem:[#allocation2 + $0x74] sm:$0xf]
    %v58 = vld [vmem:[#allocation2 + $0x78] sm:$0xff]
    %v59 = vld [vmem:[#allocation2 + $0x80] sm:$0xff]
    %v60 = vld [vmem:[#allocation2 + $0x88] sm:$0xf]
    %v61 = vld [vmem:[#allocation2 + $0x8c] sm:$0xff]
    %v62 = vld [vmem:[#allocation2 + $0x94] sm:$0xff]
    %v63 = vld [vmem:[#allocation2 + $0x9c] sm:$0xf]
    %v64 = vld [vmem:[%s1] sm:$0xf]
    %v65 = vld [vmem:[%s1 + $0x4] sm:$0xf]
    %v66 = vld [vmem:[%s1 + $0x8] sm:$0xf]
    %v67 = vld [vmem:[%s1 + $0xc] sm:$0xf]
    %v68 = vld [vmem:[%s1 + $0x10] sm:$0xf]
    %v69 = vld [vmem:[%s1 + $0x14] sm:$0xf]
    %v70 = vld [vmem:[%s1 + $0x18] sm:$0xf]
    %v71 = vld [vmem:[%s1 + $0x1c] sm:$0xf]
    %v72 = vld [vmem:[%s1 + $0x20] sm:$0xf]
    %v73 = vld [vmem:[%s1 + $0x24] sm:$0xf]
    %v74 = vld [vmem:[%s1 + $0x28] sm:$0xf]
    %v75 = vld [vmem:[%s1 + $0x2c] sm:$0xf]
    %v76 = vld [vmem:[%s1 + $0x30] sm:$0xf]
    %v77 = vld [vmem:[%s1 + $0x34] sm:$0xf]
    %v78 = vld [vmem:[%s1 + $0x38] sm:$0xf]
    %v79 = vld [vmem:[%s1 + $0x3c] sm:$0xf]
    %v80 = vld [vmem:[%s1 + $0x40] sm:$0xf]
    %v81 = vld [vmem:[%s1 + $0x44] sm:$0xf]
    %v82 = vld [vmem:[%s1 + $0x48] sm:$0xf]
    %v83 = vld [vmem:[%s1 + $0x4c] sm:$0xf]
    %v84 = vld [vmem:[%s1 + $0x50] sm:$0xf]
    %v85 = vld [vmem:[%s1 + $0x54] sm:$0xf]
    %v86 = vld [vmem:[%s1 + $0x58] sm:$0xf]
    %v87 = vld [vmem:[%s1 + $0x5c] sm:$0xf]
    %v88 = vld [vmem:[%s1 + $0x60] sm:$0xf]
    %v89 = vld [vmem:[%s1 + $0x64] sm:$0xf]
    %v90 = vld [vmem:[%s1 + $0x68] sm:$0xf]
    %v91 = vld [vmem:[%s1 + $0x6c] sm:$0xf]
    %v92 = vld [vmem:[%s1 + $0x70] sm:$0xf]
    %v93 = vld [vmem:[%s1 + $0x74] sm:$0xf]
    %v94 = vld [vmem:[%s1 + $0x78] sm:$0xf]
    %v95 = vld [vmem:[%s1 + $0x7c] sm:$0xf]
    %v96 = vld [vmem:[%s1 + $0x80] sm:$0xf]
    %v97 = vld [vmem:[%s1 + $0x84] sm:$0xf]
    %v98 = vld [vmem:[%s1 + $0x88] sm:$0xf]
    %v99 = vld [vmem:[%s1 + $0x8c] sm:$0xf]
    %v100 = vld [vmem:[%s1 + $0x90] sm:$0xf]
    %v101 = vld [vmem:[%s1 + $0x94] sm:$0xf]
    %v102 = vld [vmem:[%s1 + $0x98] sm:$0xf]
    %v103 = vld [vmem:[%s1 + $0x9c] sm:$0xf]
    %v104 = vld [vmem:[%s1 + $0xa0] sm:$0xf]
    %v105 = vld [vmem:[%s1 + $0xa4] sm:$0xf]
    %v106 = vld [vmem:[%s1 + $0xa8] sm:$0xf]
    %v107 = vld [vmem:[%s1 + $0xac] sm:$0xf]
    %v108 = vld [vmem:[%s1 + $0xb0] sm:$0xf]
    %v109 = vld [vmem:[%s1 + $0xb4] sm:$0xf]
    %v110 = vld [vmem:[%s1 + $0xb8] sm:$0xf]
    %v111 = vld [vmem:[%s1 + $0xbc] sm:$0xf]
    %v112 = vld [vmem:[%s1 + $0xc0] sm:$0xf]
    %v113 = vld [vmem:[%s1 + $0xc4] sm:$0xf]
    %v114 = vld [vmem:[%s1 + $0xc8] sm:$0xf]
    %v115 = vld [vmem:[%s1 + $0xcc] sm:$0xf]
    %v116 = vld [vmem:[%s1 + $0xd0] sm:$0xf]
    %v117 = vld [vmem:[%s1 + $0xd4] sm:$0xf]
    %v118 = vld [vmem:[%s1 + $0xd8] sm:$0xf]
    %v119 = vld [vmem:[%s1 + $0xdc] sm:$0xf]
    %v120 = vld [vmem:[%s1 + $0xe0] sm:$0xf]
    %v121 = vld [vmem:[%s1 + $0xe4] sm:$0xf]
    %v122 = vld [vmem:[%s1 + $0xe8] sm:$0xf]
    %v123 = vld [vmem:[%s1 + $0xec] sm:$0xf]
    %v124 = vld [vmem:[%s1 + $0xf0] sm:$0xf]
    %v125 = vld [vmem:[%s1 + $0xf4] sm:$0xf]
    %v126 = vld [vmem:[%s1 + $0xf8] sm:$0xf]
    %v127 = vld [vmem:[%s1 + $0xfc] sm:$0xf]
    %v128 = vld [vmem:[%s1 + $0x100] sm:$0xf]
    %v129 = vld [vmem:[%s1 + $0x104] sm:$0xf]
    %v130 = vld [vmem:[%s1 + $0x108] sm:$0xf]
    %v131 = vld [vmem:[%s1 + $0x10c] sm:$0xf]
    %v132 = vld [vmem:[%s1 + $0x110] sm:$0xf]
    %v133 = vld [vmem:[%s1 + $0x114] sm:$0xf]
    %v134 = vld [vmem:[%s1 + $0x118] sm:$0xf]
    %v135 = vld [vmem:[%s1 + $0x11c] sm:$0xf]
    %137 = vset.pattern.permute.xlu0 0
    %138 = vperm.xlu0 %137, %v29
    %v139 = vpop.permute.xlu0 %138
    %142 = vset.pattern.permute.xlu0 0
    %143 = vperm.xlu0 %142, %v30
    %v144 = vpop.permute.xlu0 %143
    %147 = vset.pattern.permute.xlu0 0
    %148 = vperm.xlu0 %147, %v31
    %v149 = vpop.permute.xlu0 %148
    %152 = vset.pattern.permute.xlu0 0
    %153 = vperm.xlu0 %152, %v32
    %v154 = vpop.permute.xlu0 %153
    %157 = vset.pattern.permute.xlu0 0
    %158 = vperm.xlu0 %157, %v33
    %v159 = vpop.permute.xlu0 %158
    %162 = vset.pattern.permute.xlu0 0
    %163 = vperm.xlu0 %162, %v34
    %v164 = vpop.permute.xlu0 %163
    %167 = vset.pattern.permute.xlu0 0
    %168 = vperm.xlu0 %167, %v35
    %v169 = vpop.permute.xlu0 %168
    %172 = vset.pattern.permute.xlu0 0
    %173 = vperm.xlu0 %172, %v36
    %v174 = vpop.permute.xlu0 %173
    %v200 = vunpack.c.l.b16 %v40
    %v201 = vunpack.c.h.b16 %v40
    %v202 = vunpack.c.l.b16 %v41
    %v203 = vunpack.c.h.b16 %v41
    %v204 = vunpack.c.l.b16 %v42
    %v205 = vunpack.c.l.b16 %v43
    %v206 = vunpack.c.h.b16 %v43
    %v207 = vunpack.c.l.b16 %v44
    %v208 = vunpack.c.h.b16 %v44
    %v209 = vunpack.c.l.b16 %v45
    %v210 = vunpack.c.l.b16 %v46
    %v211 = vunpack.c.h.b16 %v46
    %v212 = vunpack.c.l.b16 %v47
    %v213 = vunpack.c.h.b16 %v47
    %v214 = vunpack.c.l.b16 %v48
    %v215 = vunpack.c.l.b16 %v49
    %v216 = vunpack.c.h.b16 %v49
    %v217 = vunpack.c.l.b16 %v50
    %v218 = vunpack.c.h.b16 %v50
    %v219 = vunpack.c.l.b16 %v51
    %v220 = vunpack.c.l.b16 %v52
    %v221 = vunpack.c.h.b16 %v52
    %v222 = vunpack.c.l.b16 %v53
    %v223 = vunpack.c.h.b16 %v53
    %v224 = vunpack.c.l.b16 %v54
    %v225 = vunpack.c.l.b16 %v55
    %v226 = vunpack.c.h.b16 %v55
    %v227 = vunpack.c.l.b16 %v56
    %v228 = vunpack.c.h.b16 %v56
    %v229 = vunpack.c.l.b16 %v57
    %v230 = vunpack.c.l.b16 %v58
    %v231 = vunpack.c.h.b16 %v58
    %v232 = vunpack.c.l.b16 %v59
    %v233 = vunpack.c.h.b16 %v59
    %v234 = vunpack.c.l.b16 %v60
    %v235 = vunpack.c.l.b16 %v61
    %v236 = vunpack.c.h.b16 %v61
    %v237 = vunpack.c.l.b16 %v62
    %v238 = vunpack.c.h.b16 %v62
    %v239 = vunpack.c.l.b16 %v63
    %v240 = vpack.c.b16 %v205, %v200
    %v241 = vpack.c.b16 %v206, %v201
    %v242 = vpack.c.b16 %v207, %v202
    %v243 = vpack.c.b16 %v208, %v203
    %v244 = vpack.c.b16 %v209, %v204
    %v245 = vpack.c.b16 %v215, %v210
    %v246 = vpack.c.b16 %v216, %v211
    %v247 = vpack.c.b16 %v217, %v212
    %v248 = vpack.c.b16 %v218, %v213
    %v249 = vpack.c.b16 %v219, %v214
    %v250 = vpack.c.b16 %v225, %v220
    %v251 = vpack.c.b16 %v226, %v221
    %v252 = vpack.c.b16 %v227, %v222
    %v253 = vpack.c.b16 %v228, %v223
    %v254 = vpack.c.b16 %v229, %v224
    %v255 = vpack.c.b16 %v235, %v230
    %v256 = vpack.c.b16 %v236, %v231
    %v257 = vpack.c.b16 %v237, %v232
    %v258 = vpack.c.b16 %v238, %v233
    %v259 = vpack.c.b16 %v239, %v234
    %v348 = vunpack.c.l.b16 %v64
    %v349 = vunpack.c.l.b16 %v65
    %v350 = vunpack.c.l.b16 %v66
    %v351 = vunpack.c.l.b16 %v67
    %v352 = vunpack.c.l.b16 %v68
    %v353 = vunpack.c.l.b16 %v69
    %v354 = vunpack.c.l.b16 %v70
    %v355 = vunpack.c.l.b16 %v71
    %v356 = vunpack.c.l.b16 %v72
    %v357 = vunpack.c.l.b16 %v73
    %v358 = vunpack.c.l.b16 %v74
    %v359 = vunpack.c.l.b16 %v75
    %v360 = vunpack.c.l.b16 %v76
    %v361 = vunpack.c.l.b16 %v77
    %v362 = vunpack.c.l.b16 %v78
    %v363 = vunpack.c.l.b16 %v79
    %v364 = vunpack.c.l.b16 %v80
    %v365 = vunpack.c.l.b16 %v81
    %v366 = vunpack.c.l.b16 %v82
    %v367 = vunpack.c.l.b16 %v83
    %v368 = vunpack.c.l.b16 %v84
    %v369 = vunpack.c.l.b16 %v85
    %v370 = vunpack.c.l.b16 %v86
    %v371 = vunpack.c.l.b16 %v87
    %v372 = vunpack.c.l.b16 %v88
    %v373 = vunpack.c.l.b16 %v89
    %v374 = vunpack.c.l.b16 %v90
    %v375 = vunpack.c.l.b16 %v91
    %v376 = vunpack.c.l.b16 %v92
    %v377 = vunpack.c.l.b16 %v93
    %v378 = vunpack.c.l.b16 %v94
    %v379 = vunpack.c.l.b16 %v95
    %v380 = vunpack.c.l.b16 %v96
    %v381 = vunpack.c.l.b16 %v97
    %v382 = vunpack.c.l.b16 %v98
    %v383 = vunpack.c.l.b16 %v99
    %v384 = vunpack.c.l.b16 %v100
    %v385 = vunpack.c.l.b16 %v101
    %v386 = vunpack.c.l.b16 %v102
    %v387 = vunpack.c.l.b16 %v103
    %v388 = vunpack.c.l.b16 %v104
    %v389 = vunpack.c.l.b16 %v105
    %v390 = vunpack.c.l.b16 %v106
    %v391 = vunpack.c.l.b16 %v107
    %v392 = vunpack.c.l.b16 %v108
    %v393 = vunpack.c.l.b16 %v109
    %v394 = vunpack.c.l.b16 %v110
    %v395 = vunpack.c.l.b16 %v111
    %v396 = vunpack.c.l.b16 %v112
    %v397 = vunpack.c.l.b16 %v113
    %v398 = vunpack.c.l.b16 %v114
    %v399 = vunpack.c.l.b16 %v115
    %v400 = vunpack.c.l.b16 %v116
    %v401 = vunpack.c.l.b16 %v117
    %v402 = vunpack.c.l.b16 %v118
    %v403 = vunpack.c.l.b16 %v119
    %v404 = vunpack.c.l.b16 %v120
    %v405 = vunpack.c.l.b16 %v121
    %v406 = vunpack.c.l.b16 %v122
    %v407 = vunpack.c.l.b16 %v123
    %v408 = vunpack.c.l.b16 %v124
    %v409 = vunpack.c.l.b16 %v125
    %v410 = vunpack.c.l.b16 %v126
    %v411 = vunpack.c.l.b16 %v127
    %v412 = vunpack.c.l.b16 %v128
    %v413 = vunpack.c.l.b16 %v129
    %v414 = vunpack.c.l.b16 %v130
    %v415 = vunpack.c.l.b16 %v131
    %v416 = vunpack.c.l.b16 %v132
    %v417 = vunpack.c.l.b16 %v133
    %v418 = vunpack.c.l.b16 %v134
    %v419 = vunpack.c.l.b16 %v135
    %v420 = vpack.c.b16 %v349, %v348
    %v421 = vpack.c.b16 %v351, %v350
    %v422 = vpack.c.b16 %v353, %v352
    %v423 = vpack.c.b16 %v355, %v354
    %v424 = vpack.c.b16 %v357, %v356
    %v425 = vpack.c.b16 %v359, %v358
    %v426 = vpack.c.b16 %v361, %v360
    %v427 = vpack.c.b16 %v363, %v362
    %v428 = vpack.c.b16 %v365, %v364
    %v429 = vpack.c.b16 %v367, %v366
    %v430 = vpack.c.b16 %v369, %v368
    %v431 = vpack.c.b16 %v371, %v370
    %v432 = vpack.c.b16 %v373, %v372
    %v433 = vpack.c.b16 %v375, %v374
    %v434 = vpack.c.b16 %v377, %v376
    %v435 = vpack.c.b16 %v379, %v378
    %v436 = vpack.c.b16 %v381, %v380
    %v437 = vpack.c.b16 %v383, %v382
    %v438 = vpack.c.b16 %v385, %v384
    %v439 = vpack.c.b16 %v387, %v386
    %v440 = vpack.c.b16 %v389, %v388
    %v441 = vpack.c.b16 %v391, %v390
    %v442 = vpack.c.b16 %v393, %v392
    %v443 = vpack.c.b16 %v395, %v394
    %v444 = vpack.c.b16 %v397, %v396
    %v445 = vpack.c.b16 %v399, %v398
    %v446 = vpack.c.b16 %v401, %v400
    %v447 = vpack.c.b16 %v403, %v402
    %v448 = vpack.c.b16 %v405, %v404
    %v449 = vpack.c.b16 %v407, %v406
    %v450 = vpack.c.b16 %v409, %v408
    %v451 = vpack.c.b16 %v411, %v410
    %v452 = vpack.c.b16 %v413, %v412
    %v453 = vpack.c.b16 %v415, %v414
    %v454 = vpack.c.b16 %v417, %v416
    %v455 = vpack.c.b16 %v419, %v418
    %vm492 = vcmask 523264
    %v494 = vsel %vm492, %v244, 0
    %v497 = vsel %vm492, %v249, 0
    %v500 = vsel %vm492, %v254, 0
    %v503 = vsel %vm492, %v259, 0
    %505 = vmatprep.subr.bf16.mxu0 0
    %506 = vmatpush1.bf16.msra.mxu0 %v427
    %507 = vmatprep.subr.bf16.mxu0 0
    %508 = vmatpush1.bf16.msra.mxu0 %v426
    %509 = vmatprep.subr.bf16.mxu0 0
    %510 = vmatpush1.bf16.msra.mxu0 %v425
    %511 = vmatprep.subr.bf16.mxu0 0
    %512 = vmatpush1.bf16.msra.mxu0 %v424
    %513 = vmatprep.subr.bf16.mxu0 0
    %514 = vmatpush1.bf16.msra.mxu0 %v423
    %515 = vmatprep.subr.bf16.mxu0 0
    %516 = vmatpush1.bf16.msra.mxu0 %v422
    %517 = vmatprep.subr.bf16.mxu0 0
    %518 = vmatpush1.bf16.msra.mxu0 %v421
    %519 = vmatprep.subr.bf16.mxu0 0
    %520 = vmatpush1.bf16.msra.mxu0 %v420
    %521 = vmatprep.subr.bf16.mxu0 0
    %522 = vmatpush2.bf16.msra.mxu0 %v435
    %523 = vmatprep.subr.bf16.mxu0 0
    %524 = vmatpush2.bf16.msra.mxu0 %v434
    %525 = vmatprep.subr.bf16.mxu0 0
    %526 = vmatpush2.bf16.msra.mxu0 %v433
    %527 = vmatprep.subr.bf16.mxu0 0
    %528 = vmatpush2.bf16.msra.mxu0 %v432
    %529 = vmatprep.subr.bf16.mxu0 0
    %530 = vmatpush2.bf16.msra.mxu0 %v431
    %531 = vmatprep.subr.bf16.mxu0 0
    %532 = vmatpush2.bf16.msra.mxu0 %v430
    %533 = vmatprep.subr.bf16.mxu0 0
    %534 = vmatpush2.bf16.msra.mxu0 %v429
    %535 = vmatprep.subr.bf16.mxu0 0
    %536 = vmatpush2.bf16.msra.mxu0 %v428
    %537 = vmatprep.mubr.bf16.mxu0 %v241
    %538 = vmatmul.mubr.bf16.gmra.mxu0 %v240
    %v539 = vpop.f32.mrf.mxu0
    %v540 = vadd.f32 %v139, %v539
    %v541 = vpop.f32.mrf.mxu0
    %v542 = vpop.f32.mrf.mxu0
    %v543 = vadd.f32 %v144, %v542
    %v544 = vpop.f32.mrf.mxu0
    %545 = vmatprep.mubr.bf16.mxu0 %v246
    %546 = vmatmul.mubr.bf16.gmra.mxu0 %v245
    %v547 = vpop.f32.mrf.mxu0
    %v548 = vadd.f32 %v149, %v547
    %v549 = vpop.f32.mrf.mxu0
    %v550 = vpop.f32.mrf.mxu0
    %v551 = vadd.f32 %v154, %v550
    %v552 = vpop.f32.mrf.mxu0
    %553 = vmatprep.mubr.bf16.mxu0 %v251
    %554 = vmatmul.mubr.bf16.gmra.mxu0 %v250
    %v555 = vpop.f32.mrf.mxu0
    %v556 = vadd.f32 %v159, %v555
    %v557 = vpop.f32.mrf.mxu0
    %v558 = vpop.f32.mrf.mxu0
    %v559 = vadd.f32 %v164, %v558
    %v560 = vpop.f32.mrf.mxu0
    %561 = vmatprep.mubr.bf16.mxu0 %v256
    %562 = vmatmul.mubr.bf16.gmra.mxu0 %v255
    %v563 = vpop.f32.mrf.mxu0
    %v564 = vadd.f32 %v169, %v563
    %v565 = vpop.f32.mrf.mxu0
    %v566 = vpop.f32.mrf.mxu0
    %v567 = vadd.f32 %v174, %v566
    %v568 = vpop.f32.mrf.mxu0
    %569 = vdwg.mxu0
    %570 = vmatprep.subr.bf16.mxu0 0
    %571 = vmatpush1.bf16.msra.mxu0 %v443
    %572 = vmatprep.subr.bf16.mxu0 0
    %573 = vmatpush1.bf16.msra.mxu0 %v442
    %574 = vmatprep.subr.bf16.mxu0 0
    %575 = vmatpush1.bf16.msra.mxu0 %v441
    %576 = vmatprep.subr.bf16.mxu0 0
    %577 = vmatpush1.bf16.msra.mxu0 %v440
    %578 = vmatprep.subr.bf16.mxu0 0
    %579 = vmatpush1.bf16.msra.mxu0 %v439
    %580 = vmatprep.subr.bf16.mxu0 0
    %581 = vmatpush1.bf16.msra.mxu0 %v438
    %582 = vmatprep.subr.bf16.mxu0 0
    %583 = vmatpush1.bf16.msra.mxu0 %v437
    %584 = vmatprep.subr.bf16.mxu0 0
    %585 = vmatpush1.bf16.msra.mxu0 %v436
    %586 = vmatprep.subr.bf16.mxu0 0
    %587 = vmatpush2.bf16.msra.mxu0 %v451
    %588 = vmatprep.subr.bf16.mxu0 0
    %589 = vmatpush2.bf16.msra.mxu0 %v450
    %590 = vmatprep.subr.bf16.mxu0 0
    %591 = vmatpush2.bf16.msra.mxu0 %v449
    %592 = vmatprep.subr.bf16.mxu0 0
    %593 = vmatpush2.bf16.msra.mxu0 %v448
    %594 = vmatprep.subr.bf16.mxu0 0
    %595 = vmatpush2.bf16.msra.mxu0 %v447
    %596 = vmatprep.subr.bf16.mxu0 0
    %597 = vmatpush2.bf16.msra.mxu0 %v446
    %598 = vmatprep.subr.bf16.mxu0 0
    %599 = vmatpush2.bf16.msra.mxu0 %v445
    %600 = vmatprep.subr.bf16.mxu0 0
    %601 = vmatpush2.bf16.msra.mxu0 %v444
    %602 = vmatprep.mubr.bf16.mxu0 %v243
    %603 = vmatmul.mubr.bf16.gmra.mxu0 %v242
    %v604 = vpop.f32.mrf.mxu0
    %v605 = vadd.f32 %v540, %v604
    %v606 = vpop.f32.mrf.mxu0
    %v607 = vpop.f32.mrf.mxu0
    %v608 = vadd.f32 %v543, %v607
    %v609 = vpop.f32.mrf.mxu0
    %610 = vmatprep.mubr.bf16.mxu0 %v248
    %611 = vmatmul.mubr.bf16.gmra.mxu0 %v247
    %v612 = vpop.f32.mrf.mxu0
    %v613 = vadd.f32 %v548, %v612
    %v614 = vpop.f32.mrf.mxu0
    %v615 = vpop.f32.mrf.mxu0
    %v616 = vadd.f32 %v551, %v615
    %v617 = vpop.f32.mrf.mxu0
    %618 = vmatprep.mubr.bf16.mxu0 %v253
    %619 = vmatmul.mubr.bf16.gmra.mxu0 %v252
    %v620 = vpop.f32.mrf.mxu0
    %v621 = vadd.f32 %v556, %v620
    %v622 = vpop.f32.mrf.mxu0
    %v623 = vpop.f32.mrf.mxu0
    %v624 = vadd.f32 %v559, %v623
    %v625 = vpop.f32.mrf.mxu0
    %626 = vmatprep.mubr.bf16.mxu0 %v258
    %627 = vmatmul.mubr.bf16.gmra.mxu0 %v257
    %v628 = vpop.f32.mrf.mxu0
    %v629 = vadd.f32 %v564, %v628
    %v630 = vpop.f32.mrf.mxu0
    %v631 = vpop.f32.mrf.mxu0
    %v632 = vadd.f32 %v567, %v631
    %v633 = vpop.f32.mrf.mxu0
    %634 = vdwg.mxu0
    %635 = vmatprep.subr.bf16.mxu0 0
    %636 = vmatpush1.bf16.msra.mxu0 0
    %637 = vmatprep.subr.bf16.mxu0 0
    %638 = vmatpush1.bf16.msra.mxu0 0
    %639 = vmatprep.subr.bf16.mxu0 0
    %640 = vmatpush1.bf16.msra.mxu0 0
    %641 = vmatprep.subr.bf16.mxu0 0
    %642 = vmatpush1.bf16.msra.mxu0 0
    %643 = vmatprep.subr.bf16.mxu0 0
    %644 = vmatpush1.bf16.msra.mxu0 %v455
    %645 = vmatprep.subr.bf16.mxu0 0
    %646 = vmatpush1.bf16.msra.mxu0 %v454
    %647 = vmatprep.subr.bf16.mxu0 0
    %648 = vmatpush1.bf16.msra.mxu0 %v453
    %649 = vmatprep.subr.bf16.mxu0 0
    %650 = vmatpush1.bf16.msra.mxu0 %v452
    %651 = vmatprep.subr.bf16.mxu0 0
    %652 = vmatpush2.bf16.msra.mxu0 0
    %653 = vmatprep.subr.bf16.mxu0 0
    %654 = vmatpush2.bf16.msra.mxu0 0
    %655 = vmatprep.subr.bf16.mxu0 0
    %656 = vmatpush2.bf16.msra.mxu0 0
    %657 = vmatprep.subr.bf16.mxu0 0
    %658 = vmatpush2.bf16.msra.mxu0 0
    %659 = vmatprep.subr.bf16.mxu0 0
    %660 = vmatpush2.bf16.msra.mxu0 0
    %661 = vmatprep.subr.bf16.mxu0 0
    %662 = vmatpush2.bf16.msra.mxu0 0
    %663 = vmatprep.subr.bf16.mxu0 0
    %664 = vmatpush2.bf16.msra.mxu0 0
    %665 = vmatprep.subr.bf16.mxu0 0
    %666 = vmatpush2.bf16.msra.mxu0 0
    %667 = vmatprep.mubr.bf16.mxu0 0
    %668 = vmatmul.mubr.bf16.gmra.mxu0 %v494
    %v669 = vpop.f32.mrf.mxu0
    %v670 = vadd.f32 %v605, %v669
    %v671 = vpop.f32.mrf.mxu0
    %v672 = vpop.f32.mrf.mxu0
    %v673 = vadd.f32 %v608, %v672
    %v674 = vpop.f32.mrf.mxu0
    %675 = vmatprep.mubr.bf16.mxu0 0
    %676 = vmatmul.mubr.bf16.gmra.mxu0 %v497
    %v677 = vpop.f32.mrf.mxu0
    %v678 = vadd.f32 %v613, %v677
    %v679 = vpop.f32.mrf.mxu0
    %v680 = vpop.f32.mrf.mxu0
    %v681 = vadd.f32 %v616, %v680
    %v682 = vpop.f32.mrf.mxu0
    %683 = vmatprep.mubr.bf16.mxu0 0
    %684 = vmatmul.mubr.bf16.gmra.mxu0 %v500
    %v685 = vpop.f32.mrf.mxu0
    %v686 = vadd.f32 %v621, %v685
    %v687 = vpop.f32.mrf.mxu0
    %v688 = vpop.f32.mrf.mxu0
    %v689 = vadd.f32 %v624, %v688
    %v690 = vpop.f32.mrf.mxu0
    %691 = vmatprep.mubr.bf16.mxu0 0
    %692 = vmatmul.mubr.bf16.gmra.mxu0 %v503
    %v693 = vpop.f32.mrf.mxu0
    %v694 = vadd.f32 %v629, %v693
    %v695 = vpop.f32.mrf.mxu0
    %v696 = vpop.f32.mrf.mxu0
    %v697 = vadd.f32 %v632, %v696
    %v698 = vpop.f32.mrf.mxu0
    %699 = vdwg.mxu0
    %v700 = vsel %vm39, 1, 0
    %vm701 = vcmp.eq.s32.totalorder %v700, 1
    %v702 = vsel %vm701, %v670, 0.0
    %v703 = vsel %vm701, %v673, 0.0
    %v704 = vsel %vm701, %v678, 0.0
    %v705 = vsel %vm701, %v681, 0.0
    %v706 = vsel %vm701, %v686, 0.0
    %v707 = vsel %vm701, %v689, 0.0
    %v708 = vsel %vm701, %v694, 0.0
    %v709 = vsel %vm701, %v697, 0.0
    %v710 = vsel %vm492, %v670, 0.0
    %711 = vadd.xlane.f32.xlu0 %v710
    %v712 = vpop.xlane.xlu0 %711
    %v713 = vsel %vm492, %v673, 0.0
    %714 = vadd.xlane.f32.xlu0 %v713
    %v715 = vpop.xlane.xlu0 %714
    %v716 = vsel %vm492, %v678, 0.0
    %717 = vadd.xlane.f32.xlu0 %v716
    %v718 = vpop.xlane.xlu0 %717
    %v719 = vsel %vm492, %v681, 0.0
    %720 = vadd.xlane.f32.xlu0 %v719
    %v721 = vpop.xlane.xlu0 %720
    %v722 = vsel %vm492, %v686, 0.0
    %723 = vadd.xlane.f32.xlu0 %v722
    %v724 = vpop.xlane.xlu0 %723
    %v725 = vsel %vm492, %v689, 0.0
    %726 = vadd.xlane.f32.xlu0 %v725
    %v727 = vpop.xlane.xlu0 %726
    %v728 = vsel %vm492, %v694, 0.0
    %729 = vadd.xlane.f32.xlu0 %v728
    %v730 = vpop.xlane.xlu0 %729
    %v731 = vsel %vm492, %v697, 0.0
    %732 = vadd.xlane.f32.xlu0 %v731
    %v733 = vpop.xlane.xlu0 %732
    %v734 = vadd.f32 %v712, 0.0
    %v735 = vadd.f32 %v715, 0.0
    %v736 = vadd.f32 %v718, 0.0
    %v737 = vadd.f32 %v721, 0.0
    %v738 = vadd.f32 %v724, 0.0
    %v739 = vadd.f32 %v727, 0.0
    %v740 = vadd.f32 %v730, 0.0
    %v741 = vadd.f32 %v733, 0.0
    %v742 = vmul.f32 %v670, %v670
    %v743 = vmul.f32 %v673, %v673
    %v744 = vmul.f32 %v678, %v678
    %v745 = vmul.f32 %v681, %v681
    %v746 = vmul.f32 %v686, %v686
    %v747 = vmul.f32 %v689, %v689
    %v748 = vmul.f32 %v694, %v694
    %v749 = vmul.f32 %v697, %v697
    %v750 = vsel %vm492, %v742, 0.0
    %751 = vadd.xlane.f32.xlu0 %v750
    %v752 = vpop.xlane.xlu0 %751
    %v753 = vsel %vm492, %v743, 0.0
    %754 = vadd.xlane.f32.xlu0 %v753
    %v755 = vpop.xlane.xlu0 %754
    %v756 = vsel %vm492, %v744, 0.0
    %757 = vadd.xlane.f32.xlu0 %v756
    %v758 = vpop.xlane.xlu0 %757
    %v759 = vsel %vm492, %v745, 0.0
    %760 = vadd.xlane.f32.xlu0 %v759
    %v761 = vpop.xlane.xlu0 %760
    %v762 = vsel %vm492, %v746, 0.0
    %763 = vadd.xlane.f32.xlu0 %v762
    %v764 = vpop.xlane.xlu0 %763
    %v765 = vsel %vm492, %v747, 0.0
    %766 = vadd.xlane.f32.xlu0 %v765
    %v767 = vpop.xlane.xlu0 %766
    %v768 = vsel %vm492, %v748, 0.0
    %769 = vadd.xlane.f32.xlu0 %v768
    %v770 = vpop.xlane.xlu0 %769
    %v771 = vsel %vm492, %v749, 0.0
    %772 = vadd.xlane.f32.xlu0 %v771
    %v773 = vpop.xlane.xlu0 %772
    %v774 = vadd.f32 %v752, 0.0
    %v775 = vadd.f32 %v755, 0.0
    %v776 = vadd.f32 %v758, 0.0
    %v777 = vadd.f32 %v761, 0.0
    %v778 = vadd.f32 %v764, 0.0
    %v779 = vadd.f32 %v767, 0.0
    %v780 = vadd.f32 %v770, 0.0
    %v781 = vadd.f32 %v773, 0.0
    %v782 = vsel %vm492, %v702, 0.0
    %783 = vadd.xlane.f32.xlu0 %v782
    %v784 = vpop.xlane.xlu0 %783
    %v785 = vsel %vm492, %v703, 0.0
    %786 = vadd.xlane.f32.xlu0 %v785
    %v787 = vpop.xlane.xlu0 %786
    %v788 = vsel %vm492, %v704, 0.0
    %789 = vadd.xlane.f32.xlu0 %v788
    %v790 = vpop.xlane.xlu0 %789
    %v791 = vsel %vm492, %v705, 0.0
    %792 = vadd.xlane.f32.xlu0 %v791
    %v793 = vpop.xlane.xlu0 %792
    %v794 = vsel %vm492, %v706, 0.0
    %795 = vadd.xlane.f32.xlu0 %v794
    %v796 = vpop.xlane.xlu0 %795
    %v797 = vsel %vm492, %v707, 0.0
    %798 = vadd.xlane.f32.xlu0 %v797
    %v799 = vpop.xlane.xlu0 %798
    %v800 = vsel %vm492, %v708, 0.0
    %801 = vadd.xlane.f32.xlu0 %v800
    %v802 = vpop.xlane.xlu0 %801
    %v803 = vsel %vm492, %v709, 0.0
    %804 = vadd.xlane.f32.xlu0 %v803
    %v805 = vpop.xlane.xlu0 %804
    %v806 = vadd.f32 %v784, 0.0
    %v807 = vadd.f32 %v787, 0.0
    %v808 = vadd.f32 %v790, 0.0
    %v809 = vadd.f32 %v793, 0.0
    %v810 = vadd.f32 %v796, 0.0
    %v811 = vadd.f32 %v799, 0.0
    %v812 = vadd.f32 %v802, 0.0
    %v813 = vadd.f32 %v805, 0.0
    %v814 = vmul.f32 %v702, %v702
    %v815 = vmul.f32 %v703, %v703
    %v816 = vmul.f32 %v704, %v704
    %v817 = vmul.f32 %v705, %v705
    %v818 = vmul.f32 %v706, %v706
    %v819 = vmul.f32 %v707, %v707
    %v820 = vmul.f32 %v708, %v708
    %v821 = vmul.f32 %v709, %v709
    %v822 = vsel %vm492, %v814, 0.0
    %823 = vadd.xlane.f32.xlu0 %v822
    %v824 = vpop.xlane.xlu0 %823
    %v825 = vsel %vm492, %v815, 0.0
    %826 = vadd.xlane.f32.xlu0 %v825
    %v827 = vpop.xlane.xlu0 %826
    %v828 = vsel %vm492, %v816, 0.0
    %829 = vadd.xlane.f32.xlu0 %v828
    %v830 = vpop.xlane.xlu0 %829
    %v831 = vsel %vm492, %v817, 0.0
    %832 = vadd.xlane.f32.xlu0 %v831
    %v833 = vpop.xlane.xlu0 %832
    %v834 = vsel %vm492, %v818, 0.0
    %835 = vadd.xlane.f32.xlu0 %v834
    %v836 = vpop.xlane.xlu0 %835
    %v837 = vsel %vm492, %v819, 0.0
    %838 = vadd.xlane.f32.xlu0 %v837
    %v839 = vpop.xlane.xlu0 %838
    %v840 = vsel %vm492, %v820, 0.0
    %841 = vadd.xlane.f32.xlu0 %v840
    %v842 = vpop.xlane.xlu0 %841
    %v843 = vsel %vm492, %v821, 0.0
    %844 = vadd.xlane.f32.xlu0 %v843
    %v845 = vpop.xlane.xlu0 %844
    %v846 = vadd.f32 %v824, 0.0
    %v847 = vadd.f32 %v827, 0.0
    %v848 = vadd.f32 %v830, 0.0
    %v849 = vadd.f32 %v833, 0.0
    %v850 = vadd.f32 %v836, 0.0
    %v851 = vadd.f32 %v839, 0.0
    %v852 = vadd.f32 %v842, 0.0
    %v853 = vadd.f32 %v845, 0.0
    %v854 = vmul.f32 %v806, 0.03125
    %v855 = vmul.f32 %v807, 0.03125
    %v856 = vmul.f32 %v808, 0.03125
    %v857 = vmul.f32 %v809, 0.03125
    %v858 = vmul.f32 %v810, 0.03125
    %v859 = vmul.f32 %v811, 0.03125
    %v860 = vmul.f32 %v812, 0.03125
    %v861 = vmul.f32 %v813, 0.03125
    %v862 = vmul.f32 %v846, 0.03125
    %v863 = vmul.f32 %v847, 0.03125
    %v864 = vmul.f32 %v848, 0.03125
    %v865 = vmul.f32 %v849, 0.03125
    %v866 = vmul.f32 %v850, 0.03125
    %v867 = vmul.f32 %v851, 0.03125
    %v868 = vmul.f32 %v852, 0.03125
    %v869 = vmul.f32 %v853, 0.03125
    %v870 = vsub.f32 %v734, %v806
    %v871 = vsub.f32 %v735, %v807
    %v872 = vsub.f32 %v736, %v808
    %v873 = vsub.f32 %v737, %v809
    %v874 = vsub.f32 %v738, %v810
    %v875 = vsub.f32 %v739, %v811
    %v876 = vsub.f32 %v740, %v812
    %v877 = vsub.f32 %v741, %v813
    %v878 = vmul.f32 %v870, 0.03125
    %v879 = vmul.f32 %v871, 0.03125
    %v880 = vmul.f32 %v872, 0.03125
    %v881 = vmul.f32 %v873, 0.03125
    %v882 = vmul.f32 %v874, 0.03125
    %v883 = vmul.f32 %v875, 0.03125
    %v884 = vmul.f32 %v876, 0.03125
    %v885 = vmul.f32 %v877, 0.03125
    %v886 = vsub.f32 %v774, %v846
    %v887 = vsub.f32 %v775, %v847
    %v888 = vsub.f32 %v776, %v848
    %v889 = vsub.f32 %v777, %v849
    %v890 = vsub.f32 %v778, %v850
    %v891 = vsub.f32 %v779, %v851
    %v892 = vsub.f32 %v780, %v852
    %v893 = vsub.f32 %v781, %v853
    %v894 = vmul.f32 %v886, 0.03125
    %v895 = vmul.f32 %v887, 0.03125
    %v896 = vmul.f32 %v888, 0.03125
    %v897 = vmul.f32 %v889, 0.03125
    %v898 = vmul.f32 %v890, 0.03125
    %v899 = vmul.f32 %v891, 0.03125
    %v900 = vmul.f32 %v892, 0.03125
    %v901 = vmul.f32 %v893, 0.03125
    %v902 = vmul.f32 %v878, 0.33333334
    %v903 = vmul.f32 %v879, 0.33333334
    %v904 = vmul.f32 %v880, 0.33333334
    %v905 = vmul.f32 %v881, 0.33333334
    %v906 = vmul.f32 %v882, 0.33333334
    %v907 = vmul.f32 %v883, 0.33333334
    %v908 = vmul.f32 %v884, 0.33333334
    %v909 = vmul.f32 %v885, 0.33333334
    %v910 = vmul.f32 %v854, 0.6666667
    %v911 = vmul.f32 %v855, 0.6666667
    %v912 = vmul.f32 %v856, 0.6666667
    %v913 = vmul.f32 %v857, 0.6666667
    %v914 = vmul.f32 %v858, 0.6666667
    %v915 = vmul.f32 %v859, 0.6666667
    %v916 = vmul.f32 %v860, 0.6666667
    %v917 = vmul.f32 %v861, 0.6666667
    %v918 = vadd.f32 %v902, %v910
    %v919 = vadd.f32 %v903, %v911
    %v920 = vadd.f32 %v904, %v912
    %v921 = vadd.f32 %v905, %v913
    %v922 = vadd.f32 %v906, %v914
    %v923 = vadd.f32 %v907, %v915
    %v924 = vadd.f32 %v908, %v916
    %v925 = vadd.f32 %v909, %v917
    %v926 = vmul.f32 %v894, 0.33333334
    %v927 = vmul.f32 %v895, 0.33333334
    %v928 = vmul.f32 %v896, 0.33333334
    %v929 = vmul.f32 %v897, 0.33333334
    %v930 = vmul.f32 %v898, 0.33333334
    %v931 = vmul.f32 %v899, 0.33333334
    %v932 = vmul.f32 %v900, 0.33333334
    %v933 = vmul.f32 %v901, 0.33333334
    %v934 = vmul.f32 %v862, 0.6666667
    %v935 = vmul.f32 %v863, 0.6666667
    %v936 = vmul.f32 %v864, 0.6666667
    %v937 = vmul.f32 %v865, 0.6666667
    %v938 = vmul.f32 %v866, 0.6666667
    %v939 = vmul.f32 %v867, 0.6666667
    %v940 = vmul.f32 %v868, 0.6666667
    %v941 = vmul.f32 %v869, 0.6666667
    %v942 = vadd.f32 %v926, %v934
    %v943 = vadd.f32 %v927, %v935
    %v944 = vadd.f32 %v928, %v936
    %v945 = vadd.f32 %v929, %v937
    %v946 = vadd.f32 %v930, %v938
    %v947 = vadd.f32 %v931, %v939
    %v948 = vadd.f32 %v932, %v940
    %v949 = vadd.f32 %v933, %v941
    %v950 = vmul.f32 %v854, %v854
    %v951 = vmul.f32 %v855, %v855
    %v952 = vmul.f32 %v856, %v856
    %v953 = vmul.f32 %v857, %v857
    %v954 = vmul.f32 %v858, %v858
    %v955 = vmul.f32 %v859, %v859
    %v956 = vmul.f32 %v860, %v860
    %v957 = vmul.f32 %v861, %v861
    %v958 = vsub.f32 %v862, %v950
    %v959 = vsub.f32 %v863, %v951
    %v960 = vsub.f32 %v864, %v952
    %v961 = vsub.f32 %v865, %v953
    %v962 = vsub.f32 %v866, %v954
    %v963 = vsub.f32 %v867, %v955
    %v964 = vsub.f32 %v868, %v956
    %v965 = vsub.f32 %v869, %v957
    %v966 = vadd.f32 %v958, 1e-05
    %v967 = vadd.f32 %v959, 1e-05
    %v968 = vadd.f32 %v960, 1e-05
    %v969 = vadd.f32 %v961, 1e-05
    %v970 = vadd.f32 %v962, 1e-05
    %v971 = vadd.f32 %v963, 1e-05
    %v972 = vadd.f32 %v964, 1e-05
    %v973 = vadd.f32 %v965, 1e-05
    %v974 = vrsqrt.pop %v966
    %v975 = vrsqrt.pop %v967
    %v976 = vrsqrt.pop %v968
    %v977 = vrsqrt.pop %v969
    %v978 = vrsqrt.pop %v970
    %v979 = vrsqrt.pop %v971
    %v980 = vrsqrt.pop %v972
    %v981 = vrsqrt.pop %v973
    %v982 = vmul.f32 %v974, %v29
    %v983 = vmul.f32 %v975, %v30
    %v984 = vmul.f32 %v976, %v31
    %v985 = vmul.f32 %v977, %v32
    %v986 = vmul.f32 %v978, %v33
    %v987 = vmul.f32 %v979, %v34
    %v988 = vmul.f32 %v980, %v35
    %v989 = vmul.f32 %v981, %v36
    %v990 = vmul.f32 %v918, %v918
    %v991 = vmul.f32 %v919, %v919
    %v992 = vmul.f32 %v920, %v920
    %v993 = vmul.f32 %v921, %v921
    %v994 = vmul.f32 %v922, %v922
    %v995 = vmul.f32 %v923, %v923
    %v996 = vmul.f32 %v924, %v924
    %v997 = vmul.f32 %v925, %v925
    %v998 = vsub.f32 %v942, %v990
    %v999 = vsub.f32 %v943, %v991
    %v1000 = vsub.f32 %v944, %v992
    %v1001 = vsub.f32 %v945, %v993
    %v1002 = vsub.f32 %v946, %v994
    %v1003 = vsub.f32 %v947, %v995
    %v1004 = vsub.f32 %v948, %v996
    %v1005 = vsub.f32 %v949, %v997
    %v1006 = vadd.f32 %v998, 1e-05
    %v1007 = vadd.f32 %v999, 1e-05
    %v1008 = vadd.f32 %v1000, 1e-05
    %v1009 = vadd.f32 %v1001, 1e-05
    %v1010 = vadd.f32 %v1002, 1e-05
    %v1011 = vadd.f32 %v1003, 1e-05
    %v1012 = vadd.f32 %v1004, 1e-05
    %v1013 = vadd.f32 %v1005, 1e-05
    %v1014 = vrsqrt.pop %v1006
    %v1015 = vrsqrt.pop %v1007
    %v1016 = vrsqrt.pop %v1008
    %v1017 = vrsqrt.pop %v1009
    %v1018 = vrsqrt.pop %v1010
    %v1019 = vrsqrt.pop %v1011
    %v1020 = vrsqrt.pop %v1012
    %v1021 = vrsqrt.pop %v1013
    %v1022 = vmul.f32 %v1014, %v29
    %v1023 = vmul.f32 %v1015, %v30
    %v1024 = vmul.f32 %v1016, %v31
    %v1025 = vmul.f32 %v1017, %v32
    %v1026 = vmul.f32 %v1018, %v33
    %v1027 = vmul.f32 %v1019, %v34
    %v1028 = vmul.f32 %v1020, %v35
    %v1029 = vmul.f32 %v1021, %v36
    %v1030 = vmul.f32 %v854, %v982
    %v1031 = vmul.f32 %v855, %v983
    %v1032 = vmul.f32 %v856, %v984
    %v1033 = vmul.f32 %v857, %v985
    %v1034 = vmul.f32 %v858, %v986
    %v1035 = vmul.f32 %v859, %v987
    %v1036 = vmul.f32 %v860, %v988
    %v1037 = vmul.f32 %v861, %v989
    %1046 = vrot.lane.b32.xlu0 %v1030, 1
    %v1047 = vpop.permute.xlu0 %1046
    %1048 = vrot.lane.b32.xlu0 %v1031, 1
    %v1049 = vpop.permute.xlu0 %1048
    %1050 = vrot.lane.b32.xlu0 %v1032, 1
    %v1051 = vpop.permute.xlu0 %1050
    %1052 = vrot.lane.b32.xlu0 %v1033, 1
    %v1053 = vpop.permute.xlu0 %1052
    %1054 = vrot.lane.b32.xlu0 %v1034, 1
    %v1055 = vpop.permute.xlu0 %1054
    %1056 = vrot.lane.b32.xlu0 %v1035, 1
    %v1057 = vpop.permute.xlu0 %1056
    %1058 = vrot.lane.b32.xlu0 %v1036, 1
    %v1059 = vpop.permute.xlu0 %1058
    %1060 = vrot.lane.b32.xlu0 %v1037, 1
    %v1061 = vpop.permute.xlu0 %1060
    %v1070 = vsub.f32 %v29, %v1047
    %v1071 = vsub.f32 %v30, %v1049
    %v1072 = vsub.f32 %v31, %v1051
    %v1073 = vsub.f32 %v32, %v1053
    %v1074 = vsub.f32 %v33, %v1055
    %v1075 = vsub.f32 %v34, %v1057
    %v1076 = vsub.f32 %v35, %v1059
    %v1077 = vsub.f32 %v36, %v1061
    %v1078 = vmul.f32 %v918, %v1022
    %v1079 = vmul.f32 %v919, %v1023
    %v1080 = vmul.f32 %v920, %v1024
    %v1081 = vmul.f32 %v921, %v1025
    %v1082 = vmul.f32 %v922, %v1026
    %v1083 = vmul.f32 %v923, %v1027
    %v1084 = vmul.f32 %v924, %v1028
    %v1085 = vmul.f32 %v925, %v1029
    %1094 = vrot.lane.b32.xlu0 %v1078, 1
    %v1095 = vpop.permute.xlu0 %1094
    %1096 = vrot.lane.b32.xlu0 %v1079, 1
    %v1097 = vpop.permute.xlu0 %1096
    %1098 = vrot.lane.b32.xlu0 %v1080, 1
    %v1099 = vpop.permute.xlu0 %1098
    %1100 = vrot.lane.b32.xlu0 %v1081, 1
    %v1101 = vpop.permute.xlu0 %1100
    %1102 = vrot.lane.b32.xlu0 %v1082, 1
    %v1103 = vpop.permute.xlu0 %1102
    %1104 = vrot.lane.b32.xlu0 %v1083, 1
    %v1105 = vpop.permute.xlu0 %1104
    %1106 = vrot.lane.b32.xlu0 %v1084, 1
    %v1107 = vpop.permute.xlu0 %1106
    %1108 = vrot.lane.b32.xlu0 %v1085, 1
    %v1109 = vpop.permute.xlu0 %1108
    %v1118 = vsub.f32 %v29, %v1095
    %v1119 = vsub.f32 %v30, %v1097
    %v1120 = vsub.f32 %v31, %v1099
    %v1121 = vsub.f32 %v32, %v1101
    %v1122 = vsub.f32 %v33, %v1103
    %v1123 = vsub.f32 %v34, %v1105
    %v1124 = vsub.f32 %v35, %v1107
    %v1125 = vsub.f32 %v36, %v1109
    %1127 = vset.pattern.permute.xlu0 1
    %1128 = vperm.xlu0 %1127, %v982
    %v1129 = vpop.permute.xlu0 %1128
    %1132 = vset.pattern.permute.xlu0 1
    %1133 = vperm.xlu0 %1132, %v983
    %v1134 = vpop.permute.xlu0 %1133
    %1137 = vset.pattern.permute.xlu0 1
    %1138 = vperm.xlu0 %1137, %v984
    %v1139 = vpop.permute.xlu0 %1138
    %1142 = vset.pattern.permute.xlu0 1
    %1143 = vperm.xlu0 %1142, %v985
    %v1144 = vpop.permute.xlu0 %1143
    %1147 = vset.pattern.permute.xlu0 1
    %1148 = vperm.xlu0 %1147, %v986
    %v1149 = vpop.permute.xlu0 %1148
    %1152 = vset.pattern.permute.xlu0 1
    %1153 = vperm.xlu0 %1152, %v987
    %v1154 = vpop.permute.xlu0 %1153
    %1157 = vset.pattern.permute.xlu0 1
    %1158 = vperm.xlu0 %1157, %v988
    %v1159 = vpop.permute.xlu0 %1158
    %1162 = vset.pattern.permute.xlu0 1
    %1163 = vperm.xlu0 %1162, %v989
    %v1164 = vpop.permute.xlu0 %1163
    %1167 = vset.pattern.permute.xlu0 1
    %1168 = vperm.xlu0 %1167, %v1022
    %v1169 = vpop.permute.xlu0 %1168
    %1172 = vset.pattern.permute.xlu0 1
    %1173 = vperm.xlu0 %1172, %v1023
    %v1174 = vpop.permute.xlu0 %1173
    %1177 = vset.pattern.permute.xlu0 1
    %1178 = vperm.xlu0 %1177, %v1024
    %v1179 = vpop.permute.xlu0 %1178
    %1182 = vset.pattern.permute.xlu0 1
    %1183 = vperm.xlu0 %1182, %v1025
    %v1184 = vpop.permute.xlu0 %1183
    %1187 = vset.pattern.permute.xlu0 1
    %1188 = vperm.xlu0 %1187, %v1026
    %v1189 = vpop.permute.xlu0 %1188
    %1192 = vset.pattern.permute.xlu0 1
    %1193 = vperm.xlu0 %1192, %v1027
    %v1194 = vpop.permute.xlu0 %1193
    %1197 = vset.pattern.permute.xlu0 1
    %1198 = vperm.xlu0 %1197, %v1028
    %v1199 = vpop.permute.xlu0 %1198
    %1202 = vset.pattern.permute.xlu0 1
    %1203 = vperm.xlu0 %1202, %v1029
    %v1204 = vpop.permute.xlu0 %1203
    %v1206 = vsel %vm701, %v1129, %v1169
    %v1207 = vsel %vm701, %v1134, %v1174
    %v1208 = vsel %vm701, %v1139, %v1179
    %v1209 = vsel %vm701, %v1144, %v1184
    %v1210 = vsel %vm701, %v1149, %v1189
    %v1211 = vsel %vm701, %v1154, %v1194
    %v1212 = vsel %vm701, %v1159, %v1199
    %v1213 = vsel %vm701, %v1164, %v1204
    %1215 = vset.pattern.permute.xlu0 2
    %1216 = vperm.xlu0 %1215, %v1070
    %v1217 = vpop.permute.xlu0 %1216
    %1220 = vset.pattern.permute.xlu0 2
    %1221 = vperm.xlu0 %1220, %v1071
    %v1222 = vpop.permute.xlu0 %1221
    %1225 = vset.pattern.permute.xlu0 2
    %1226 = vperm.xlu0 %1225, %v1072
    %v1227 = vpop.permute.xlu0 %1226
    %1230 = vset.pattern.permute.xlu0 2
    %1231 = vperm.xlu0 %1230, %v1073
    %v1232 = vpop.permute.xlu0 %1231
    %1235 = vset.pattern.permute.xlu0 2
    %1236 = vperm.xlu0 %1235, %v1074
    %v1237 = vpop.permute.xlu0 %1236
    %1240 = vset.pattern.permute.xlu0 2
    %1241 = vperm.xlu0 %1240, %v1075
    %v1242 = vpop.permute.xlu0 %1241
    %1245 = vset.pattern.permute.xlu0 2
    %1246 = vperm.xlu0 %1245, %v1076
    %v1247 = vpop.permute.xlu0 %1246
    %1250 = vset.pattern.permute.xlu0 2
    %1251 = vperm.xlu0 %1250, %v1077
    %v1252 = vpop.permute.xlu0 %1251
    %1255 = vset.pattern.permute.xlu0 2
    %1256 = vperm.xlu0 %1255, %v1118
    %v1257 = vpop.permute.xlu0 %1256
    %1260 = vset.pattern.permute.xlu0 2
    %1261 = vperm.xlu0 %1260, %v1119
    %v1262 = vpop.permute.xlu0 %1261
    %1265 = vset.pattern.permute.xlu0 2
    %1266 = vperm.xlu0 %1265, %v1120
    %v1267 = vpop.permute.xlu0 %1266
    %1270 = vset.pattern.permute.xlu0 2
    %1271 = vperm.xlu0 %1270, %v1121
    %v1272 = vpop.permute.xlu0 %1271
    %1275 = vset.pattern.permute.xlu0 2
    %1276 = vperm.xlu0 %1275, %v1122
    %v1277 = vpop.permute.xlu0 %1276
    %1280 = vset.pattern.permute.xlu0 2
    %1281 = vperm.xlu0 %1280, %v1123
    %v1282 = vpop.permute.xlu0 %1281
    %1285 = vset.pattern.permute.xlu0 2
    %1286 = vperm.xlu0 %1285, %v1124
    %v1287 = vpop.permute.xlu0 %1286
    %1290 = vset.pattern.permute.xlu0 2
    %1291 = vperm.xlu0 %1290, %v1125
    %v1292 = vpop.permute.xlu0 %1291
    %v1294 = vsel %vm701, %v1217, %v1257
    %v1295 = vsel %vm701, %v1222, %v1262
    %v1296 = vsel %vm701, %v1227, %v1267
    %v1297 = vsel %vm701, %v1232, %v1272
    %v1298 = vsel %vm701, %v1237, %v1277
    %v1299 = vsel %vm701, %v1242, %v1282
    %v1300 = vsel %vm701, %v1247, %v1287
    %v1301 = vsel %vm701, %v1252, %v1292
    %v1302 = vmul.f32 %v670, %v1206
    %v1303 = vmul.f32 %v673, %v1207
    %v1304 = vmul.f32 %v678, %v1208
    %v1305 = vmul.f32 %v681, %v1209
    %v1306 = vmul.f32 %v686, %v1210
    %v1307 = vmul.f32 %v689, %v1211
    %v1308 = vmul.f32 %v694, %v1212
    %v1309 = vmul.f32 %v697, %v1213
    %v1310 = vadd.f32 %v1302, %v1294
    %v1311 = vadd.f32 %v1303, %v1295
    %v1312 = vadd.f32 %v1304, %v1296
    %v1313 = vadd.f32 %v1305, %v1297
    %v1314 = vadd.f32 %v1306, %v1298
    %v1315 = vadd.f32 %v1307, %v1299
    %v1316 = vadd.f32 %v1308, %v1300
    %v1317 = vadd.f32 %v1309, %v1301
    %vm1318 = vcmp.ge.f32.partialorder %v1310, 0.0
    %vm1319 = vcmp.ge.f32.partialorder %v1311, 0.0
    %vm1320 = vcmp.ge.f32.partialorder %v1312, 0.0
    %vm1321 = vcmp.ge.f32.partialorder %v1313, 0.0
    %vm1322 = vcmp.ge.f32.partialorder %v1314, 0.0
    %vm1323 = vcmp.ge.f32.partialorder %v1315, 0.0
    %vm1324 = vcmp.ge.f32.partialorder %v1316, 0.0
    %vm1325 = vcmp.ge.f32.partialorder %v1317, 0.0
    %v1326 = vmul.f32 %v1310, 0.2
    %v1327 = vmul.f32 %v1311, 0.2
    %v1328 = vmul.f32 %v1312, 0.2
    %v1329 = vmul.f32 %v1313, 0.2
    %v1330 = vmul.f32 %v1314, 0.2
    %v1331 = vmul.f32 %v1315, 0.2
    %v1332 = vmul.f32 %v1316, 0.2
    %v1333 = vmul.f32 %v1317, 0.2
    %v1334 = vsel %vm1318, %v1310, %v1326
    %v1335 = vsel %vm1319, %v1311, %v1327
    %v1336 = vsel %vm1320, %v1312, %v1328
    %v1337 = vsel %vm1321, %v1313, %v1329
    %v1338 = vsel %vm1322, %v1314, %v1330
    %v1339 = vsel %vm1323, %v1315, %v1331
    %v1340 = vsel %vm1324, %v1316, %v1332
    %v1341 = vsel %vm1325, %v1317, %v1333
    %v1342 = vpack.c.bf16 %v1335, %v1334
    %v1343 = vpack.c.bf16 %v1337, %v1336
    %v1344 = vpack.c.bf16 %v1339, %v1338
    %v1345 = vpack.c.bf16 %v1341, %v1340
    %v1350 = vunpack.c.l.b16 %v1342
    %v1351 = vunpack.c.h.b16 %v1342
    %v1352 = vunpack.c.l.b16 %v1343
    %v1353 = vunpack.c.h.b16 %v1343
    %v1354 = vunpack.c.l.b16 %v1344
    %v1355 = vunpack.c.h.b16 %v1344
    %v1356 = vunpack.c.l.b16 %v1345
    %v1357 = vunpack.c.h.b16 %v1345
    %v1358 = vpack.c.b16 %v1350, %v1350
    %v1359 = vpack.c.b16 %v1351, %v1351
    %v1360 = vpack.c.b16 %v1352, %v1352
    %v1361 = vpack.c.b16 %v1353, %v1353
    %v1362 = vpack.c.b16 %v1354, %v1354
    %v1363 = vpack.c.b16 %v1355, %v1355
    %v1364 = vpack.c.b16 %v1356, %v1356
    %v1365 = vpack.c.b16 %v1357, %v1357
    %vm1374 = vcmask 519168
    %1375 = vst.msk [vmem:[%s3] sm:$0xf] %vm1374, %v1358
    %1376 = vst.msk [vmem:[%s3 + $0x4] sm:$0xf] %vm1374, %v1359
    %1377 = vst.msk [vmem:[%s3 + $0x8] sm:$0xf] %vm1374, %v1360
    %1378 = vst.msk [vmem:[%s3 + $0xc] sm:$0xf] %vm1374, %v1361
    %1379 = vst.msk [vmem:[%s3 + $0x10] sm:$0xf] %vm1374, %v1362
    %1380 = vst.msk [vmem:[%s3 + $0x14] sm:$0xf] %vm1374, %v1363
    %1381 = vst.msk [vmem:[%s3 + $0x18] sm:$0xf] %vm1374, %v1364
    %1382 = vst.msk [vmem:[%s3 + $0x1c] sm:$0xf] %vm1374, %v1365
    // Predicated region
    $region18: #{generator_forward.7} parent=1 // pred_check
      _
    $region19: #{generator_forward.7} parent=1 // pred_check_branch
      %1384 = sbr.rel (0) target = $region21
    $region20: #{generator_forward.7} parent=1 // pred_region
      _
    $region21: #{generator_forward.7} parent=1 // pred_fallthru
      _
    // Predicated region
    $region22: #{generator_forward.7} parent=1 // pred_check
      _
    $region23: #{generator_forward.7} parent=1 // pred_check_branch
      %1386 = sbr.rel (0) target = $region25
    $region24: #{generator_forward.7} parent=1 // pred_region
      _
    $region25: #{generator_forward.7} parent=1 // pred_fallthru
      _
    %1387 = vsyncpa [#allocation3], 1

// kernel: generator_forward.8
$region0: #{generator_forward.8}
  #allocation0 [shape = 'u32[]', space=smem, size = 0x4, offset = 0x4, fixed_abs, tag = 'smem constant byte address 0x4 - core index']
  #allocation1 [shape = 'u32[144,128]{1,0:T(1,128)}', space=vmem, size = 0x12000, scoped, tag = 'internal scratch']
  %s0 = inlined_call_operand.vmem [shape: bf16[4,32,256], index: 0, kind: input, shape index: {}]
  %s1 = inlined_call_operand.vmem [shape: bf16[4,256,64], index: 1, kind: input, shape index: {}]
  %s2 = inlined_call_operand.vmem [shape: f32[32,8], index: 2, kind: input, shape index: {}]
  %s3 = inlined_call_operand.vmem [shape: bf16[4,32,64], index: 3, kind: output, shape index: {}]
  %s4 = sld [smem:[#allocation0]]
  $region22: #{generator_forward.8} parent=0
    _
  %s6 = ssub.s32 1, %s4
  %s7 = scalar_select 0, %s6, %s4
  // Predicated region
  $region2: #{generator_forward.8} parent=0 // pred_check
    _
  $region3: #{generator_forward.8} parent=0 // pred_check_branch
    %9 = sbr.rel (0) target = $region5
  $region4: #{generator_forward.8} parent=0 // pred_region
    _
  $region5: #{generator_forward.8} parent=0 // pred_fallthru
    _
  // Predicated region
  $region6: #{generator_forward.8} parent=0 // pred_check
    _
  $region7: #{generator_forward.8} parent=0 // pred_check_branch
    %11 = sbr.rel (0) target = $region9
  $region8: #{generator_forward.8} parent=0 // pred_region
    _
  $region9: #{generator_forward.8} parent=0 // pred_fallthru
    _
  // Predicated region
  $region10: #{generator_forward.8} parent=0 // pred_check
    _
  $region11: #{generator_forward.8} parent=0 // pred_check_branch
    %13 = sbr.rel (0) target = $region13
  $region12: #{generator_forward.8} parent=0 // pred_region
    _
  $region13: #{generator_forward.8} parent=0 // pred_fallthru
    _
  %v15 = vld [vmem:[%s2] sm:$0xff]
  %v16 = vld [vmem:[%s2 + $0x8] sm:$0xff]
  %v17 = vld [vmem:[%s2 + $0x10] sm:$0xff]
  %v18 = vld [vmem:[%s2 + $0x18] sm:$0xff]
  %v19 = vlaneseq
  %v20 = vand.u32 %v19, 127
  %vm21 = vcmp.lt.s32.totalorder %v20, 32
  %v22 = vld [vmem:[%s0] sm:$0xff]
  %v23 = vld [vmem:[%s0 + $0x8] sm:$0xff]
  %v24 = vld [vmem:[%s0 + $0x10] sm:$0xff]
  %v25 = vld [vmem:[%s0 + $0x18] sm:$0xff]
  %v26 = vld [vmem:[%s1] sm:$0xf]
  %v27 = vld [vmem:[%s1 + $0x4] sm:$0xf]
  %v28 = vld [vmem:[%s1 + $0x8] sm:$0xf]
  %v29 = vld [vmem:[%s1 + $0xc] sm:$0xf]
  %v30 = vld [vmem:[%s1 + $0x10] sm:$0xf]
  %v31 = vld [vmem:[%s1 + $0x14] sm:$0xf]
  %v32 = vld [vmem:[%s1 + $0x18] sm:$0xf]
  %v33 = vld [vmem:[%s1 + $0x1c] sm:$0xf]
  %v34 = vld [vmem:[%s1 + $0x20] sm:$0xf]
  %v35 = vld [vmem:[%s1 + $0x24] sm:$0xf]
  %v36 = vld [vmem:[%s1 + $0x28] sm:$0xf]
  %v37 = vld [vmem:[%s1 + $0x2c] sm:$0xf]
  %v38 = vld [vmem:[%s1 + $0x30] sm:$0xf]
  %v39 = vld [vmem:[%s1 + $0x34] sm:$0xf]
  %v40 = vld [vmem:[%s1 + $0x38] sm:$0xf]
  %v41 = vld [vmem:[%s1 + $0x3c] sm:$0xf]
  %v42 = vld [vmem:[%s1 + $0x40] sm:$0xf]
  %v43 = vld [vmem:[%s1 + $0x44] sm:$0xf]
  %v44 = vld [vmem:[%s1 + $0x48] sm:$0xf]
  %v45 = vld [vmem:[%s1 + $0x4c] sm:$0xf]
  %v46 = vld [vmem:[%s1 + $0x50] sm:$0xf]
  %v47 = vld [vmem:[%s1 + $0x54] sm:$0xf]
  %v48 = vld [vmem:[%s1 + $0x58] sm:$0xf]
  %v49 = vld [vmem:[%s1 + $0x5c] sm:$0xf]
  %v50 = vld [vmem:[%s1 + $0x60] sm:$0xf]
  %v51 = vld [vmem:[%s1 + $0x64] sm:$0xf]
  %v52 = vld [vmem:[%s1 + $0x68] sm:$0xf]
  %v53 = vld [vmem:[%s1 + $0x6c] sm:$0xf]
  %v54 = vld [vmem:[%s1 + $0x70] sm:$0xf]
  %v55 = vld [vmem:[%s1 + $0x74] sm:$0xf]
  %v56 = vld [vmem:[%s1 + $0x78] sm:$0xf]
  %v57 = vld [vmem:[%s1 + $0x7c] sm:$0xf]
  %59 = vset.pattern.permute.xlu0 0
  %60 = vperm.xlu0 %59, %v15
  %v61 = vpop.permute.xlu0 %60
  %64 = vset.pattern.permute.xlu0 0
  %65 = vperm.xlu0 %64, %v16
  %v66 = vpop.permute.xlu0 %65
  %69 = vset.pattern.permute.xlu0 0
  %70 = vperm.xlu0 %69, %v17
  %v71 = vpop.permute.xlu0 %70
  %74 = vset.pattern.permute.xlu0 0
  %75 = vperm.xlu0 %74, %v18
  %v76 = vpop.permute.xlu0 %75
  %v82 = vunpack.c.l.b16 %v22
  %v83 = vunpack.c.h.b16 %v22
  %v84 = vunpack.c.l.b16 %v23
  %v85 = vunpack.c.h.b16 %v23
  %v86 = vunpack.c.l.b16 %v24
  %v87 = vunpack.c.h.b16 %v24
  %v88 = vunpack.c.l.b16 %v25
  %v89 = vunpack.c.h.b16 %v25
  %v90 = vpack.c.b16 %v84, %v82
  %v91 = vpack.c.b16 %v85, %v83
  %v92 = vpack.c.b16 %v88, %v86
  %v93 = vpack.c.b16 %v89, %v87
  %v130 = vunpack.c.l.b16 %v26
  %v131 = vunpack.c.l.b16 %v27
  %v132 = vunpack.c.l.b16 %v28
  %v133 = vunpack.c.l.b16 %v29
  %v134 = vunpack.c.l.b16 %v30
  %v135 = vunpack.c.l.b16 %v31
  %v136 = vunpack.c.l.b16 %v32
  %v137 = vunpack.c.l.b16 %v33
  %v138 = vunpack.c.l.b16 %v34
  %v139 = vunpack.c.l.b16 %v35
  %v140 = vunpack.c.l.b16 %v36
  %v141 = vunpack.c.l.b16 %v37
  %v142 = vunpack.c.l.b16 %v38
  %v143 = vunpack.c.l.b16 %v39
  %v144 = vunpack.c.l.b16 %v40
  %v145 = vunpack.c.l.b16 %v41
  %v146 = vunpack.c.l.b16 %v42
  %v147 = vunpack.c.l.b16 %v43
  %v148 = vunpack.c.l.b16 %v44
  %v149 = vunpack.c.l.b16 %v45
  %v150 = vunpack.c.l.b16 %v46
  %v151 = vunpack.c.l.b16 %v47
  %v152 = vunpack.c.l.b16 %v48
  %v153 = vunpack.c.l.b16 %v49
  %v154 = vunpack.c.l.b16 %v50
  %v155 = vunpack.c.l.b16 %v51
  %v156 = vunpack.c.l.b16 %v52
  %v157 = vunpack.c.l.b16 %v53
  %v158 = vunpack.c.l.b16 %v54
  %v159 = vunpack.c.l.b16 %v55
  %v160 = vunpack.c.l.b16 %v56
  %v161 = vunpack.c.l.b16 %v57
  %v162 = vpack.c.b16 %v131, %v130
  %v163 = vpack.c.b16 %v133, %v132
  %v164 = vpack.c.b16 %v135, %v134
  %v165 = vpack.c.b16 %v137, %v136
  %v166 = vpack.c.b16 %v139, %v138
  %v167 = vpack.c.b16 %v141, %v140
  %v168 = vpack.c.b16 %v143, %v142
  %v169 = vpack.c.b16 %v145, %v144
  %v170 = vpack.c.b16 %v147, %v146
  %v171 = vpack.c.b16 %v149, %v148
  %v172 = vpack.c.b16 %v151, %v150
  %v173 = vpack.c.b16 %v153, %v152
  %v174 = vpack.c.b16 %v155, %v154
  %v175 = vpack.c.b16 %v157, %v156
  %v176 = vpack.c.b16 %v159, %v158
  %v177 = vpack.c.b16 %v161, %v160
  %194 = vmatprep.subr.bf16.mxu0 0
  %195 = vmatpush1.bf16.msra.mxu0 %v169
  %196 = vmatprep.subr.bf16.mxu0 0
  %197 = vmatpush1.bf16.msra.mxu0 %v168
  %198 = vmatprep.subr.bf16.mxu0 0
  %199 = vmatpush1.bf16.msra.mxu0 %v167
  %200 = vmatprep.subr.bf16.mxu0 0
  %201 = vmatpush1.bf16.msra.mxu0 %v166
  %202 = vmatprep.subr.bf16.mxu0 0
  %203 = vmatpush1.bf16.msra.mxu0 %v165
  %204 = vmatprep.subr.bf16.mxu0 0
  %205 = vmatpush1.bf16.msra.mxu0 %v164
  %206 = vmatprep.subr.bf16.mxu0 0
  %207 = vmatpush1.bf16.msra.mxu0 %v163
  %208 = vmatprep.subr.bf16.mxu0 0
  %209 = vmatpush1.bf16.msra.mxu0 %v162
  %210 = vmatprep.subr.bf16.mxu0 0
  %211 = vmatpush2.bf16.msra.mxu0 %v177
  %212 = vmatprep.subr.bf16.mxu0 0
  %213 = vmatpush2.bf16.msra.mxu0 %v176
  %214 = vmatprep.subr.bf16.mxu0 0
  %215 = vmatpush2.bf16.msra.mxu0 %v175
  %216 = vmatprep.subr.bf16.mxu0 0
  %217 = vmatpush2.bf16.msra.mxu0 %v174
  %218 = vmatprep.subr.bf16.mxu0 0
  %219 = vmatpush2.bf16.msra.mxu0 %v173
  %220 = vmatprep.subr.bf16.mxu0 0
  %221 = vmatpush2.bf16.msra.mxu0 %v172
  %222 = vmatprep.subr.bf16.mxu0 0
  %223 = vmatpush2.bf16.msra.mxu0 %v171
  %224 = vmatprep.subr.bf16.mxu0 0
  %225 = vmatpush2.bf16.msra.mxu0 %v170
  %226 = vmatprep.mubr.bf16.mxu0 %v91
  %227 = vmatmul.mubr.bf16.gmra.mxu0 %v90
  %v228 = vpop.f32.mrf.mxu0
  %v229 = vadd.f32 %v61, %v228
  %v230 = vpop.f32.mrf.mxu0
  %v231 = vpop.f32.mrf.mxu0
  %v232 = vadd.f32 %v66, %v231
  %v233 = vpop.f32.mrf.mxu0
  %234 = vmatprep.mubr.bf16.mxu0 %v93
  %235 = vmatmul.mubr.bf16.gmra.mxu0 %v92
  %v236 = vpop.f32.mrf.mxu0
  %v237 = vadd.f32 %v71, %v236
  %v238 = vpop.f32.mrf.mxu0
  %v239 = vpop.f32.mrf.mxu0
  %v240 = vadd.f32 %v76, %v239
  %v241 = vpop.f32.mrf.mxu0
  %242 = vdwg.mxu0
  %v243 = vsel %vm21, 1, 0
  %vm244 = vcmp.eq.s32.totalorder %v243, 1
  %v245 = vsel %vm244, %v229, 0.0
  %v246 = vsel %vm244, %v232, 0.0
  %v247 = vsel %vm244, %v237, 0.0
  %v248 = vsel %vm244, %v240, 0.0
  %vm249 = vcmask 523264
  %v250 = vsel %vm249, %v229, 0.0
  %251 = vadd.xlane.f32.xlu0 %v250
  %v252 = vpop.xlane.xlu0 %251
  %v253 = vsel %vm249, %v232, 0.0
  %254 = vadd.xlane.f32.xlu0 %v253
  %v255 = vpop.xlane.xlu0 %254
  %v256 = vsel %vm249, %v237, 0.0
  %257 = vadd.xlane.f32.xlu0 %v256
  %v258 = vpop.xlane.xlu0 %257
  %v259 = vsel %vm249, %v240, 0.0
  %260 = vadd.xlane.f32.xlu0 %v259
  %v261 = vpop.xlane.xlu0 %260
  %v262 = vadd.f32 %v252, 0.0
  %v263 = vadd.f32 %v255, 0.0
  %v264 = vadd.f32 %v258, 0.0
  %v265 = vadd.f32 %v261, 0.0
  %v266 = vmul.f32 %v229, %v229
  %v267 = vmul.f32 %v232, %v232
  %v268 = vmul.f32 %v237, %v237
  %v269 = vmul.f32 %v240, %v240
  %v270 = vsel %vm249, %v266, 0.0
  %271 = vadd.xlane.f32.xlu0 %v270
  %v272 = vpop.xlane.xlu0 %271
  %v273 = vsel %vm249, %v267, 0.0
  %274 = vadd.xlane.f32.xlu0 %v273
  %v275 = vpop.xlane.xlu0 %274
  %v276 = vsel %vm249, %v268, 0.0
  %277 = vadd.xlane.f32.xlu0 %v276
  %v278 = vpop.xlane.xlu0 %277
  %v279 = vsel %vm249, %v269, 0.0
  %280 = vadd.xlane.f32.xlu0 %v279
  %v281 = vpop.xlane.xlu0 %280
  %v282 = vadd.f32 %v272, 0.0
  %v283 = vadd.f32 %v275, 0.0
  %v284 = vadd.f32 %v278, 0.0
  %v285 = vadd.f32 %v281, 0.0
  %v286 = vsel %vm249, %v245, 0.0
  %287 = vadd.xlane.f32.xlu0 %v286
  %v288 = vpop.xlane.xlu0 %287
  %v289 = vsel %vm249, %v246, 0.0
  %290 = vadd.xlane.f32.xlu0 %v289
  %v291 = vpop.xlane.xlu0 %290
  %v292 = vsel %vm249, %v247, 0.0
  %293 = vadd.xlane.f32.xlu0 %v292
  %v294 = vpop.xlane.xlu0 %293
  %v295 = vsel %vm249, %v248, 0.0
  %296 = vadd.xlane.f32.xlu0 %v295
  %v297 = vpop.xlane.xlu0 %296
  %v298 = vadd.f32 %v288, 0.0
  %v299 = vadd.f32 %v291, 0.0
  %v300 = vadd.f32 %v294, 0.0
  %v301 = vadd.f32 %v297, 0.0
  %v302 = vmul.f32 %v245, %v245
  %v303 = vmul.f32 %v246, %v246
  %v304 = vmul.f32 %v247, %v247
  %v305 = vmul.f32 %v248, %v248
  %v306 = vsel %vm249, %v302, 0.0
  %307 = vadd.xlane.f32.xlu0 %v306
  %v308 = vpop.xlane.xlu0 %307
  %v309 = vsel %vm249, %v303, 0.0
  %310 = vadd.xlane.f32.xlu0 %v309
  %v311 = vpop.xlane.xlu0 %310
  %v312 = vsel %vm249, %v304, 0.0
  %313 = vadd.xlane.f32.xlu0 %v312
  %v314 = vpop.xlane.xlu0 %313
  %v315 = vsel %vm249, %v305, 0.0
  %316 = vadd.xlane.f32.xlu0 %v315
  %v317 = vpop.xlane.xlu0 %316
  %v318 = vadd.f32 %v308, 0.0
  %v319 = vadd.f32 %v311, 0.0
  %v320 = vadd.f32 %v314, 0.0
  %v321 = vadd.f32 %v317, 0.0
  %s322 = scalar_lea.vmem %s0, 32
  %v323 = vld [vmem:[%s322] sm:$0xff]
  %v324 = vld [vmem:[%s322 + $0x8] sm:$0xff]
  %v325 = vld [vmem:[%s322 + $0x10] sm:$0xff]
  %v326 = vld [vmem:[%s322 + $0x18] sm:$0xff]
  %s327 = scalar_lea.vmem %s1, 128
  %v328 = vld [vmem:[%s327] sm:$0xf]
  %v329 = vld [vmem:[%s327 + $0x4] sm:$0xf]
  %v330 = vld [vmem:[%s327 + $0x8] sm:$0xf]
  %v331 = vld [vmem:[%s327 + $0xc] sm:$0xf]
  %v332 = vld [vmem:[%s327 + $0x10] sm:$0xf]
  %v333 = vld [vmem:[%s327 + $0x14] sm:$0xf]
  %v334 = vld [vmem:[%s327 + $0x18] sm:$0xf]
  %v335 = vld [vmem:[%s327 + $0x1c] sm:$0xf]
  %v336 = vld [vmem:[%s327 + $0x20] sm:$0xf]
  %v337 = vld [vmem:[%s327 + $0x24] sm:$0xf]
  %v338 = vld [vmem:[%s327 + $0x28] sm:$0xf]
  %v339 = vld [vmem:[%s327 + $0x2c] sm:$0xf]
  %v340 = vld [vmem:[%s327 + $0x30] sm:$0xf]
  %v341 = vld [vmem:[%s327 + $0x34] sm:$0xf]
  %v342 = vld [vmem:[%s327 + $0x38] sm:$0xf]
  %v343 = vld [vmem:[%s327 + $0x3c] sm:$0xf]
  %v344 = vld [vmem:[%s327 + $0x40] sm:$0xf]
  %v345 = vld [vmem:[%s327 + $0x44] sm:$0xf]
  %v346 = vld [vmem:[%s327 + $0x48] sm:$0xf]
  %v347 = vld [vmem:[%s327 + $0x4c] sm:$0xf]
  %v348 = vld [vmem:[%s327 + $0x50] sm:$0xf]
  %v349 = vld [vmem:[%s327 + $0x54] sm:$0xf]
  %v350 = vld [vmem:[%s327 + $0x58] sm:$0xf]
  %v351 = vld [vmem:[%s327 + $0x5c] sm:$0xf]
  %v352 = vld [vmem:[%s327 + $0x60] sm:$0xf]
  %v353 = vld [vmem:[%s327 + $0x64] sm:$0xf]
  %v354 = vld [vmem:[%s327 + $0x68] sm:$0xf]
  %v355 = vld [vmem:[%s327 + $0x6c] sm:$0xf]
  %v356 = vld [vmem:[%s327 + $0x70] sm:$0xf]
  %v357 = vld [vmem:[%s327 + $0x74] sm:$0xf]
  %v358 = vld [vmem:[%s327 + $0x78] sm:$0xf]
  %v359 = vld [vmem:[%s327 + $0x7c] sm:$0xf]
  %v364 = vunpack.c.l.b16 %v323
  %v365 = vunpack.c.h.b16 %v323
  %v366 = vunpack.c.l.b16 %v324
  %v367 = vunpack.c.h.b16 %v324
  %v368 = vunpack.c.l.b16 %v325
  %v369 = vunpack.c.h.b16 %v325
  %v370 = vunpack.c.l.b16 %v326
  %v371 = vunpack.c.h.b16 %v326
  %v372 = vpack.c.b16 %v366, %v364
  %v373 = vpack.c.b16 %v367, %v365
  %v374 = vpack.c.b16 %v370, %v368
  %v375 = vpack.c.b16 %v371, %v369
  %v412 = vunpack.c.l.b16 %v328
  %v413 = vunpack.c.l.b16 %v329
  %v414 = vunpack.c.l.b16 %v330
  %v415 = vunpack.c.l.b16 %v331
  %v416 = vunpack.c.l.b16 %v332
  %v417 = vunpack.c.l.b16 %v333
  %v418 = vunpack.c.l.b16 %v334
  %v419 = vunpack.c.l.b16 %v335
  %v420 = vunpack.c.l.b16 %v336
  %v421 = vunpack.c.l.b16 %v337
  %v422 = vunpack.c.l.b16 %v338
  %v423 = vunpack.c.l.b16 %v339
  %v424 = vunpack.c.l.b16 %v340
  %v425 = vunpack.c.l.b16 %v341
  %v426 = vunpack.c.l.b16 %v342
  %v427 = vunpack.c.l.b16 %v343
  %v428 = vunpack.c.l.b16 %v344
  %v429 = vunpack.c.l.b16 %v345
  %v430 = vunpack.c.l.b16 %v346
  %v431 = vunpack.c.l.b16 %v347
  %v432 = vunpack.c.l.b16 %v348
  %v433 = vunpack.c.l.b16 %v349
  %v434 = vunpack.c.l.b16 %v350
  %v435 = vunpack.c.l.b16 %v351
  %v436 = vunpack.c.l.b16 %v352
  %v437 = vunpack.c.l.b16 %v353
  %v438 = vunpack.c.l.b16 %v354
  %v439 = vunpack.c.l.b16 %v355
  %v440 = vunpack.c.l.b16 %v356
  %v441 = vunpack.c.l.b16 %v357
  %v442 = vunpack.c.l.b16 %v358
  %v443 = vunpack.c.l.b16 %v359
  %v444 = vpack.c.b16 %v413, %v412
  %v445 = vpack.c.b16 %v415, %v414
  %v446 = vpack.c.b16 %v417, %v416
  %v447 = vpack.c.b16 %v419, %v418
  %v448 = vpack.c.b16 %v421, %v420
  %v449 = vpack.c.b16 %v423, %v422
  %v450 = vpack.c.b16 %v425, %v424
  %v451 = vpack.c.b16 %v427, %v426
  %v452 = vpack.c.b16 %v429, %v428
  %v453 = vpack.c.b16 %v431, %v430
  %v454 = vpack.c.b16 %v433, %v432
  %v455 = vpack.c.b16 %v435, %v434
  %v456 = vpack.c.b16 %v437, %v436
  %v457 = vpack.c.b16 %v439, %v438
  %v458 = vpack.c.b16 %v441, %v440
  %v459 = vpack.c.b16 %v443, %v442
  %476 = vmatprep.subr.bf16.mxu0 0
  %477 = vmatpush1.bf16.msra.mxu0 %v451
  %478 = vmatprep.subr.bf16.mxu0 0
  %479 = vmatpush1.bf16.msra.mxu0 %v450
  %480 = vmatprep.subr.bf16.mxu0 0
  %481 = vmatpush1.bf16.msra.mxu0 %v449
  %482 = vmatprep.subr.bf16.mxu0 0
  %483 = vmatpush1.bf16.msra.mxu0 %v448
  %484 = vmatprep.subr.bf16.mxu0 0
  %485 = vmatpush1.bf16.msra.mxu0 %v447
  %486 = vmatprep.subr.bf16.mxu0 0
  %487 = vmatpush1.bf16.msra.mxu0 %v446
  %488 = vmatprep.subr.bf16.mxu0 0
  %489 = vmatpush1.bf16.msra.mxu0 %v445
  %490 = vmatprep.subr.bf16.mxu0 0
  %491 = vmatpush1.bf16.msra.mxu0 %v444
  %492 = vmatprep.subr.bf16.mxu0 0
  %493 = vmatpush2.bf16.msra.mxu0 %v459
  %494 = vmatprep.subr.bf16.mxu0 0
  %495 = vmatpush2.bf16.msra.mxu0 %v458
  %496 = vmatprep.subr.bf16.mxu0 0
  %497 = vmatpush2.bf16.msra.mxu0 %v457
  %498 = vmatprep.subr.bf16.mxu0 0
  %499 = vmatpush2.bf16.msra.mxu0 %v456
  %500 = vmatprep.subr.bf16.mxu0 0
  %501 = vmatpush2.bf16.msra.mxu0 %v455
  %502 = vmatprep.subr.bf16.mxu0 0
  %503 = vmatpush2.bf16.msra.mxu0 %v454
  %504 = vmatprep.subr.bf16.mxu0 0
  %505 = vmatpush2.bf16.msra.mxu0 %v453
  %506 = vmatprep.subr.bf16.mxu0 0
  %507 = vmatpush2.bf16.msra.mxu0 %v452
  %508 = vmatprep.mubr.bf16.mxu0 %v373
  %509 = vmatmul.mubr.bf16.gmra.mxu0 %v372
  %v510 = vpop.f32.mrf.mxu0
  %v511 = vadd.f32 %v61, %v510
  %v512 = vpop.f32.mrf.mxu0
  %v513 = vpop.f32.mrf.mxu0
  %v514 = vadd.f32 %v66, %v513
  %v515 = vpop.f32.mrf.mxu0
  %516 = vmatprep.mubr.bf16.mxu0 %v375
  %517 = vmatmul.mubr.bf16.gmra.mxu0 %v374
  %v518 = vpop.f32.mrf.mxu0
  %v519 = vadd.f32 %v71, %v518
  %v520 = vpop.f32.mrf.mxu0
  %v521 = vpop.f32.mrf.mxu0
  %v522 = vadd.f32 %v76, %v521
  %v523 = vpop.f32.mrf.mxu0
  %524 = vdwg.mxu0
  %v525 = vsel %vm244, %v511, 0.0
  %v526 = vsel %vm244, %v514, 0.0
  %v527 = vsel %vm244, %v519, 0.0
  %v528 = vsel %vm244, %v522, 0.0
  %v529 = vsel %vm249, %v511, 0.0
  %530 = vadd.xlane.f32.xlu0 %v529
  %v531 = vpop.xlane.xlu0 %530
  %v532 = vsel %vm249, %v514, 0.0
  %533 = vadd.xlane.f32.xlu0 %v532
  %v534 = vpop.xlane.xlu0 %533
  %v535 = vsel %vm249, %v519, 0.0
  %536 = vadd.xlane.f32.xlu0 %v535
  %v537 = vpop.xlane.xlu0 %536
  %v538 = vsel %vm249, %v522, 0.0
  %539 = vadd.xlane.f32.xlu0 %v538
  %v540 = vpop.xlane.xlu0 %539
  %v541 = vadd.f32 %v262, %v531
  %v542 = vadd.f32 %v263, %v534
  %v543 = vadd.f32 %v264, %v537
  %v544 = vadd.f32 %v265, %v540
  %v545 = vmul.f32 %v511, %v511
  %v546 = vmul.f32 %v514, %v514
  %v547 = vmul.f32 %v519, %v519
  %v548 = vmul.f32 %v522, %v522
  %v549 = vsel %vm249, %v545, 0.0
  %550 = vadd.xlane.f32.xlu0 %v549
  %v551 = vpop.xlane.xlu0 %550
  %v552 = vsel %vm249, %v546, 0.0
  %553 = vadd.xlane.f32.xlu0 %v552
  %v554 = vpop.xlane.xlu0 %553
  %v555 = vsel %vm249, %v547, 0.0
  %556 = vadd.xlane.f32.xlu0 %v555
  %v557 = vpop.xlane.xlu0 %556
  %v558 = vsel %vm249, %v548, 0.0
  %559 = vadd.xlane.f32.xlu0 %v558
  %v560 = vpop.xlane.xlu0 %559
  %v561 = vadd.f32 %v282, %v551
  %v562 = vadd.f32 %v283, %v554
  %v563 = vadd.f32 %v284, %v557
  %v564 = vadd.f32 %v285, %v560
  %v565 = vsel %vm249, %v525, 0.0
  %566 = vadd.xlane.f32.xlu0 %v565
  %v567 = vpop.xlane.xlu0 %566
  %v568 = vsel %vm249, %v526, 0.0
  %569 = vadd.xlane.f32.xlu0 %v568
  %v570 = vpop.xlane.xlu0 %569
  %v571 = vsel %vm249, %v527, 0.0
  %572 = vadd.xlane.f32.xlu0 %v571
  %v573 = vpop.xlane.xlu0 %572
  %v574 = vsel %vm249, %v528, 0.0
  %575 = vadd.xlane.f32.xlu0 %v574
  %v576 = vpop.xlane.xlu0 %575
  %v577 = vadd.f32 %v298, %v567
  %v578 = vadd.f32 %v299, %v570
  %v579 = vadd.f32 %v300, %v573
  %v580 = vadd.f32 %v301, %v576
  %v581 = vmul.f32 %v525, %v525
  %v582 = vmul.f32 %v526, %v526
  %v583 = vmul.f32 %v527, %v527
  %v584 = vmul.f32 %v528, %v528
  %v585 = vsel %vm249, %v581, 0.0
  %586 = vadd.xlane.f32.xlu0 %v585
  %v587 = vpop.xlane.xlu0 %586
  %v588 = vsel %vm249, %v582, 0.0
  %589 = vadd.xlane.f32.xlu0 %v588
  %v590 = vpop.xlane.xlu0 %589
  %v591 = vsel %vm249, %v583, 0.0
  %592 = vadd.xlane.f32.xlu0 %v591
  %v593 = vpop.xlane.xlu0 %592
  %v594 = vsel %vm249, %v584, 0.0
  %595 = vadd.xlane.f32.xlu0 %v594
  %v596 = vpop.xlane.xlu0 %595
  %v597 = vadd.f32 %v318, %v587
  %v598 = vadd.f32 %v319, %v590
  %v599 = vadd.f32 %v320, %v593
  %v600 = vadd.f32 %v321, %v596
  %s601 = scalar_lea.vmem %s0, 64
  %v602 = vld [vmem:[%s601] sm:$0xff]
  %v603 = vld [vmem:[%s601 + $0x8] sm:$0xff]
  %v604 = vld [vmem:[%s601 + $0x10] sm:$0xff]
  %v605 = vld [vmem:[%s601 + $0x18] sm:$0xff]
  %s606 = scalar_lea.vmem %s1, 256
  %v607 = vld [vmem:[%s606] sm:$0xf]
  %v608 = vld [vmem:[%s606 + $0x4] sm:$0xf]
  %v609 = vld [vmem:[%s606 + $0x8] sm:$0xf]
  %v610 = vld [vmem:[%s606 + $0xc] sm:$0xf]
  %v611 = vld [vmem:[%s606 + $0x10] sm:$0xf]
  %v612 = vld [vmem:[%s606 + $0x14] sm:$0xf]
  %v613 = vld [vmem:[%s606 + $0x18] sm:$0xf]
  %v614 = vld [vmem:[%s606 + $0x1c] sm:$0xf]
  %v615 = vld [vmem:[%s606 + $0x20] sm:$0xf]
  %v616 = vld [vmem:[%s606 + $0x24] sm:$0xf]
  %v617 = vld [vmem:[%s606 + $0x28] sm:$0xf]
  %v618 = vld [vmem:[%s606 + $0x2c] sm:$0xf]
  %v619 = vld [vmem:[%s606 + $0x30] sm:$0xf]
  %v620 = vld [vmem:[%s606 + $0x34] sm:$0xf]
  %v621 = vld [vmem:[%s606 + $0x38] sm:$0xf]
  %v622 = vld [vmem:[%s606 + $0x3c] sm:$0xf]
  %v623 = vld [vmem:[%s606 + $0x40] sm:$0xf]
  %v624 = vld [vmem:[%s606 + $0x44] sm:$0xf]
  %v625 = vld [vmem:[%s606 + $0x48] sm:$0xf]
  %v626 = vld [vmem:[%s606 + $0x4c] sm:$0xf]
  %v627 = vld [vmem:[%s606 + $0x50] sm:$0xf]
  %v628 = vld [vmem:[%s606 + $0x54] sm:$0xf]
  %v629 = vld [vmem:[%s606 + $0x58] sm:$0xf]
  %v630 = vld [vmem:[%s606 + $0x5c] sm:$0xf]
  %v631 = vld [vmem:[%s606 + $0x60] sm:$0xf]
  %v632 = vld [vmem:[%s606 + $0x64] sm:$0xf]
  %v633 = vld [vmem:[%s606 + $0x68] sm:$0xf]
  %v634 = vld [vmem:[%s606 + $0x6c] sm:$0xf]
  %v635 = vld [vmem:[%s606 + $0x70] sm:$0xf]
  %v636 = vld [vmem:[%s606 + $0x74] sm:$0xf]
  %v637 = vld [vmem:[%s606 + $0x78] sm:$0xf]
  %v638 = vld [vmem:[%s606 + $0x7c] sm:$0xf]
  %v643 = vunpack.c.l.b16 %v602
  %v644 = vunpack.c.h.b16 %v602
  %v645 = vunpack.c.l.b16 %v603
  %v646 = vunpack.c.h.b16 %v603
  %v647 = vunpack.c.l.b16 %v604
  %v648 = vunpack.c.h.b16 %v604
  %v649 = vunpack.c.l.b16 %v605
  %v650 = vunpack.c.h.b16 %v605
  %v651 = vpack.c.b16 %v645, %v643
  %v652 = vpack.c.b16 %v646, %v644
  %v653 = vpack.c.b16 %v649, %v647
  %v654 = vpack.c.b16 %v650, %v648
  %v691 = vunpack.c.l.b16 %v607
  %v692 = vunpack.c.l.b16 %v608
  %v693 = vunpack.c.l.b16 %v609
  %v694 = vunpack.c.l.b16 %v610
  %v695 = vunpack.c.l.b16 %v611
  %v696 = vunpack.c.l.b16 %v612
  %v697 = vunpack.c.l.b16 %v613
  %v698 = vunpack.c.l.b16 %v614
  %v699 = vunpack.c.l.b16 %v615
  %v700 = vunpack.c.l.b16 %v616
  %v701 = vunpack.c.l.b16 %v617
  %v702 = vunpack.c.l.b16 %v618
  %v703 = vunpack.c.l.b16 %v619
  %v704 = vunpack.c.l.b16 %v620
  %v705 = vunpack.c.l.b16 %v621
  %v706 = vunpack.c.l.b16 %v622
  %v707 = vunpack.c.l.b16 %v623
  %v708 = vunpack.c.l.b16 %v624
  %v709 = vunpack.c.l.b16 %v625
  %v710 = vunpack.c.l.b16 %v626
  %v711 = vunpack.c.l.b16 %v627
  %v712 = vunpack.c.l.b16 %v628
  %v713 = vunpack.c.l.b16 %v629
  %v714 = vunpack.c.l.b16 %v630
  %v715 = vunpack.c.l.b16 %v631
  %v716 = vunpack.c.l.b16 %v632
  %v717 = vunpack.c.l.b16 %v633
  %v718 = vunpack.c.l.b16 %v634
  %v719 = vunpack.c.l.b16 %v635
  %v720 = vunpack.c.l.b16 %v636
  %v721 = vunpack.c.l.b16 %v637
  %v722 = vunpack.c.l.b16 %v638
  %v723 = vpack.c.b16 %v692, %v691
  %v724 = vpack.c.b16 %v694, %v693
  %v725 = vpack.c.b16 %v696, %v695
  %v726 = vpack.c.b16 %v698, %v697
  %v727 = vpack.c.b16 %v700, %v699
  %v728 = vpack.c.b16 %v702, %v701
  %v729 = vpack.c.b16 %v704, %v703
  %v730 = vpack.c.b16 %v706, %v705
  %v731 = vpack.c.b16 %v708, %v707
  %v732 = vpack.c.b16 %v710, %v709
  %v733 = vpack.c.b16 %v712, %v711
  %v734 = vpack.c.b16 %v714, %v713
  %v735 = vpack.c.b16 %v716, %v715
  %v736 = vpack.c.b16 %v718, %v717
  %v737 = vpack.c.b16 %v720, %v719
  %v738 = vpack.c.b16 %v722, %v721
  %755 = vmatprep.subr.bf16.mxu0 0
  %756 = vmatpush1.bf16.msra.mxu0 %v730
  %757 = vmatprep.subr.bf16.mxu0 0
  %758 = vmatpush1.bf16.msra.mxu0 %v729
  %759 = vmatprep.subr.bf16.mxu0 0
  %760 = vmatpush1.bf16.msra.mxu0 %v728
  %761 = vmatprep.subr.bf16.mxu0 0
  %762 = vmatpush1.bf16.msra.mxu0 %v727
  %763 = vmatprep.subr.bf16.mxu0 0
  %764 = vmatpush1.bf16.msra.mxu0 %v726
  %765 = vmatprep.subr.bf16.mxu0 0
  %766 = vmatpush1.bf16.msra.mxu0 %v725
  %767 = vmatprep.subr.bf16.mxu0 0
  %768 = vmatpush1.bf16.msra.mxu0 %v724
  %769 = vmatprep.subr.bf16.mxu0 0
  %770 = vmatpush1.bf16.msra.mxu0 %v723
  %771 = vmatprep.subr.bf16.mxu0 0
  %772 = vmatpush2.bf16.msra.mxu0 %v738
  %773 = vmatprep.subr.bf16.mxu0 0
  %774 = vmatpush2.bf16.msra.mxu0 %v737
  %775 = vmatprep.subr.bf16.mxu0 0
  %776 = vmatpush2.bf16.msra.mxu0 %v736
  %777 = vmatprep.subr.bf16.mxu0 0
  %778 = vmatpush2.bf16.msra.mxu0 %v735
  %779 = vmatprep.subr.bf16.mxu0 0
  %780 = vmatpush2.bf16.msra.mxu0 %v734
  %781 = vmatprep.subr.bf16.mxu0 0
  %782 = vmatpush2.bf16.msra.mxu0 %v733
  %783 = vmatprep.subr.bf16.mxu0 0
  %784 = vmatpush2.bf16.msra.mxu0 %v732
  %785 = vmatprep.subr.bf16.mxu0 0
  %786 = vmatpush2.bf16.msra.mxu0 %v731
  %787 = vmatprep.mubr.bf16.mxu0 %v652
  %788 = vmatmul.mubr.bf16.gmra.mxu0 %v651
  %v789 = vpop.f32.mrf.mxu0
  %v790 = vadd.f32 %v61, %v789
  %v791 = vpop.f32.mrf.mxu0
  %v792 = vpop.f32.mrf.mxu0
  %v793 = vadd.f32 %v66, %v792
  %v794 = vpop.f32.mrf.mxu0
  %795 = vmatprep.mubr.bf16.mxu0 %v654
  %796 = vmatmul.mubr.bf16.gmra.mxu0 %v653
  %v797 = vpop.f32.mrf.mxu0
  %v798 = vadd.f32 %v71, %v797
  %v799 = vpop.f32.mrf.mxu0
  %v800 = vpop.f32.mrf.mxu0
  %v801 = vadd.f32 %v76, %v800
  %v802 = vpop.f32.mrf.mxu0
  %803 = vdwg.mxu0
  %v804 = vsel %vm244, %v790, 0.0
  %v805 = vsel %vm244, %v793, 0.0
  %v806 = vsel %vm244, %v798, 0.0
  %v807 = vsel %vm244, %v801, 0.0
  %v808 = vsel %vm249, %v790, 0.0
  %809 = vadd.xlane.f32.xlu0 %v808
  %v810 = vpop.xlane.xlu0 %809
  %v811 = vsel %vm249, %v793, 0.0
  %812 = vadd.xlane.f32.xlu0 %v811
  %v813 = vpop.xlane.xlu0 %812
  %v814 = vsel %vm249, %v798, 0.0
  %815 = vadd.xlane.f32.xlu0 %v814
  %v816 = vpop.xlane.xlu0 %815
  %v817 = vsel %vm249, %v801, 0.0
  %818 = vadd.xlane.f32.xlu0 %v817
  %v819 = vpop.xlane.xlu0 %818
  %v820 = vadd.f32 %v541, %v810
  %v821 = vadd.f32 %v542, %v813
  %v822 = vadd.f32 %v543, %v816
  %v823 = vadd.f32 %v544, %v819
  %v824 = vmul.f32 %v790, %v790
  %v825 = vmul.f32 %v793, %v793
  %v826 = vmul.f32 %v798, %v798
  %v827 = vmul.f32 %v801, %v801
  %v828 = vsel %vm249, %v824, 0.0
  %829 = vadd.xlane.f32.xlu0 %v828
  %v830 = vpop.xlane.xlu0 %829
  %v831 = vsel %vm249, %v825, 0.0
  %832 = vadd.xlane.f32.xlu0 %v831
  %v833 = vpop.xlane.xlu0 %832
  %v834 = vsel %vm249, %v826, 0.0
  %835 = vadd.xlane.f32.xlu0 %v834
  %v836 = vpop.xlane.xlu0 %835
  %v837 = vsel %vm249, %v827, 0.0
  %838 = vadd.xlane.f32.xlu0 %v837
  %v839 = vpop.xlane.xlu0 %838
  %v840 = vadd.f32 %v561, %v830
  %v841 = vadd.f32 %v562, %v833
  %v842 = vadd.f32 %v563, %v836
  %v843 = vadd.f32 %v564, %v839
  %v844 = vsel %vm249, %v804, 0.0
  %845 = vadd.xlane.f32.xlu0 %v844
  %v846 = vpop.xlane.xlu0 %845
  %v847 = vsel %vm249, %v805, 0.0
  %848 = vadd.xlane.f32.xlu0 %v847
  %v849 = vpop.xlane.xlu0 %848
  %v850 = vsel %vm249, %v806, 0.0
  %851 = vadd.xlane.f32.xlu0 %v850
  %v852 = vpop.xlane.xlu0 %851
  %v853 = vsel %vm249, %v807, 0.0
  %854 = vadd.xlane.f32.xlu0 %v853
  %v855 = vpop.xlane.xlu0 %854
  %v856 = vadd.f32 %v577, %v846
  %v857 = vadd.f32 %v578, %v849
  %v858 = vadd.f32 %v579, %v852
  %v859 = vadd.f32 %v580, %v855
  %v860 = vmul.f32 %v804, %v804
  %v861 = vmul.f32 %v805, %v805
  %v862 = vmul.f32 %v806, %v806
  %v863 = vmul.f32 %v807, %v807
  %v864 = vsel %vm249, %v860, 0.0
  %865 = vadd.xlane.f32.xlu0 %v864
  %v866 = vpop.xlane.xlu0 %865
  %v867 = vsel %vm249, %v861, 0.0
  %868 = vadd.xlane.f32.xlu0 %v867
  %v869 = vpop.xlane.xlu0 %868
  %v870 = vsel %vm249, %v862, 0.0
  %871 = vadd.xlane.f32.xlu0 %v870
  %v872 = vpop.xlane.xlu0 %871
  %v873 = vsel %vm249, %v863, 0.0
  %874 = vadd.xlane.f32.xlu0 %v873
  %v875 = vpop.xlane.xlu0 %874
  %v876 = vadd.f32 %v597, %v866
  %v877 = vadd.f32 %v598, %v869
  %v878 = vadd.f32 %v599, %v872
  %v879 = vadd.f32 %v600, %v875
  %s880 = scalar_lea.vmem %s0, 96
  %v881 = vld [vmem:[%s880] sm:$0xff]
  %v882 = vld [vmem:[%s880 + $0x8] sm:$0xff]
  %v883 = vld [vmem:[%s880 + $0x10] sm:$0xff]
  %v884 = vld [vmem:[%s880 + $0x18] sm:$0xff]
  %s885 = scalar_lea.vmem %s1, 384
  %v886 = vld [vmem:[%s885] sm:$0xf]
  %v887 = vld [vmem:[%s885 + $0x4] sm:$0xf]
  %v888 = vld [vmem:[%s885 + $0x8] sm:$0xf]
  %v889 = vld [vmem:[%s885 + $0xc] sm:$0xf]
  %v890 = vld [vmem:[%s885 + $0x10] sm:$0xf]
  %v891 = vld [vmem:[%s885 + $0x14] sm:$0xf]
  %v892 = vld [vmem:[%s885 + $0x18] sm:$0xf]
  %v893 = vld [vmem:[%s885 + $0x1c] sm:$0xf]
  %v894 = vld [vmem:[%s885 + $0x20] sm:$0xf]
  %v895 = vld [vmem:[%s885 + $0x24] sm:$0xf]
  %v896 = vld [vmem:[%s885 + $0x28] sm:$0xf]
  %v897 = vld [vmem:[%s885 + $0x2c] sm:$0xf]
  %v898 = vld [vmem:[%s885 + $0x30] sm:$0xf]
  %v899 = vld [vmem:[%s885 + $0x34] sm:$0xf]
  %v900 = vld [vmem:[%s885 + $0x38] sm:$0xf]
  %v901 = vld [vmem:[%s885 + $0x3c] sm:$0xf]
  %v902 = vld [vmem:[%s885 + $0x40] sm:$0xf]
  %v903 = vld [vmem:[%s885 + $0x44] sm:$0xf]
  %v904 = vld [vmem:[%s885 + $0x48] sm:$0xf]
  %v905 = vld [vmem:[%s885 + $0x4c] sm:$0xf]
  %v906 = vld [vmem:[%s885 + $0x50] sm:$0xf]
  %v907 = vld [vmem:[%s885 + $0x54] sm:$0xf]
  %v908 = vld [vmem:[%s885 + $0x58] sm:$0xf]
  %v909 = vld [vmem:[%s885 + $0x5c] sm:$0xf]
  %v910 = vld [vmem:[%s885 + $0x60] sm:$0xf]
  %v911 = vld [vmem:[%s885 + $0x64] sm:$0xf]
  %v912 = vld [vmem:[%s885 + $0x68] sm:$0xf]
  %v913 = vld [vmem:[%s885 + $0x6c] sm:$0xf]
  %v914 = vld [vmem:[%s885 + $0x70] sm:$0xf]
  %v915 = vld [vmem:[%s885 + $0x74] sm:$0xf]
  %v916 = vld [vmem:[%s885 + $0x78] sm:$0xf]
  %v917 = vld [vmem:[%s885 + $0x7c] sm:$0xf]
  %v922 = vunpack.c.l.b16 %v881
  %v923 = vunpack.c.h.b16 %v881
  %v924 = vunpack.c.l.b16 %v882
  %v925 = vunpack.c.h.b16 %v882
  %v926 = vunpack.c.l.b16 %v883
  %v927 = vunpack.c.h.b16 %v883
  %v928 = vunpack.c.l.b16 %v884
  %v929 = vunpack.c.h.b16 %v884
  %v930 = vpack.c.b16 %v924, %v922
  %v931 = vpack.c.b16 %v925, %v923
  %v932 = vpack.c.b16 %v928, %v926
  %v933 = vpack.c.b16 %v929, %v927
  %v970 = vunpack.c.l.b16 %v886
  %v971 = vunpack.c.l.b16 %v887
  %v972 = vunpack.c.l.b16 %v888
  %v973 = vunpack.c.l.b16 %v889
  %v974 = vunpack.c.l.b16 %v890
  %v975 = vunpack.c.l.b16 %v891
  %v976 = vunpack.c.l.b16 %v892
  %v977 = vunpack.c.l.b16 %v893
  %v978 = vunpack.c.l.b16 %v894
  %v979 = vunpack.c.l.b16 %v895
  %v980 = vunpack.c.l.b16 %v896
  %v981 = vunpack.c.l.b16 %v897
  %v982 = vunpack.c.l.b16 %v898
  %v983 = vunpack.c.l.b16 %v899
  %v984 = vunpack.c.l.b16 %v900
  %v985 = vunpack.c.l.b16 %v901
  %v986 = vunpack.c.l.b16 %v902
  %v987 = vunpack.c.l.b16 %v903
  %v988 = vunpack.c.l.b16 %v904
  %v989 = vunpack.c.l.b16 %v905
  %v990 = vunpack.c.l.b16 %v906
  %v991 = vunpack.c.l.b16 %v907
  %v992 = vunpack.c.l.b16 %v908
  %v993 = vunpack.c.l.b16 %v909
  %v994 = vunpack.c.l.b16 %v910
  %v995 = vunpack.c.l.b16 %v911
  %v996 = vunpack.c.l.b16 %v912
  %v997 = vunpack.c.l.b16 %v913
  %v998 = vunpack.c.l.b16 %v914
  %v999 = vunpack.c.l.b16 %v915
  %v1000 = vunpack.c.l.b16 %v916
  %v1001 = vunpack.c.l.b16 %v917
  %v1002 = vpack.c.b16 %v971, %v970
  %v1003 = vpack.c.b16 %v973, %v972
  %v1004 = vpack.c.b16 %v975, %v974
  %v1005 = vpack.c.b16 %v977, %v976
  %v1006 = vpack.c.b16 %v979, %v978
  %v1007 = vpack.c.b16 %v981, %v980
  %v1008 = vpack.c.b16 %v983, %v982
  %v1009 = vpack.c.b16 %v985, %v984
  %v1010 = vpack.c.b16 %v987, %v986
  %v1011 = vpack.c.b16 %v989, %v988
  %v1012 = vpack.c.b16 %v991, %v990
  %v1013 = vpack.c.b16 %v993, %v992
  %v1014 = vpack.c.b16 %v995, %v994
  %v1015 = vpack.c.b16 %v997, %v996
  %v1016 = vpack.c.b16 %v999, %v998
  %v1017 = vpack.c.b16 %v1001, %v1000
  %1034 = vmatprep.subr.bf16.mxu0 0
  %1035 = vmatpush1.bf16.msra.mxu0 %v1009
  %1036 = vmatprep.subr.bf16.mxu0 0
  %1037 = vmatpush1.bf16.msra.mxu0 %v1008
  %1038 = vmatprep.subr.bf16.mxu0 0
  %1039 = vmatpush1.bf16.msra.mxu0 %v1007
  %1040 = vmatprep.subr.bf16.mxu0 0
  %1041 = vmatpush1.bf16.msra.mxu0 %v1006
  %1042 = vmatprep.subr.bf16.mxu0 0
  %1043 = vmatpush1.bf16.msra.mxu0 %v1005
  %1044 = vmatprep.subr.bf16.mxu0 0
  %1045 = vmatpush1.bf16.msra.mxu0 %v1004
  %1046 = vmatprep.subr.bf16.mxu0 0
  %1047 = vmatpush1.bf16.msra.mxu0 %v1003
  %1048 = vmatprep.subr.bf16.mxu0 0
  %1049 = vmatpush1.bf16.msra.mxu0 %v1002
  %1050 = vmatprep.subr.bf16.mxu0 0
  %1051 = vmatpush2.bf16.msra.mxu0 %v1017
  %1052 = vmatprep.subr.bf16.mxu0 0
  %1053 = vmatpush2.bf16.msra.mxu0 %v1016
  %1054 = vmatprep.subr.bf16.mxu0 0
  %1055 = vmatpush2.bf16.msra.mxu0 %v1015
  %1056 = vmatprep.subr.bf16.mxu0 0
  %1057 = vmatpush2.bf16.msra.mxu0 %v1014
  %1058 = vmatprep.subr.bf16.mxu0 0
  %1059 = vmatpush2.bf16.msra.mxu0 %v1013
  %1060 = vmatprep.subr.bf16.mxu0 0
  %1061 = vmatpush2.bf16.msra.mxu0 %v1012
  %1062 = vmatprep.subr.bf16.mxu0 0
  %1063 = vmatpush2.bf16.msra.mxu0 %v1011
  %1064 = vmatprep.subr.bf16.mxu0 0
  %1065 = vmatpush2.bf16.msra.mxu0 %v1010
  %1066 = vmatprep.mubr.bf16.mxu0 %v931
  %1067 = vmatmul.mubr.bf16.gmra.mxu0 %v930
  %v1068 = vpop.f32.mrf.mxu0
  %v1069 = vadd.f32 %v61, %v1068
  %v1070 = vpop.f32.mrf.mxu0
  %v1071 = vpop.f32.mrf.mxu0
  %v1072 = vadd.f32 %v66, %v1071
  %v1073 = vpop.f32.mrf.mxu0
  %1074 = vmatprep.mubr.bf16.mxu0 %v933
  %1075 = vmatmul.mubr.bf16.gmra.mxu0 %v932
  %v1076 = vpop.f32.mrf.mxu0
  %v1077 = vadd.f32 %v71, %v1076
  %v1078 = vpop.f32.mrf.mxu0
  %v1079 = vpop.f32.mrf.mxu0
  %v1080 = vadd.f32 %v76, %v1079
  %v1081 = vpop.f32.mrf.mxu0
  %1082 = vdwg.mxu0
  %v1083 = vsel %vm244, %v1069, 0.0
  %v1084 = vsel %vm244, %v1072, 0.0
  %v1085 = vsel %vm244, %v1077, 0.0
  %v1086 = vsel %vm244, %v1080, 0.0
  %v1087 = vsel %vm249, %v1069, 0.0
  %1088 = vadd.xlane.f32.xlu0 %v1087
  %v1089 = vpop.xlane.xlu0 %1088
  %v1090 = vsel %vm249, %v1072, 0.0
  %1091 = vadd.xlane.f32.xlu0 %v1090
  %v1092 = vpop.xlane.xlu0 %1091
  %v1093 = vsel %vm249, %v1077, 0.0
  %1094 = vadd.xlane.f32.xlu0 %v1093
  %v1095 = vpop.xlane.xlu0 %1094
  %v1096 = vsel %vm249, %v1080, 0.0
  %1097 = vadd.xlane.f32.xlu0 %v1096
  %v1098 = vpop.xlane.xlu0 %1097
  %v1099 = vadd.f32 %v820, %v1089
  %v1100 = vadd.f32 %v821, %v1092
  %v1101 = vadd.f32 %v822, %v1095
  %v1102 = vadd.f32 %v823, %v1098
  %v1103 = vmul.f32 %v1069, %v1069
  %v1104 = vmul.f32 %v1072, %v1072
  %v1105 = vmul.f32 %v1077, %v1077
  %v1106 = vmul.f32 %v1080, %v1080
  %v1107 = vsel %vm249, %v1103, 0.0
  %1108 = vadd.xlane.f32.xlu0 %v1107
  %v1109 = vpop.xlane.xlu0 %1108
  %v1110 = vsel %vm249, %v1104, 0.0
  %1111 = vadd.xlane.f32.xlu0 %v1110
  %v1112 = vpop.xlane.xlu0 %1111
  %v1113 = vsel %vm249, %v1105, 0.0
  %1114 = vadd.xlane.f32.xlu0 %v1113
  %v1115 = vpop.xlane.xlu0 %1114
  %v1116 = vsel %vm249, %v1106, 0.0
  %1117 = vadd.xlane.f32.xlu0 %v1116
  %v1118 = vpop.xlane.xlu0 %1117
  %v1119 = vadd.f32 %v840, %v1109
  %v1120 = vadd.f32 %v841, %v1112
  %v1121 = vadd.f32 %v842, %v1115
  %v1122 = vadd.f32 %v843, %v1118
  %v1123 = vsel %vm249, %v1083, 0.0
  %1124 = vadd.xlane.f32.xlu0 %v1123
  %v1125 = vpop.xlane.xlu0 %1124
  %v1126 = vsel %vm249, %v1084, 0.0
  %1127 = vadd.xlane.f32.xlu0 %v1126
  %v1128 = vpop.xlane.xlu0 %1127
  %v1129 = vsel %vm249, %v1085, 0.0
  %1130 = vadd.xlane.f32.xlu0 %v1129
  %v1131 = vpop.xlane.xlu0 %1130
  %v1132 = vsel %vm249, %v1086, 0.0
  %1133 = vadd.xlane.f32.xlu0 %v1132
  %v1134 = vpop.xlane.xlu0 %1133
  %v1135 = vadd.f32 %v856, %v1125
  %v1136 = vadd.f32 %v857, %v1128
  %v1137 = vadd.f32 %v858, %v1131
  %v1138 = vadd.f32 %v859, %v1134
  %v1139 = vmul.f32 %v1083, %v1083
  %v1140 = vmul.f32 %v1084, %v1084
  %v1141 = vmul.f32 %v1085, %v1085
  %v1142 = vmul.f32 %v1086, %v1086
  %v1143 = vsel %vm249, %v1139, 0.0
  %1144 = vadd.xlane.f32.xlu0 %v1143
  %v1145 = vpop.xlane.xlu0 %1144
  %v1146 = vsel %vm249, %v1140, 0.0
  %1147 = vadd.xlane.f32.xlu0 %v1146
  %v1148 = vpop.xlane.xlu0 %1147
  %v1149 = vsel %vm249, %v1141, 0.0
  %1150 = vadd.xlane.f32.xlu0 %v1149
  %v1151 = vpop.xlane.xlu0 %1150
  %v1152 = vsel %vm249, %v1142, 0.0
  %1153 = vadd.xlane.f32.xlu0 %v1152
  %v1154 = vpop.xlane.xlu0 %1153
  %v1155 = vadd.f32 %v876, %v1145
  %v1156 = vadd.f32 %v877, %v1148
  %v1157 = vadd.f32 %v878, %v1151
  %v1158 = vadd.f32 %v879, %v1154
  %v1159 = vmul.f32 %v1135, 0.0078125
  %v1160 = vmul.f32 %v1136, 0.0078125
  %v1161 = vmul.f32 %v1137, 0.0078125
  %v1162 = vmul.f32 %v1138, 0.0078125
  %v1163 = vmul.f32 %v1155, 0.0078125
  %v1164 = vmul.f32 %v1156, 0.0078125
  %v1165 = vmul.f32 %v1157, 0.0078125
  %v1166 = vmul.f32 %v1158, 0.0078125
  %v1167 = vsub.f32 %v1099, %v1135
  %v1168 = vsub.f32 %v1100, %v1136
  %v1169 = vsub.f32 %v1101, %v1137
  %v1170 = vsub.f32 %v1102, %v1138
  %v1171 = vmul.f32 %v1167, 0.0078125
  %v1172 = vmul.f32 %v1168, 0.0078125
  %v1173 = vmul.f32 %v1169, 0.0078125
  %v1174 = vmul.f32 %v1170, 0.0078125
  %v1175 = vsub.f32 %v1119, %v1155
  %v1176 = vsub.f32 %v1120, %v1156
  %v1177 = vsub.f32 %v1121, %v1157
  %v1178 = vsub.f32 %v1122, %v1158
  %v1179 = vmul.f32 %v1175, 0.0078125
  %v1180 = vmul.f32 %v1176, 0.0078125
  %v1181 = vmul.f32 %v1177, 0.0078125
  %v1182 = vmul.f32 %v1178, 0.0078125
  %v1183 = vmul.f32 %v1171, 0.33333334
  %v1184 = vmul.f32 %v1172, 0.33333334
  %v1185 = vmul.f32 %v1173, 0.33333334
  %v1186 = vmul.f32 %v1174, 0.33333334
  %v1187 = vmul.f32 %v1159, 0.6666667
  %v1188 = vmul.f32 %v1160, 0.6666667
  %v1189 = vmul.f32 %v1161, 0.6666667
  %v1190 = vmul.f32 %v1162, 0.6666667
  %v1191 = vadd.f32 %v1183, %v1187
  %v1192 = vadd.f32 %v1184, %v1188
  %v1193 = vadd.f32 %v1185, %v1189
  %v1194 = vadd.f32 %v1186, %v1190
  %v1195 = vmul.f32 %v1179, 0.33333334
  %v1196 = vmul.f32 %v1180, 0.33333334
  %v1197 = vmul.f32 %v1181, 0.33333334
  %v1198 = vmul.f32 %v1182, 0.33333334
  %v1199 = vmul.f32 %v1163, 0.6666667
  %v1200 = vmul.f32 %v1164, 0.6666667
  %v1201 = vmul.f32 %v1165, 0.6666667
  %v1202 = vmul.f32 %v1166, 0.6666667
  %v1203 = vadd.f32 %v1195, %v1199
  %v1204 = vadd.f32 %v1196, %v1200
  %v1205 = vadd.f32 %v1197, %v1201
  %v1206 = vadd.f32 %v1198, %v1202
  %v1207 = vmul.f32 %v1159, %v1159
  %v1208 = vmul.f32 %v1160, %v1160
  %v1209 = vmul.f32 %v1161, %v1161
  %v1210 = vmul.f32 %v1162, %v1162
  %v1211 = vsub.f32 %v1163, %v1207
  %v1212 = vsub.f32 %v1164, %v1208
  %v1213 = vsub.f32 %v1165, %v1209
  %v1214 = vsub.f32 %v1166, %v1210
  %v1215 = vadd.f32 %v1211, 1e-05
  %v1216 = vadd.f32 %v1212, 1e-05
  %v1217 = vadd.f32 %v1213, 1e-05
  %v1218 = vadd.f32 %v1214, 1e-05
  %v1219 = vrsqrt.pop %v1215
  %v1220 = vrsqrt.pop %v1216
  %v1221 = vrsqrt.pop %v1217
  %v1222 = vrsqrt.pop %v1218
  %v1223 = vmul.f32 %v1219, %v15
  %v1224 = vmul.f32 %v1220, %v16
  %v1225 = vmul.f32 %v1221, %v17
  %v1226 = vmul.f32 %v1222, %v18
  %v1227 = vmul.f32 %v1191, %v1191
  %v1228 = vmul.f32 %v1192, %v1192
  %v1229 = vmul.f32 %v1193, %v1193
  %v1230 = vmul.f32 %v1194, %v1194
  %v1231 = vsub.f32 %v1203, %v1227
  %v1232 = vsub.f32 %v1204, %v1228
  %v1233 = vsub.f32 %v1205, %v1229
  %v1234 = vsub.f32 %v1206, %v1230
  %v1235 = vadd.f32 %v1231, 1e-05
  %v1236 = vadd.f32 %v1232, 1e-05
  %v1237 = vadd.f32 %v1233, 1e-05
  %v1238 = vadd.f32 %v1234, 1e-05
  %v1239 = vrsqrt.pop %v1235
  %v1240 = vrsqrt.pop %v1236
  %v1241 = vrsqrt.pop %v1237
  %v1242 = vrsqrt.pop %v1238
  %v1243 = vmul.f32 %v1239, %v15
  %v1244 = vmul.f32 %v1240, %v16
  %v1245 = vmul.f32 %v1241, %v17
  %v1246 = vmul.f32 %v1242, %v18
  %v1247 = vmul.f32 %v1159, %v1223
  %v1248 = vmul.f32 %v1160, %v1224
  %v1249 = vmul.f32 %v1161, %v1225
  %v1250 = vmul.f32 %v1162, %v1226
  %1255 = vrot.lane.b32.xlu0 %v1247, 1
  %v1256 = vpop.permute.xlu0 %1255
  %1257 = vrot.lane.b32.xlu0 %v1248, 1
  %v1258 = vpop.permute.xlu0 %1257
  %1259 = vrot.lane.b32.xlu0 %v1249, 1
  %v1260 = vpop.permute.xlu0 %1259
  %1261 = vrot.lane.b32.xlu0 %v1250, 1
  %v1262 = vpop.permute.xlu0 %1261
  %v1267 = vsub.f32 %v15, %v1256
  %v1268 = vsub.f32 %v16, %v1258
  %v1269 = vsub.f32 %v17, %v1260
  %v1270 = vsub.f32 %v18, %v1262
  %v1271 = vmul.f32 %v1191, %v1243
  %v1272 = vmul.f32 %v1192, %v1244
  %v1273 = vmul.f32 %v1193, %v1245
  %v1274 = vmul.f32 %v1194, %v1246
  %1279 = vrot.lane.b32.xlu0 %v1271, 1
  %v1280 = vpop.permute.xlu0 %1279
  %1281 = vrot.lane.b32.xlu0 %v1272, 1
  %v1282 = vpop.permute.xlu0 %1281
  %1283 = vrot.lane.b32.xlu0 %v1273, 1
  %v1284 = vpop.permute.xlu0 %1283
  %1285 = vrot.lane.b32.xlu0 %v1274, 1
  %v1286 = vpop.permute.xlu0 %1285
  %v1291 = vsub.f32 %v15, %v1280
  %v1292 = vsub.f32 %v16, %v1282
  %v1293 = vsub.f32 %v17, %v1284
  %v1294 = vsub.f32 %v18, %v1286
  %1296 = vset.pattern.permute.xlu0 1
  %1297 = vperm.xlu0 %1296, %v1223
  %v1298 = vpop.permute.xlu0 %1297
  %1301 = vset.pattern.permute.xlu0 1
  %1302 = vperm.xlu0 %1301, %v1224
  %v1303 = vpop.permute.xlu0 %1302
  %1306 = vset.pattern.permute.xlu0 1
  %1307 = vperm.xlu0 %1306, %v1225
  %v1308 = vpop.permute.xlu0 %1307
  %1311 = vset.pattern.permute.xlu0 1
  %1312 = vperm.xlu0 %1311, %v1226
  %v1313 = vpop.permute.xlu0 %1312
  %1316 = vset.pattern.permute.xlu0 1
  %1317 = vperm.xlu0 %1316, %v1243
  %v1318 = vpop.permute.xlu0 %1317
  %1321 = vset.pattern.permute.xlu0 1
  %1322 = vperm.xlu0 %1321, %v1244
  %v1323 = vpop.permute.xlu0 %1322
  %1326 = vset.pattern.permute.xlu0 1
  %1327 = vperm.xlu0 %1326, %v1245
  %v1328 = vpop.permute.xlu0 %1327
  %1331 = vset.pattern.permute.xlu0 1
  %1332 = vperm.xlu0 %1331, %v1246
  %v1333 = vpop.permute.xlu0 %1332
  %v1335 = vsel %vm244, %v1298, %v1318
  %v1336 = vsel %vm244, %v1303, %v1323
  %v1337 = vsel %vm244, %v1308, %v1328
  %v1338 = vsel %vm244, %v1313, %v1333
  %1340 = vset.pattern.permute.xlu0 2
  %1341 = vperm.xlu0 %1340, %v1267
  %v1342 = vpop.permute.xlu0 %1341
  %1345 = vset.pattern.permute.xlu0 2
  %1346 = vperm.xlu0 %1345, %v1268
  %v1347 = vpop.permute.xlu0 %1346
  %1350 = vset.pattern.permute.xlu0 2
  %1351 = vperm.xlu0 %1350, %v1269
  %v1352 = vpop.permute.xlu0 %1351
  %1355 = vset.pattern.permute.xlu0 2
  %1356 = vperm.xlu0 %1355, %v1270
  %v1357 = vpop.permute.xlu0 %1356
  %1360 = vset.pattern.permute.xlu0 2
  %1361 = vperm.xlu0 %1360, %v1291
  %v1362 = vpop.permute.xlu0 %1361
  %1365 = vset.pattern.permute.xlu0 2
  %1366 = vperm.xlu0 %1365, %v1292
  %v1367 = vpop.permute.xlu0 %1366
  %1370 = vset.pattern.permute.xlu0 2
  %1371 = vperm.xlu0 %1370, %v1293
  %v1372 = vpop.permute.xlu0 %1371
  %1375 = vset.pattern.permute.xlu0 2
  %1376 = vperm.xlu0 %1375, %v1294
  %v1377 = vpop.permute.xlu0 %1376
  %v1379 = vsel %vm244, %v1342, %v1362
  %v1380 = vsel %vm244, %v1347, %v1367
  %v1381 = vsel %vm244, %v1352, %v1372
  %v1382 = vsel %vm244, %v1357, %v1377
  %v1383 = vmul.f32 %v229, %v1335
  %v1384 = vmul.f32 %v232, %v1336
  %v1385 = vmul.f32 %v237, %v1337
  %v1386 = vmul.f32 %v240, %v1338
  %v1387 = vadd.f32 %v1383, %v1379
  %v1388 = vadd.f32 %v1384, %v1380
  %v1389 = vadd.f32 %v1385, %v1381
  %v1390 = vadd.f32 %v1386, %v1382
  %vm1391 = vcmp.ge.f32.partialorder %v1387, 0.0
  %vm1392 = vcmp.ge.f32.partialorder %v1388, 0.0
  %vm1393 = vcmp.ge.f32.partialorder %v1389, 0.0
  %vm1394 = vcmp.ge.f32.partialorder %v1390, 0.0
  %v1395 = vmul.f32 %v1387, 0.2
  %v1396 = vmul.f32 %v1388, 0.2
  %v1397 = vmul.f32 %v1389, 0.2
  %v1398 = vmul.f32 %v1390, 0.2
  %v1399 = vsel %vm1391, %v1387, %v1395
  %v1400 = vsel %vm1392, %v1388, %v1396
  %v1401 = vsel %vm1393, %v1389, %v1397
  %v1402 = vsel %vm1394, %v1390, %v1398
  %v1403 = vpack.c.bf16 %v1400, %v1399
  %v1404 = vpack.c.bf16 %v1402, %v1401
  %v1407 = vunpack.c.l.b16 %v1403
  %v1408 = vunpack.c.h.b16 %v1403
  %v1409 = vunpack.c.l.b16 %v1404
  %v1410 = vunpack.c.h.b16 %v1404
  %v1411 = vpack.c.b16 %v1407, %v1407
  %v1412 = vpack.c.b16 %v1408, %v1408
  %v1413 = vpack.c.b16 %v1409, %v1409
  %v1414 = vpack.c.b16 %v1410, %v1410
  %vm1419 = vcmask 519168
  %1420 = vst.msk [vmem:[%s3] sm:$0xf] %vm1419, %v1411
  %1421 = vst.msk [vmem:[%s3 + $0x4] sm:$0xf] %vm1419, %v1412
  %1422 = vst.msk [vmem:[%s3 + $0x8] sm:$0xf] %vm1419, %v1413
  %1423 = vst.msk [vmem:[%s3 + $0xc] sm:$0xf] %vm1419, %v1414
  %v1424 = vmul.f32 %v511, %v1335
  %v1425 = vmul.f32 %v514, %v1336
  %v1426 = vmul.f32 %v519, %v1337
  %v1427 = vmul.f32 %v522, %v1338
  %v1428 = vadd.f32 %v1424, %v1379
  %v1429 = vadd.f32 %v1425, %v1380
  %v1430 = vadd.f32 %v1426, %v1381
  %v1431 = vadd.f32 %v1427, %v1382
  %vm1432 = vcmp.ge.f32.partialorder %v1428, 0.0
  %vm1433 = vcmp.ge.f32.partialorder %v1429, 0.0
  %vm1434 = vcmp.ge.f32.partialorder %v1430, 0.0
  %vm1435 = vcmp.ge.f32.partialorder %v1431, 0.0
  %v1436 = vmul.f32 %v1428, 0.2
  %v1437 = vmul.f32 %v1429, 0.2
  %v1438 = vmul.f32 %v1430, 0.2
  %v1439 = vmul.f32 %v1431, 0.2
  %v1440 = vsel %vm1432, %v1428, %v1436
  %v1441 = vsel %vm1433, %v1429, %v1437
  %v1442 = vsel %vm1434, %v1430, %v1438
  %v1443 = vsel %vm1435, %v1431, %v1439
  %v1444 = vpack.c.bf16 %v1441, %v1440
  %v1445 = vpack.c.bf16 %v1443, %v1442
  %v1448 = vunpack.c.l.b16 %v1444
  %v1449 = vunpack.c.h.b16 %v1444
  %v1450 = vunpack.c.l.b16 %v1445
  %v1451 = vunpack.c.h.b16 %v1445
  %v1452 = vpack.c.b16 %v1448, %v1448
  %v1453 = vpack.c.b16 %v1449, %v1449
  %v1454 = vpack.c.b16 %v1450, %v1450
  %v1455 = vpack.c.b16 %v1451, %v1451
  %s1460 = scalar_lea.vmem %s3, 16
  %1461 = vst.msk [vmem:[%s1460] sm:$0xf] %vm1419, %v1452
  %1462 = vst.msk [vmem:[%s1460 + $0x4] sm:$0xf] %vm1419, %v1453
  %1463 = vst.msk [vmem:[%s1460 + $0x8] sm:$0xf] %vm1419, %v1454
  %1464 = vst.msk [vmem:[%s1460 + $0xc] sm:$0xf] %vm1419, %v1455
  %v1465 = vmul.f32 %v790, %v1335
  %v1466 = vmul.f32 %v793, %v1336
  %v1467 = vmul.f32 %v798, %v1337
  %v1468 = vmul.f32 %v801, %v1338
  %v1469 = vadd.f32 %v1465, %v1379
  %v1470 = vadd.f32 %v1466, %v1380
  %v1471 = vadd.f32 %v1467, %v1381
  %v1472 = vadd.f32 %v1468, %v1382
  %vm1473 = vcmp.ge.f32.partialorder %v1469, 0.0
  %vm1474 = vcmp.ge.f32.partialorder %v1470, 0.0
  %vm1475 = vcmp.ge.f32.partialorder %v1471, 0.0
  %vm1476 = vcmp.ge.f32.partialorder %v1472, 0.0
  %v1477 = vmul.f32 %v1469, 0.2
  %v1478 = vmul.f32 %v1470, 0.2
  %v1479 = vmul.f32 %v1471, 0.2
  %v1480 = vmul.f32 %v1472, 0.2
  %v1481 = vsel %vm1473, %v1469, %v1477
  %v1482 = vsel %vm1474, %v1470, %v1478
  %v1483 = vsel %vm1475, %v1471, %v1479
  %v1484 = vsel %vm1476, %v1472, %v1480
  %v1485 = vpack.c.bf16 %v1482, %v1481
  %v1486 = vpack.c.bf16 %v1484, %v1483
  %v1489 = vunpack.c.l.b16 %v1485
  %v1490 = vunpack.c.h.b16 %v1485
  %v1491 = vunpack.c.l.b16 %v1486
  %v1492 = vunpack.c.h.b16 %v1486
  %v1493 = vpack.c.b16 %v1489, %v1489
  %v1494 = vpack.c.b16 %v1490, %v1490
  %v1495 = vpack.c.b16 %v1491, %v1491
  %v1496 = vpack.c.b16 %v1492, %v1492
  %s1501 = scalar_lea.vmem %s3, 32
  %1502 = vst.msk [vmem:[%s1501] sm:$0xf] %vm1419, %v1493
  %1503 = vst.msk [vmem:[%s1501 + $0x4] sm:$0xf] %vm1419, %v1494
  %1504 = vst.msk [vmem:[%s1501 + $0x8] sm:$0xf] %vm1419, %v1495
  %1505 = vst.msk [vmem:[%s1501 + $0xc] sm:$0xf] %vm1419, %v1496
  %v1506 = vmul.f32 %v1069, %v1335
  %v1507 = vmul.f32 %v1072, %v1336
  %v1508 = vmul.f32 %v1077, %v1337
  %v1509 = vmul.f32 %v1080, %v1338
  %v1510 = vadd.f32 %v1506, %v1379
  %v1511 = vadd.f32 %v1507, %v1380
  %v1512 = vadd.f32 %v1508, %v1381
  %v1513 = vadd.f32 %v1509, %v1382
  %vm1514 = vcmp.ge.f32.partialorder %v1510, 0.0
  %vm1515 = vcmp.ge.f32.partialorder %v1511, 0.0
  %vm1516 = vcmp.ge.f32.partialorder %v1512, 0.0
  %vm1517 = vcmp.ge.f32.partialorder %v1513, 0.0
  %v1518 = vmul.f32 %v1510, 0.2
  %v1519 = vmul.f32 %v1511, 0.2
  %v1520 = vmul.f32 %v1512, 0.2
  %v1521 = vmul.f32 %v1513, 0.2
  %v1522 = vsel %vm1514, %v1510, %v1518
  %v1523 = vsel %vm1515, %v1511, %v1519
  %v1524 = vsel %vm1516, %v1512, %v1520
  %v1525 = vsel %vm1517, %v1513, %v1521
  %v1526 = vpack.c.bf16 %v1523, %v1522
  %v1527 = vpack.c.bf16 %v1525, %v1524
  %v1530 = vunpack.c.l.b16 %v1526
  %v1531 = vunpack.c.h.b16 %v1526
  %v1532 = vunpack.c.l.b16 %v1527
  %v1533 = vunpack.c.h.b16 %v1527
  %v1534 = vpack.c.b16 %v1530, %v1530
  %v1535 = vpack.c.b16 %v1531, %v1531
  %v1536 = vpack.c.b16 %v1532, %v1532
  %v1537 = vpack.c.b16 %v1533, %v1533
  %s1542 = scalar_lea.vmem %s3, 48
  %1543 = vst.msk [vmem:[%s1542] sm:$0xf] %vm1419, %v1534
  %1544 = vst.msk [vmem:[%s1542 + $0x4] sm:$0xf] %vm1419, %v1535
  %1545 = vst.msk [vmem:[%s1542 + $0x8] sm:$0xf] %vm1419, %v1536
  %1546 = vst.msk [vmem:[%s1542 + $0xc] sm:$0xf] %vm1419, %v1537
  // Predicated region
  $region14: #{generator_forward.8} parent=0 // pred_check
    _
  $region15: #{generator_forward.8} parent=0 // pred_check_branch
    %1548 = sbr.rel (0) target = $region17
  $region16: #{generator_forward.8} parent=0 // pred_region
    _
  $region17: #{generator_forward.8} parent=0 // pred_fallthru
    _
  // Predicated region
  $region18: #{generator_forward.8} parent=0 // pred_check
    _
  $region19: #{generator_forward.8} parent=0 // pred_check_branch
    %1550 = sbr.rel (0) target = $region21
  $region20: #{generator_forward.8} parent=0 // pred_region
    _
  $region21: #{generator_forward.8} parent=0 // pred_fallthru
    _

// kernel: generator_forward.9
$region0: #{generator_forward.9}
  #allocation0 [shape = 'u32[]', space=smem, size = 0x4, offset = 0x4, fixed_abs, tag = 'smem constant byte address 0x4 - core index']
  #allocation1 [shape = 'u32[144,128]{1,0:T(1,128)}', space=vmem, size = 0x12000, scoped, tag = 'internal scratch']
  %s0 = inlined_call_operand.vmem [shape: bf16[4,16,128], index: 0, kind: input, shape index: {}]
  %s1 = inlined_call_operand.vmem [shape: bf16[4,128,256], index: 1, kind: input, shape index: {}]
  %s2 = inlined_call_operand.vmem [shape: f32[16,8], index: 2, kind: input, shape index: {}]
  %s3 = inlined_call_operand.vmem [shape: bf16[4,16,256], index: 3, kind: output, shape index: {}]
  %s4 = sld [smem:[#allocation0]]
  $region22: #{generator_forward.9} parent=0
    _
  %s6 = ssub.s32 1, %s4
  %s7 = scalar_select 0, %s6, %s4
  // Predicated region
  $region2: #{generator_forward.9} parent=0 // pred_check
    _
  $region3: #{generator_forward.9} parent=0 // pred_check_branch
    %9 = sbr.rel (0) target = $region5
  $region4: #{generator_forward.9} parent=0 // pred_region
    _
  $region5: #{generator_forward.9} parent=0 // pred_fallthru
    _
  // Predicated region
  $region6: #{generator_forward.9} parent=0 // pred_check
    _
  $region7: #{generator_forward.9} parent=0 // pred_check_branch
    %11 = sbr.rel (0) target = $region9
  $region8: #{generator_forward.9} parent=0 // pred_region
    _
  $region9: #{generator_forward.9} parent=0 // pred_fallthru
    _
  // Predicated region
  $region10: #{generator_forward.9} parent=0 // pred_check
    _
  $region11: #{generator_forward.9} parent=0 // pred_check_branch
    %13 = sbr.rel (0) target = $region13
  $region12: #{generator_forward.9} parent=0 // pred_region
    _
  $region13: #{generator_forward.9} parent=0 // pred_fallthru
    _
  %v15 = vld [vmem:[%s2] sm:$0xff]
  %v16 = vld [vmem:[%s2 + $0x8] sm:$0xff]
  %v17 = vlaneseq
  %v18 = vand.u32 %v17, 127
  %v19 = vadd.s32 %v18, 128
  %vm20 = vcmp.lt.s32.totalorder %v18, 128
  %vm21 = vcmp.lt.s32.totalorder %v19, 128
  %v22 = vld [vmem:[%s0] sm:$0xf]
  %v23 = vld [vmem:[%s0 + $0x4] sm:$0xf]
  %v24 = vld [vmem:[%s1] sm:$0xff]
  %v25 = vld [vmem:[%s1 + $0x8] sm:$0xff]
  %v26 = vld [vmem:[%s1 + $0x10] sm:$0xff]
  %v27 = vld [vmem:[%s1 + $0x18] sm:$0xff]
  %v28 = vld [vmem:[%s1 + $0x20] sm:$0xff]
  %v29 = vld [vmem:[%s1 + $0x28] sm:$0xff]
  %v30 = vld [vmem:[%s1 + $0x30] sm:$0xff]
  %v31 = vld [vmem:[%s1 + $0x38] sm:$0xff]
  %v32 = vld [vmem:[%s1 + $0x40] sm:$0xff]
  %v33 = vld [vmem:[%s1 + $0x48] sm:$0xff]
  %v34 = vld [vmem:[%s1 + $0x50] sm:$0xff]
  %v35 = vld [vmem:[%s1 + $0x58] sm:$0xff]
  %v36 = vld [vmem:[%s1 + $0x60] sm:$0xff]
  %v37 = vld [vmem:[%s1 + $0x68] sm:$0xff]
  %v38 = vld [vmem:[%s1 + $0x70] sm:$0xff]
  %v39 = vld [vmem:[%s1 + $0x78] sm:$0xff]
  %41 = vset.pattern.permute.xlu0 0
  %42 = vperm.xlu0 %41, %v15
  %v43 = vpop.permute.xlu0 %42
  %46 = vset.pattern.permute.xlu0 0
  %47 = vperm.xlu0 %46, %v16
  %v48 = vpop.permute.xlu0 %47
  %v52 = vunpack.c.l.b16 %v22
  %v53 = vunpack.c.l.b16 %v23
  %v54 = vpack.c.b16 %v53, %v52
  %v72 = vunpack.c.l.b16 %v24
  %v73 = vunpack.c.h.b16 %v24
  %v74 = vunpack.c.l.b16 %v25
  %v75 = vunpack.c.h.b16 %v25
  %v76 = vunpack.c.l.b16 %v26
  %v77 = vunpack.c.h.b16 %v26
  %v78 = vunpack.c.l.b16 %v27
  %v79 = vunpack.c.h.b16 %v27
  %v80 = vunpack.c.l.b16 %v28
  %v81 = vunpack.c.h.b16 %v28
  %v82 = vunpack.c.l.b16 %v29
  %v83 = vunpack.c.h.b16 %v29
  %v84 = vunpack.c.l.b16 %v30
  %v85 = vunpack.c.h.b16 %v30
  %v86 = vunpack.c.l.b16 %v31
  %v87 = vunpack.c.h.b16 %v31
  %v88 = vunpack.c.l.b16 %v32
  %v89 = vunpack.c.h.b16 %v32
  %v90 = vunpack.c.l.b16 %v33
  %v91 = vunpack.c.h.b16 %v33
  %v92 = vunpack.c.l.b16 %v34
  %v93 = vunpack.c.h.b16 %v34
  %v94 = vunpack.c.l.b16 %v35
  %v95 = vunpack.c.h.b16 %v35
  %v96 = vunpack.c.l.b16 %v36
  %v97 = vunpack.c.h.b16 %v36
  %v98 = vunpack.c.l.b16 %v37
  %v99 = vunpack.c.h.b16 %v37
  %v100 = vunpack.c.l.b16 %v38
  %v101 = vunpack.c.h.b16 %v38
  %v102 = vunpack.c.l.b16 %v39
  %v103 = vunpack.c.h.b16 %v39
  %v104 = vpack.c.b16 %v74, %v72
  %v105 = vpack.c.b16 %v75, %v73
  %v106 = vpack.c.b16 %v78, %v76
  %v107 = vpack.c.b16 %v79, %v77
  %v108 = vpack.c.b16 %v82, %v80
  %v109 = vpack.c.b16 %v83, %v81
  %v110 = vpack.c.b16 %v86, %v84
  %v111 = vpack.c.b16 %v87, %v85
  %v112 = vpack.c.b16 %v90, %v88
  %v113 = vpack.c.b16 %v91, %v89
  %v114 = vpack.c.b16 %v94, %v92
  %v115 = vpack.c.b16 %v95, %v93
  %v116 = vpack.c.b16 %v98, %v96
  %v117 = vpack.c.b16 %v99, %v97
  %v118 = vpack.c.b16 %v102, %v100
  %v119 = vpack.c.b16 %v103, %v101
  %136 = vmatprep.subr.bf16.mxu0 %v119
  %137 = vmatpush1.bf16.msra.mxu0 %v118
  %138 = vmatprep.subr.bf16.mxu0 %v117
  %139 = vmatpush1.bf16.msra.mxu0 %v116
  %140 = vmatprep.subr.bf16.mxu0 %v115
  %141 = vmatpush1.bf16.msra.mxu0 %v114
  %142 = vmatprep.subr.bf16.mxu0 %v113
  %143 = vmatpush1.bf16.msra.mxu0 %v112
  %144 = vmatprep.subr.bf16.mxu0 %v111
  %145 = vmatpush1.bf16.msra.mxu0 %v110
  %146 = vmatprep.subr.bf16.mxu0 %v109
  %147 = vmatpush1.bf16.msra.mxu0 %v108
  %148 = vmatprep.subr.bf16.mxu0 %v107
  %149 = vmatpush1.bf16.msra.mxu0 %v106
  %150 = vmatprep.subr.bf16.mxu0 %v105
  %151 = vmatpush1.bf16.msra.mxu0 %v104
  %152 = vmatprep.subr.bf16.mxu0 0
  %153 = vmatpush2.bf16.msra.mxu0 0
  %154 = vmatprep.subr.bf16.mxu0 0
  %155 = vmatpush2.bf16.msra.mxu0 0
  %156 = vmatprep.subr.bf16.mxu0 0
  %157 = vmatpush2.bf16.msra.mxu0 0
  %158 = vmatprep.subr.bf16.mxu0 0
  %159 = vmatpush2.bf16.msra.mxu0 0
  %160 = vmatprep.subr.bf16.mxu0 0
  %161 = vmatpush2.bf16.msra.mxu0 0
  %162 = vmatprep.subr.bf16.mxu0 0
  %163 = vmatpush2.bf16.msra.mxu0 0
  %164 = vmatprep.subr.bf16.mxu0 0
  %165 = vmatpush2.bf16.msra.mxu0 0
  %166 = vmatprep.subr.bf16.mxu0 0
  %167 = vmatpush2.bf16.msra.mxu0 0
  %168 = vmatprep.mubr.bf16.mxu0 0
  %169 = vmatmul.mubr.bf16.gmra.mxu0 %v54
  %v170 = vpop.f32.mrf.mxu0
  %v171 = vadd.f32 %v43, %v170
  %v172 = vpop.f32.mrf.mxu0
  %v173 = vadd.f32 %v43, %v172
  %v174 = vpop.f32.mrf.mxu0
  %v175 = vadd.f32 %v48, %v174
  %v176 = vpop.f32.mrf.mxu0
  %v177 = vadd.f32 %v48, %v176
  %178 = vdwg.mxu0
  %v179 = vsel %vm20, 1, 0
  %v180 = vsel %vm21, 1, 0
  %vm181 = vcmp.eq.s32.totalorder %v179, 1
  %vm182 = vcmp.eq.s32.totalorder %v180, 1
  %v183 = vsel %vm181, %v171, 0.0
  %v184 = vsel %vm182, %v173, 0.0
  %v185 = vsel %vm181, %v175, 0.0
  %v186 = vsel %vm182, %v177, 0.0
  %v187 = vadd.f32 %v171, %v173
  %188 = vadd.xlane.f32.xlu0 %v187
  %v189 = vpop.xlane.xlu0 %188
  %v190 = vadd.f32 %v175, %v177
  %191 = vadd.xlane.f32.xlu0 %v190
  %v192 = vpop.xlane.xlu0 %191
  %v193 = vadd.f32 %v189, 0.0
  %v194 = vadd.f32 %v192, 0.0
  %v195 = vmul.f32 %v171, %v171
  %v196 = vmul.f32 %v173, %v173
  %v197 = vmul.f32 %v175, %v175
  %v198 = vmul.f32 %v177, %v177
  %v199 = vadd.f32 %v195, %v196
  %200 = vadd.xlane.f32.xlu0 %v199
  %v201 = vpop.xlane.xlu0 %200
  %v202 = vadd.f32 %v197, %v198
  %203 = vadd.xlane.f32.xlu0 %v202
  %v204 = vpop.xlane.xlu0 %203
  %v205 = vadd.f32 %v201, 0.0
  %v206 = vadd.f32 %v204, 0.0
  %v207 = vadd.f32 %v183, %v184
  %208 = vadd.xlane.f32.xlu0 %v207
  %v209 = vpop.xlane.xlu0 %208
  %v210 = vadd.f32 %v185, %v186
  %211 = vadd.xlane.f32.xlu0 %v210
  %v212 = vpop.xlane.xlu0 %211
  %v213 = vadd.f32 %v209, 0.0
  %v214 = vadd.f32 %v212, 0.0
  %v215 = vmul.f32 %v183, %v183
  %v216 = vmul.f32 %v184, %v184
  %v217 = vmul.f32 %v185, %v185
  %v218 = vmul.f32 %v186, %v186
  %v219 = vadd.f32 %v215, %v216
  %220 = vadd.xlane.f32.xlu0 %v219
  %v221 = vpop.xlane.xlu0 %220
  %v222 = vadd.f32 %v217, %v218
  %223 = vadd.xlane.f32.xlu0 %v222
  %v224 = vpop.xlane.xlu0 %223
  %v225 = vadd.f32 %v221, 0.0
  %v226 = vadd.f32 %v224, 0.0
  %s227 = scalar_lea.vmem %s0, 8
  %v228 = vld [vmem:[%s227] sm:$0xf]
  %v229 = vld [vmem:[%s227 + $0x4] sm:$0xf]
  %s230 = scalar_lea.vmem %s1, 128
  %v231 = vld [vmem:[%s230] sm:$0xff]
  %v232 = vld [vmem:[%s230 + $0x8] sm:$0xff]
  %v233 = vld [vmem:[%s230 + $0x10] sm:$0xff]
  %v234 = vld [vmem:[%s230 + $0x18] sm:$0xff]
  %v235 = vld [vmem:[%s230 + $0x20] sm:$0xff]
  %v236 = vld [vmem:[%s230 + $0x28] sm:$0xff]
  %v237 = vld [vmem:[%s230 + $0x30] sm:$0xff]
  %v238 = vld [vmem:[%s230 + $0x38] sm:$0xff]
  %v239 = vld [vmem:[%s230 + $0x40] sm:$0xff]
  %v240 = vld [vmem:[%s230 + $0x48] sm:$0xff]
  %v241 = vld [vmem:[%s230 + $0x50] sm:$0xff]
  %v242 = vld [vmem:[%s230 + $0x58] sm:$0xff]
  %v243 = vld [vmem:[%s230 + $0x60] sm:$0xff]
  %v244 = vld [vmem:[%s230 + $0x68] sm:$0xff]
  %v245 = vld [vmem:[%s230 + $0x70] sm:$0xff]
  %v246 = vld [vmem:[%s230 + $0x78] sm:$0xff]
  %v249 = vunpack.c.l.b16 %v228
  %v250 = vunpack.c.l.b16 %v229
  %v251 = vpack.c.b16 %v250, %v249
  %v269 = vunpack.c.l.b16 %v231
  %v270 = vunpack.c.h.b16 %v231
  %v271 = vunpack.c.l.b16 %v232
  %v272 = vunpack.c.h.b16 %v232
  %v273 = vunpack.c.l.b16 %v233
  %v274 = vunpack.c.h.b16 %v233
  %v275 = vunpack.c.l.b16 %v234
  %v276 = vunpack.c.h.b16 %v234
  %v277 = vunpack.c.l.b16 %v235
  %v278 = vunpack.c.h.b16 %v235
  %v279 = vunpack.c.l.b16 %v236
  %v280 = vunpack.c.h.b16 %v236
  %v281 = vunpack.c.l.b16 %v237
  %v282 = vunpack.c.h.b16 %v237
  %v283 = vunpack.c.l.b16 %v238
  %v284 = vunpack.c.h.b16 %v238
  %v285 = vunpack.c.l.b16 %v239
  %v286 = vunpack.c.h.b16 %v239
  %v287 = vunpack.c.l.b16 %v240
  %v288 = vunpack.c.h.b16 %v240
  %v289 = vunpack.c.l.b16 %v241
  %v290 = vunpack.c.h.b16 %v241
  %v291 = vunpack.c.l.b16 %v242
  %v292 = vunpack.c.h.b16 %v242
  %v293 = vunpack.c.l.b16 %v243
  %v294 = vunpack.c.h.b16 %v243
  %v295 = vunpack.c.l.b16 %v244
  %v296 = vunpack.c.h.b16 %v244
  %v297 = vunpack.c.l.b16 %v245
  %v298 = vunpack.c.h.b16 %v245
  %v299 = vunpack.c.l.b16 %v246
  %v300 = vunpack.c.h.b16 %v246
  %v301 = vpack.c.b16 %v271, %v269
  %v302 = vpack.c.b16 %v272, %v270
  %v303 = vpack.c.b16 %v275, %v273
  %v304 = vpack.c.b16 %v276, %v274
  %v305 = vpack.c.b16 %v279, %v277
  %v306 = vpack.c.b16 %v280, %v278
  %v307 = vpack.c.b16 %v283, %v281
  %v308 = vpack.c.b16 %v284, %v282
  %v309 = vpack.c.b16 %v287, %v285
  %v310 = vpack.c.b16 %v288, %v286
  %v311 = vpack.c.b16 %v291, %v289
  %v312 = vpack.c.b16 %v292, %v290
  %v313 = vpack.c.b16 %v295, %v293
  %v314 = vpack.c.b16 %v296, %v294
  %v315 = vpack.c.b16 %v299, %v297
  %v316 = vpack.c.b16 %v300, %v298
  %333 = vmatprep.subr.bf16.mxu0 %v316
  %334 = vmatpush1.bf16.msra.mxu0 %v315
  %335 = vmatprep.subr.bf16.mxu0 %v314
  %336 = vmatpush1.bf16.msra.mxu0 %v313
  %337 = vmatprep.subr.bf16.mxu0 %v312
  %338 = vmatpush1.bf16.msra.mxu0 %v311
  %339 = vmatprep.subr.bf16.mxu0 %v310
  %340 = vmatpush1.bf16.msra.mxu0 %v309
  %341 = vmatprep.subr.bf16.mxu0 %v308
  %342 = vmatpush1.bf16.msra.mxu0 %v307
  %343 = vmatprep.subr.bf16.mxu0 %v306
  %344 = vmatpush1.bf16.msra.mxu0 %v305
  %345 = vmatprep.subr.bf16.mxu0 %v304
  %346 = vmatpush1.bf16.msra.mxu0 %v303
  %347 = vmatprep.subr.bf16.mxu0 %v302
  %348 = vmatpush1.bf16.msra.mxu0 %v301
  %349 = vmatprep.subr.bf16.mxu0 0
  %350 = vmatpush2.bf16.msra.mxu0 0
  %351 = vmatprep.subr.bf16.mxu0 0
  %352 = vmatpush2.bf16.msra.mxu0 0
  %353 = vmatprep.subr.bf16.mxu0 0
  %354 = vmatpush2.bf16.msra.mxu0 0
  %355 = vmatprep.subr.bf16.mxu0 0
  %356 = vmatpush2.bf16.msra.mxu0 0
  %357 = vmatprep.subr.bf16.mxu0 0
  %358 = vmatpush2.bf16.msra.mxu0 0
  %359 = vmatprep.subr.bf16.mxu0 0
  %360 = vmatpush2.bf16.msra.mxu0 0
  %361 = vmatprep.subr.bf16.mxu0 0
  %362 = vmatpush2.bf16.msra.mxu0 0
  %363 = vmatprep.subr.bf16.mxu0 0
  %364 = vmatpush2.bf16.msra.mxu0 0
  %365 = vmatprep.mubr.bf16.mxu0 0
  %366 = vmatmul.mubr.bf16.gmra.mxu0 %v251
  %v367 = vpop.f32.mrf.mxu0
  %v368 = vadd.f32 %v43, %v367
  %v369 = vpop.f32.mrf.mxu0
  %v370 = vadd.f32 %v43, %v369
  %v371 = vpop.f32.mrf.mxu0
  %v372 = vadd.f32 %v48, %v371
  %v373 = vpop.f32.mrf.mxu0
  %v374 = vadd.f32 %v48, %v373
  %375 = vdwg.mxu0
  %v376 = vsel %vm181, %v368, 0.0
  %v377 = vsel %vm182, %v370, 0.0
  %v378 = vsel %vm181, %v372, 0.0
  %v379 = vsel %vm182, %v374, 0.0
  %v380 = vadd.f32 %v368, %v370
  %381 = vadd.xlane.f32.xlu0 %v380
  %v382 = vpop.xlane.xlu0 %381
  %v383 = vadd.f32 %v372, %v374
  %384 = vadd.xlane.f32.xlu0 %v383
  %v385 = vpop.xlane.xlu0 %384
  %v386 = vadd.f32 %v193, %v382
  %v387 = vadd.f32 %v194, %v385
  %v388 = vmul.f32 %v368, %v368
  %v389 = vmul.f32 %v370, %v370
  %v390 = vmul.f32 %v372, %v372
  %v391 = vmul.f32 %v374, %v374
  %v392 = vadd.f32 %v388, %v389
  %393 = vadd.xlane.f32.xlu0 %v392
  %v394 = vpop.xlane.xlu0 %393
  %v395 = vadd.f32 %v390, %v391
  %396 = vadd.xlane.f32.xlu0 %v395
  %v397 = vpop.xlane.xlu0 %396
  %v398 = vadd.f32 %v205, %v394
  %v399 = vadd.f32 %v206, %v397
  %v400 = vadd.f32 %v376, %v377
  %401 = vadd.xlane.f32.xlu0 %v400
  %v402 = vpop.xlane.xlu0 %401
  %v403 = vadd.f32 %v378, %v379
  %404 = vadd.xlane.f32.xlu0 %v403
  %v405 = vpop.xlane.xlu0 %404
  %v406 = vadd.f32 %v213, %v402
  %v407 = vadd.f32 %v214, %v405
  %v408 = vmul.f32 %v376, %v376
  %v409 = vmul.f32 %v377, %v377
  %v410 = vmul.f32 %v378, %v378
  %v411 = vmul.f32 %v379, %v379
  %v412 = vadd.f32 %v408, %v409
  %413 = vadd.xlane.f32.xlu0 %v412
  %v414 = vpop.xlane.xlu0 %413
  %v415 = vadd.f32 %v410, %v411
  %416 = vadd.xlane.f32.xlu0 %v415
  %v417 = vpop.xlane.xlu0 %416
  %v418 = vadd.f32 %v225, %v414
  %v419 = vadd.f32 %v226, %v417
  %s420 = scalar_lea.vmem %s0, 16
  %v421 = vld [vmem:[%s420] sm:$0xf]
  %v422 = vld [vmem:[%s420 + $0x4] sm:$0xf]
  %s423 = scalar_lea.vmem %s1, 256
  %v424 = vld [vmem:[%s423] sm:$0xff]
  %v425 = vld [vmem:[%s423 + $0x8] sm:$0xff]
  %v426 = vld [vmem:[%s423 + $0x10] sm:$0xff]
  %v427 = vld [vmem:[%s423 + $0x18] sm:$0xff]
  %v428 = vld [vmem:[%s423 + $0x20] sm:$0xff]
  %v429 = vld [vmem:[%s423 + $0x28] sm:$0xff]
  %v430 = vld [vmem:[%s423 + $0x30] sm:$0xff]
  %v431 = vld [vmem:[%s423 + $0x38] sm:$0xff]
  %v432 = vld [vmem:[%s423 + $0x40] sm:$0xff]
  %v433 = vld [vmem:[%s423 + $0x48] sm:$0xff]
  %v434 = vld [vmem:[%s423 + $0x50] sm:$0xff]
  %v435 = vld [vmem:[%s423 + $0x58] sm:$0xff]
  %v436 = vld [vmem:[%s423 + $0x60] sm:$0xff]
  %v437 = vld [vmem:[%s423 + $0x68] sm:$0xff]
  %v438 = vld [vmem:[%s423 + $0x70] sm:$0xff]
  %v439 = vld [vmem:[%s423 + $0x78] sm:$0xff]
  %v442 = vunpack.c.l.b16 %v421
  %v443 = vunpack.c.l.b16 %v422
  %v444 = vpack.c.b16 %v443, %v442
  %v462 = vunpack.c.l.b16 %v424
  %v463 = vunpack.c.h.b16 %v424
  %v464 = vunpack.c.l.b16 %v425
  %v465 = vunpack.c.h.b16 %v425
  %v466 = vunpack.c.l.b16 %v426
  %v467 = vunpack.c.h.b16 %v426
  %v468 = vunpack.c.l.b16 %v427
  %v469 = vunpack.c.h.b16 %v427
  %v470 = vunpack.c.l.b16 %v428
  %v471 = vunpack.c.h.b16 %v428
  %v472 = vunpack.c.l.b16 %v429
  %v473 = vunpack.c.h.b16 %v429
  %v474 = vunpack.c.l.b16 %v430
  %v475 = vunpack.c.h.b16 %v430
  %v476 = vunpack.c.l.b16 %v431
  %v477 = vunpack.c.h.b16 %v431
  %v478 = vunpack.c.l.b16 %v432
  %v479 = vunpack.c.h.b16 %v432
  %v480 = vunpack.c.l.b16 %v433
  %v481 = vunpack.c.h.b16 %v433
  %v482 = vunpack.c.l.b16 %v434
  %v483 = vunpack.c.h.b16 %v434
  %v484 = vunpack.c.l.b16 %v435
  %v485 = vunpack.c.h.b16 %v435
  %v486 = vunpack.c.l.b16 %v436
  %v487 = vunpack.c.h.b16 %v436
  %v488 = vunpack.c.l.b16 %v437
  %v489 = vunpack.c.h.b16 %v437
  %v490 = vunpack.c.l.b16 %v438
  %v491 = vunpack.c.h.b16 %v438
  %v492 = vunpack.c.l.b16 %v439
  %v493 = vunpack.c.h.b16 %v439
  %v494 = vpack.c.b16 %v464, %v462
  %v495 = vpack.c.b16 %v465, %v463
  %v496 = vpack.c.b16 %v468, %v466
  %v497 = vpack.c.b16 %v469, %v467
  %v498 = vpack.c.b16 %v472, %v470
  %v499 = vpack.c.b16 %v473, %v471
  %v500 = vpack.c.b16 %v476, %v474
  %v501 = vpack.c.b16 %v477, %v475
  %v502 = vpack.c.b16 %v480, %v478
  %v503 = vpack.c.b16 %v481, %v479
  %v504 = vpack.c.b16 %v484, %v482
  %v505 = vpack.c.b16 %v485, %v483
  %v506 = vpack.c.b16 %v488, %v486
  %v507 = vpack.c.b16 %v489, %v487
  %v508 = vpack.c.b16 %v492, %v490
  %v509 = vpack.c.b16 %v493, %v491
  %526 = vmatprep.subr.bf16.mxu0 %v509
  %527 = vmatpush1.bf16.msra.mxu0 %v508
  %528 = vmatprep.subr.bf16.mxu0 %v507
  %529 = vmatpush1.bf16.msra.mxu0 %v506
  %530 = vmatprep.subr.bf16.mxu0 %v505
  %531 = vmatpush1.bf16.msra.mxu0 %v504
  %532 = vmatprep.subr.bf16.mxu0 %v503
  %533 = vmatpush1.bf16.msra.mxu0 %v502
  %534 = vmatprep.subr.bf16.mxu0 %v501
  %535 = vmatpush1.bf16.msra.mxu0 %v500
  %536 = vmatprep.subr.bf16.mxu0 %v499
  %537 = vmatpush1.bf16.msra.mxu0 %v498
  %538 = vmatprep.subr.bf16.mxu0 %v497
  %539 = vmatpush1.bf16.msra.mxu0 %v496
  %540 = vmatprep.subr.bf16.mxu0 %v495
  %541 = vmatpush1.bf16.msra.mxu0 %v494
  %542 = vmatprep.subr.bf16.mxu0 0
  %543 = vmatpush2.bf16.msra.mxu0 0
  %544 = vmatprep.subr.bf16.mxu0 0
  %545 = vmatpush2.bf16.msra.mxu0 0
  %546 = vmatprep.subr.bf16.mxu0 0
  %547 = vmatpush2.bf16.msra.mxu0 0
  %548 = vmatprep.subr.bf16.mxu0 0
  %549 = vmatpush2.bf16.msra.mxu0 0
  %550 = vmatprep.subr.bf16.mxu0 0
  %551 = vmatpush2.bf16.msra.mxu0 0
  %552 = vmatprep.subr.bf16.mxu0 0
  %553 = vmatpush2.bf16.msra.mxu0 0
  %554 = vmatprep.subr.bf16.mxu0 0
  %555 = vmatpush2.bf16.msra.mxu0 0
  %556 = vmatprep.subr.bf16.mxu0 0
  %557 = vmatpush2.bf16.msra.mxu0 0
  %558 = vmatprep.mubr.bf16.mxu0 0
  %559 = vmatmul.mubr.bf16.gmra.mxu0 %v444
  %v560 = vpop.f32.mrf.mxu0
  %v561 = vadd.f32 %v43, %v560
  %v562 = vpop.f32.mrf.mxu0
  %v563 = vadd.f32 %v43, %v562
  %v564 = vpop.f32.mrf.mxu0
  %v565 = vadd.f32 %v48, %v564
  %v566 = vpop.f32.mrf.mxu0
  %v567 = vadd.f32 %v48, %v566
  %568 = vdwg.mxu0
  %v569 = vsel %vm181, %v561, 0.0
  %v570 = vsel %vm182, %v563, 0.0
  %v571 = vsel %vm181, %v565, 0.0
  %v572 = vsel %vm182, %v567, 0.0
  %v573 = vadd.f32 %v561, %v563
  %574 = vadd.xlane.f32.xlu0 %v573
  %v575 = vpop.xlane.xlu0 %574
  %v576 = vadd.f32 %v565, %v567
  %577 = vadd.xlane.f32.xlu0 %v576
  %v578 = vpop.xlane.xlu0 %577
  %v579 = vadd.f32 %v386, %v575
  %v580 = vadd.f32 %v387, %v578
  %v581 = vmul.f32 %v561, %v561
  %v582 = vmul.f32 %v563, %v563
  %v583 = vmul.f32 %v565, %v565
  %v584 = vmul.f32 %v567, %v567
  %v585 = vadd.f32 %v581, %v582
  %586 = vadd.xlane.f32.xlu0 %v585
  %v587 = vpop.xlane.xlu0 %586
  %v588 = vadd.f32 %v583, %v584
  %589 = vadd.xlane.f32.xlu0 %v588
  %v590 = vpop.xlane.xlu0 %589
  %v591 = vadd.f32 %v398, %v587
  %v592 = vadd.f32 %v399, %v590
  %v593 = vadd.f32 %v569, %v570
  %594 = vadd.xlane.f32.xlu0 %v593
  %v595 = vpop.xlane.xlu0 %594
  %v596 = vadd.f32 %v571, %v572
  %597 = vadd.xlane.f32.xlu0 %v596
  %v598 = vpop.xlane.xlu0 %597
  %v599 = vadd.f32 %v406, %v595
  %v600 = vadd.f32 %v407, %v598
  %v601 = vmul.f32 %v569, %v569
  %v602 = vmul.f32 %v570, %v570
  %v603 = vmul.f32 %v571, %v571
  %v604 = vmul.f32 %v572, %v572
  %v605 = vadd.f32 %v601, %v602
  %606 = vadd.xlane.f32.xlu0 %v605
  %v607 = vpop.xlane.xlu0 %606
  %v608 = vadd.f32 %v603, %v604
  %609 = vadd.xlane.f32.xlu0 %v608
  %v610 = vpop.xlane.xlu0 %609
  %v611 = vadd.f32 %v418, %v607
  %v612 = vadd.f32 %v419, %v610
  %s613 = scalar_lea.vmem %s0, 24
  %v614 = vld [vmem:[%s613] sm:$0xf]
  %v615 = vld [vmem:[%s613 + $0x4] sm:$0xf]
  %s616 = scalar_lea.vmem %s1, 384
  %v617 = vld [vmem:[%s616] sm:$0xff]
  %v618 = vld [vmem:[%s616 + $0x8] sm:$0xff]
  %v619 = vld [vmem:[%s616 + $0x10] sm:$0xff]
  %v620 = vld [vmem:[%s616 + $0x18] sm:$0xff]
  %v621 = vld [vmem:[%s616 + $0x20] sm:$0xff]
  %v622 = vld [vmem:[%s616 + $0x28] sm:$0xff]
  %v623 = vld [vmem:[%s616 + $0x30] sm:$0xff]
  %v624 = vld [vmem:[%s616 + $0x38] sm:$0xff]
  %v625 = vld [vmem:[%s616 + $0x40] sm:$0xff]
  %v626 = vld [vmem:[%s616 + $0x48] sm:$0xff]
  %v627 = vld [vmem:[%s616 + $0x50] sm:$0xff]
  %v628 = vld [vmem:[%s616 + $0x58] sm:$0xff]
  %v629 = vld [vmem:[%s616 + $0x60] sm:$0xff]
  %v630 = vld [vmem:[%s616 + $0x68] sm:$0xff]
  %v631 = vld [vmem:[%s616 + $0x70] sm:$0xff]
  %v632 = vld [vmem:[%s616 + $0x78] sm:$0xff]
  %v635 = vunpack.c.l.b16 %v614
  %v636 = vunpack.c.l.b16 %v615
  %v637 = vpack.c.b16 %v636, %v635
  %v655 = vunpack.c.l.b16 %v617
  %v656 = vunpack.c.h.b16 %v617
  %v657 = vunpack.c.l.b16 %v618
  %v658 = vunpack.c.h.b16 %v618
  %v659 = vunpack.c.l.b16 %v619
  %v660 = vunpack.c.h.b16 %v619
  %v661 = vunpack.c.l.b16 %v620
  %v662 = vunpack.c.h.b16 %v620
  %v663 = vunpack.c.l.b16 %v621
  %v664 = vunpack.c.h.b16 %v621
  %v665 = vunpack.c.l.b16 %v622
  %v666 = vunpack.c.h.b16 %v622
  %v667 = vunpack.c.l.b16 %v623
  %v668 = vunpack.c.h.b16 %v623
  %v669 = vunpack.c.l.b16 %v624
  %v670 = vunpack.c.h.b16 %v624
  %v671 = vunpack.c.l.b16 %v625
  %v672 = vunpack.c.h.b16 %v625
  %v673 = vunpack.c.l.b16 %v626
  %v674 = vunpack.c.h.b16 %v626
  %v675 = vunpack.c.l.b16 %v627
  %v676 = vunpack.c.h.b16 %v627
  %v677 = vunpack.c.l.b16 %v628
  %v678 = vunpack.c.h.b16 %v628
  %v679 = vunpack.c.l.b16 %v629
  %v680 = vunpack.c.h.b16 %v629
  %v681 = vunpack.c.l.b16 %v630
  %v682 = vunpack.c.h.b16 %v630
  %v683 = vunpack.c.l.b16 %v631
  %v684 = vunpack.c.h.b16 %v631
  %v685 = vunpack.c.l.b16 %v632
  %v686 = vunpack.c.h.b16 %v632
  %v687 = vpack.c.b16 %v657, %v655
  %v688 = vpack.c.b16 %v658, %v656
  %v689 = vpack.c.b16 %v661, %v659
  %v690 = vpack.c.b16 %v662, %v660
  %v691 = vpack.c.b16 %v665, %v663
  %v692 = vpack.c.b16 %v666, %v664
  %v693 = vpack.c.b16 %v669, %v667
  %v694 = vpack.c.b16 %v670, %v668
  %v695 = vpack.c.b16 %v673, %v671
  %v696 = vpack.c.b16 %v674, %v672
  %v697 = vpack.c.b16 %v677, %v675
  %v698 = vpack.c.b16 %v678, %v676
  %v699 = vpack.c.b16 %v681, %v679
  %v700 = vpack.c.b16 %v682, %v680
  %v701 = vpack.c.b16 %v685, %v683
  %v702 = vpack.c.b16 %v686, %v684
  %719 = vmatprep.subr.bf16.mxu0 %v702
  %720 = vmatpush1.bf16.msra.mxu0 %v701
  %721 = vmatprep.subr.bf16.mxu0 %v700
  %722 = vmatpush1.bf16.msra.mxu0 %v699
  %723 = vmatprep.subr.bf16.mxu0 %v698
  %724 = vmatpush1.bf16.msra.mxu0 %v697
  %725 = vmatprep.subr.bf16.mxu0 %v696
  %726 = vmatpush1.bf16.msra.mxu0 %v695
  %727 = vmatprep.subr.bf16.mxu0 %v694
  %728 = vmatpush1.bf16.msra.mxu0 %v693
  %729 = vmatprep.subr.bf16.mxu0 %v692
  %730 = vmatpush1.bf16.msra.mxu0 %v691
  %731 = vmatprep.subr.bf16.mxu0 %v690
  %732 = vmatpush1.bf16.msra.mxu0 %v689
  %733 = vmatprep.subr.bf16.mxu0 %v688
  %734 = vmatpush1.bf16.msra.mxu0 %v687
  %735 = vmatprep.subr.bf16.mxu0 0
  %736 = vmatpush2.bf16.msra.mxu0 0
  %737 = vmatprep.subr.bf16.mxu0 0
  %738 = vmatpush2.bf16.msra.mxu0 0
  %739 = vmatprep.subr.bf16.mxu0 0
  %740 = vmatpush2.bf16.msra.mxu0 0
  %741 = vmatprep.subr.bf16.mxu0 0
  %742 = vmatpush2.bf16.msra.mxu0 0
  %743 = vmatprep.subr.bf16.mxu0 0
  %744 = vmatpush2.bf16.msra.mxu0 0
  %745 = vmatprep.subr.bf16.mxu0 0
  %746 = vmatpush2.bf16.msra.mxu0 0
  %747 = vmatprep.subr.bf16.mxu0 0
  %748 = vmatpush2.bf16.msra.mxu0 0
  %749 = vmatprep.subr.bf16.mxu0 0
  %750 = vmatpush2.bf16.msra.mxu0 0
  %751 = vmatprep.mubr.bf16.mxu0 0
  %752 = vmatmul.mubr.bf16.gmra.mxu0 %v637
  %v753 = vpop.f32.mrf.mxu0
  %v754 = vadd.f32 %v43, %v753
  %v755 = vpop.f32.mrf.mxu0
  %v756 = vadd.f32 %v43, %v755
  %v757 = vpop.f32.mrf.mxu0
  %v758 = vadd.f32 %v48, %v757
  %v759 = vpop.f32.mrf.mxu0
  %v760 = vadd.f32 %v48, %v759
  %761 = vdwg.mxu0
  %v762 = vsel %vm181, %v754, 0.0
  %v763 = vsel %vm182, %v756, 0.0
  %v764 = vsel %vm181, %v758, 0.0
  %v765 = vsel %vm182, %v760, 0.0
  %v766 = vadd.f32 %v754, %v756
  %767 = vadd.xlane.f32.xlu0 %v766
  %v768 = vpop.xlane.xlu0 %767
  %v769 = vadd.f32 %v758, %v760
  %770 = vadd.xlane.f32.xlu0 %v769
  %v771 = vpop.xlane.xlu0 %770
  %v772 = vadd.f32 %v579, %v768
  %v773 = vadd.f32 %v580, %v771
  %v774 = vmul.f32 %v754, %v754
  %v775 = vmul.f32 %v756, %v756
  %v776 = vmul.f32 %v758, %v758
  %v777 = vmul.f32 %v760, %v760
  %v778 = vadd.f32 %v774, %v775
  %779 = vadd.xlane.f32.xlu0 %v778
  %v780 = vpop.xlane.xlu0 %779
  %v781 = vadd.f32 %v776, %v777
  %782 = vadd.xlane.f32.xlu0 %v781
  %v783 = vpop.xlane.xlu0 %782
  %v784 = vadd.f32 %v591, %v780
  %v785 = vadd.f32 %v592, %v783
  %v786 = vadd.f32 %v762, %v763
  %787 = vadd.xlane.f32.xlu0 %v786
  %v788 = vpop.xlane.xlu0 %787
  %v789 = vadd.f32 %v764, %v765
  %790 = vadd.xlane.f32.xlu0 %v789
  %v791 = vpop.xlane.xlu0 %790
  %v792 = vadd.f32 %v599, %v788
  %v793 = vadd.f32 %v600, %v791
  %v794 = vmul.f32 %v762, %v762
  %v795 = vmul.f32 %v763, %v763
  %v796 = vmul.f32 %v764, %v764
  %v797 = vmul.f32 %v765, %v765
  %v798 = vadd.f32 %v794, %v795
  %799 = vadd.xlane.f32.xlu0 %v798
  %v800 = vpop.xlane.xlu0 %799
  %v801 = vadd.f32 %v796, %v797
  %802 = vadd.xlane.f32.xlu0 %v801
  %v803 = vpop.xlane.xlu0 %802
  %v804 = vadd.f32 %v611, %v800
  %v805 = vadd.f32 %v612, %v803
  %v806 = vmul.f32 %v792, 0.001953125
  %v807 = vmul.f32 %v793, 0.001953125
  %v808 = vmul.f32 %v804, 0.001953125
  %v809 = vmul.f32 %v805, 0.001953125
  %v810 = vsub.f32 %v772, %v792
  %v811 = vsub.f32 %v773, %v793
  %v812 = vmul.f32 %v810, 0.001953125
  %v813 = vmul.f32 %v811, 0.001953125
  %v814 = vsub.f32 %v784, %v804
  %v815 = vsub.f32 %v785, %v805
  %v816 = vmul.f32 %v814, 0.001953125
  %v817 = vmul.f32 %v815, 0.001953125
  %v818 = vmul.f32 %v812, 0.33333334
  %v819 = vmul.f32 %v813, 0.33333334
  %v820 = vmul.f32 %v806, 0.6666667
  %v821 = vmul.f32 %v807, 0.6666667
  %v822 = vadd.f32 %v818, %v820
  %v823 = vadd.f32 %v819, %v821
  %v824 = vmul.f32 %v816, 0.33333334
  %v825 = vmul.f32 %v817, 0.33333334
  %v826 = vmul.f32 %v808, 0.6666667
  %v827 = vmul.f32 %v809, 0.6666667
  %v828 = vadd.f32 %v824, %v826
  %v829 = vadd.f32 %v825, %v827
  %v830 = vmul.f32 %v806, %v806
  %v831 = vmul.f32 %v807, %v807
  %v832 = vsub.f32 %v808, %v830
  %v833 = vsub.f32 %v809, %v831
  %v834 = vadd.f32 %v832, 1e-05
  %v835 = vadd.f32 %v833, 1e-05
  %v836 = vrsqrt.pop %v834
  %v837 = vrsqrt.pop %v835
  %v838 = vmul.f32 %v836, %v15
  %v839 = vmul.f32 %v837, %v16
  %v840 = vmul.f32 %v822, %v822
  %v841 = vmul.f32 %v823, %v823
  %v842 = vsub.f32 %v828, %v840
  %v843 = vsub.f32 %v829, %v841
  %v844 = vadd.f32 %v842, 1e-05
  %v845 = vadd.f32 %v843, 1e-05
  %v846 = vrsqrt.pop %v844
  %v847 = vrsqrt.pop %v845
  %v848 = vmul.f32 %v846, %v15
  %v849 = vmul.f32 %v847, %v16
  %v850 = vmul.f32 %v806, %v838
  %v851 = vmul.f32 %v807, %v839
  %854 = vrot.lane.b32.xlu0 %v850, 1
  %v855 = vpop.permute.xlu0 %854
  %856 = vrot.lane.b32.xlu0 %v851, 1
  %v857 = vpop.permute.xlu0 %856
  %v860 = vsub.f32 %v15, %v855
  %v861 = vsub.f32 %v16, %v857
  %v862 = vmul.f32 %v822, %v848
  %v863 = vmul.f32 %v823, %v849
  %866 = vrot.lane.b32.xlu0 %v862, 1
  %v867 = vpop.permute.xlu0 %866
  %868 = vrot.lane.b32.xlu0 %v863, 1
  %v869 = vpop.permute.xlu0 %868
  %v872 = vsub.f32 %v15, %v867
  %v873 = vsub.f32 %v16, %v869
  %875 = vset.pattern.permute.xlu0 1
  %876 = vperm.xlu0 %875, %v838
  %v877 = vpop.permute.xlu0 %876
  %880 = vset.pattern.permute.xlu0 1
  %881 = vperm.xlu0 %880, %v839
  %v882 = vpop.permute.xlu0 %881
  %885 = vset.pattern.permute.xlu0 1
  %886 = vperm.xlu0 %885, %v848
  %v887 = vpop.permute.xlu0 %886
  %890 = vset.pattern.permute.xlu0 1
  %891 = vperm.xlu0 %890, %v849
  %v892 = vpop.permute.xlu0 %891
  %v894 = vsel %vm181, %v877, %v887
  %v895 = vsel %vm182, %v877, %v887
  %v896 = vsel %vm181, %v882, %v892
  %v897 = vsel %vm182, %v882, %v892
  %899 = vset.pattern.permute.xlu0 2
  %900 = vperm.xlu0 %899, %v860
  %v901 = vpop.permute.xlu0 %900
  %904 = vset.pattern.permute.xlu0 2
  %905 = vperm.xlu0 %904, %v861
  %v906 = vpop.permute.xlu0 %905
  %909 = vset.pattern.permute.xlu0 2
  %910 = vperm.xlu0 %909, %v872
  %v911 = vpop.permute.xlu0 %910
  %914 = vset.pattern.permute.xlu0 2
  %915 = vperm.xlu0 %914, %v873
  %v916 = vpop.permute.xlu0 %915
  %v918 = vsel %vm181, %v901, %v911
  %v919 = vsel %vm182, %v901, %v911
  %v920 = vsel %vm181, %v906, %v916
  %v921 = vsel %vm182, %v906, %v916
  %v922 = vmul.f32 %v171, %v894
  %v923 = vmul.f32 %v173, %v895
  %v924 = vmul.f32 %v175, %v896
  %v925 = vmul.f32 %v177, %v897
  %v926 = vadd.f32 %v922, %v918
  %v927 = vadd.f32 %v923, %v919
  %v928 = vadd.f32 %v924, %v920
  %v929 = vadd.f32 %v925, %v921
  %vm930 = vcmp.ge.f32.partialorder %v926, 0.0
  %vm931 = vcmp.ge.f32.partialorder %v927, 0.0
  %vm932 = vcmp.ge.f32.partialorder %v928, 0.0
  %vm933 = vcmp.ge.f32.partialorder %v929, 0.0
  %v934 = vmul.f32 %v926, 0.2
  %v935 = vmul.f32 %v927, 0.2
  %v936 = vmul.f32 %v928, 0.2
  %v937 = vmul.f32 %v929, 0.2
  %v938 = vsel %vm930, %v926, %v934
  %v939 = vsel %vm931, %v927, %v935
  %v940 = vsel %vm932, %v928, %v936
  %v941 = vsel %vm933, %v929, %v937
  %v942 = vpack.c.bf16 %v940, %v938
  %v943 = vpack.c.bf16 %v941, %v939
  %v946 = vunpack.c.l.b16 %v942
  %v947 = vunpack.c.l.b16 %v943
  %v948 = vunpack.c.h.b16 %v942
  %v949 = vunpack.c.h.b16 %v943
  %v950 = vpack.c.b16 %v947, %v946
  %v951 = vpack.c.b16 %v949, %v948
  %954 = vst [vmem:[%s3] sm:$0xff] %v950
  %955 = vst [vmem:[%s3 + $0x8] sm:$0xff] %v951
  %v956 = vmul.f32 %v368, %v894
  %v957 = vmul.f32 %v370, %v895
  %v958 = vmul.f32 %v372, %v896
  %v959 = vmul.f32 %v374, %v897
  %v960 = vadd.f32 %v956, %v918
  %v961 = vadd.f32 %v957, %v919
  %v962 = vadd.f32 %v958, %v920
  %v963 = vadd.f32 %v959, %v921
  %vm964 = vcmp.ge.f32.partialorder %v960, 0.0
  %vm965 = vcmp.ge.f32.partialorder %v961, 0.0
  %vm966 = vcmp.ge.f32.partialorder %v962, 0.0
  %vm967 = vcmp.ge.f32.partialorder %v963, 0.0
  %v968 = vmul.f32 %v960, 0.2
  %v969 = vmul.f32 %v961, 0.2
  %v970 = vmul.f32 %v962, 0.2
  %v971 = vmul.f32 %v963, 0.2
  %v972 = vsel %vm964, %v960, %v968
  %v973 = vsel %vm965, %v961, %v969
  %v974 = vsel %vm966, %v962, %v970
  %v975 = vsel %vm967, %v963, %v971
  %v976 = vpack.c.bf16 %v974, %v972
  %v977 = vpack.c.bf16 %v975, %v973
  %v980 = vunpack.c.l.b16 %v976
  %v981 = vunpack.c.l.b16 %v977
  %v982 = vunpack.c.h.b16 %v976
  %v983 = vunpack.c.h.b16 %v977
  %v984 = vpack.c.b16 %v981, %v980
  %v985 = vpack.c.b16 %v983, %v982
  %s988 = scalar_lea.vmem %s3, 16
  %989 = vst [vmem:[%s988] sm:$0xff] %v984
  %990 = vst [vmem:[%s988 + $0x8] sm:$0xff] %v985
  %v991 = vmul.f32 %v561, %v894
  %v992 = vmul.f32 %v563, %v895
  %v993 = vmul.f32 %v565, %v896
  %v994 = vmul.f32 %v567, %v897
  %v995 = vadd.f32 %v991, %v918
  %v996 = vadd.f32 %v992, %v919
  %v997 = vadd.f32 %v993, %v920
  %v998 = vadd.f32 %v994, %v921
  %vm999 = vcmp.ge.f32.partialorder %v995, 0.0
  %vm1000 = vcmp.ge.f32.partialorder %v996, 0.0
  %vm1001 = vcmp.ge.f32.partialorder %v997, 0.0
  %vm1002 = vcmp.ge.f32.partialorder %v998, 0.0
  %v1003 = vmul.f32 %v995, 0.2
  %v1004 = vmul.f32 %v996, 0.2
  %v1005 = vmul.f32 %v997, 0.2
  %v1006 = vmul.f32 %v998, 0.2
  %v1007 = vsel %vm999, %v995, %v1003
  %v1008 = vsel %vm1000, %v996, %v1004
  %v1009 = vsel %vm1001, %v997, %v1005
  %v1010 = vsel %vm1002, %v998, %v1006
  %v1011 = vpack.c.bf16 %v1009, %v1007
  %v1012 = vpack.c.bf16 %v1010, %v1008
  %v1015 = vunpack.c.l.b16 %v1011
  %v1016 = vunpack.c.l.b16 %v1012
  %v1017 = vunpack.c.h.b16 %v1011
  %v1018 = vunpack.c.h.b16 %v1012
  %v1019 = vpack.c.b16 %v1016, %v1015
  %v1020 = vpack.c.b16 %v1018, %v1017
  %s1023 = scalar_lea.vmem %s3, 32
  %1024 = vst [vmem:[%s1023] sm:$0xff] %v1019
  %1025 = vst [vmem:[%s1023 + $0x8] sm:$0xff] %v1020
  %v1026 = vmul.f32 %v754, %v894
  %v1027 = vmul.f32 %v756, %v895
  %v1028 = vmul.f32 %v758, %v896
  %v1029 = vmul.f32 %v760, %v897
  %v1030 = vadd.f32 %v1026, %v918
  %v1031 = vadd.f32 %v1027, %v919
  %v1032 = vadd.f32 %v1028, %v920
  %v1033 = vadd.f32 %v1029, %v921
  %vm1034 = vcmp.ge.f32.partialorder %v1030, 0.0
  %vm1035 = vcmp.ge.f32.partialorder %v1031, 0.0
  %vm1036 = vcmp.ge.f32.partialorder %v1032, 0.0
  %vm1037 = vcmp.ge.f32.partialorder %v1033, 0.0
  %v1038 = vmul.f32 %v1030, 0.2
  %v1039 = vmul.f32 %v1031, 0.2
  %v1040 = vmul.f32 %v1032, 0.2
  %v1041 = vmul.f32 %v1033, 0.2
  %v1042 = vsel %vm1034, %v1030, %v1038
  %v1043 = vsel %vm1035, %v1031, %v1039
  %v1044 = vsel %vm1036, %v1032, %v1040
  %v1045 = vsel %vm1037, %v1033, %v1041
  %v1046 = vpack.c.bf16 %v1044, %v1042
  %v1047 = vpack.c.bf16 %v1045, %v1043
  %v1050 = vunpack.c.l.b16 %v1046
  %v1051 = vunpack.c.l.b16 %v1047
  %v1052 = vunpack.c.h.b16 %v1046
  %v1053 = vunpack.c.h.b16 %v1047
  %v1054 = vpack.c.b16 %v1051, %v1050
  %v1055 = vpack.c.b16 %v1053, %v1052
  %s1058 = scalar_lea.vmem %s3, 48
  %1059 = vst [vmem:[%s1058] sm:$0xff] %v1054
  %1060 = vst [vmem:[%s1058 + $0x8] sm:$0xff] %v1055
  // Predicated region
  $region14: #{generator_forward.9} parent=0 // pred_check
    _
  $region15: #{generator_forward.9} parent=0 // pred_check_branch
    %1062 = sbr.rel (0) target = $region17
  $region16: #{generator_forward.9} parent=0 // pred_region
    _
  $region17: #{generator_forward.9} parent=0 // pred_fallthru
    _
  // Predicated region
  $region18: #{generator_forward.9} parent=0 // pred_check
    _
  $region19: #{generator_forward.9} parent=0 // pred_check_branch
    %1064 = sbr.rel (0) target = $region21
  $region20: #{generator_forward.9} parent=0 // pred_region
    _
  $region21: #{generator_forward.9} parent=0 // pred_fallthru
    _

// kernel: generator_forward.10
$region0: #{generator_forward.10}
  #allocation0 [shape = 'u32[]', space=smem, size = 0x4, offset = 0x4, fixed_abs, tag = 'smem constant byte address 0x4 - core index']
  #allocation1 [shape = 'u32[144,128]{1,0:T(1,128)}', space=vmem, size = 0x12000, scoped, tag = 'internal scratch']
  %s0 = inlined_call_operand.vmem [shape: bf16[4,8,64], index: 0, kind: input, shape index: {}]
  %s1 = inlined_call_operand.vmem [shape: bf16[4,64,1024], index: 1, kind: input, shape index: {}]
  %s2 = inlined_call_operand.vmem [shape: f32[8,8], index: 2, kind: input, shape index: {}]
  %s3 = inlined_call_operand.vmem [shape: bf16[4,8,1024], index: 3, kind: output, shape index: {}]
  %s4 = sld [smem:[#allocation0]]
  $region22: #{generator_forward.10} parent=0
    _
  %s6 = ssub.s32 1, %s4
  %s7 = scalar_select 0, %s6, %s4
  // Predicated region
  $region2: #{generator_forward.10} parent=0 // pred_check
    _
  $region3: #{generator_forward.10} parent=0 // pred_check_branch
    %9 = sbr.rel (0) target = $region5
  $region4: #{generator_forward.10} parent=0 // pred_region
    _
  $region5: #{generator_forward.10} parent=0 // pred_fallthru
    _
  // Predicated region
  $region6: #{generator_forward.10} parent=0 // pred_check
    _
  $region7: #{generator_forward.10} parent=0 // pred_check_branch
    %11 = sbr.rel (0) target = $region9
  $region8: #{generator_forward.10} parent=0 // pred_region
    _
  $region9: #{generator_forward.10} parent=0 // pred_fallthru
    _
  // Predicated region
  $region10: #{generator_forward.10} parent=0 // pred_check
    _
  $region11: #{generator_forward.10} parent=0 // pred_check_branch
    %13 = sbr.rel (0) target = $region13
  $region12: #{generator_forward.10} parent=0 // pred_region
    _
  $region13: #{generator_forward.10} parent=0 // pred_fallthru
    _
  %v15 = vld [vmem:[%s2] sm:$0xff]
  %v16 = vlaneseq
  %v17 = vand.u32 %v16, 127
  %v18 = vadd.s32 %v17, 128
  %v19 = vadd.s32 %v17, 256
  %v20 = vadd.s32 %v17, 384
  %v21 = vadd.s32 %v17, 512
  %v22 = vadd.s32 %v17, 640
  %v23 = vadd.s32 %v17, 768
  %v24 = vadd.s32 %v17, 896
  %vm25 = vcmp.lt.s32.totalorder %v17, 512
  %vm26 = vcmp.lt.s32.totalorder %v18, 512
  %vm27 = vcmp.lt.s32.totalorder %v19, 512
  %vm28 = vcmp.lt.s32.totalorder %v20, 512
  %vm29 = vcmp.lt.s32.totalorder %v21, 512
  %vm30 = vcmp.lt.s32.totalorder %v22, 512
  %vm31 = vcmp.lt.s32.totalorder %v23, 512
  %vm32 = vcmp.lt.s32.totalorder %v24, 512
  %v33 = vld [vmem:[%s0] sm:$0xf]
  %v34 = vld [vmem:[%s1] sm:$0xff]
  %v35 = vld [vmem:[%s1 + $0x8] sm:$0xff]
  %v36 = vld [vmem:[%s1 + $0x10] sm:$0xff]
  %v37 = vld [vmem:[%s1 + $0x18] sm:$0xff]
  %v38 = vld [vmem:[%s1 + $0x20] sm:$0xff]
  %v39 = vld [vmem:[%s1 + $0x28] sm:$0xff]
  %v40 = vld [vmem:[%s1 + $0x30] sm:$0xff]
  %v41 = vld [vmem:[%s1 + $0x38] sm:$0xff]
  %v42 = vld [vmem:[%s1 + $0x40] sm:$0xff]
  %v43 = vld [vmem:[%s1 + $0x48] sm:$0xff]
  %v44 = vld [vmem:[%s1 + $0x50] sm:$0xff]
  %v45 = vld [vmem:[%s1 + $0x58] sm:$0xff]
  %v46 = vld [vmem:[%s1 + $0x60] sm:$0xff]
  %v47 = vld [vmem:[%s1 + $0x68] sm:$0xff]
  %v48 = vld [vmem:[%s1 + $0x70] sm:$0xff]
  %v49 = vld [vmem:[%s1 + $0x78] sm:$0xff]
  %v50 = vld [vmem:[%s1 + $0x80] sm:$0xff]
  %v51 = vld [vmem:[%s1 + $0x88] sm:$0xff]
  %v52 = vld [vmem:[%s1 + $0x90] sm:$0xff]
  %v53 = vld [vmem:[%s1 + $0x98] sm:$0xff]
  %v54 = vld [vmem:[%s1 + $0xa0] sm:$0xff]
  %v55 = vld [vmem:[%s1 + $0xa8] sm:$0xff]
  %v56 = vld [vmem:[%s1 + $0xb0] sm:$0xff]
  %v57 = vld [vmem:[%s1 + $0xb8] sm:$0xff]
  %v58 = vld [vmem:[%s1 + $0xc0] sm:$0xff]
  %v59 = vld [vmem:[%s1 + $0xc8] sm:$0xff]
  %v60 = vld [vmem:[%s1 + $0xd0] sm:$0xff]
  %v61 = vld [vmem:[%s1 + $0xd8] sm:$0xff]
  %v62 = vld [vmem:[%s1 + $0xe0] sm:$0xff]
  %v63 = vld [vmem:[%s1 + $0xe8] sm:$0xff]
  %v64 = vld [vmem:[%s1 + $0xf0] sm:$0xff]
  %v65 = vld [vmem:[%s1 + $0xf8] sm:$0xff]
  %67 = vset.pattern.permute.xlu0 0
  %68 = vperm.xlu0 %67, %v15
  %v69 = vpop.permute.xlu0 %68
  %v103 = vunpack.c.l.b16 %v34
  %v104 = vunpack.c.h.b16 %v34
  %v105 = vunpack.c.l.b16 %v35
  %v106 = vunpack.c.h.b16 %v35
  %v107 = vunpack.c.l.b16 %v36
  %v108 = vunpack.c.h.b16 %v36
  %v109 = vunpack.c.l.b16 %v37
  %v110 = vunpack.c.h.b16 %v37
  %v111 = vunpack.c.l.b16 %v38
  %v112 = vunpack.c.h.b16 %v38
  %v113 = vunpack.c.l.b16 %v39
  %v114 = vunpack.c.h.b16 %v39
  %v115 = vunpack.c.l.b16 %v40
  %v116 = vunpack.c.h.b16 %v40
  %v117 = vunpack.c.l.b16 %v41
  %v118 = vunpack.c.h.b16 %v41
  %v119 = vunpack.c.l.b16 %v42
  %v120 = vunpack.c.h.b16 %v42
  %v121 = vunpack.c.l.b16 %v43
  %v122 = vunpack.c.h.b16 %v43
  %v123 = vunpack.c.l.b16 %v44
  %v124 = vunpack.c.h.b16 %v44
  %v125 = vunpack.c.l.b16 %v45
  %v126 = vunpack.c.h.b16 %v45
  %v127 = vunpack.c.l.b16 %v46
  %v128 = vunpack.c.h.b16 %v46
  %v129 = vunpack.c.l.b16 %v47
  %v130 = vunpack.c.h.b16 %v47
  %v131 = vunpack.c.l.b16 %v48
  %v132 = vunpack.c.h.b16 %v48
  %v133 = vunpack.c.l.b16 %v49
  %v134 = vunpack.c.h.b16 %v49
  %v135 = vunpack.c.l.b16 %v50
  %v136 = vunpack.c.h.b16 %v50
  %v137 = vunpack.c.l.b16 %v51
  %v138 = vunpack.c.h.b16 %v51
  %v139 = vunpack.c.l.b16 %v52
  %v140 = vunpack.c.h.b16 %v52
  %v141 = vunpack.c.l.b16 %v53
  %v142 = vunpack.c.h.b16 %v53
  %v143 = vunpack.c.l.b16 %v54
  %v144 = vunpack.c.h.b16 %v54
  %v145 = vunpack.c.l.b16 %v55
  %v146 = vunpack.c.h.b16 %v55
  %v147 = vunpack.c.l.b16 %v56
  %v148 = vunpack.c.h.b16 %v56
  %v149 = vunpack.c.l.b16 %v57
  %v150 = vunpack.c.h.b16 %v57
  %v151 = vunpack.c.l.b16 %v58
  %v152 = vunpack.c.h.b16 %v58
  %v153 = vunpack.c.l.b16 %v59
  %v154 = vunpack.c.h.b16 %v59
  %v155 = vunpack.c.l.b16 %v60
  %v156 = vunpack.c.h.b16 %v60
  %v157 = vunpack.c.l.b16 %v61
  %v158 = vunpack.c.h.b16 %v61
  %v159 = vunpack.c.l.b16 %v62
  %v160 = vunpack.c.h.b16 %v62
  %v161 = vunpack.c.l.b16 %v63
  %v162 = vunpack.c.h.b16 %v63
  %v163 = vunpack.c.l.b16 %v64
  %v164 = vunpack.c.h.b16 %v64
  %v165 = vunpack.c.l.b16 %v65
  %v166 = vunpack.c.h.b16 %v65
  %v167 = vpack.c.b16 %v111, %v103
  %v168 = vpack.c.b16 %v112, %v104
  %v169 = vpack.c.b16 %v113, %v105
  %v170 = vpack.c.b16 %v114, %v106
  %v171 = vpack.c.b16 %v115, %v107
  %v172 = vpack.c.b16 %v116, %v108
  %v173 = vpack.c.b16 %v117, %v109
  %v174 = vpack.c.b16 %v118, %v110
  %v175 = vpack.c.b16 %v127, %v119
  %v176 = vpack.c.b16 %v128, %v120
  %v177 = vpack.c.b16 %v129, %v121
  %v178 = vpack.c.b16 %v130, %v122
  %v179 = vpack.c.b16 %v131, %v123
  %v180 = vpack.c.b16 %v132, %v124
  %v181 = vpack.c.b16 %v133, %v125
  %v182 = vpack.c.b16 %v134, %v126
  %v183 = vpack.c.b16 %v143, %v135
  %v184 = vpack.c.b16 %v144, %v136
  %v185 = vpack.c.b16 %v145, %v137
  %v186 = vpack.c.b16 %v146, %v138
  %v187 = vpack.c.b16 %v147, %v139
  %v188 = vpack.c.b16 %v148, %v140
  %v189 = vpack.c.b16 %v149, %v141
  %v190 = vpack.c.b16 %v150, %v142
  %v191 = vpack.c.b16 %v159, %v151
  %v192 = vpack.c.b16 %v160, %v152
  %v193 = vpack.c.b16 %v161, %v153
  %v194 = vpack.c.b16 %v162, %v154
  %v195 = vpack.c.b16 %v163, %v155
  %v196 = vpack.c.b16 %v164, %v156
  %v197 = vpack.c.b16 %v165, %v157
  %v198 = vpack.c.b16 %v166, %v158
  %vm231 = vcmask 523264
  %v233 = vsel %vm231, %v33, 0
  %235 = vmatprep.subr.bf16.mxu0 0
  %236 = vmatpush1.bf16.msra.mxu0 0
  %237 = vmatprep.subr.bf16.mxu0 0
  %238 = vmatpush1.bf16.msra.mxu0 0
  %239 = vmatprep.subr.bf16.mxu0 0
  %240 = vmatpush1.bf16.msra.mxu0 0
  %241 = vmatprep.subr.bf16.mxu0 0
  %242 = vmatpush1.bf16.msra.mxu0 0
  %243 = vmatprep.subr.bf16.mxu0 %v192
  %244 = vmatpush1.bf16.msra.mxu0 %v191
  %245 = vmatprep.subr.bf16.mxu0 %v184
  %246 = vmatpush1.bf16.msra.mxu0 %v183
  %247 = vmatprep.subr.bf16.mxu0 %v176
  %248 = vmatpush1.bf16.msra.mxu0 %v175
  %249 = vmatprep.subr.bf16.mxu0 %v168
  %250 = vmatpush1.bf16.msra.mxu0 %v167
  %251 = vmatprep.subr.bf16.mxu0 0
  %252 = vmatpush2.bf16.msra.mxu0 0
  %253 = vmatprep.subr.bf16.mxu0 0
  %254 = vmatpush2.bf16.msra.mxu0 0
  %255 = vmatprep.subr.bf16.mxu0 0
  %256 = vmatpush2.bf16.msra.mxu0 0
  %257 = vmatprep.subr.bf16.mxu0 0
  %258 = vmatpush2.bf16.msra.mxu0 0
  %259 = vmatprep.subr.bf16.mxu0 0
  %260 = vmatpush2.bf16.msra.mxu0 0
  %261 = vmatprep.subr.bf16.mxu0 0
  %262 = vmatpush2.bf16.msra.mxu0 0
  %263 = vmatprep.subr.bf16.mxu0 0
  %264 = vmatpush2.bf16.msra.mxu0 0
  %265 = vmatprep.subr.bf16.mxu0 0
  %266 = vmatpush2.bf16.msra.mxu0 0
  %267 = vmatprep.mubr.bf16.mxu0 0
  %268 = vmatmul.mubr.bf16.gmra.mxu0 %v233
  %v269 = vpop.f32.mrf.mxu0
  %v270 = vadd.f32 %v69, %v269
  %v271 = vpop.f32.mrf.mxu0
  %v272 = vadd.f32 %v69, %v271
  %v273 = vpop.f32.mrf.mxu0
  %v274 = vpop.f32.mrf.mxu0
  %275 = vdwg.mxu0
  %276 = vmatprep.subr.bf16.mxu0 0
  %277 = vmatpush1.bf16.msra.mxu0 0
  %278 = vmatprep.subr.bf16.mxu0 0
  %279 = vmatpush1.bf16.msra.mxu0 0
  %280 = vmatprep.subr.bf16.mxu0 0
  %281 = vmatpush1.bf16.msra.mxu0 0
  %282 = vmatprep.subr.bf16.mxu0 0
  %283 = vmatpush1.bf16.msra.mxu0 0
  %284 = vmatprep.subr.bf16.mxu0 %v194
  %285 = vmatpush1.bf16.msra.mxu0 %v193
  %286 = vmatprep.subr.bf16.mxu0 %v186
  %287 = vmatpush1.bf16.msra.mxu0 %v185
  %288 = vmatprep.subr.bf16.mxu0 %v178
  %289 = vmatpush1.bf16.msra.mxu0 %v177
  %290 = vmatprep.subr.bf16.mxu0 %v170
  %291 = vmatpush1.bf16.msra.mxu0 %v169
  %292 = vmatprep.subr.bf16.mxu0 0
  %293 = vmatpush2.bf16.msra.mxu0 0
  %294 = vmatprep.subr.bf16.mxu0 0
  %295 = vmatpush2.bf16.msra.mxu0 0
  %296 = vmatprep.subr.bf16.mxu0 0
  %297 = vmatpush2.bf16.msra.mxu0 0
  %298 = vmatprep.subr.bf16.mxu0 0
  %299 = vmatpush2.bf16.msra.mxu0 0
  %300 = vmatprep.subr.bf16.mxu0 0
  %301 = vmatpush2.bf16.msra.mxu0 0
  %302 = vmatprep.subr.bf16.mxu0 0
  %303 = vmatpush2.bf16.msra.mxu0 0
  %304 = vmatprep.subr.bf16.mxu0 0
  %305 = vmatpush2.bf16.msra.mxu0 0
  %306 = vmatprep.subr.bf16.mxu0 0
  %307 = vmatpush2.bf16.msra.mxu0 0
  %308 = vmatprep.mubr.bf16.mxu0 0
  %309 = vmatmul.mubr.bf16.gmra.mxu0 %v233
  %v310 = vpop.f32.mrf.mxu0
  %v311 = vadd.f32 %v69, %v310
  %v312 = vpop.f32.mrf.mxu0
  %v313 = vadd.f32 %v69, %v312
  %v314 = vpop.f32.mrf.mxu0
  %v315 = vpop.f32.mrf.mxu0
  %316 = vdwg.mxu0
  %317 = vmatprep.subr.bf16.mxu0 0
  %318 = vmatpush1.bf16.msra.mxu0 0
  %319 = vmatprep.subr.bf16.mxu0 0
  %320 = vmatpush1.bf16.msra.mxu0 0
  %321 = vmatprep.subr.bf16.mxu0 0
  %322 = vmatpush1.bf16.msra.mxu0 0
  %323 = vmatprep.subr.bf16.mxu0 0
  %324 = vmatpush1.bf16.msra.mxu0 0
  %325 = vmatprep.subr.bf16.mxu0 %v196
  %326 = vmatpush1.bf16.msra.mxu0 %v195
  %327 = vmatprep.subr.bf16.mxu0 %v188
  %328 = vmatpush1.bf16.msra.mxu0 %v187
  %329 = vmatprep.subr.bf16.mxu0 %v180
  %330 = vmatpush1.bf16.msra.mxu0 %v179
  %331 = vmatprep.subr.bf16.mxu0 %v172
  %332 = vmatpush1.bf16.msra.mxu0 %v171
  %333 = vmatprep.subr.bf16.mxu0 0
  %334 = vmatpush2.bf16.msra.mxu0 0
  %335 = vmatprep.subr.bf16.mxu0 0
  %336 = vmatpush2.bf16.msra.mxu0 0
  %337 = vmatprep.subr.bf16.mxu0 0
  %338 = vmatpush2.bf16.msra.mxu0 0
  %339 = vmatprep.subr.bf16.mxu0 0
  %340 = vmatpush2.bf16.msra.mxu0 0
  %341 = vmatprep.subr.bf16.mxu0 0
  %342 = vmatpush2.bf16.msra.mxu0 0
  %343 = vmatprep.subr.bf16.mxu0 0
  %344 = vmatpush2.bf16.msra.mxu0 0
  %345 = vmatprep.subr.bf16.mxu0 0
  %346 = vmatpush2.bf16.msra.mxu0 0
  %347 = vmatprep.subr.bf16.mxu0 0
  %348 = vmatpush2.bf16.msra.mxu0 0
  %349 = vmatprep.mubr.bf16.mxu0 0
  %350 = vmatmul.mubr.bf16.gmra.mxu0 %v233
  %v351 = vpop.f32.mrf.mxu0
  %v352 = vadd.f32 %v69, %v351
  %v353 = vpop.f32.mrf.mxu0
  %v354 = vadd.f32 %v69, %v353
  %v355 = vpop.f32.mrf.mxu0
  %v356 = vpop.f32.mrf.mxu0
  %357 = vdwg.mxu0
  %358 = vmatprep.subr.bf16.mxu0 0
  %359 = vmatpush1.bf16.msra.mxu0 0
  %360 = vmatprep.subr.bf16.mxu0 0
  %361 = vmatpush1.bf16.msra.mxu0 0
  %362 = vmatprep.subr.bf16.mxu0 0
  %363 = vmatpush1.bf16.msra.mxu0 0
  %364 = vmatprep.subr.bf16.mxu0 0
  %365 = vmatpush1.bf16.msra.mxu0 0
  %366 = vmatprep.subr.bf16.mxu0 %v198
  %367 = vmatpush1.bf16.msra.mxu0 %v197
  %368 = vmatprep.subr.bf16.mxu0 %v190
  %369 = vmatpush1.bf16.msra.mxu0 %v189
  %370 = vmatprep.subr.bf16.mxu0 %v182
  %371 = vmatpush1.bf16.msra.mxu0 %v181
  %372 = vmatprep.subr.bf16.mxu0 %v174
  %373 = vmatpush1.bf16.msra.mxu0 %v173
  %374 = vmatprep.subr.bf16.mxu0 0
  %375 = vmatpush2.bf16.msra.mxu0 0
  %376 = vmatprep.subr.bf16.mxu0 0
  %377 = vmatpush2.bf16.msra.mxu0 0
  %378 = vmatprep.subr.bf16.mxu0 0
  %379 = vmatpush2.bf16.msra.mxu0 0
  %380 = vmatprep.subr.bf16.mxu0 0
  %381 = vmatpush2.bf16.msra.mxu0 0
  %382 = vmatprep.subr.bf16.mxu0 0
  %383 = vmatpush2.bf16.msra.mxu0 0
  %384 = vmatprep.subr.bf16.mxu0 0
  %385 = vmatpush2.bf16.msra.mxu0 0
  %386 = vmatprep.subr.bf16.mxu0 0
  %387 = vmatpush2.bf16.msra.mxu0 0
  %388 = vmatprep.subr.bf16.mxu0 0
  %389 = vmatpush2.bf16.msra.mxu0 0
  %390 = vmatprep.mubr.bf16.mxu0 0
  %391 = vmatmul.mubr.bf16.gmra.mxu0 %v233
  %v392 = vpop.f32.mrf.mxu0
  %v393 = vadd.f32 %v69, %v392
  %v394 = vpop.f32.mrf.mxu0
  %v395 = vadd.f32 %v69, %v394
  %v396 = vpop.f32.mrf.mxu0
  %v397 = vpop.f32.mrf.mxu0
  %398 = vdwg.mxu0
  %v399 = vsel %vm25, 1, 0
  %v400 = vsel %vm26, 1, 0
  %v401 = vsel %vm27, 1, 0
  %v402 = vsel %vm28, 1, 0
  %v403 = vsel %vm29, 1, 0
  %v404 = vsel %vm30, 1, 0
  %v405 = vsel %vm31, 1, 0
  %v406 = vsel %vm32, 1, 0
  %vm407 = vcmp.eq.s32.totalorder %v399, 1
  %vm408 = vcmp.eq.s32.totalorder %v400, 1
  %vm409 = vcmp.eq.s32.totalorder %v401, 1
  %vm410 = vcmp.eq.s32.totalorder %v402, 1
  %vm411 = vcmp.eq.s32.totalorder %v403, 1
  %vm412 = vcmp.eq.s32.totalorder %v404, 1
  %vm413 = vcmp.eq.s32.totalorder %v405, 1
  %vm414 = vcmp.eq.s32.totalorder %v406, 1
  %v415 = vsel %vm407, %v270, 0.0
  %v416 = vsel %vm408, %v272, 0.0
  %v417 = vsel %vm409, %v311, 0.0
  %v418 = vsel %vm410, %v313, 0.0
  %v419 = vsel %vm411, %v352, 0.0
  %v420 = vsel %vm412, %v354, 0.0
  %v421 = vsel %vm413, %v393, 0.0
  %v422 = vsel %vm414, %v395, 0.0
  %v423 = vadd.f32 %v270, %v272
  %v424 = vadd.f32 %v423, %v311
  %v425 = vadd.f32 %v424, %v313
  %v426 = vadd.f32 %v425, %v352
  %v427 = vadd.f32 %v426, %v354
  %v428 = vadd.f32 %v427, %v393
  %v429 = vadd.f32 %v428, %v395
  %430 = vadd.xlane.f32.xlu0 %v429
  %v431 = vpop.xlane.xlu0 %430
  %v432 = vadd.f32 %v431, 0.0
  %v433 = vmul.f32 %v270, %v270
  %v434 = vmul.f32 %v272, %v272
  %v435 = vmul.f32 %v311, %v311
  %v436 = vmul.f32 %v313, %v313
  %v437 = vmul.f32 %v352, %v352
  %v438 = vmul.f32 %v354, %v354
  %v439 = vmul.f32 %v393, %v393
  %v440 = vmul.f32 %v395, %v395
  %v441 = vadd.f32 %v433, %v434
  %v442 = vadd.f32 %v441, %v435
  %v443 = vadd.f32 %v442, %v436
  %v444 = vadd.f32 %v443, %v437
  %v445 = vadd.f32 %v444, %v438
  %v446 = vadd.f32 %v445, %v439
  %v447 = vadd.f32 %v446, %v440
  %448 = vadd.xlane.f32.xlu0 %v447
  %v449 = vpop.xlane.xlu0 %448
  %v450 = vadd.f32 %v449, 0.0
  %v451 = vadd.f32 %v415, %v416
  %v452 = vadd.f32 %v451, %v417
  %v453 = vadd.f32 %v452, %v418
  %v454 = vadd.f32 %v453, %v419
  %v455 = vadd.f32 %v454, %v420
  %v456 = vadd.f32 %v455, %v421
  %v457 = vadd.f32 %v456, %v422
  %458 = vadd.xlane.f32.xlu0 %v457
  %v459 = vpop.xlane.xlu0 %458
  %v460 = vadd.f32 %v459, 0.0
  %v461 = vmul.f32 %v415, %v415
  %v462 = vmul.f32 %v416, %v416
  %v463 = vmul.f32 %v417, %v417
  %v464 = vmul.f32 %v418, %v418
  %v465 = vmul.f32 %v419, %v419
  %v466 = vmul.f32 %v420, %v420
  %v467 = vmul.f32 %v421, %v421
  %v468 = vmul.f32 %v422, %v422
  %v469 = vadd.f32 %v461, %v462
  %v470 = vadd.f32 %v469, %v463
  %v471 = vadd.f32 %v470, %v464
  %v472 = vadd.f32 %v471, %v465
  %v473 = vadd.f32 %v472, %v466
  %v474 = vadd.f32 %v473, %v467
  %v475 = vadd.f32 %v474, %v468
  %476 = vadd.xlane.f32.xlu0 %v475
  %v477 = vpop.xlane.xlu0 %476
  %v478 = vadd.f32 %v477, 0.0
  %s479 = scalar_lea.vmem %s0, 4
  %v480 = vld [vmem:[%s479] sm:$0xf]
  %s481 = scalar_lea.vmem %s1, 256
  %v482 = vld [vmem:[%s481] sm:$0xff]
  %v483 = vld [vmem:[%s481 + $0x8] sm:$0xff]
  %v484 = vld [vmem:[%s481 + $0x10] sm:$0xff]
  %v485 = vld [vmem:[%s481 + $0x18] sm:$0xff]
  %v486 = vld [vmem:[%s481 + $0x20] sm:$0xff]
  %v487 = vld [vmem:[%s481 + $0x28] sm:$0xff]
  %v488 = vld [vmem:[%s481 + $0x30] sm:$0xff]
  %v489 = vld [vmem:[%s481 + $0x38] sm:$0xff]
  %v490 = vld [vmem:[%s481 + $0x40] sm:$0xff]
  %v491 = vld [vmem:[%s481 + $0x48] sm:$0xff]
  %v492 = vld [vmem:[%s481 + $0x50] sm:$0xff]
  %v493 = vld [vmem:[%s481 + $0x58] sm:$0xff]
  %v494 = vld [vmem:[%s481 + $0x60] sm:$0xff]
  %v495 = vld [vmem:[%s481 + $0x68] sm:$0xff]
  %v496 = vld [vmem:[%s481 + $0x70] sm:$0xff]
  %v497 = vld [vmem:[%s481 + $0x78] sm:$0xff]
  %v498 = vld [vmem:[%s481 + $0x80] sm:$0xff]
  %v499 = vld [vmem:[%s481 + $0x88] sm:$0xff]
  %v500 = vld [vmem:[%s481 + $0x90] sm:$0xff]
  %v501 = vld [vmem:[%s481 + $0x98] sm:$0xff]
  %v502 = vld [vmem:[%s481 + $0xa0] sm:$0xff]
  %v503 = vld [vmem:[%s481 + $0xa8] sm:$0xff]
  %v504 = vld [vmem:[%s481 + $0xb0] sm:$0xff]
  %v505 = vld [vmem:[%s481 + $0xb8] sm:$0xff]
  %v506 = vld [vmem:[%s481 + $0xc0] sm:$0xff]
  %v507 = vld [vmem:[%s481 + $0xc8] sm:$0xff]
  %v508 = vld [vmem:[%s481 + $0xd0] sm:$0xff]
  %v509 = vld [vmem:[%s481 + $0xd8] sm:$0xff]
  %v510 = vld [vmem:[%s481 + $0xe0] sm:$0xff]
  %v511 = vld [vmem:[%s481 + $0xe8] sm:$0xff]
  %v512 = vld [vmem:[%s481 + $0xf0] sm:$0xff]
  %v513 = vld [vmem:[%s481 + $0xf8] sm:$0xff]
  %v546 = vunpack.c.l.b16 %v482
  %v547 = vunpack.c.h.b16 %v482
  %v548 = vunpack.c.l.b16 %v483
  %v549 = vunpack.c.h.b16 %v483
  %v550 = vunpack.c.l.b16 %v484
  %v551 = vunpack.c.h.b16 %v484
  %v552 = vunpack.c.l.b16 %v485
  %v553 = vunpack.c.h.b16 %v485
  %v554 = vunpack.c.l.b16 %v486
  %v555 = vunpack.c.h.b16 %v486
  %v556 = vunpack.c.l.b16 %v487
  %v557 = vunpack.c.h.b16 %v487
  %v558 = vunpack.c.l.b16 %v488
  %v559 = vunpack.c.h.b16 %v488
  %v560 = vunpack.c.l.b16 %v489
  %v561 = vunpack.c.h.b16 %v489
  %v562 = vunpack.c.l.b16 %v490
  %v563 = vunpack.c.h.b16 %v490
  %v564 = vunpack.c.l.b16 %v491
  %v565 = vunpack.c.h.b16 %v491
  %v566 = vunpack.c.l.b16 %v492
  %v567 = vunpack.c.h.b16 %v492
  %v568 = vunpack.c.l.b16 %v493
  %v569 = vunpack.c.h.b16 %v493
  %v570 = vunpack.c.l.b16 %v494
  %v571 = vunpack.c.h.b16 %v494
  %v572 = vunpack.c.l.b16 %v495
  %v573 = vunpack.c.h.b16 %v495
  %v574 = vunpack.c.l.b16 %v496
  %v575 = vunpack.c.h.b16 %v496
  %v576 = vunpack.c.l.b16 %v497
  %v577 = vunpack.c.h.b16 %v497
  %v578 = vunpack.c.l.b16 %v498
  %v579 = vunpack.c.h.b16 %v498
  %v580 = vunpack.c.l.b16 %v499
  %v581 = vunpack.c.h.b16 %v499
  %v582 = vunpack.c.l.b16 %v500
  %v583 = vunpack.c.h.b16 %v500
  %v584 = vunpack.c.l.b16 %v501
  %v585 = vunpack.c.h.b16 %v501
  %v586 = vunpack.c.l.b16 %v502
  %v587 = vunpack.c.h.b16 %v502
  %v588 = vunpack.c.l.b16 %v503
  %v589 = vunpack.c.h.b16 %v503
  %v590 = vunpack.c.l.b16 %v504
  %v591 = vunpack.c.h.b16 %v504
  %v592 = vunpack.c.l.b16 %v505
  %v593 = vunpack.c.h.b16 %v505
  %v594 = vunpack.c.l.b16 %v506
  %v595 = vunpack.c.h.b16 %v506
  %v596 = vunpack.c.l.b16 %v507
  %v597 = vunpack.c.h.b16 %v507
  %v598 = vunpack.c.l.b16 %v508
  %v599 = vunpack.c.h.b16 %v508
  %v600 = vunpack.c.l.b16 %v509
  %v601 = vunpack.c.h.b16 %v509
  %v602 = vunpack.c.l.b16 %v510
  %v603 = vunpack.c.h.b16 %v510
  %v604 = vunpack.c.l.b16 %v511
  %v605 = vunpack.c.h.b16 %v511
  %v606 = vunpack.c.l.b16 %v512
  %v607 = vunpack.c.h.b16 %v512
  %v608 = vunpack.c.l.b16 %v513
  %v609 = vunpack.c.h.b16 %v513
  %v610 = vpack.c.b16 %v554, %v546
  %v611 = vpack.c.b16 %v555, %v547
  %v612 = vpack.c.b16 %v556, %v548
  %v613 = vpack.c.b16 %v557, %v549
  %v614 = vpack.c.b16 %v558, %v550
  %v615 = vpack.c.b16 %v559, %v551
  %v616 = vpack.c.b16 %v560, %v552
  %v617 = vpack.c.b16 %v561, %v553
  %v618 = vpack.c.b16 %v570, %v562
  %v619 = vpack.c.b16 %v571, %v563
  %v620 = vpack.c.b16 %v572, %v564
  %v621 = vpack.c.b16 %v573, %v565
  %v622 = vpack.c.b16 %v574, %v566
  %v623 = vpack.c.b16 %v575, %v567
  %v624 = vpack.c.b16 %v576, %v568
  %v625 = vpack.c.b16 %v577, %v569
  %v626 = vpack.c.b16 %v586, %v578
  %v627 = vpack.c.b16 %v587, %v579
  %v628 = vpack.c.b16 %v588, %v580
  %v629 = vpack.c.b16 %v589, %v581
  %v630 = vpack.c.b16 %v590, %v582
  %v631 = vpack.c.b16 %v591, %v583
  %v632 = vpack.c.b16 %v592, %v584
  %v633 = vpack.c.b16 %v593, %v585
  %v634 = vpack.c.b16 %v602, %v594
  %v635 = vpack.c.b16 %v603, %v595
  %v636 = vpack.c.b16 %v604, %v596
  %v637 = vpack.c.b16 %v605, %v597
  %v638 = vpack.c.b16 %v606, %v598
  %v639 = vpack.c.b16 %v607, %v599
  %v640 = vpack.c.b16 %v608, %v600
  %v641 = vpack.c.b16 %v609, %v601
  %v675 = vsel %vm231, %v480, 0
  %677 = vmatprep.subr.bf16.mxu0 0
  %678 = vmatpush1.bf16.msra.mxu0 0
  %679 = vmatprep.subr.bf16.mxu0 0
  %680 = vmatpush1.bf16.msra.mxu0 0
  %681 = vmatprep.subr.bf16.mxu0 0
  %682 = vmatpush1.bf16.msra.mxu0 0
  %683 = vmatprep.subr.bf16.mxu0 0
  %684 = vmatpush1.bf16.msra.mxu0 0
  %685 = vmatprep.subr.bf16.mxu0 %v635
  %686 = vmatpush1.bf16.msra.mxu0 %v634
  %687 = vmatprep.subr.bf16.mxu0 %v627
  %688 = vmatpush1.bf16.msra.mxu0 %v626
  %689 = vmatprep.subr.bf16.mxu0 %v619
  %690 = vmatpush1.bf16.msra.mxu0 %v618
  %691 = vmatprep.subr.bf16.mxu0 %v611
  %692 = vmatpush1.bf16.msra.mxu0 %v610
  %693 = vmatprep.subr.bf16.mxu0 0
  %694 = vmatpush2.bf16.msra.mxu0 0
  %695 = vmatprep.subr.bf16.mxu0 0
  %696 = vmatpush2.bf16.msra.mxu0 0
  %697 = vmatprep.subr.bf16.mxu0 0
  %698 = vmatpush2.bf16.msra.mxu0 0
  %699 = vmatprep.subr.bf16.mxu0 0
  %700 = vmatpush2.bf16.msra.mxu0 0
  %701 = vmatprep.subr.bf16.mxu0 0
  %702 = vmatpush2.bf16.msra.mxu0 0
  %703 = vmatprep.subr.bf16.mxu0 0
  %704 = vmatpush2.bf16.msra.mxu0 0
  %705 = vmatprep.subr.bf16.mxu0 0
  %706 = vmatpush2.bf16.msra.mxu0 0
  %707 = vmatprep.subr.bf16.mxu0 0
  %708 = vmatpush2.bf16.msra.mxu0 0
  %709 = vmatprep.mubr.bf16.mxu0 0
  %710 = vmatmul.mubr.bf16.gmra.mxu0 %v675
  %v711 = vpop.f32.mrf.mxu0
  %v712 = vadd.f32 %v69, %v711
  %v713 = vpop.f32.mrf.mxu0
  %v714 = vadd.f32 %v69, %v713
  %v715 = vpop.f32.mrf.mxu0
  %v716 = vpop.f32.mrf.mxu0
  %717 = vdwg.mxu0
  %718 = vmatprep.subr.bf16.mxu0 0
  %719 = vmatpush1.bf16.msra.mxu0 0
  %720 = vmatprep.subr.bf16.mxu0 0
  %721 = vmatpush1.bf16.msra.mxu0 0
  %722 = vmatprep.subr.bf16.mxu0 0
  %723 = vmatpush1.bf16.msra.mxu0 0
  %724 = vmatprep.subr.bf16.mxu0 0
  %725 = vmatpush1.bf16.msra.mxu0 0
  %726 = vmatprep.subr.bf16.mxu0 %v637
  %727 = vmatpush1.bf16.msra.mxu0 %v636
  %728 = vmatprep.subr.bf16.mxu0 %v629
  %729 = vmatpush1.bf16.msra.mxu0 %v628
  %730 = vmatprep.subr.bf16.mxu0 %v621
  %731 = vmatpush1.bf16.msra.mxu0 %v620
  %732 = vmatprep.subr.bf16.mxu0 %v613
  %733 = vmatpush1.bf16.msra.mxu0 %v612
  %734 = vmatprep.subr.bf16.mxu0 0
  %735 = vmatpush2.bf16.msra.mxu0 0
  %736 = vmatprep.subr.bf16.mxu0 0
  %737 = vmatpush2.bf16.msra.mxu0 0
  %738 = vmatprep.subr.bf16.mxu0 0
  %739 = vmatpush2.bf16.msra.mxu0 0
  %740 = vmatprep.subr.bf16.mxu0 0
  %741 = vmatpush2.bf16.msra.mxu0 0
  %742 = vmatprep.subr.bf16.mxu0 0
  %743 = vmatpush2.bf16.msra.mxu0 0
  %744 = vmatprep.subr.bf16.mxu0 0
  %745 = vmatpush2.bf16.msra.mxu0 0
  %746 = vmatprep.subr.bf16.mxu0 0
  %747 = vmatpush2.bf16.msra.mxu0 0
  %748 = vmatprep.subr.bf16.mxu0 0
  %749 = vmatpush2.bf16.msra.mxu0 0
  %750 = vmatprep.mubr.bf16.mxu0 0
  %751 = vmatmul.mubr.bf16.gmra.mxu0 %v675
  %v752 = vpop.f32.mrf.mxu0
  %v753 = vadd.f32 %v69, %v752
  %v754 = vpop.f32.mrf.mxu0
  %v755 = vadd.f32 %v69, %v754
  %v756 = vpop.f32.mrf.mxu0
  %v757 = vpop.f32.mrf.mxu0
  %758 = vdwg.mxu0
  %759 = vmatprep.subr.bf16.mxu0 0
  %760 = vmatpush1.bf16.msra.mxu0 0
  %761 = vmatprep.subr.bf16.mxu0 0
  %762 = vmatpush1.bf16.msra.mxu0 0
  %763 = vmatprep.subr.bf16.mxu0 0
  %764 = vmatpush1.bf16.msra.mxu0 0
  %765 = vmatprep.subr.bf16.mxu0 0
  %766 = vmatpush1.bf16.msra.mxu0 0
  %767 = vmatprep.subr.bf16.mxu0 %v639
  %768 = vmatpush1.bf16.msra.mxu0 %v638
  %769 = vmatprep.subr.bf16.mxu0 %v631
  %770 = vmatpush1.bf16.msra.mxu0 %v630
  %771 = vmatprep.subr.bf16.mxu0 %v623
  %772 = vmatpush1.bf16.msra.mxu0 %v622
  %773 = vmatprep.subr.bf16.mxu0 %v615
  %774 = vmatpush1.bf16.msra.mxu0 %v614
  %775 = vmatprep.subr.bf16.mxu0 0
  %776 = vmatpush2.bf16.msra.mxu0 0
  %777 = vmatprep.subr.bf16.mxu0 0
  %778 = vmatpush2.bf16.msra.mxu0 0
  %779 = vmatprep.subr.bf16.mxu0 0
  %780 = vmatpush2.bf16.msra.mxu0 0
  %781 = vmatprep.subr.bf16.mxu0 0
  %782 = vmatpush2.bf16.msra.mxu0 0
  %783 = vmatprep.subr.bf16.mxu0 0
  %784 = vmatpush2.bf16.msra.mxu0 0
  %785 = vmatprep.subr.bf16.mxu0 0
  %786 = vmatpush2.bf16.msra.mxu0 0
  %787 = vmatprep.subr.bf16.mxu0 0
  %788 = vmatpush2.bf16.msra.mxu0 0
  %789 = vmatprep.subr.bf16.mxu0 0
  %790 = vmatpush2.bf16.msra.mxu0 0
  %791 = vmatprep.mubr.bf16.mxu0 0
  %792 = vmatmul.mubr.bf16.gmra.mxu0 %v675
  %v793 = vpop.f32.mrf.mxu0
  %v794 = vadd.f32 %v69, %v793
  %v795 = vpop.f32.mrf.mxu0
  %v796 = vadd.f32 %v69, %v795
  %v797 = vpop.f32.mrf.mxu0
  %v798 = vpop.f32.mrf.mxu0
  %799 = vdwg.mxu0
  %800 = vmatprep.subr.bf16.mxu0 0
  %801 = vmatpush1.bf16.msra.mxu0 0
  %802 = vmatprep.subr.bf16.mxu0 0
  %803 = vmatpush1.bf16.msra.mxu0 0
  %804 = vmatprep.subr.bf16.mxu0 0
  %805 = vmatpush1.bf16.msra.mxu0 0
  %806 = vmatprep.subr.bf16.mxu0 0
  %807 = vmatpush1.bf16.msra.mxu0 0
  %808 = vmatprep.subr.bf16.mxu0 %v641
  %809 = vmatpush1.bf16.msra.mxu0 %v640
  %810 = vmatprep.subr.bf16.mxu0 %v633
  %811 = vmatpush1.bf16.msra.mxu0 %v632
  %812 = vmatprep.subr.bf16.mxu0 %v625
  %813 = vmatpush1.bf16.msra.mxu0 %v624
  %814 = vmatprep.subr.bf16.mxu0 %v617
  %815 = vmatpush1.bf16.msra.mxu0 %v616
  %816 = vmatprep.subr.bf16.mxu0 0
  %817 = vmatpush2.bf16.msra.mxu0 0
  %818 = vmatprep.subr.bf16.mxu0 0
  %819 = vmatpush2.bf16.msra.mxu0 0
  %820 = vmatprep.subr.bf16.mxu0 0
  %821 = vmatpush2.bf16.msra.mxu0 0
  %822 = vmatprep.subr.bf16.mxu0 0
  %823 = vmatpush2.bf16.msra.mxu0 0
  %824 = vmatprep.subr.bf16.mxu0 0
  %825 = vmatpush2.bf16.msra.mxu0 0
  %826 = vmatprep.subr.bf16.mxu0 0
  %827 = vmatpush2.bf16.msra.mxu0 0
  %828 = vmatprep.subr.bf16.mxu0 0
  %829 = vmatpush2.bf16.msra.mxu0 0
  %830 = vmatprep.subr.bf16.mxu0 0
  %831 = vmatpush2.bf16.msra.mxu0 0
  %832 = vmatprep.mubr.bf16.mxu0 0
  %833 = vmatmul.mubr.bf16.gmra.mxu0 %v675
  %v834 = vpop.f32.mrf.mxu0
  %v835 = vadd.f32 %v69, %v834
  %v836 = vpop.f32.mrf.mxu0
  %v837 = vadd.f32 %v69, %v836
  %v838 = vpop.f32.mrf.mxu0
  %v839 = vpop.f32.mrf.mxu0
  %840 = vdwg.mxu0
  %v841 = vsel %vm407, %v712, 0.0
  %v842 = vsel %vm408, %v714, 0.0
  %v843 = vsel %vm409, %v753, 0.0
  %v844 = vsel %vm410, %v755, 0.0
  %v845 = vsel %vm411, %v794, 0.0
  %v846 = vsel %vm412, %v796, 0.0
  %v847 = vsel %vm413, %v835, 0.0
  %v848 = vsel %vm414, %v837, 0.0
  %v849 = vadd.f32 %v712, %v714
  %v850 = vadd.f32 %v849, %v753
  %v851 = vadd.f32 %v850, %v755
  %v852 = vadd.f32 %v851, %v794
  %v853 = vadd.f32 %v852, %v796
  %v854 = vadd.f32 %v853, %v835
  %v855 = vadd.f32 %v854, %v837
  %856 = vadd.xlane.f32.xlu0 %v855
  %v857 = vpop.xlane.xlu0 %856
  %v858 = vadd.f32 %v432, %v857
  %v859 = vmul.f32 %v712, %v712
  %v860 = vmul.f32 %v714, %v714
  %v861 = vmul.f32 %v753, %v753
  %v862 = vmul.f32 %v755, %v755
  %v863 = vmul.f32 %v794, %v794
  %v864 = vmul.f32 %v796, %v796
  %v865 = vmul.f32 %v835, %v835
  %v866 = vmul.f32 %v837, %v837
  %v867 = vadd.f32 %v859, %v860
  %v868 = vadd.f32 %v867, %v861
  %v869 = vadd.f32 %v868, %v862
  %v870 = vadd.f32 %v869, %v863
  %v871 = vadd.f32 %v870, %v864
  %v872 = vadd.f32 %v871, %v865
  %v873 = vadd.f32 %v872, %v866
  %874 = vadd.xlane.f32.xlu0 %v873
  %v875 = vpop.xlane.xlu0 %874
  %v876 = vadd.f32 %v450, %v875
  %v877 = vadd.f32 %v841, %v842
  %v878 = vadd.f32 %v877, %v843
  %v879 = vadd.f32 %v878, %v844
  %v880 = vadd.f32 %v879, %v845
  %v881 = vadd.f32 %v880, %v846
  %v882 = vadd.f32 %v881, %v847
  %v883 = vadd.f32 %v882, %v848
  %884 = vadd.xlane.f32.xlu0 %v883
  %v885 = vpop.xlane.xlu0 %884
  %v886 = vadd.f32 %v460, %v885
  %v887 = vmul.f32 %v841, %v841
  %v888 = vmul.f32 %v842, %v842
  %v889 = vmul.f32 %v843, %v843
  %v890 = vmul.f32 %v844, %v844
  %v891 = vmul.f32 %v845, %v845
  %v892 = vmul.f32 %v846, %v846
  %v893 = vmul.f32 %v847, %v847
  %v894 = vmul.f32 %v848, %v848
  %v895 = vadd.f32 %v887, %v888
  %v896 = vadd.f32 %v895, %v889
  %v897 = vadd.f32 %v896, %v890
  %v898 = vadd.f32 %v897, %v891
  %v899 = vadd.f32 %v898, %v892
  %v900 = vadd.f32 %v899, %v893
  %v901 = vadd.f32 %v900, %v894
  %902 = vadd.xlane.f32.xlu0 %v901
  %v903 = vpop.xlane.xlu0 %902
  %v904 = vadd.f32 %v478, %v903
  %s905 = scalar_lea.vmem %s0, 8
  %v906 = vld [vmem:[%s905] sm:$0xf]
  %s907 = scalar_lea.vmem %s1, 512
  %v908 = vld [vmem:[%s907] sm:$0xff]
  %v909 = vld [vmem:[%s907 + $0x8] sm:$0xff]
  %v910 = vld [vmem:[%s907 + $0x10] sm:$0xff]
  %v911 = vld [vmem:[%s907 + $0x18] sm:$0xff]
  %v912 = vld [vmem:[%s907 + $0x20] sm:$0xff]
  %v913 = vld [vmem:[%s907 + $0x28] sm:$0xff]
  %v914 = vld [vmem:[%s907 + $0x30] sm:$0xff]
  %v915 = vld [vmem:[%s907 + $0x38] sm:$0xff]
  %v916 = vld [vmem:[%s907 + $0x40] sm:$0xff]
  %v917 = vld [vmem:[%s907 + $0x48] sm:$0xff]
  %v918 = vld [vmem:[%s907 + $0x50] sm:$0xff]
  %v919 = vld [vmem:[%s907 + $0x58] sm:$0xff]
  %v920 = vld [vmem:[%s907 + $0x60] sm:$0xff]
  %v921 = vld [vmem:[%s907 + $0x68] sm:$0xff]
  %v922 = vld [vmem:[%s907 + $0x70] sm:$0xff]
  %v923 = vld [vmem:[%s907 + $0x78] sm:$0xff]
  %v924 = vld [vmem:[%s907 + $0x80] sm:$0xff]
  %v925 = vld [vmem:[%s907 + $0x88] sm:$0xff]
  %v926 = vld [vmem:[%s907 + $0x90] sm:$0xff]
  %v927 = vld [vmem:[%s907 + $0x98] sm:$0xff]
  %v928 = vld [vmem:[%s907 + $0xa0] sm:$0xff]
  %v929 = vld [vmem:[%s907 + $0xa8] sm:$0xff]
  %v930 = vld [vmem:[%s907 + $0xb0] sm:$0xff]
  %v931 = vld [vmem:[%s907 + $0xb8] sm:$0xff]
  %v932 = vld [vmem:[%s907 + $0xc0] sm:$0xff]
  %v933 = vld [vmem:[%s907 + $0xc8] sm:$0xff]
  %v934 = vld [vmem:[%s907 + $0xd0] sm:$0xff]
  %v935 = vld [vmem:[%s907 + $0xd8] sm:$0xff]
  %v936 = vld [vmem:[%s907 + $0xe0] sm:$0xff]
  %v937 = vld [vmem:[%s907 + $0xe8] sm:$0xff]
  %v938 = vld [vmem:[%s907 + $0xf0] sm:$0xff]
  %v939 = vld [vmem:[%s907 + $0xf8] sm:$0xff]
  %v972 = vunpack.c.l.b16 %v908
  %v973 = vunpack.c.h.b16 %v908
  %v974 = vunpack.c.l.b16 %v909
  %v975 = vunpack.c.h.b16 %v909
  %v976 = vunpack.c.l.b16 %v910
  %v977 = vunpack.c.h.b16 %v910
  %v978 = vunpack.c.l.b16 %v911
  %v979 = vunpack.c.h.b16 %v911
  %v980 = vunpack.c.l.b16 %v912
  %v981 = vunpack.c.h.b16 %v912
  %v982 = vunpack.c.l.b16 %v913
  %v983 = vunpack.c.h.b16 %v913
  %v984 = vunpack.c.l.b16 %v914
  %v985 = vunpack.c.h.b16 %v914
  %v986 = vunpack.c.l.b16 %v915
  %v987 = vunpack.c.h.b16 %v915
  %v988 = vunpack.c.l.b16 %v916
  %v989 = vunpack.c.h.b16 %v916
  %v990 = vunpack.c.l.b16 %v917
  %v991 = vunpack.c.h.b16 %v917
  %v992 = vunpack.c.l.b16 %v918
  %v993 = vunpack.c.h.b16 %v918
  %v994 = vunpack.c.l.b16 %v919
  %v995 = vunpack.c.h.b16 %v919
  %v996 = vunpack.c.l.b16 %v920
  %v997 = vunpack.c.h.b16 %v920
  %v998 = vunpack.c.l.b16 %v921
  %v999 = vunpack.c.h.b16 %v921
  %v1000 = vunpack.c.l.b16 %v922
  %v1001 = vunpack.c.h.b16 %v922
  %v1002 = vunpack.c.l.b16 %v923
  %v1003 = vunpack.c.h.b16 %v923
  %v1004 = vunpack.c.l.b16 %v924
  %v1005 = vunpack.c.h.b16 %v924
  %v1006 = vunpack.c.l.b16 %v925
  %v1007 = vunpack.c.h.b16 %v925
  %v1008 = vunpack.c.l.b16 %v926
  %v1009 = vunpack.c.h.b16 %v926
  %v1010 = vunpack.c.l.b16 %v927
  %v1011 = vunpack.c.h.b16 %v927
  %v1012 = vunpack.c.l.b16 %v928
  %v1013 = vunpack.c.h.b16 %v928
  %v1014 = vunpack.c.l.b16 %v929
  %v1015 = vunpack.c.h.b16 %v929
  %v1016 = vunpack.c.l.b16 %v930
  %v1017 = vunpack.c.h.b16 %v930
  %v1018 = vunpack.c.l.b16 %v931
  %v1019 = vunpack.c.h.b16 %v931
  %v1020 = vunpack.c.l.b16 %v932
  %v1021 = vunpack.c.h.b16 %v932
  %v1022 = vunpack.c.l.b16 %v933
  %v1023 = vunpack.c.h.b16 %v933
  %v1024 = vunpack.c.l.b16 %v934
  %v1025 = vunpack.c.h.b16 %v934
  %v1026 = vunpack.c.l.b16 %v935
  %v1027 = vunpack.c.h.b16 %v935
  %v1028 = vunpack.c.l.b16 %v936
  %v1029 = vunpack.c.h.b16 %v936
  %v1030 = vunpack.c.l.b16 %v937
  %v1031 = vunpack.c.h.b16 %v937
  %v1032 = vunpack.c.l.b16 %v938
  %v1033 = vunpack.c.h.b16 %v938
  %v1034 = vunpack.c.l.b16 %v939
  %v1035 = vunpack.c.h.b16 %v939
  %v1036 = vpack.c.b16 %v980, %v972
  %v1037 = vpack.c.b16 %v981, %v973
  %v1038 = vpack.c.b16 %v982, %v974
  %v1039 = vpack.c.b16 %v983, %v975
  %v1040 = vpack.c.b16 %v984, %v976
  %v1041 = vpack.c.b16 %v985, %v977
  %v1042 = vpack.c.b16 %v986, %v978
  %v1043 = vpack.c.b16 %v987, %v979
  %v1044 = vpack.c.b16 %v996, %v988
  %v1045 = vpack.c.b16 %v997, %v989
  %v1046 = vpack.c.b16 %v998, %v990
  %v1047 = vpack.c.b16 %v999, %v991
  %v1048 = vpack.c.b16 %v1000, %v992
  %v1049 = vpack.c.b16 %v1001, %v993
  %v1050 = vpack.c.b16 %v1002, %v994
  %v1051 = vpack.c.b16 %v1003, %v995
  %v1052 = vpack.c.b16 %v1012, %v1004
  %v1053 = vpack.c.b16 %v1013, %v1005
  %v1054 = vpack.c.b16 %v1014, %v1006
  %v1055 = vpack.c.b16 %v1015, %v1007
  %v1056 = vpack.c.b16 %v1016, %v1008
  %v1057 = vpack.c.b16 %v1017, %v1009
  %v1058 = vpack.c.b16 %v1018, %v1010
  %v1059 = vpack.c.b16 %v1019, %v1011
  %v1060 = vpack.c.b16 %v1028, %v1020
  %v1061 = vpack.c.b16 %v1029, %v1021
  %v1062 = vpack.c.b16 %v1030, %v1022
  %v1063 = vpack.c.b16 %v1031, %v1023
  %v1064 = vpack.c.b16 %v1032, %v1024
  %v1065 = vpack.c.b16 %v1033, %v1025
  %v1066 = vpack.c.b16 %v1034, %v1026
  %v1067 = vpack.c.b16 %v1035, %v1027
  %v1101 = vsel %vm231, %v906, 0
  %1103 = vmatprep.subr.bf16.mxu0 0
  %1104 = vmatpush1.bf16.msra.mxu0 0
  %1105 = vmatprep.subr.bf16.mxu0 0
  %1106 = vmatpush1.bf16.msra.mxu0 0
  %1107 = vmatprep.subr.bf16.mxu0 0
  %1108 = vmatpush1.bf16.msra.mxu0 0
  %1109 = vmatprep.subr.bf16.mxu0 0
  %1110 = vmatpush1.bf16.msra.mxu0 0
  %1111 = vmatprep.subr.bf16.mxu0 %v1061
  %1112 = vmatpush1.bf16.msra.mxu0 %v1060
  %1113 = vmatprep.subr.bf16.mxu0 %v1053
  %1114 = vmatpush1.bf16.msra.mxu0 %v1052
  %1115 = vmatprep.subr.bf16.mxu0 %v1045
  %1116 = vmatpush1.bf16.msra.mxu0 %v1044
  %1117 = vmatprep.subr.bf16.mxu0 %v1037
  %1118 = vmatpush1.bf16.msra.mxu0 %v1036
  %1119 = vmatprep.subr.bf16.mxu0 0
  %1120 = vmatpush2.bf16.msra.mxu0 0
  %1121 = vmatprep.subr.bf16.mxu0 0
  %1122 = vmatpush2.bf16.msra.mxu0 0
  %1123 = vmatprep.subr.bf16.mxu0 0
  %1124 = vmatpush2.bf16.msra.mxu0 0
  %1125 = vmatprep.subr.bf16.mxu0 0
  %1126 = vmatpush2.bf16.msra.mxu0 0
  %1127 = vmatprep.subr.bf16.mxu0 0
  %1128 = vmatpush2.bf16.msra.mxu0 0
  %1129 = vmatprep.subr.bf16.mxu0 0
  %1130 = vmatpush2.bf16.msra.mxu0 0
  %1131 = vmatprep.subr.bf16.mxu0 0
  %1132 = vmatpush2.bf16.msra.mxu0 0
  %1133 = vmatprep.subr.bf16.mxu0 0
  %1134 = vmatpush2.bf16.msra.mxu0 0
  %1135 = vmatprep.mubr.bf16.mxu0 0
  %1136 = vmatmul.mubr.bf16.gmra.mxu0 %v1101
  %v1137 = vpop.f32.mrf.mxu0
  %v1138 = vadd.f32 %v69, %v1137
  %v1139 = vpop.f32.mrf.mxu0
  %v1140 = vadd.f32 %v69, %v1139
  %v1141 = vpop.f32.mrf.mxu0
  %v1142 = vpop.f32.mrf.mxu0
  %1143 = vdwg.mxu0
  %1144 = vmatprep.subr.bf16.mxu0 0
  %1145 = vmatpush1.bf16.msra.mxu0 0
  %1146 = vmatprep.subr.bf16.mxu0 0
  %1147 = vmatpush1.bf16.msra.mxu0 0
  %1148 = vmatprep.subr.bf16.mxu0 0
  %1149 = vmatpush1.bf16.msra.mxu0 0
  %1150 = vmatprep.subr.bf16.mxu0 0
  %1151 = vmatpush1.bf16.msra.mxu0 0
  %1152 = vmatprep.subr.bf16.mxu0 %v1063
  %1153 = vmatpush1.bf16.msra.mxu0 %v1062
  %1154 = vmatprep.subr.bf16.mxu0 %v1055
  %1155 = vmatpush1.bf16.msra.mxu0 %v1054
  %1156 = vmatprep.subr.bf16.mxu0 %v1047
  %1157 = vmatpush1.bf16.msra.mxu0 %v1046
  %1158 = vmatprep.subr.bf16.mxu0 %v1039
  %1159 = vmatpush1.bf16.msra.mxu0 %v1038
  %1160 = vmatprep.subr.bf16.mxu0 0
  %1161 = vmatpush2.bf16.msra.mxu0 0
  %1162 = vmatprep.subr.bf16.mxu0 0
  %1163 = vmatpush2.bf16.msra.mxu0 0
  %1164 = vmatprep.subr.bf16.mxu0 0
  %1165 = vmatpush2.bf16.msra.mxu0 0
  %1166 = vmatprep.subr.bf16.mxu0 0
  %1167 = vmatpush2.bf16.msra.mxu0 0
  %1168 = vmatprep.subr.bf16.mxu0 0
  %1169 = vmatpush2.bf16.msra.mxu0 0
  %1170 = vmatprep.subr.bf16.mxu0 0
  %1171 = vmatpush2.bf16.msra.mxu0 0
  %1172 = vmatprep.subr.bf16.mxu0 0
  %1173 = vmatpush2.bf16.msra.mxu0 0
  %1174 = vmatprep.subr.bf16.mxu0 0
  %1175 = vmatpush2.bf16.msra.mxu0 0
  %1176 = vmatprep.mubr.bf16.mxu0 0
  %1177 = vmatmul.mubr.bf16.gmra.mxu0 %v1101
  %v1178 = vpop.f32.mrf.mxu0
  %v1179 = vadd.f32 %v69, %v1178
  %v1180 = vpop.f32.mrf.mxu0
  %v1181 = vadd.f32 %v69, %v1180
  %v1182 = vpop.f32.mrf.mxu0
  %v1183 = vpop.f32.mrf.mxu0
  %1184 = vdwg.mxu0
  %1185 = vmatprep.subr.bf16.mxu0 0
  %1186 = vmatpush1.bf16.msra.mxu0 0
  %1187 = vmatprep.subr.bf16.mxu0 0
  %1188 = vmatpush1.bf16.msra.mxu0 0
  %1189 = vmatprep.subr.bf16.mxu0 0
  %1190 = vmatpush1.bf16.msra.mxu0 0
  %1191 = vmatprep.subr.bf16.mxu0 0
  %1192 = vmatpush1.bf16.msra.mxu0 0
  %1193 = vmatprep.subr.bf16.mxu0 %v1065
  %1194 = vmatpush1.bf16.msra.mxu0 %v1064
  %1195 = vmatprep.subr.bf16.mxu0 %v1057
  %1196 = vmatpush1.bf16.msra.mxu0 %v1056
  %1197 = vmatprep.subr.bf16.mxu0 %v1049
  %1198 = vmatpush1.bf16.msra.mxu0 %v1048
  %1199 = vmatprep.subr.bf16.mxu0 %v1041
  %1200 = vmatpush1.bf16.msra.mxu0 %v1040
  %1201 = vmatprep.subr.bf16.mxu0 0
  %1202 = vmatpush2.bf16.msra.mxu0 0
  %1203 = vmatprep.subr.bf16.mxu0 0
  %1204 = vmatpush2.bf16.msra.mxu0 0
  %1205 = vmatprep.subr.bf16.mxu0 0
  %1206 = vmatpush2.bf16.msra.mxu0 0
  %1207 = vmatprep.subr.bf16.mxu0 0
  %1208 = vmatpush2.bf16.msra.mxu0 0
  %1209 = vmatprep.subr.bf16.mxu0 0
  %1210 = vmatpush2.bf16.msra.mxu0 0
  %1211 = vmatprep.subr.bf16.mxu0 0
  %1212 = vmatpush2.bf16.msra.mxu0 0
  %1213 = vmatprep.subr.bf16.mxu0 0
  %1214 = vmatpush2.bf16.msra.mxu0 0
  %1215 = vmatprep.subr.bf16.mxu0 0
  %1216 = vmatpush2.bf16.msra.mxu0 0
  %1217 = vmatprep.mubr.bf16.mxu0 0
  %1218 = vmatmul.mubr.bf16.gmra.mxu0 %v1101
  %v1219 = vpop.f32.mrf.mxu0
  %v1220 = vadd.f32 %v69, %v1219
  %v1221 = vpop.f32.mrf.mxu0
  %v1222 = vadd.f32 %v69, %v1221
  %v1223 = vpop.f32.mrf.mxu0
  %v1224 = vpop.f32.mrf.mxu0
  %1225 = vdwg.mxu0
  %1226 = vmatprep.subr.bf16.mxu0 0
  %1227 = vmatpush1.bf16.msra.mxu0 0
  %1228 = vmatprep.subr.bf16.mxu0 0
  %1229 = vmatpush1.bf16.msra.mxu0 0
  %1230 = vmatprep.subr.bf16.mxu0 0
  %1231 = vmatpush1.bf16.msra.mxu0 0
  %1232 = vmatprep.subr.bf16.mxu0 0
  %1233 = vmatpush1.bf16.msra.mxu0 0
  %1234 = vmatprep.subr.bf16.mxu0 %v1067
  %1235 = vmatpush1.bf16.msra.mxu0 %v1066
  %1236 = vmatprep.subr.bf16.mxu0 %v1059
  %1237 = vmatpush1.bf16.msra.mxu0 %v1058
  %1238 = vmatprep.subr.bf16.mxu0 %v1051
  %1239 = vmatpush1.bf16.msra.mxu0 %v1050
  %1240 = vmatprep.subr.bf16.mxu0 %v1043
  %1241 = vmatpush1.bf16.msra.mxu0 %v1042
  %1242 = vmatprep.subr.bf16.mxu0 0
  %1243 = vmatpush2.bf16.msra.mxu0 0
  %1244 = vmatprep.subr.bf16.mxu0 0
  %1245 = vmatpush2.bf16.msra.mxu0 0
  %1246 = vmatprep.subr.bf16.mxu0 0
  %1247 = vmatpush2.bf16.msra.mxu0 0
  %1248 = vmatprep.subr.bf16.mxu0 0
  %1249 = vmatpush2.bf16.msra.mxu0 0
  %1250 = vmatprep.subr.bf16.mxu0 0
  %1251 = vmatpush2.bf16.msra.mxu0 0
  %1252 = vmatprep.subr.bf16.mxu0 0
  %1253 = vmatpush2.bf16.msra.mxu0 0
  %1254 = vmatprep.subr.bf16.mxu0 0
  %1255 = vmatpush2.bf16.msra.mxu0 0
  %1256 = vmatprep.subr.bf16.mxu0 0
  %1257 = vmatpush2.bf16.msra.mxu0 0
  %1258 = vmatprep.mubr.bf16.mxu0 0
  %1259 = vmatmul.mubr.bf16.gmra.mxu0 %v1101
  %v1260 = vpop.f32.mrf.mxu0
  %v1261 = vadd.f32 %v69, %v1260
  %v1262 = vpop.f32.mrf.mxu0
  %v1263 = vadd.f32 %v69, %v1262
  %v1264 = vpop.f32.mrf.mxu0
  %v1265 = vpop.f32.mrf.mxu0
  %1266 = vdwg.mxu0
  %v1267 = vsel %vm407, %v1138, 0.0
  %v1268 = vsel %vm408, %v1140, 0.0
  %v1269 = vsel %vm409, %v1179, 0.0
  %v1270 = vsel %vm410, %v1181, 0.0
  %v1271 = vsel %vm411, %v1220, 0.0
  %v1272 = vsel %vm412, %v1222, 0.0
  %v1273 = vsel %vm413, %v1261, 0.0
  %v1274 = vsel %vm414, %v1263, 0.0
  %v1275 = vadd.f32 %v1138, %v1140
  %v1276 = vadd.f32 %v1275, %v1179
  %v1277 = vadd.f32 %v1276, %v1181
  %v1278 = vadd.f32 %v1277, %v1220
  %v1279 = vadd.f32 %v1278, %v1222
  %v1280 = vadd.f32 %v1279, %v1261
  %v1281 = vadd.f32 %v1280, %v1263
  %1282 = vadd.xlane.f32.xlu0 %v1281
  %v1283 = vpop.xlane.xlu0 %1282
  %v1284 = vadd.f32 %v858, %v1283
  %v1285 = vmul.f32 %v1138, %v1138
  %v1286 = vmul.f32 %v1140, %v1140
  %v1287 = vmul.f32 %v1179, %v1179
  %v1288 = vmul.f32 %v1181, %v1181
  %v1289 = vmul.f32 %v1220, %v1220
  %v1290 = vmul.f32 %v1222, %v1222
  %v1291 = vmul.f32 %v1261, %v1261
  %v1292 = vmul.f32 %v1263, %v1263
  %v1293 = vadd.f32 %v1285, %v1286
  %v1294 = vadd.f32 %v1293, %v1287
  %v1295 = vadd.f32 %v1294, %v1288
  %v1296 = vadd.f32 %v1295, %v1289
  %v1297 = vadd.f32 %v1296, %v1290
  %v1298 = vadd.f32 %v1297, %v1291
  %v1299 = vadd.f32 %v1298, %v1292
  %1300 = vadd.xlane.f32.xlu0 %v1299
  %v1301 = vpop.xlane.xlu0 %1300
  %v1302 = vadd.f32 %v876, %v1301
  %v1303 = vadd.f32 %v1267, %v1268
  %v1304 = vadd.f32 %v1303, %v1269
  %v1305 = vadd.f32 %v1304, %v1270
  %v1306 = vadd.f32 %v1305, %v1271
  %v1307 = vadd.f32 %v1306, %v1272
  %v1308 = vadd.f32 %v1307, %v1273
  %v1309 = vadd.f32 %v1308, %v1274
  %1310 = vadd.xlane.f32.xlu0 %v1309
  %v1311 = vpop.xlane.xlu0 %1310
  %v1312 = vadd.f32 %v886, %v1311
  %v1313 = vmul.f32 %v1267, %v1267
  %v1314 = vmul.f32 %v1268, %v1268
  %v1315 = vmul.f32 %v1269, %v1269
  %v1316 = vmul.f32 %v1270, %v1270
  %v1317 = vmul.f32 %v1271, %v1271
  %v1318 = vmul.f32 %v1272, %v1272
  %v1319 = vmul.f32 %v1273, %v1273
  %v1320 = vmul.f32 %v1274, %v1274
  %v1321 = vadd.f32 %v1313, %v1314
  %v1322 = vadd.f32 %v1321, %v1315
  %v1323 = vadd.f32 %v1322, %v1316
  %v1324 = vadd.f32 %v1323, %v1317
  %v1325 = vadd.f32 %v1324, %v1318
  %v1326 = vadd.f32 %v1325, %v1319
  %v1327 = vadd.f32 %v1326, %v1320
  %1328 = vadd.xlane.f32.xlu0 %v1327
  %v1329 = vpop.xlane.xlu0 %1328
  %v1330 = vadd.f32 %v904, %v1329
  %s1331 = scalar_lea.vmem %s0, 12
  %v1332 = vld [vmem:[%s1331] sm:$0xf]
  %s1333 = scalar_lea.vmem %s1, 768
  %v1334 = vld [vmem:[%s1333] sm:$0xff]
  %v1335 = vld [vmem:[%s1333 + $0x8] sm:$0xff]
  %v1336 = vld [vmem:[%s1333 + $0x10] sm:$0xff]
  %v1337 = vld [vmem:[%s1333 + $0x18] sm:$0xff]
  %v1338 = vld [vmem:[%s1333 + $0x20] sm:$0xff]
  %v1339 = vld [vmem:[%s1333 + $0x28] sm:$0xff]
  %v1340 = vld [vmem:[%s1333 + $0x30] sm:$0xff]
  %v1341 = vld [vmem:[%s1333 + $0x38] sm:$0xff]
  %v1342 = vld [vmem:[%s1333 + $0x40] sm:$0xff]
  %v1343 = vld [vmem:[%s1333 + $0x48] sm:$0xff]
  %v1344 = vld [vmem:[%s1333 + $0x50] sm:$0xff]
  %v1345 = vld [vmem:[%s1333 + $0x58] sm:$0xff]
  %v1346 = vld [vmem:[%s1333 + $0x60] sm:$0xff]
  %v1347 = vld [vmem:[%s1333 + $0x68] sm:$0xff]
  %v1348 = vld [vmem:[%s1333 + $0x70] sm:$0xff]
  %v1349 = vld [vmem:[%s1333 + $0x78] sm:$0xff]
  %v1350 = vld [vmem:[%s1333 + $0x80] sm:$0xff]
  %v1351 = vld [vmem:[%s1333 + $0x88] sm:$0xff]
  %v1352 = vld [vmem:[%s1333 + $0x90] sm:$0xff]
  %v1353 = vld [vmem:[%s1333 + $0x98] sm:$0xff]
  %v1354 = vld [vmem:[%s1333 + $0xa0] sm:$0xff]
  %v1355 = vld [vmem:[%s1333 + $0xa8] sm:$0xff]
  %v1356 = vld [vmem:[%s1333 + $0xb0] sm:$0xff]
  %v1357 = vld [vmem:[%s1333 + $0xb8] sm:$0xff]
  %v1358 = vld [vmem:[%s1333 + $0xc0] sm:$0xff]
  %v1359 = vld [vmem:[%s1333 + $0xc8] sm:$0xff]
  %v1360 = vld [vmem:[%s1333 + $0xd0] sm:$0xff]
  %v1361 = vld [vmem:[%s1333 + $0xd8] sm:$0xff]
  %v1362 = vld [vmem:[%s1333 + $0xe0] sm:$0xff]
  %v1363 = vld [vmem:[%s1333 + $0xe8] sm:$0xff]
  %v1364 = vld [vmem:[%s1333 + $0xf0] sm:$0xff]
  %v1365 = vld [vmem:[%s1333 + $0xf8] sm:$0xff]
  %v1398 = vunpack.c.l.b16 %v1334
  %v1399 = vunpack.c.h.b16 %v1334
  %v1400 = vunpack.c.l.b16 %v1335
  %v1401 = vunpack.c.h.b16 %v1335
  %v1402 = vunpack.c.l.b16 %v1336
  %v1403 = vunpack.c.h.b16 %v1336
  %v1404 = vunpack.c.l.b16 %v1337
  %v1405 = vunpack.c.h.b16 %v1337
  %v1406 = vunpack.c.l.b16 %v1338
  %v1407 = vunpack.c.h.b16 %v1338
  %v1408 = vunpack.c.l.b16 %v1339
  %v1409 = vunpack.c.h.b16 %v1339
  %v1410 = vunpack.c.l.b16 %v1340
  %v1411 = vunpack.c.h.b16 %v1340
  %v1412 = vunpack.c.l.b16 %v1341
  %v1413 = vunpack.c.h.b16 %v1341
  %v1414 = vunpack.c.l.b16 %v1342
  %v1415 = vunpack.c.h.b16 %v1342
  %v1416 = vunpack.c.l.b16 %v1343
  %v1417 = vunpack.c.h.b16 %v1343
  %v1418 = vunpack.c.l.b16 %v1344
  %v1419 = vunpack.c.h.b16 %v1344
  %v1420 = vunpack.c.l.b16 %v1345
  %v1421 = vunpack.c.h.b16 %v1345
  %v1422 = vunpack.c.l.b16 %v1346
  %v1423 = vunpack.c.h.b16 %v1346
  %v1424 = vunpack.c.l.b16 %v1347
  %v1425 = vunpack.c.h.b16 %v1347
  %v1426 = vunpack.c.l.b16 %v1348
  %v1427 = vunpack.c.h.b16 %v1348
  %v1428 = vunpack.c.l.b16 %v1349
  %v1429 = vunpack.c.h.b16 %v1349
  %v1430 = vunpack.c.l.b16 %v1350
  %v1431 = vunpack.c.h.b16 %v1350
  %v1432 = vunpack.c.l.b16 %v1351
  %v1433 = vunpack.c.h.b16 %v1351
  %v1434 = vunpack.c.l.b16 %v1352
  %v1435 = vunpack.c.h.b16 %v1352
  %v1436 = vunpack.c.l.b16 %v1353
  %v1437 = vunpack.c.h.b16 %v1353
  %v1438 = vunpack.c.l.b16 %v1354
  %v1439 = vunpack.c.h.b16 %v1354
  %v1440 = vunpack.c.l.b16 %v1355
  %v1441 = vunpack.c.h.b16 %v1355
  %v1442 = vunpack.c.l.b16 %v1356
  %v1443 = vunpack.c.h.b16 %v1356
  %v1444 = vunpack.c.l.b16 %v1357
  %v1445 = vunpack.c.h.b16 %v1357
  %v1446 = vunpack.c.l.b16 %v1358
  %v1447 = vunpack.c.h.b16 %v1358
  %v1448 = vunpack.c.l.b16 %v1359
  %v1449 = vunpack.c.h.b16 %v1359
  %v1450 = vunpack.c.l.b16 %v1360
  %v1451 = vunpack.c.h.b16 %v1360
  %v1452 = vunpack.c.l.b16 %v1361
  %v1453 = vunpack.c.h.b16 %v1361
  %v1454 = vunpack.c.l.b16 %v1362
  %v1455 = vunpack.c.h.b16 %v1362
  %v1456 = vunpack.c.l.b16 %v1363
  %v1457 = vunpack.c.h.b16 %v1363
  %v1458 = vunpack.c.l.b16 %v1364
  %v1459 = vunpack.c.h.b16 %v1364
  %v1460 = vunpack.c.l.b16 %v1365
  %v1461 = vunpack.c.h.b16 %v1365
  %v1462 = vpack.c.b16 %v1406, %v1398
  %v1463 = vpack.c.b16 %v1407, %v1399
  %v1464 = vpack.c.b16 %v1408, %v1400
  %v1465 = vpack.c.b16 %v1409, %v1401
  %v1466 = vpack.c.b16 %v1410, %v1402
  %v1467 = vpack.c.b16 %v1411, %v1403
  %v1468 = vpack.c.b16 %v1412, %v1404
  %v1469 = vpack.c.b16 %v1413, %v1405
  %v1470 = vpack.c.b16 %v1422, %v1414
  %v1471 = vpack.c.b16 %v1423, %v1415
  %v1472 = vpack.c.b16 %v1424, %v1416
  %v1473 = vpack.c.b16 %v1425, %v1417
  %v1474 = vpack.c.b16 %v1426, %v1418
  %v1475 = vpack.c.b16 %v1427, %v1419
  %v1476 = vpack.c.b16 %v1428, %v1420
  %v1477 = vpack.c.b16 %v1429, %v1421
  %v1478 = vpack.c.b16 %v1438, %v1430
  %v1479 = vpack.c.b16 %v1439, %v1431
  %v1480 = vpack.c.b16 %v1440, %v1432
  %v1481 = vpack.c.b16 %v1441, %v1433
  %v1482 = vpack.c.b16 %v1442, %v1434
  %v1483 = vpack.c.b16 %v1443, %v1435
  %v1484 = vpack.c.b16 %v1444, %v1436
  %v1485 = vpack.c.b16 %v1445, %v1437
  %v1486 = vpack.c.b16 %v1454, %v1446
  %v1487 = vpack.c.b16 %v1455, %v1447
  %v1488 = vpack.c.b16 %v1456, %v1448
  %v1489 = vpack.c.b16 %v1457, %v1449
  %v1490 = vpack.c.b16 %v1458, %v1450
  %v1491 = vpack.c.b16 %v1459, %v1451
  %v1492 = vpack.c.b16 %v1460, %v1452
  %v1493 = vpack.c.b16 %v1461, %v1453
  %v1527 = vsel %vm231, %v1332, 0
  %1529 = vmatprep.subr.bf16.mxu0 0
  %1530 = vmatpush1.bf16.msra.mxu0 0
  %1531 = vmatprep.subr.bf16.mxu0 0
  %1532 = vmatpush1.bf16.msra.mxu0 0
  %1533 = vmatprep.subr.bf16.mxu0 0
  %1534 = vmatpush1.bf16.msra.mxu0 0
  %1535 = vmatprep.subr.bf16.mxu0 0
  %1536 = vmatpush1.bf16.msra.mxu0 0
  %1537 = vmatprep.subr.bf16.mxu0 %v1487
  %1538 = vmatpush1.bf16.msra.mxu0 %v1486
  %1539 = vmatprep.subr.bf16.mxu0 %v1479
  %1540 = vmatpush1.bf16.msra.mxu0 %v1478
  %1541 = vmatprep.subr.bf16.mxu0 %v1471
  %1542 = vmatpush1.bf16.msra.mxu0 %v1470
  %1543 = vmatprep.subr.bf16.mxu0 %v1463
  %1544 = vmatpush1.bf16.msra.mxu0 %v1462
  %1545 = vmatprep.subr.bf16.mxu0 0
  %1546 = vmatpush2.bf16.msra.mxu0 0
  %1547 = vmatprep.subr.bf16.mxu0 0
  %1548 = vmatpush2.bf16.msra.mxu0 0
  %1549 = vmatprep.subr.bf16.mxu0 0
  %1550 = vmatpush2.bf16.msra.mxu0 0
  %1551 = vmatprep.subr.bf16.mxu0 0
  %1552 = vmatpush2.bf16.msra.mxu0 0
  %1553 = vmatprep.subr.bf16.mxu0 0
  %1554 = vmatpush2.bf16.msra.mxu0 0
  %1555 = vmatprep.subr.bf16.mxu0 0
  %1556 = vmatpush2.bf16.msra.mxu0 0
  %1557 = vmatprep.subr.bf16.mxu0 0
  %1558 = vmatpush2.bf16.msra.mxu0 0
  %1559 = vmatprep.subr.bf16.mxu0 0
  %1560 = vmatpush2.bf16.msra.mxu0 0
  %1561 = vmatprep.mubr.bf16.mxu0 0
  %1562 = vmatmul.mubr.bf16.gmra.mxu0 %v1527
  %v1563 = vpop.f32.mrf.mxu0
  %v1564 = vadd.f32 %v69, %v1563
  %v1565 = vpop.f32.mrf.mxu0
  %v1566 = vadd.f32 %v69, %v1565
  %v1567 = vpop.f32.mrf.mxu0
  %v1568 = vpop.f32.mrf.mxu0
  %1569 = vdwg.mxu0
  %1570 = vmatprep.subr.bf16.mxu0 0
  %1571 = vmatpush1.bf16.msra.mxu0 0
  %1572 = vmatprep.subr.bf16.mxu0 0
  %1573 = vmatpush1.bf16.msra.mxu0 0
  %1574 = vmatprep.subr.bf16.mxu0 0
  %1575 = vmatpush1.bf16.msra.mxu0 0
  %1576 = vmatprep.subr.bf16.mxu0 0
  %1577 = vmatpush1.bf16.msra.mxu0 0
  %1578 = vmatprep.subr.bf16.mxu0 %v1489
  %1579 = vmatpush1.bf16.msra.mxu0 %v1488
  %1580 = vmatprep.subr.bf16.mxu0 %v1481
  %1581 = vmatpush1.bf16.msra.mxu0 %v1480
  %1582 = vmatprep.subr.bf16.mxu0 %v1473
  %1583 = vmatpush1.bf16.msra.mxu0 %v1472
  %1584 = vmatprep.subr.bf16.mxu0 %v1465
  %1585 = vmatpush1.bf16.msra.mxu0 %v1464
  %1586 = vmatprep.subr.bf16.mxu0 0
  %1587 = vmatpush2.bf16.msra.mxu0 0
  %1588 = vmatprep.subr.bf16.mxu0 0
  %1589 = vmatpush2.bf16.msra.mxu0 0
  %1590 = vmatprep.subr.bf16.mxu0 0
  %1591 = vmatpush2.bf16.msra.mxu0 0
  %1592 = vmatprep.subr.bf16.mxu0 0
  %1593 = vmatpush2.bf16.msra.mxu0 0
  %1594 = vmatprep.subr.bf16.mxu0 0
  %1595 = vmatpush2.bf16.msra.mxu0 0
  %1596 = vmatprep.subr.bf16.mxu0 0
  %1597 = vmatpush2.bf16.msra.mxu0 0
  %1598 = vmatprep.subr.bf16.mxu0 0
  %1599 = vmatpush2.bf16.msra.mxu0 0
  %1600 = vmatprep.subr.bf16.mxu0 0
  %1601 = vmatpush2.bf16.msra.mxu0 0
  %1602 = vmatprep.mubr.bf16.mxu0 0
  %1603 = vmatmul.mubr.bf16.gmra.mxu0 %v1527
  %v1604 = vpop.f32.mrf.mxu0
  %v1605 = vadd.f32 %v69, %v1604
  %v1606 = vpop.f32.mrf.mxu0
  %v1607 = vadd.f32 %v69, %v1606
  %v1608 = vpop.f32.mrf.mxu0
  %v1609 = vpop.f32.mrf.mxu0
  %1610 = vdwg.mxu0
  %1611 = vmatprep.subr.bf16.mxu0 0
  %1612 = vmatpush1.bf16.msra.mxu0 0
  %1613 = vmatprep.subr.bf16.mxu0 0
  %1614 = vmatpush1.bf16.msra.mxu0 0
  %1615 = vmatprep.subr.bf16.mxu0 0
  %1616 = vmatpush1.bf16.msra.mxu0 0
  %1617 = vmatprep.subr.bf16.mxu0 0
  %1618 = vmatpush1.bf16.msra.mxu0 0
  %1619 = vmatprep.subr.bf16.mxu0 %v1491
  %1620 = vmatpush1.bf16.msra.mxu0 %v1490
  %1621 = vmatprep.subr.bf16.mxu0 %v1483
  %1622 = vmatpush1.bf16.msra.mxu0 %v1482
  %1623 = vmatprep.subr.bf16.mxu0 %v1475
  %1624 = vmatpush1.bf16.msra.mxu0 %v1474
  %1625 = vmatprep.subr.bf16.mxu0 %v1467
  %1626 = vmatpush1.bf16.msra.mxu0 %v1466
  %1627 = vmatprep.subr.bf16.mxu0 0
  %1628 = vmatpush2.bf16.msra.mxu0 0
  %1629 = vmatprep.subr.bf16.mxu0 0
  %1630 = vmatpush2.bf16.msra.mxu0 0
  %1631 = vmatprep.subr.bf16.mxu0 0
  %1632 = vmatpush2.bf16.msra.mxu0 0
  %1633 = vmatprep.subr.bf16.mxu0 0
  %1634 = vmatpush2.bf16.msra.mxu0 0
  %1635 = vmatprep.subr.bf16.mxu0 0
  %1636 = vmatpush2.bf16.msra.mxu0 0
  %1637 = vmatprep.subr.bf16.mxu0 0
  %1638 = vmatpush2.bf16.msra.mxu0 0
  %1639 = vmatprep.subr.bf16.mxu0 0
  %1640 = vmatpush2.bf16.msra.mxu0 0
  %1641 = vmatprep.subr.bf16.mxu0 0
  %1642 = vmatpush2.bf16.msra.mxu0 0
  %1643 = vmatprep.mubr.bf16.mxu0 0
  %1644 = vmatmul.mubr.bf16.gmra.mxu0 %v1527
  %v1645 = vpop.f32.mrf.mxu0
  %v1646 = vadd.f32 %v69, %v1645
  %v1647 = vpop.f32.mrf.mxu0
  %v1648 = vadd.f32 %v69, %v1647
  %v1649 = vpop.f32.mrf.mxu0
  %v1650 = vpop.f32.mrf.mxu0
  %1651 = vdwg.mxu0
  %1652 = vmatprep.subr.bf16.mxu0 0
  %1653 = vmatpush1.bf16.msra.mxu0 0
  %1654 = vmatprep.subr.bf16.mxu0 0
  %1655 = vmatpush1.bf16.msra.mxu0 0
  %1656 = vmatprep.subr.bf16.mxu0 0
  %1657 = vmatpush1.bf16.msra.mxu0 0
  %1658 = vmatprep.subr.bf16.mxu0 0
  %1659 = vmatpush1.bf16.msra.mxu0 0
  %1660 = vmatprep.subr.bf16.mxu0 %v1493
  %1661 = vmatpush1.bf16.msra.mxu0 %v1492
  %1662 = vmatprep.subr.bf16.mxu0 %v1485
  %1663 = vmatpush1.bf16.msra.mxu0 %v1484
  %1664 = vmatprep.subr.bf16.mxu0 %v1477
  %1665 = vmatpush1.bf16.msra.mxu0 %v1476
  %1666 = vmatprep.subr.bf16.mxu0 %v1469
  %1667 = vmatpush1.bf16.msra.mxu0 %v1468
  %1668 = vmatprep.subr.bf16.mxu0 0
  %1669 = vmatpush2.bf16.msra.mxu0 0
  %1670 = vmatprep.subr.bf16.mxu0 0
  %1671 = vmatpush2.bf16.msra.mxu0 0
  %1672 = vmatprep.subr.bf16.mxu0 0
  %1673 = vmatpush2.bf16.msra.mxu0 0
  %1674 = vmatprep.subr.bf16.mxu0 0
  %1675 = vmatpush2.bf16.msra.mxu0 0
  %1676 = vmatprep.subr.bf16.mxu0 0
  %1677 = vmatpush2.bf16.msra.mxu0 0
  %1678 = vmatprep.subr.bf16.mxu0 0
  %1679 = vmatpush2.bf16.msra.mxu0 0
  %1680 = vmatprep.subr.bf16.mxu0 0
  %1681 = vmatpush2.bf16.msra.mxu0 0
  %1682 = vmatprep.subr.bf16.mxu0 0
  %1683 = vmatpush2.bf16.msra.mxu0 0
  %1684 = vmatprep.mubr.bf16.mxu0 0
  %1685 = vmatmul.mubr.bf16.gmra.mxu0 %v1527
  %v1686 = vpop.f32.mrf.mxu0
  %v1687 = vadd.f32 %v69, %v1686
  %v1688 = vpop.f32.mrf.mxu0
  %v1689 = vadd.f32 %v69, %v1688
  %v1690 = vpop.f32.mrf.mxu0
  %v1691 = vpop.f32.mrf.mxu0
  %1692 = vdwg.mxu0
  %v1693 = vsel %vm407, %v1564, 0.0
  %v1694 = vsel %vm408, %v1566, 0.0
  %v1695 = vsel %vm409, %v1605, 0.0
  %v1696 = vsel %vm410, %v1607, 0.0
  %v1697 = vsel %vm411, %v1646, 0.0
  %v1698 = vsel %vm412, %v1648, 0.0
  %v1699 = vsel %vm413, %v1687, 0.0
  %v1700 = vsel %vm414, %v1689, 0.0
  %v1701 = vadd.f32 %v1564, %v1566
  %v1702 = vadd.f32 %v1701, %v1605
  %v1703 = vadd.f32 %v1702, %v1607
  %v1704 = vadd.f32 %v1703, %v1646
  %v1705 = vadd.f32 %v1704, %v1648
  %v1706 = vadd.f32 %v1705, %v1687
  %v1707 = vadd.f32 %v1706, %v1689
  %1708 = vadd.xlane.f32.xlu0 %v1707
  %v1709 = vpop.xlane.xlu0 %1708
  %v1710 = vadd.f32 %v1284, %v1709
  %v1711 = vmul.f32 %v1564, %v1564
  %v1712 = vmul.f32 %v1566, %v1566
  %v1713 = vmul.f32 %v1605, %v1605
  %v1714 = vmul.f32 %v1607, %v1607
  %v1715 = vmul.f32 %v1646, %v1646
  %v1716 = vmul.f32 %v1648, %v1648
  %v1717 = vmul.f32 %v1687, %v1687
  %v1718 = vmul.f32 %v1689, %v1689
  %v1719 = vadd.f32 %v1711, %v1712
  %v1720 = vadd.f32 %v1719, %v1713
  %v1721 = vadd.f32 %v1720, %v1714
  %v1722 = vadd.f32 %v1721, %v1715
  %v1723 = vadd.f32 %v1722, %v1716
  %v1724 = vadd.f32 %v1723, %v1717
  %v1725 = vadd.f32 %v1724, %v1718
  %1726 = vadd.xlane.f32.xlu0 %v1725
  %v1727 = vpop.xlane.xlu0 %1726
  %v1728 = vadd.f32 %v1302, %v1727
  %v1729 = vadd.f32 %v1693, %v1694
  %v1730 = vadd.f32 %v1729, %v1695
  %v1731 = vadd.f32 %v1730, %v1696
  %v1732 = vadd.f32 %v1731, %v1697
  %v1733 = vadd.f32 %v1732, %v1698
  %v1734 = vadd.f32 %v1733, %v1699
  %v1735 = vadd.f32 %v1734, %v1700
  %1736 = vadd.xlane.f32.xlu0 %v1735
  %v1737 = vpop.xlane.xlu0 %1736
  %v1738 = vadd.f32 %v1312, %v1737
  %v1739 = vmul.f32 %v1693, %v1693
  %v1740 = vmul.f32 %v1694, %v1694
  %v1741 = vmul.f32 %v1695, %v1695
  %v1742 = vmul.f32 %v1696, %v1696
  %v1743 = vmul.f32 %v1697, %v1697
  %v1744 = vmul.f32 %v1698, %v1698
  %v1745 = vmul.f32 %v1699, %v1699
  %v1746 = vmul.f32 %v1700, %v1700
  %v1747 = vadd.f32 %v1739, %v1740
  %v1748 = vadd.f32 %v1747, %v1741
  %v1749 = vadd.f32 %v1748, %v1742
  %v1750 = vadd.f32 %v1749, %v1743
  %v1751 = vadd.f32 %v1750, %v1744
  %v1752 = vadd.f32 %v1751, %v1745
  %v1753 = vadd.f32 %v1752, %v1746
  %1754 = vadd.xlane.f32.xlu0 %v1753
  %v1755 = vpop.xlane.xlu0 %1754
  %v1756 = vadd.f32 %v1330, %v1755
  %v1757 = vmul.f32 %v1738, 0.00048828125
  %v1758 = vmul.f32 %v1756, 0.00048828125
  %v1759 = vsub.f32 %v1710, %v1738
  %v1760 = vmul.f32 %v1759, 0.00048828125
  %v1761 = vsub.f32 %v1728, %v1756
  %v1762 = vmul.f32 %v1761, 0.00048828125
  %v1763 = vmul.f32 %v1760, 0.33333334
  %v1764 = vmul.f32 %v1757, 0.6666667
  %v1765 = vadd.f32 %v1763, %v1764
  %v1766 = vmul.f32 %v1762, 0.33333334
  %v1767 = vmul.f32 %v1758, 0.6666667
  %v1768 = vadd.f32 %v1766, %v1767
  %v1769 = vmul.f32 %v1757, %v1757
  %v1770 = vsub.f32 %v1758, %v1769
  %v1771 = vadd.f32 %v1770, 1e-05
  %v1772 = vrsqrt.pop %v1771
  %v1773 = vmul.f32 %v1772, %v15
  %v1774 = vmul.f32 %v1765, %v1765
  %v1775 = vsub.f32 %v1768, %v1774
  %v1776 = vadd.f32 %v1775, 1e-05
  %v1777 = vrsqrt.pop %v1776
  %v1778 = vmul.f32 %v1777, %v15
  %v1779 = vmul.f32 %v1757, %v1773
  %1781 = vrot.lane.b32.xlu0 %v1779, 1
  %v1782 = vpop.permute.xlu0 %1781
  %v1784 = vsub.f32 %v15, %v1782
  %v1785 = vmul.f32 %v1765, %v1778
  %1787 = vrot.lane.b32.xlu0 %v1785, 1
  %v1788 = vpop.permute.xlu0 %1787
  %v1790 = vsub.f32 %v15, %v1788
  %1792 = vset.pattern.permute.xlu0 1
  %1793 = vperm.xlu0 %1792, %v1773
  %v1794 = vpop.permute.xlu0 %1793
  %1797 = vset.pattern.permute.xlu0 1
  %1798 = vperm.xlu0 %1797, %v1778
  %v1799 = vpop.permute.xlu0 %1798
  %v1801 = vsel %vm407, %v1794, %v1799
  %v1802 = vsel %vm408, %v1794, %v1799
  %v1803 = vsel %vm409, %v1794, %v1799
  %v1804 = vsel %vm410, %v1794, %v1799
  %v1805 = vsel %vm411, %v1794, %v1799
  %v1806 = vsel %vm412, %v1794, %v1799
  %v1807 = vsel %vm413, %v1794, %v1799
  %v1808 = vsel %vm414, %v1794, %v1799
  %1810 = vset.pattern.permute.xlu0 2
  %1811 = vperm.xlu0 %1810, %v1784
  %v1812 = vpop.permute.xlu0 %1811
  %1815 = vset.pattern.permute.xlu0 2
  %1816 = vperm.xlu0 %1815, %v1790
  %v1817 = vpop.permute.xlu0 %1816
  %v1819 = vsel %vm407, %v1812, %v1817
  %v1820 = vsel %vm408, %v1812, %v1817
  %v1821 = vsel %vm409, %v1812, %v1817
  %v1822 = vsel %vm410, %v1812, %v1817
  %v1823 = vsel %vm411, %v1812, %v1817
  %v1824 = vsel %vm412, %v1812, %v1817
  %v1825 = vsel %vm413, %v1812, %v1817
  %v1826 = vsel %vm414, %v1812, %v1817
  %v1827 = vmul.f32 %v270, %v1801
  %v1828 = vmul.f32 %v272, %v1802
  %v1829 = vmul.f32 %v311, %v1803
  %v1830 = vmul.f32 %v313, %v1804
  %v1831 = vmul.f32 %v352, %v1805
  %v1832 = vmul.f32 %v354, %v1806
  %v1833 = vmul.f32 %v393, %v1807
  %v1834 = vmul.f32 %v395, %v1808
  %v1835 = vadd.f32 %v1827, %v1819
  %v1836 = vadd.f32 %v1828, %v1820
  %v1837 = vadd.f32 %v1829, %v1821
  %v1838 = vadd.f32 %v1830, %v1822
  %v1839 = vadd.f32 %v1831, %v1823
  %v1840 = vadd.f32 %v1832, %v1824
  %v1841 = vadd.f32 %v1833, %v1825
  %v1842 = vadd.f32 %v1834, %v1826
  %vm1843 = vcmp.ge.f32.partialorder %v1835, 0.0
  %vm1844 = vcmp.ge.f32.partialorder %v1836, 0.0
  %vm1845 = vcmp.ge.f32.partialorder %v1837, 0.0
  %vm1846 = vcmp.ge.f32.partialorder %v1838, 0.0
  %vm1847 = vcmp.ge.f32.partialorder %v1839, 0.0
  %vm1848 = vcmp.ge.f32.partialorder %v1840, 0.0
  %vm1849 = vcmp.ge.f32.partialorder %v1841, 0.0
  %vm1850 = vcmp.ge.f32.partialorder %v1842, 0.0
  %v1851 = vmul.f32 %v1835, 0.2
  %v1852 = vmul.f32 %v1836, 0.2
  %v1853 = vmul.f32 %v1837, 0.2
  %v1854 = vmul.f32 %v1838, 0.2
  %v1855 = vmul.f32 %v1839, 0.2
  %v1856 = vmul.f32 %v1840, 0.2
  %v1857 = vmul.f32 %v1841, 0.2
  %v1858 = vmul.f32 %v1842, 0.2
  %v1859 = vsel %vm1843, %v1835, %v1851
  %v1860 = vsel %vm1844, %v1836, %v1852
  %v1861 = vsel %vm1845, %v1837, %v1853
  %v1862 = vsel %vm1846, %v1838, %v1854
  %v1863 = vsel %vm1847, %v1839, %v1855
  %v1864 = vsel %vm1848, %v1840, %v1856
  %v1865 = vsel %vm1849, %v1841, %v1857
  %v1866 = vsel %vm1850, %v1842, %v1858
  %v1867 = vpack.c.bf16 %v1859, %v1859
  %v1868 = vpack.c.bf16 %v1860, %v1860
  %v1869 = vpack.c.bf16 %v1861, %v1861
  %v1870 = vpack.c.bf16 %v1862, %v1862
  %v1871 = vpack.c.bf16 %v1863, %v1863
  %v1872 = vpack.c.bf16 %v1864, %v1864
  %v1873 = vpack.c.bf16 %v1865, %v1865
  %v1874 = vpack.c.bf16 %v1866, %v1866
  %v1883 = vunpack.c.l.b16 %v1867
  %v1884 = vunpack.c.l.b16 %v1868
  %v1885 = vunpack.c.l.b16 %v1869
  %v1886 = vunpack.c.l.b16 %v1870
  %v1887 = vunpack.c.l.b16 %v1871
  %v1888 = vunpack.c.l.b16 %v1872
  %v1889 = vunpack.c.l.b16 %v1873
  %v1890 = vunpack.c.l.b16 %v1874
  %v1891 = vpack.c.b16 %v1884, %v1883
  %v1892 = vpack.c.b16 %v1886, %v1885
  %v1893 = vpack.c.b16 %v1888, %v1887
  %v1894 = vpack.c.b16 %v1890, %v1889
  %1899 = vst [vmem:[%s3] sm:$0xff] %v1891
  %1900 = vst [vmem:[%s3 + $0x8] sm:$0xff] %v1892
  %1901 = vst [vmem:[%s3 + $0x10] sm:$0xff] %v1893
  %1902 = vst [vmem:[%s3 + $0x18] sm:$0xff] %v1894
  %v1903 = vmul.f32 %v712, %v1801
  %v1904 = vmul.f32 %v714, %v1802
  %v1905 = vmul.f32 %v753, %v1803
  %v1906 = vmul.f32 %v755, %v1804
  %v1907 = vmul.f32 %v794, %v1805
  %v1908 = vmul.f32 %v796, %v1806
  %v1909 = vmul.f32 %v835, %v1807
  %v1910 = vmul.f32 %v837, %v1808
  %v1911 = vadd.f32 %v1903, %v1819
  %v1912 = vadd.f32 %v1904, %v1820
  %v1913 = vadd.f32 %v1905, %v1821
  %v1914 = vadd.f32 %v1906, %v1822
  %v1915 = vadd.f32 %v1907, %v1823
  %v1916 = vadd.f32 %v1908, %v1824
  %v1917 = vadd.f32 %v1909, %v1825
  %v1918 = vadd.f32 %v1910, %v1826
  %vm1919 = vcmp.ge.f32.partialorder %v1911, 0.0
  %vm1920 = vcmp.ge.f32.partialorder %v1912, 0.0
  %vm1921 = vcmp.ge.f32.partialorder %v1913, 0.0
  %vm1922 = vcmp.ge.f32.partialorder %v1914, 0.0
  %vm1923 = vcmp.ge.f32.partialorder %v1915, 0.0
  %vm1924 = vcmp.ge.f32.partialorder %v1916, 0.0
  %vm1925 = vcmp.ge.f32.partialorder %v1917, 0.0
  %vm1926 = vcmp.ge.f32.partialorder %v1918, 0.0
  %v1927 = vmul.f32 %v1911, 0.2
  %v1928 = vmul.f32 %v1912, 0.2
  %v1929 = vmul.f32 %v1913, 0.2
  %v1930 = vmul.f32 %v1914, 0.2
  %v1931 = vmul.f32 %v1915, 0.2
  %v1932 = vmul.f32 %v1916, 0.2
  %v1933 = vmul.f32 %v1917, 0.2
  %v1934 = vmul.f32 %v1918, 0.2
  %v1935 = vsel %vm1919, %v1911, %v1927
  %v1936 = vsel %vm1920, %v1912, %v1928
  %v1937 = vsel %vm1921, %v1913, %v1929
  %v1938 = vsel %vm1922, %v1914, %v1930
  %v1939 = vsel %vm1923, %v1915, %v1931
  %v1940 = vsel %vm1924, %v1916, %v1932
  %v1941 = vsel %vm1925, %v1917, %v1933
  %v1942 = vsel %vm1926, %v1918, %v1934
  %v1943 = vpack.c.bf16 %v1935, %v1935
  %v1944 = vpack.c.bf16 %v1936, %v1936
  %v1945 = vpack.c.bf16 %v1937, %v1937
  %v1946 = vpack.c.bf16 %v1938, %v1938
  %v1947 = vpack.c.bf16 %v1939, %v1939
  %v1948 = vpack.c.bf16 %v1940, %v1940
  %v1949 = vpack.c.bf16 %v1941, %v1941
  %v1950 = vpack.c.bf16 %v1942, %v1942
  %v1959 = vunpack.c.l.b16 %v1943
  %v1960 = vunpack.c.l.b16 %v1944
  %v1961 = vunpack.c.l.b16 %v1945
  %v1962 = vunpack.c.l.b16 %v1946
  %v1963 = vunpack.c.l.b16 %v1947
  %v1964 = vunpack.c.l.b16 %v1948
  %v1965 = vunpack.c.l.b16 %v1949
  %v1966 = vunpack.c.l.b16 %v1950
  %v1967 = vpack.c.b16 %v1960, %v1959
  %v1968 = vpack.c.b16 %v1962, %v1961
  %v1969 = vpack.c.b16 %v1964, %v1963
  %v1970 = vpack.c.b16 %v1966, %v1965
  %s1975 = scalar_lea.vmem %s3, 32
  %1976 = vst [vmem:[%s1975] sm:$0xff] %v1967
  %1977 = vst [vmem:[%s1975 + $0x8] sm:$0xff] %v1968
  %1978 = vst [vmem:[%s1975 + $0x10] sm:$0xff] %v1969
  %1979 = vst [vmem:[%s1975 + $0x18] sm:$0xff] %v1970
  %v1980 = vmul.f32 %v1138, %v1801
  %v1981 = vmul.f32 %v1140, %v1802
  %v1982 = vmul.f32 %v1179, %v1803
  %v1983 = vmul.f32 %v1181, %v1804
  %v1984 = vmul.f32 %v1220, %v1805
  %v1985 = vmul.f32 %v1222, %v1806
  %v1986 = vmul.f32 %v1261, %v1807
  %v1987 = vmul.f32 %v1263, %v1808
  %v1988 = vadd.f32 %v1980, %v1819
  %v1989 = vadd.f32 %v1981, %v1820
  %v1990 = vadd.f32 %v1982, %v1821
  %v1991 = vadd.f32 %v1983, %v1822
  %v1992 = vadd.f32 %v1984, %v1823
  %v1993 = vadd.f32 %v1985, %v1824
  %v1994 = vadd.f32 %v1986, %v1825
  %v1995 = vadd.f32 %v1987, %v1826
  %vm1996 = vcmp.ge.f32.partialorder %v1988, 0.0
  %vm1997 = vcmp.ge.f32.partialorder %v1989, 0.0
  %vm1998 = vcmp.ge.f32.partialorder %v1990, 0.0
  %vm1999 = vcmp.ge.f32.partialorder %v1991, 0.0
  %vm2000 = vcmp.ge.f32.partialorder %v1992, 0.0
  %vm2001 = vcmp.ge.f32.partialorder %v1993, 0.0
  %vm2002 = vcmp.ge.f32.partialorder %v1994, 0.0
  %vm2003 = vcmp.ge.f32.partialorder %v1995, 0.0
  %v2004 = vmul.f32 %v1988, 0.2
  %v2005 = vmul.f32 %v1989, 0.2
  %v2006 = vmul.f32 %v1990, 0.2
  %v2007 = vmul.f32 %v1991, 0.2
  %v2008 = vmul.f32 %v1992, 0.2
  %v2009 = vmul.f32 %v1993, 0.2
  %v2010 = vmul.f32 %v1994, 0.2
  %v2011 = vmul.f32 %v1995, 0.2
  %v2012 = vsel %vm1996, %v1988, %v2004
  %v2013 = vsel %vm1997, %v1989, %v2005
  %v2014 = vsel %vm1998, %v1990, %v2006
  %v2015 = vsel %vm1999, %v1991, %v2007
  %v2016 = vsel %vm2000, %v1992, %v2008
  %v2017 = vsel %vm2001, %v1993, %v2009
  %v2018 = vsel %vm2002, %v1994, %v2010
  %v2019 = vsel %vm2003, %v1995, %v2011
  %v2020 = vpack.c.bf16 %v2012, %v2012
  %v2021 = vpack.c.bf16 %v2013, %v2013
  %v2022 = vpack.c.bf16 %v2014, %v2014
  %v2023 = vpack.c.bf16 %v2015, %v2015
  %v2024 = vpack.c.bf16 %v2016, %v2016
  %v2025 = vpack.c.bf16 %v2017, %v2017
  %v2026 = vpack.c.bf16 %v2018, %v2018
  %v2027 = vpack.c.bf16 %v2019, %v2019
  %v2036 = vunpack.c.l.b16 %v2020
  %v2037 = vunpack.c.l.b16 %v2021
  %v2038 = vunpack.c.l.b16 %v2022
  %v2039 = vunpack.c.l.b16 %v2023
  %v2040 = vunpack.c.l.b16 %v2024
  %v2041 = vunpack.c.l.b16 %v2025
  %v2042 = vunpack.c.l.b16 %v2026
  %v2043 = vunpack.c.l.b16 %v2027
  %v2044 = vpack.c.b16 %v2037, %v2036
  %v2045 = vpack.c.b16 %v2039, %v2038
  %v2046 = vpack.c.b16 %v2041, %v2040
  %v2047 = vpack.c.b16 %v2043, %v2042
  %s2052 = scalar_lea.vmem %s3, 64
  %2053 = vst [vmem:[%s2052] sm:$0xff] %v2044
  %2054 = vst [vmem:[%s2052 + $0x8] sm:$0xff] %v2045
  %2055 = vst [vmem:[%s2052 + $0x10] sm:$0xff] %v2046
  %2056 = vst [vmem:[%s2052 + $0x18] sm:$0xff] %v2047
  %v2057 = vmul.f32 %v1564, %v1801
  %v2058 = vmul.f32 %v1566, %v1802
  %v2059 = vmul.f32 %v1605, %v1803
  %v2060 = vmul.f32 %v1607, %v1804
  %v2061 = vmul.f32 %v1646, %v1805
  %v2062 = vmul.f32 %v1648, %v1806
  %v2063 = vmul.f32 %v1687, %v1807
  %v2064 = vmul.f32 %v1689, %v1808
  %v2065 = vadd.f32 %v2057, %v1819
  %v2066 = vadd.f32 %v2058, %v1820
  %v2067 = vadd.f32 %v2059, %v1821
  %v2068 = vadd.f32 %v2060, %v1822
  %v2069 = vadd.f32 %v2061, %v1823
  %v2070 = vadd.f32 %v2062, %v1824
  %v2071 = vadd.f32 %v2063, %v1825
  %v2072 = vadd.f32 %v2064, %v1826
  %vm2073 = vcmp.ge.f32.partialorder %v2065, 0.0
  %vm2074 = vcmp.ge.f32.partialorder %v2066, 0.0
  %vm2075 = vcmp.ge.f32.partialorder %v2067, 0.0
  %vm2076 = vcmp.ge.f32.partialorder %v2068, 0.0
  %vm2077 = vcmp.ge.f32.partialorder %v2069, 0.0
  %vm2078 = vcmp.ge.f32.partialorder %v2070, 0.0
  %vm2079 = vcmp.ge.f32.partialorder %v2071, 0.0
  %vm2080 = vcmp.ge.f32.partialorder %v2072, 0.0
  %v2081 = vmul.f32 %v2065, 0.2
  %v2082 = vmul.f32 %v2066, 0.2
  %v2083 = vmul.f32 %v2067, 0.2
  %v2084 = vmul.f32 %v2068, 0.2
  %v2085 = vmul.f32 %v2069, 0.2
  %v2086 = vmul.f32 %v2070, 0.2
  %v2087 = vmul.f32 %v2071, 0.2
  %v2088 = vmul.f32 %v2072, 0.2
  %v2089 = vsel %vm2073, %v2065, %v2081
  %v2090 = vsel %vm2074, %v2066, %v2082
  %v2091 = vsel %vm2075, %v2067, %v2083
  %v2092 = vsel %vm2076, %v2068, %v2084
  %v2093 = vsel %vm2077, %v2069, %v2085
  %v2094 = vsel %vm2078, %v2070, %v2086
  %v2095 = vsel %vm2079, %v2071, %v2087
  %v2096 = vsel %vm2080, %v2072, %v2088
  %v2097 = vpack.c.bf16 %v2089, %v2089
  %v2098 = vpack.c.bf16 %v2090, %v2090
  %v2099 = vpack.c.bf16 %v2091, %v2091
  %v2100 = vpack.c.bf16 %v2092, %v2092
  %v2101 = vpack.c.bf16 %v2093, %v2093
  %v2102 = vpack.c.bf16 %v2094, %v2094
  %v2103 = vpack.c.bf16 %v2095, %v2095
  %v2104 = vpack.c.bf16 %v2096, %v2096
  %v2113 = vunpack.c.l.b16 %v2097
  %v2114 = vunpack.c.l.b16 %v2098
  %v2115 = vunpack.c.l.b16 %v2099
  %v2116 = vunpack.c.l.b16 %v2100
  %v2117 = vunpack.c.l.b16 %v2101
  %v2118 = vunpack.c.l.b16 %v2102
  %v2119 = vunpack.c.l.b16 %v2103
  %v2120 = vunpack.c.l.b16 %v2104
  %v2121 = vpack.c.b16 %v2114, %v2113
  %v2122 = vpack.c.b16 %v2116, %v2115
  %v2123 = vpack.c.b16 %v2118, %v2117
  %v2124 = vpack.c.b16 %v2120, %v2119
  %s2129 = scalar_lea.vmem %s3, 96
  %2130 = vst [vmem:[%s2129] sm:$0xff] %v2121
  %2131 = vst [vmem:[%s2129 + $0x8] sm:$0xff] %v2122
  %2132 = vst [vmem:[%s2129 + $0x10] sm:$0xff] %v2123
  %2133 = vst [vmem:[%s2129 + $0x18] sm:$0xff] %v2124
  // Predicated region
  $region14: #{generator_forward.10} parent=0 // pred_check
    _
  $region15: #{generator_forward.10} parent=0 // pred_check_branch
    %2135 = sbr.rel (0) target = $region17
  $region16: #{generator_forward.10} parent=0 // pred_region
    _
  $region17: #{generator_forward.10} parent=0 // pred_fallthru
    _
  // Predicated region
  $region18: #{generator_forward.10} parent=0 // pred_check
    _
  $region19: #{generator_forward.10} parent=0 // pred_check_branch
    %2137 = sbr.rel (0) target = $region21
  $region20: #{generator_forward.10} parent=0 // pred_region
    _
  $region21: #{generator_forward.10} parent=0 // pred_fallthru
    _

// kernel: generator_forward.11
$region0: #{generator_forward.11}
  #allocation0 [shape = 'u32[]', space=smem, size = 0x4, offset = 0x4, fixed_abs, tag = 'smem constant byte address 0x4 - core index']
  #allocation1 [shape = 'u32[144,128]{1,0:T(1,128)}', space=vmem, size = 0x12000, scoped, tag = 'internal scratch']
  %s0 = inlined_call_operand.vmem [shape: bf16[4,3,32], index: 0, kind: input, shape index: {}]
  %s1 = inlined_call_operand.vmem [shape: bf16[4,32,2048], index: 1, kind: input, shape index: {}]
  %s2 = inlined_call_operand.vmem [shape: f32[3,1], index: 2, kind: input, shape index: {}]
  %s3 = inlined_call_operand.vmem [shape: f32[4,3,2048], index: 3, kind: output, shape index: {}]
  %s4 = sld [smem:[#allocation0]]
  $region45: #{generator_forward.11} parent=0
    _
  %s6 = ssub.s32 1, %s4
  %s7 = scalar_select 0, %s6, %s4
  loop: start=0, step=1, limit=6
  $region2: #{generator_forward.11} parent=0 // loop_pre_header
    _
  $region3: #{generator_forward.11} parent=0 // loop_header
    %s9 = sphi 0, %s13
    %p10 = scmp.ge.s32.totalorder %s9, 6
    %s16 = sphi 0, %s28
    %s17 = sphi 0, %s24
    %s18 = sphi 0, %s16
    %s19 = sphi 0, %s17
    %s20 = sphi 0, %s18
    %s21 = sphi 0, %s19
    %s31 = sphi 0, %s33
    %s34 = sphi 0, %s31
    %s35 = sphi 0, %s34
    %s51 = sphi 0, %s35
    %s59 = sphi 0, %s61
    %s62 = sphi 0, %s59
    %s63 = sphi 0, %s62
    %s79 = sphi 0, %s63
    %s83 = sphi 0, %s83
    %s85 = sphi 0, %s83
    %s86 = sphi 0, %s85
    %s100 = sphi 0, %s86
    %s108 = sphi 0, %s110
    %s111 = sphi 0, %s108
    %s112 = sphi 0, %s111
    %s128 = sphi 0, %s112
  $region4: #{generator_forward.11} parent=0 // loop_header_branch
    %12 = sbr.rel (%p10) target = $region8
  $region5: #{generator_forward.11} parent=0 // loop_body
    %s14 = ssub.s32 %s9, 1
    %s15 = ssub.s32 %s9, 2
    %s22 = sadd.s32 1, %s17
    %p23 = scmp.ge.s32.totalorder %s22, 1
    %s24 = scalar_select %p23, 0, %s22
    %s25 = sadd.s32 1, %s16
    %s26 = scalar_select %p23, %s25, %s16
    %p27 = scmp.ge.s32.totalorder %s26, 4
    %s28 = scalar_select %p27, 0, %s26
    %s29 = ssub.s32 %s16, %s28
    %p30 = scmp.eq.s32.totalorder %s29, 0
    %s32 = sadd.s32 %s31, 1
    %s33 = scalar_select %p30, %s31, %s32
    %p36 = pneg %p30
    %p37 = scmp.eq.s32.totalorder %s9, 3
    %p38 = por %p36, %p37
    %p39 = scmp.ne.s32.totalorder %s31, %s34
    %p40 = scmp.eq.s32.totalorder %s9, 0
    %p41 = por %p39, %p40
    %p42 = scmp.ne.s32.totalorder %s31, %s34
    %p43 = scmp.eq.s32.totalorder %s14, 3
    %p44 = por %p42, %p43
    %p45 = scmp.ne.s32.totalorder %s34, %s35
    %p46 = scmp.eq.s32.totalorder %s14, 0
    %p47 = por %p45, %p46
    %p48 = scmp.ne.s32.totalorder %s34, %s35
    %p49 = scmp.eq.s32.totalorder %s15, 3
    %p50 = por %p48, %p49
    %p52 = scmp.ne.s32.totalorder %s35, %s51
    %p53 = scmp.eq.s32.totalorder %s15, 0
    %p54 = por %p52, %p53
    %s55 = ssub.s32 %s16, %s28
    %s56 = ssub.s32 %s17, %s24
    %s57 = sor.u32 %s55, %s56
    %p58 = scmp.eq.s32.totalorder %s57, 0
    %s60 = sadd.s32 %s59, 1
    %s61 = scalar_select %p58, %s59, %s60
    %p64 = pneg %p58
    %p65 = scmp.eq.s32.totalorder %s9, 3
    %p66 = por %p64, %p65
    %p67 = scmp.ne.s32.totalorder %s59, %s62
    %p68 = scmp.eq.s32.totalorder %s9, 0
    %p69 = por %p67, %p68
    %p70 = scmp.ne.s32.totalorder %s59, %s62
    %p71 = scmp.eq.s32.totalorder %s14, 3
    %p72 = por %p70, %p71
    %p73 = scmp.ne.s32.totalorder %s62, %s63
    %p74 = scmp.eq.s32.totalorder %s14, 0
    %p75 = por %p73, %p74
    %p76 = scmp.ne.s32.totalorder %s62, %s63
    %p77 = scmp.eq.s32.totalorder %s15, 3
    %p78 = por %p76, %p77
    %p80 = scmp.ne.s32.totalorder %s63, %s79
    %p81 = scmp.eq.s32.totalorder %s15, 0
    %p82 = por %p80, %p81
    %s84 = sadd.s32 %s83, 1
    %p87 = scmp.eq.s32.totalorder %s9, 3
    %p88 = scmp.ne.s32.totalorder %s83, %s85
    %p89 = scmp.eq.s32.totalorder %s9, 0
    %p90 = por %p88, %p89
    %p91 = scmp.ne.s32.totalorder %s83, %s85
    %p92 = scmp.eq.s32.totalorder %s14, 3
    %p93 = por %p91, %p92
    %p94 = scmp.ne.s32.totalorder %s85, %s86
    %p95 = scmp.eq.s32.totalorder %s14, 0
    %p96 = por %p94, %p95
    %p97 = scmp.ne.s32.totalorder %s85, %s86
    %p98 = scmp.eq.s32.totalorder %s15, 3
    %p99 = por %p97, %p98
    %p101 = scmp.ne.s32.totalorder %s86, %s100
    %p102 = scmp.eq.s32.totalorder %s15, 0
    %p103 = por %p101, %p102
    %s104 = ssub.s32 %s16, %s28
    %s105 = ssub.s32 %s17, %s24
    %s106 = sor.u32 %s104, %s105
    %p107 = scmp.eq.s32.totalorder %s106, 0
    %s109 = sadd.s32 %s108, 1
    %s110 = scalar_select %p107, %s108, %s109
    %p113 = pneg %p107
    %p114 = scmp.eq.s32.totalorder %s9, 3
    %p115 = por %p113, %p114
    %p116 = scmp.ne.s32.totalorder %s108, %s111
    %p117 = scmp.eq.s32.totalorder %s9, 0
    %p118 = por %p116, %p117
    %p119 = scmp.ne.s32.totalorder %s108, %s111
    %p120 = scmp.eq.s32.totalorder %s14, 3
    %p121 = por %p119, %p120
    %p122 = scmp.ne.s32.totalorder %s111, %s112
    %p123 = scmp.eq.s32.totalorder %s14, 0
    %p124 = por %p122, %p123
    %p125 = scmp.ne.s32.totalorder %s111, %s112
    %p126 = scmp.eq.s32.totalorder %s15, 3
    %p127 = por %p125, %p126
    %p129 = scmp.ne.s32.totalorder %s112, %s128
    %p130 = scmp.eq.s32.totalorder %s15, 0
    %p131 = por %p129, %p130
    %p132 = scmp.le.s32.totalorder 1, %s9
    %p133 = scmp.lt.s32.totalorder %s9, 5
    %p134 = pnand %p132, %p133
    %p135 = pneg %p134
    // Predicated region
    $region9: #{generator_forward.11} parent=5 // pred_check
      _
    $region10: #{generator_forward.11} parent=5 // pred_check_branch
      %137 = sbr.rel (%p134) target = $region12
    $region11: #{generator_forward.11} parent=5 // pred_region
      %s138 = ssub.s32 %s9, 1
      // Predicated region
      $region13: #{generator_forward.11} parent=11 // pred_check
        %p139 = pneg %p96
      $region14: #{generator_forward.11} parent=11 // pred_check_branch
        %141 = sbr.rel (%p139) target = $region16
      $region15: #{generator_forward.11} parent=11 // pred_region
        _
      $region16: #{generator_forward.11} parent=11 // pred_fallthru
        _
    $region12: #{generator_forward.11} parent=5 // pred_fallthru
      _
    %p142 = scmp.lt.s32.totalorder %s9, 4
    // Predicated region
    $region17: #{generator_forward.11} parent=5 // pred_check
      %p143 = pneg %p142
    $region18: #{generator_forward.11} parent=5 // pred_check_branch
      %145 = sbr.rel (%p143) target = $region20
    $region19: #{generator_forward.11} parent=5 // pred_region
      // Predicated region
      $region21: #{generator_forward.11} parent=19 // pred_check
        %p146 = pneg %p41
      $region22: #{generator_forward.11} parent=19 // pred_check_branch
        %148 = sbr.rel (%p146) target = $region24
      $region23: #{generator_forward.11} parent=19 // pred_region
        %p149 = scmp.lt.s32.totalorder %s16, 3
        %s150 = scalar_select %p149, %s16, 3
        %s151 = smul.addr %s150, 2
        %s152 = scalar_lea.vmem %s0, %s151
      $region24: #{generator_forward.11} parent=19 // pred_fallthru
        _
      // Predicated region
      $region25: #{generator_forward.11} parent=19 // pred_check
        %p153 = pneg %p69
      $region26: #{generator_forward.11} parent=19 // pred_check_branch
        %155 = sbr.rel (%p153) target = $region28
      $region27: #{generator_forward.11} parent=19 // pred_region
        %s156 = smul.u32 16, %s17
        %p157 = scmp.lt.s32.totalorder %s16, 3
        %s158 = scalar_select %p157, %s16, 3
        %p159 = scmp.lt.s32.totalorder %s156, 15
        %s160 = scalar_select %p159, %s156, 15
        %s161 = smul.addr %s158, 64
        %s162 = sadd.s32 %s160, %s161
        %s163 = smul.addr %s162, 4
        %s164 = scalar_lea.vmem %s1, %s163
        %s165 = smul.u32 16, %s17
      $region28: #{generator_forward.11} parent=19 // pred_fallthru
        _
    $region20: #{generator_forward.11} parent=5 // pred_fallthru
      _
    %p166 = scmp.le.s32.totalorder 1, %s9
    %p167 = scmp.lt.s32.totalorder %s9, 5
    %p168 = pnand %p166, %p167
    %p169 = pneg %p168
    // Predicated region
    $region29: #{generator_forward.11} parent=5 // pred_check
      _
    $region30: #{generator_forward.11} parent=5 // pred_check_branch
      %171 = sbr.rel (%p168) target = $region32
    $region31: #{generator_forward.11} parent=5 // pred_region
      %s172 = ssub.s32 %s9, 1
      %p173 = scmp.lt.s32.totalorder %s18, 3
      %s174 = scalar_select %p173, %s18, 3
      %s175 = smul.addr %s174, 2
      %s176 = scalar_lea.vmem %s0, %s175
      %p177 = pneg %p47
      %p178 = pneg %p44
      %s179 = smul.u32 16, %s19
      %p180 = scmp.lt.s32.totalorder %s18, 3
      %s181 = scalar_select %p180, %s18, 3
      %p182 = scmp.lt.s32.totalorder %s179, 15
      %s183 = scalar_select %p182, %s179, 15
      %s184 = smul.addr %s181, 64
      %s185 = sadd.s32 %s183, %s184
      %s186 = smul.addr %s185, 4
      %s187 = scalar_lea.vmem %s1, %s186
      %p188 = pneg %p75
      %p189 = pneg %p72
      %p190 = pneg %p96
      %p191 = pneg %p93
      %p192 = pneg %p124
      %p193 = pneg %p121
      %s194 = smul.u32 16, %s19
      %p195 = scmp.lt.s32.totalorder %s18, 3
      %s196 = scalar_select %p195, %s18, 3
      %p197 = scmp.lt.s32.totalorder %s194, 15
      %s198 = scalar_select %p197, %s194, 15
      %s199 = smul.addr %s196, 16
      %s200 = sadd.s32 %s198, %s199
      %s201 = smul.addr %s200, 4
      %s202 = scalar_lea.vmem %s3, %s201
      %p203 = scmp.lt.s32.totalorder %s18, 3
      %s204 = scalar_select %p203, %s18, 3
      %s205 = smul.addr %s204, 2
      %s206 = scalar_lea.vmem %s0, %s205
      %s207 = smul.u32 16, %s19
      %p208 = scmp.lt.s32.totalorder %s18, 3
      %s209 = scalar_select %p208, %s18, 3
      %p210 = scmp.lt.s32.totalorder %s207, 15
      %s211 = scalar_select %p210, %s207, 15
      %s212 = smul.addr %s209, 64
      %s213 = sadd.s32 %s211, %s212
      %s214 = smul.addr %s213, 4
      %s215 = scalar_lea.vmem %s1, %s214
      %s216 = smul.u32 16, %s19
      %s217 = smul.u32 16, %s19
      %p218 = scmp.lt.s32.totalorder %s18, 3
      %s219 = scalar_select %p218, %s18, 3
      %p220 = scmp.lt.s32.totalorder %s217, 15
      %s221 = scalar_select %p220, %s217, 15
      %s222 = smul.addr %s219, 16
      %s223 = sadd.s32 %s221, %s222
      %s224 = smul.addr %s223, 4
      %s225 = scalar_lea.vmem %s3, %s224
      %s226 = smul.u32 16, %s19
      %v228 = vld [vmem:[%s206] sm:$0x3]
      %v229 = vld [vmem:[%s215] sm:$0xff]
      %v230 = vld [vmem:[%s215 + $0x8] sm:$0xff]
      %v231 = vld [vmem:[%s215 + $0x10] sm:$0xff]
      %v232 = vld [vmem:[%s215 + $0x18] sm:$0xff]
      %v233 = vld [vmem:[%s215 + $0x20] sm:$0xff]
      %v234 = vld [vmem:[%s215 + $0x28] sm:$0xff]
      %v235 = vld [vmem:[%s215 + $0x30] sm:$0xff]
      %v236 = vld [vmem:[%s215 + $0x38] sm:$0xff]
      %v237 = vld [vmem:[%s215 + $0x40] sm:$0xff]
      %v238 = vld [vmem:[%s215 + $0x48] sm:$0xff]
      %v239 = vld [vmem:[%s215 + $0x50] sm:$0xff]
      %v240 = vld [vmem:[%s215 + $0x58] sm:$0xff]
      %v241 = vld [vmem:[%s215 + $0x60] sm:$0xff]
      %v242 = vld [vmem:[%s215 + $0x68] sm:$0xff]
      %v243 = vld [vmem:[%s215 + $0x70] sm:$0xff]
      %v244 = vld [vmem:[%s215 + $0x78] sm:$0xff]
      %v245 = vld [vmem:[%s215 + $0x80] sm:$0xff]
      %v246 = vld [vmem:[%s215 + $0x88] sm:$0xff]
      %v247 = vld [vmem:[%s215 + $0x90] sm:$0xff]
      %v248 = vld [vmem:[%s215 + $0x98] sm:$0xff]
      %v249 = vld [vmem:[%s215 + $0xa0] sm:$0xff]
      %v250 = vld [vmem:[%s215 + $0xa8] sm:$0xff]
      %v251 = vld [vmem:[%s215 + $0xb0] sm:$0xff]
      %v252 = vld [vmem:[%s215 + $0xb8] sm:$0xff]
      %v253 = vld [vmem:[%s215 + $0xc0] sm:$0xff]
      %v254 = vld [vmem:[%s215 + $0xc8] sm:$0xff]
      %v255 = vld [vmem:[%s215 + $0xd0] sm:$0xff]
      %v256 = vld [vmem:[%s215 + $0xd8] sm:$0xff]
      %v257 = vld [vmem:[%s215 + $0xe0] sm:$0xff]
      %v258 = vld [vmem:[%s215 + $0xe8] sm:$0xff]
      %v259 = vld [vmem:[%s215 + $0xf0] sm:$0xff]
      %v260 = vld [vmem:[%s215 + $0xf8] sm:$0xff]
      %v261 = vld [vmem:[%s2] sm:$0x7]
      %263 = vset.pattern.permute.xlu0 0
      %264 = vperm.xlu0 %263, %v261
      %v265 = vpop.permute.xlu0 %264
      %v299 = vunpack.c.l.b16 %v229
      %v300 = vunpack.c.h.b16 %v229
      %v301 = vunpack.c.l.b16 %v230
      %v302 = vunpack.c.h.b16 %v230
      %v303 = vunpack.c.l.b16 %v231
      %v304 = vunpack.c.h.b16 %v231
      %v305 = vunpack.c.l.b16 %v232
      %v306 = vunpack.c.h.b16 %v232
      %v307 = vunpack.c.l.b16 %v233
      %v308 = vunpack.c.h.b16 %v233
      %v309 = vunpack.c.l.b16 %v234
      %v310 = vunpack.c.h.b16 %v234
      %v311 = vunpack.c.l.b16 %v235
      %v312 = vunpack.c.h.b16 %v235
      %v313 = vunpack.c.l.b16 %v236
      %v314 = vunpack.c.h.b16 %v236
      %v315 = vunpack.c.l.b16 %v237
      %v316 = vunpack.c.h.b16 %v237
      %v317 = vunpack.c.l.b16 %v238
      %v318 = vunpack.c.h.b16 %v238
      %v319 = vunpack.c.l.b16 %v239
      %v320 = vunpack.c.h.b16 %v239
      %v321 = vunpack.c.l.b16 %v240
      %v322 = vunpack.c.h.b16 %v240
      %v323 = vunpack.c.l.b16 %v241
      %v324 = vunpack.c.h.b16 %v241
      %v325 = vunpack.c.l.b16 %v242
      %v326 = vunpack.c.h.b16 %v242
      %v327 = vunpack.c.l.b16 %v243
      %v328 = vunpack.c.h.b16 %v243
      %v329 = vunpack.c.l.b16 %v244
      %v330 = vunpack.c.h.b16 %v244
      %v331 = vunpack.c.l.b16 %v245
      %v332 = vunpack.c.h.b16 %v245
      %v333 = vunpack.c.l.b16 %v246
      %v334 = vunpack.c.h.b16 %v246
      %v335 = vunpack.c.l.b16 %v247
      %v336 = vunpack.c.h.b16 %v247
      %v337 = vunpack.c.l.b16 %v248
      %v338 = vunpack.c.h.b16 %v248
      %v339 = vunpack.c.l.b16 %v249
      %v340 = vunpack.c.h.b16 %v249
      %v341 = vunpack.c.l.b16 %v250
      %v342 = vunpack.c.h.b16 %v250
      %v343 = vunpack.c.l.b16 %v251
      %v344 = vunpack.c.h.b16 %v251
      %v345 = vunpack.c.l.b16 %v252
      %v346 = vunpack.c.h.b16 %v252
      %v347 = vunpack.c.l.b16 %v253
      %v348 = vunpack.c.h.b16 %v253
      %v349 = vunpack.c.l.b16 %v254
      %v350 = vunpack.c.h.b16 %v254
      %v351 = vunpack.c.l.b16 %v255
      %v352 = vunpack.c.h.b16 %v255
      %v353 = vunpack.c.l.b16 %v256
      %v354 = vunpack.c.h.b16 %v256
      %v355 = vunpack.c.l.b16 %v257
      %v356 = vunpack.c.h.b16 %v257
      %v357 = vunpack.c.l.b16 %v258
      %v358 = vunpack.c.h.b16 %v258
      %v359 = vunpack.c.l.b16 %v259
      %v360 = vunpack.c.h.b16 %v259
      %v361 = vunpack.c.l.b16 %v260
      %v362 = vunpack.c.h.b16 %v260
      %v363 = vpack.c.b16 %v315, %v299
      %v364 = vpack.c.b16 %v316, %v300
      %v365 = vpack.c.b16 %v317, %v301
      %v366 = vpack.c.b16 %v318, %v302
      %v367 = vpack.c.b16 %v319, %v303
      %v368 = vpack.c.b16 %v320, %v304
      %v369 = vpack.c.b16 %v321, %v305
      %v370 = vpack.c.b16 %v322, %v306
      %v371 = vpack.c.b16 %v323, %v307
      %v372 = vpack.c.b16 %v324, %v308
      %v373 = vpack.c.b16 %v325, %v309
      %v374 = vpack.c.b16 %v326, %v310
      %v375 = vpack.c.b16 %v327, %v311
      %v376 = vpack.c.b16 %v328, %v312
      %v377 = vpack.c.b16 %v329, %v313
      %v378 = vpack.c.b16 %v330, %v314
      %v379 = vpack.c.b16 %v347, %v331
      %v380 = vpack.c.b16 %v348, %v332
      %v381 = vpack.c.b16 %v349, %v333
      %v382 = vpack.c.b16 %v350, %v334
      %v383 = vpack.c.b16 %v351, %v335
      %v384 = vpack.c.b16 %v352, %v336
      %v385 = vpack.c.b16 %v353, %v337
      %v386 = vpack.c.b16 %v354, %v338
      %v387 = vpack.c.b16 %v355, %v339
      %v388 = vpack.c.b16 %v356, %v340
      %v389 = vpack.c.b16 %v357, %v341
      %v390 = vpack.c.b16 %v358, %v342
      %v391 = vpack.c.b16 %v359, %v343
      %v392 = vpack.c.b16 %v360, %v344
      %v393 = vpack.c.b16 %v361, %v345
      %v394 = vpack.c.b16 %v362, %v346
      %vm427 = vcmask 261120
      %v429 = vsel %vm427, %v228, 0
      %431 = vmatprep.subr.bf16.mxu0 0
      %432 = vmatpush1.bf16.msra.mxu0 0
      %433 = vmatprep.subr.bf16.mxu0 0
      %434 = vmatpush1.bf16.msra.mxu0 0
      %435 = vmatprep.subr.bf16.mxu0 0
      %436 = vmatpush1.bf16.msra.mxu0 0
      %437 = vmatprep.subr.bf16.mxu0 0
      %438 = vmatpush1.bf16.msra.mxu0 0
      %439 = vmatprep.subr.bf16.mxu0 0
      %440 = vmatpush1.bf16.msra.mxu0 0
      %441 = vmatprep.subr.bf16.mxu0 0
      %442 = vmatpush1.bf16.msra.mxu0 0
      %443 = vmatprep.subr.bf16.mxu0 %v380
      %444 = vmatpush1.bf16.msra.mxu0 %v379
      %445 = vmatprep.subr.bf16.mxu0 %v364
      %446 = vmatpush1.bf16.msra.mxu0 %v363
      %447 = vmatprep.subr.bf16.mxu0 0
      %448 = vmatpush2.bf16.msra.mxu0 0
      %449 = vmatprep.subr.bf16.mxu0 0
      %450 = vmatpush2.bf16.msra.mxu0 0
      %451 = vmatprep.subr.bf16.mxu0 0
      %452 = vmatpush2.bf16.msra.mxu0 0
      %453 = vmatprep.subr.bf16.mxu0 0
      %454 = vmatpush2.bf16.msra.mxu0 0
      %455 = vmatprep.subr.bf16.mxu0 0
      %456 = vmatpush2.bf16.msra.mxu0 0
      %457 = vmatprep.subr.bf16.mxu0 0
      %458 = vmatpush2.bf16.msra.mxu0 0
      %459 = vmatprep.subr.bf16.mxu0 0
      %460 = vmatpush2.bf16.msra.mxu0 0
      %461 = vmatprep.subr.bf16.mxu0 0
      %462 = vmatpush2.bf16.msra.mxu0 0
      %463 = vmatprep.mubr.bf16.mxu0 0
      %464 = vmatmul.mubr.bf16.gmra.mxu0 %v429
      %v465 = vpop.f32.mrf.mxu0
      %v466 = vadd.f32 %v265, %v465
      %v467 = vpop.f32.mrf.mxu0
      %v468 = vadd.f32 %v265, %v467
      %v469 = vpop.f32.mrf.mxu0
      %v470 = vpop.f32.mrf.mxu0
      %471 = vdwg.mxu0
      %472 = vmatprep.subr.bf16.mxu0 0
      %473 = vmatpush1.bf16.msra.mxu0 0
      %474 = vmatprep.subr.bf16.mxu0 0
      %475 = vmatpush1.bf16.msra.mxu0 0
      %476 = vmatprep.subr.bf16.mxu0 0
      %477 = vmatpush1.bf16.msra.mxu0 0
      %478 = vmatprep.subr.bf16.mxu0 0
      %479 = vmatpush1.bf16.msra.mxu0 0
      %480 = vmatprep.subr.bf16.mxu0 0
      %481 = vmatpush1.bf16.msra.mxu0 0
      %482 = vmatprep.subr.bf16.mxu0 0
      %483 = vmatpush1.bf16.msra.mxu0 0
      %484 = vmatprep.subr.bf16.mxu0 %v382
      %485 = vmatpush1.bf16.msra.mxu0 %v381
      %486 = vmatprep.subr.bf16.mxu0 %v366
      %487 = vmatpush1.bf16.msra.mxu0 %v365
      %488 = vmatprep.subr.bf16.mxu0 0
      %489 = vmatpush2.bf16.msra.mxu0 0
      %490 = vmatprep.subr.bf16.mxu0 0
      %491 = vmatpush2.bf16.msra.mxu0 0
      %492 = vmatprep.subr.bf16.mxu0 0
      %493 = vmatpush2.bf16.msra.mxu0 0
      %494 = vmatprep.subr.bf16.mxu0 0
      %495 = vmatpush2.bf16.msra.mxu0 0
      %496 = vmatprep.subr.bf16.mxu0 0
      %497 = vmatpush2.bf16.msra.mxu0 0
      %498 = vmatprep.subr.bf16.mxu0 0
      %499 = vmatpush2.bf16.msra.mxu0 0
      %500 = vmatprep.subr.bf16.mxu0 0
      %501 = vmatpush2.bf16.msra.mxu0 0
      %502 = vmatprep.subr.bf16.mxu0 0
      %503 = vmatpush2.bf16.msra.mxu0 0
      %504 = vmatprep.mubr.bf16.mxu0 0
      %505 = vmatmul.mubr.bf16.gmra.mxu0 %v429
      %v506 = vpop.f32.mrf.mxu0
      %v507 = vadd.f32 %v265, %v506
      %v508 = vpop.f32.mrf.mxu0
      %v509 = vadd.f32 %v265, %v508
      %v510 = vpop.f32.mrf.mxu0
      %v511 = vpop.f32.mrf.mxu0
      %512 = vdwg.mxu0
      %513 = vmatprep.subr.bf16.mxu0 0
      %514 = vmatpush1.bf16.msra.mxu0 0
      %515 = vmatprep.subr.bf16.mxu0 0
      %516 = vmatpush1.bf16.msra.mxu0 0
      %517 = vmatprep.subr.bf16.mxu0 0
      %518 = vmatpush1.bf16.msra.mxu0 0
      %519 = vmatprep.subr.bf16.mxu0 0
      %520 = vmatpush1.bf16.msra.mxu0 0
      %521 = vmatprep.subr.bf16.mxu0 0
      %522 = vmatpush1.bf16.msra.mxu0 0
      %523 = vmatprep.subr.bf16.mxu0 0
      %524 = vmatpush1.bf16.msra.mxu0 0
      %525 = vmatprep.subr.bf16.mxu0 %v384
      %526 = vmatpush1.bf16.msra.mxu0 %v383
      %527 = vmatprep.subr.bf16.mxu0 %v368
      %528 = vmatpush1.bf16.msra.mxu0 %v367
      %529 = vmatprep.subr.bf16.mxu0 0
      %530 = vmatpush2.bf16.msra.mxu0 0
      %531 = vmatprep.subr.bf16.mxu0 0
      %532 = vmatpush2.bf16.msra.mxu0 0
      %533 = vmatprep.subr.bf16.mxu0 0
      %534 = vmatpush2.bf16.msra.mxu0 0
      %535 = vmatprep.subr.bf16.mxu0 0
      %536 = vmatpush2.bf16.msra.mxu0 0
      %537 = vmatprep.subr.bf16.mxu0 0
      %538 = vmatpush2.bf16.msra.mxu0 0
      %539 = vmatprep.subr.bf16.mxu0 0
      %540 = vmatpush2.bf16.msra.mxu0 0
      %541 = vmatprep.subr.bf16.mxu0 0
      %542 = vmatpush2.bf16.msra.mxu0 0
      %543 = vmatprep.subr.bf16.mxu0 0
      %544 = vmatpush2.bf16.msra.mxu0 0
      %545 = vmatprep.mubr.bf16.mxu0 0
      %546 = vmatmul.mubr.bf16.gmra.mxu0 %v429
      %v547 = vpop.f32.mrf.mxu0
      %v548 = vadd.f32 %v265, %v547
      %v549 = vpop.f32.mrf.mxu0
      %v550 = vadd.f32 %v265, %v549
      %v551 = vpop.f32.mrf.mxu0
      %v552 = vpop.f32.mrf.mxu0
      %553 = vdwg.mxu0
      %554 = vmatprep.subr.bf16.mxu0 0
      %555 = vmatpush1.bf16.msra.mxu0 0
      %556 = vmatprep.subr.bf16.mxu0 0
      %557 = vmatpush1.bf16.msra.mxu0 0
      %558 = vmatprep.subr.bf16.mxu0 0
      %559 = vmatpush1.bf16.msra.mxu0 0
      %560 = vmatprep.subr.bf16.mxu0 0
      %561 = vmatpush1.bf16.msra.mxu0 0
      %562 = vmatprep.subr.bf16.mxu0 0
      %563 = vmatpush1.bf16.msra.mxu0 0
      %564 = vmatprep.subr.bf16.mxu0 0
      %565 = vmatpush1.bf16.msra.mxu0 0
      %566 = vmatprep.subr.bf16.mxu0 %v386
      %567 = vmatpush1.bf16.msra.mxu0 %v385
      %568 = vmatprep.subr.bf16.mxu0 %v370
      %569 = vmatpush1.bf16.msra.mxu0 %v369
      %570 = vmatprep.subr.bf16.mxu0 0
      %571 = vmatpush2.bf16.msra.mxu0 0
      %572 = vmatprep.subr.bf16.mxu0 0
      %573 = vmatpush2.bf16.msra.mxu0 0
      %574 = vmatprep.subr.bf16.mxu0 0
      %575 = vmatpush2.bf16.msra.mxu0 0
      %576 = vmatprep.subr.bf16.mxu0 0
      %577 = vmatpush2.bf16.msra.mxu0 0
      %578 = vmatprep.subr.bf16.mxu0 0
      %579 = vmatpush2.bf16.msra.mxu0 0
      %580 = vmatprep.subr.bf16.mxu0 0
      %581 = vmatpush2.bf16.msra.mxu0 0
      %582 = vmatprep.subr.bf16.mxu0 0
      %583 = vmatpush2.bf16.msra.mxu0 0
      %584 = vmatprep.subr.bf16.mxu0 0
      %585 = vmatpush2.bf16.msra.mxu0 0
      %586 = vmatprep.mubr.bf16.mxu0 0
      %587 = vmatmul.mubr.bf16.gmra.mxu0 %v429
      %v588 = vpop.f32.mrf.mxu0
      %v589 = vadd.f32 %v265, %v588
      %v590 = vpop.f32.mrf.mxu0
      %v591 = vadd.f32 %v265, %v590
      %v592 = vpop.f32.mrf.mxu0
      %v593 = vpop.f32.mrf.mxu0
      %594 = vdwg.mxu0
      %595 = vmatprep.subr.bf16.mxu0 0
      %596 = vmatpush1.bf16.msra.mxu0 0
      %597 = vmatprep.subr.bf16.mxu0 0
      %598 = vmatpush1.bf16.msra.mxu0 0
      %599 = vmatprep.subr.bf16.mxu0 0
      %600 = vmatpush1.bf16.msra.mxu0 0
      %601 = vmatprep.subr.bf16.mxu0 0
      %602 = vmatpush1.bf16.msra.mxu0 0
      %603 = vmatprep.subr.bf16.mxu0 0
      %604 = vmatpush1.bf16.msra.mxu0 0
      %605 = vmatprep.subr.bf16.mxu0 0
      %606 = vmatpush1.bf16.msra.mxu0 0
      %607 = vmatprep.subr.bf16.mxu0 %v388
      %608 = vmatpush1.bf16.msra.mxu0 %v387
      %609 = vmatprep.subr.bf16.mxu0 %v372
      %610 = vmatpush1.bf16.msra.mxu0 %v371
      %611 = vmatprep.subr.bf16.mxu0 0
      %612 = vmatpush2.bf16.msra.mxu0 0
      %613 = vmatprep.subr.bf16.mxu0 0
      %614 = vmatpush2.bf16.msra.mxu0 0
      %615 = vmatprep.subr.bf16.mxu0 0
      %616 = vmatpush2.bf16.msra.mxu0 0
      %617 = vmatprep.subr.bf16.mxu0 0
      %618 = vmatpush2.bf16.msra.mxu0 0
      %619 = vmatprep.subr.bf16.mxu0 0
      %620 = vmatpush2.bf16.msra.mxu0 0
      %621 = vmatprep.subr.bf16.mxu0 0
      %622 = vmatpush2.bf16.msra.mxu0 0
      %623 = vmatprep.subr.bf16.mxu0 0
      %624 = vmatpush2.bf16.msra.mxu0 0
      %625 = vmatprep.subr.bf16.mxu0 0
      %626 = vmatpush2.bf16.msra.mxu0 0
      %627 = vmatprep.mubr.bf16.mxu0 0
      %628 = vmatmul.mubr.bf16.gmra.mxu0 %v429
      %v629 = vpop.f32.mrf.mxu0
      %v630 = vadd.f32 %v265, %v629
      %v631 = vpop.f32.mrf.mxu0
      %v632 = vadd.f32 %v265, %v631
      %v633 = vpop.f32.mrf.mxu0
      %v634 = vpop.f32.mrf.mxu0
      %635 = vdwg.mxu0
      %636 = vmatprep.subr.bf16.mxu0 0
      %637 = vmatpush1.bf16.msra.mxu0 0
      %638 = vmatprep.subr.bf16.mxu0 0
      %639 = vmatpush1.bf16.msra.mxu0 0
      %640 = vmatprep.subr.bf16.mxu0 0
      %641 = vmatpush1.bf16.msra.mxu0 0
      %642 = vmatprep.subr.bf16.mxu0 0
      %643 = vmatpush1.bf16.msra.mxu0 0
      %644 = vmatprep.subr.bf16.mxu0 0
      %645 = vmatpush1.bf16.msra.mxu0 0
      %646 = vmatprep.subr.bf16.mxu0 0
      %647 = vmatpush1.bf16.msra.mxu0 0
      %648 = vmatprep.subr.bf16.mxu0 %v390
      %649 = vmatpush1.bf16.msra.mxu0 %v389
      %650 = vmatprep.subr.bf16.mxu0 %v374
      %651 = vmatpush1.bf16.msra.mxu0 %v373
      %652 = vmatprep.subr.bf16.mxu0 0
      %653 = vmatpush2.bf16.msra.mxu0 0
      %654 = vmatprep.subr.bf16.mxu0 0
      %655 = vmatpush2.bf16.msra.mxu0 0
      %656 = vmatprep.subr.bf16.mxu0 0
      %657 = vmatpush2.bf16.msra.mxu0 0
      %658 = vmatprep.subr.bf16.mxu0 0
      %659 = vmatpush2.bf16.msra.mxu0 0
      %660 = vmatprep.subr.bf16.mxu0 0
      %661 = vmatpush2.bf16.msra.mxu0 0
      %662 = vmatprep.subr.bf16.mxu0 0
      %663 = vmatpush2.bf16.msra.mxu0 0
      %664 = vmatprep.subr.bf16.mxu0 0
      %665 = vmatpush2.bf16.msra.mxu0 0
      %666 = vmatprep.subr.bf16.mxu0 0
      %667 = vmatpush2.bf16.msra.mxu0 0
      %668 = vmatprep.mubr.bf16.mxu0 0
      %669 = vmatmul.mubr.bf16.gmra.mxu0 %v429
      %v670 = vpop.f32.mrf.mxu0
      %v671 = vadd.f32 %v265, %v670
      %v672 = vpop.f32.mrf.mxu0
      %v673 = vadd.f32 %v265, %v672
      %v674 = vpop.f32.mrf.mxu0
      %v675 = vpop.f32.mrf.mxu0
      %676 = vdwg.mxu0
      %677 = vmatprep.subr.bf16.mxu0 0
      %678 = vmatpush1.bf16.msra.mxu0 0
      %679 = vmatprep.subr.bf16.mxu0 0
      %680 = vmatpush1.bf16.msra.mxu0 0
      %681 = vmatprep.subr.bf16.mxu0 0
      %682 = vmatpush1.bf16.msra.mxu0 0
      %683 = vmatprep.subr.bf16.mxu0 0
      %684 = vmatpush1.bf16.msra.mxu0 0
      %685 = vmatprep.subr.bf16.mxu0 0
      %686 = vmatpush1.bf16.msra.mxu0 0
      %687 = vmatprep.subr.bf16.mxu0 0
      %688 = vmatpush1.bf16.msra.mxu0 0
      %689 = vmatprep.subr.bf16.mxu0 %v392
      %690 = vmatpush1.bf16.msra.mxu0 %v391
      %691 = vmatprep.subr.bf16.mxu0 %v376
      %692 = vmatpush1.bf16.msra.mxu0 %v375
      %693 = vmatprep.subr.bf16.mxu0 0
      %694 = vmatpush2.bf16.msra.mxu0 0
      %695 = vmatprep.subr.bf16.mxu0 0
      %696 = vmatpush2.bf16.msra.mxu0 0
      %697 = vmatprep.subr.bf16.mxu0 0
      %698 = vmatpush2.bf16.msra.mxu0 0
      %699 = vmatprep.subr.bf16.mxu0 0
      %700 = vmatpush2.bf16.msra.mxu0 0
      %701 = vmatprep.subr.bf16.mxu0 0
      %702 = vmatpush2.bf16.msra.mxu0 0
      %703 = vmatprep.subr.bf16.mxu0 0
      %704 = vmatpush2.bf16.msra.mxu0 0
      %705 = vmatprep.subr.bf16.mxu0 0
      %706 = vmatpush2.bf16.msra.mxu0 0
      %707 = vmatprep.subr.bf16.mxu0 0
      %708 = vmatpush2.bf16.msra.mxu0 0
      %709 = vmatprep.mubr.bf16.mxu0 0
      %710 = vmatmul.mubr.bf16.gmra.mxu0 %v429
      %v711 = vpop.f32.mrf.mxu0
      %v712 = vadd.f32 %v265, %v711
      %v713 = vpop.f32.mrf.mxu0
      %v714 = vadd.f32 %v265, %v713
      %v715 = vpop.f32.mrf.mxu0
      %v716 = vpop.f32.mrf.mxu0
      %717 = vdwg.mxu0
      %718 = vmatprep.subr.bf16.mxu0 0
      %719 = vmatpush1.bf16.msra.mxu0 0
      %720 = vmatprep.subr.bf16.mxu0 0
      %721 = vmatpush1.bf16.msra.mxu0 0
      %722 = vmatprep.subr.bf16.mxu0 0
      %723 = vmatpush1.bf16.msra.mxu0 0
      %724 = vmatprep.subr.bf16.mxu0 0
      %725 = vmatpush1.bf16.msra.mxu0 0
      %726 = vmatprep.subr.bf16.mxu0 0
      %727 = vmatpush1.bf16.msra.mxu0 0
      %728 = vmatprep.subr.bf16.mxu0 0
      %729 = vmatpush1.bf16.msra.mxu0 0
      %730 = vmatprep.subr.bf16.mxu0 %v394
      %731 = vmatpush1.bf16.msra.mxu0 %v393
      %732 = vmatprep.subr.bf16.mxu0 %v378
      %733 = vmatpush1.bf16.msra.mxu0 %v377
      %734 = vmatprep.subr.bf16.mxu0 0
      %735 = vmatpush2.bf16.msra.mxu0 0
      %736 = vmatprep.subr.bf16.mxu0 0
      %737 = vmatpush2.bf16.msra.mxu0 0
      %738 = vmatprep.subr.bf16.mxu0 0
      %739 = vmatpush2.bf16.msra.mxu0 0
      %740 = vmatprep.subr.bf16.mxu0 0
      %741 = vmatpush2.bf16.msra.mxu0 0
      %742 = vmatprep.subr.bf16.mxu0 0
      %743 = vmatpush2.bf16.msra.mxu0 0
      %744 = vmatprep.subr.bf16.mxu0 0
      %745 = vmatpush2.bf16.msra.mxu0 0
      %746 = vmatprep.subr.bf16.mxu0 0
      %747 = vmatpush2.bf16.msra.mxu0 0
      %748 = vmatprep.subr.bf16.mxu0 0
      %749 = vmatpush2.bf16.msra.mxu0 0
      %750 = vmatprep.mubr.bf16.mxu0 0
      %751 = vmatmul.mubr.bf16.gmra.mxu0 %v429
      %v752 = vpop.f32.mrf.mxu0
      %v753 = vadd.f32 %v265, %v752
      %v754 = vpop.f32.mrf.mxu0
      %v755 = vadd.f32 %v265, %v754
      %v756 = vpop.f32.mrf.mxu0
      %v757 = vpop.f32.mrf.mxu0
      %758 = vdwg.mxu0
      %v759 = vtanh.pop %v466
      %v760 = vtanh.pop %v468
      %v761 = vtanh.pop %v507
      %v762 = vtanh.pop %v509
      %v763 = vtanh.pop %v548
      %v764 = vtanh.pop %v550
      %v765 = vtanh.pop %v589
      %v766 = vtanh.pop %v591
      %v767 = vtanh.pop %v630
      %v768 = vtanh.pop %v632
      %v769 = vtanh.pop %v671
      %v770 = vtanh.pop %v673
      %v771 = vtanh.pop %v712
      %v772 = vtanh.pop %v714
      %v773 = vtanh.pop %v753
      %v774 = vtanh.pop %v755
      %v791 = vcombine.low %v759, %v760
      %v792 = vcombine.low %v761, %v762
      %v793 = vcombine.low %v763, %v764
      %v794 = vcombine.low %v765, %v766
      %v795 = vcombine.low %v767, %v768
      %v796 = vcombine.low %v769, %v770
      %v797 = vcombine.low %v771, %v772
      %v798 = vcombine.low %v773, %v774
      %807 = vst [vmem:[%s225] sm:$0x77] %v791
      %808 = vst [vmem:[%s225 + $0x8] sm:$0x77] %v792
      %809 = vst [vmem:[%s225 + $0x10] sm:$0x77] %v793
      %810 = vst [vmem:[%s225 + $0x18] sm:$0x77] %v794
      %811 = vst [vmem:[%s225 + $0x20] sm:$0x77] %v795
      %812 = vst [vmem:[%s225 + $0x28] sm:$0x77] %v796
      %813 = vst [vmem:[%s225 + $0x30] sm:$0x77] %v797
      %814 = vst [vmem:[%s225 + $0x38] sm:$0x77] %v798
      %s815 = smul.u32 16, %s19
      %p816 = scmp.lt.s32.totalorder %s18, 3
      %s817 = scalar_select %p816, %s18, 3
      %p818 = scmp.lt.s32.totalorder %s815, 15
      %s819 = scalar_select %p818, %s815, 15
      %s820 = smul.addr %s817, 16
      %s821 = sadd.s32 %s819, %s820
      %s822 = smul.addr %s821, 4
      %s823 = scalar_lea.vmem %s3, %s822
      // Predicated region
      $region33: #{generator_forward.11} parent=31 // pred_check
        %p824 = pneg %p121
      $region34: #{generator_forward.11} parent=31 // pred_check_branch
        %826 = sbr.rel (%p824) target = $region36
      $region35: #{generator_forward.11} parent=31 // pred_region
        %s827 = smul.u32 16, %s19
      $region36: #{generator_forward.11} parent=31 // pred_fallthru
        _
    $region32: #{generator_forward.11} parent=5 // pred_fallthru
      _
    %p828 = scmp.le.s32.totalorder 2, %s9
    // Predicated region
    $region37: #{generator_forward.11} parent=5 // pred_check
      %p829 = pneg %p828
    $region38: #{generator_forward.11} parent=5 // pred_check_branch
      %831 = sbr.rel (%p829) target = $region40
    $region39: #{generator_forward.11} parent=5 // pred_region
      %s832 = ssub.s32 %s9, 2
      // Predicated region
      $region41: #{generator_forward.11} parent=39 // pred_check
        %p833 = pneg %p127
      $region42: #{generator_forward.11} parent=39 // pred_check_branch
        %835 = sbr.rel (%p833) target = $region44
      $region43: #{generator_forward.11} parent=39 // pred_region
        %s836 = smul.u32 16, %s21
        %p837 = scmp.lt.s32.totalorder %s20, 3
        %s838 = scalar_select %p837, %s20, 3
        %p839 = scmp.lt.s32.totalorder %s836, 15
        %s840 = scalar_select %p839, %s836, 15
        %s841 = smul.addr %s838, 16
        %s842 = sadd.s32 %s840, %s841
        %s843 = smul.addr %s842, 4
        %s844 = scalar_lea.vmem %s3, %s843
      $region44: #{generator_forward.11} parent=39 // pred_fallthru
        _
    $region40: #{generator_forward.11} parent=5 // pred_fallthru
      _
  $region6: #{generator_forward.11} parent=0 // loop_footer
    %s13 = sadd.s32 1, %s9
  $region7: #{generator_forward.11} parent=0 // loop_footer_branch
    %8 = sbr.rel target = $region3
  $region8: #{generator_forward.11} parent=0 // loop_exit
    _

</llo_original>
